<compile_context>
chip_gen: v7x
topology: tpu7x:2x2x1
jax: 0.10.0
libtpu: 0.0.40
codegen_flags: <defaults>
</compile_context>

<pallas_src>
import functools
import math

import jax
import jax.numpy as jnp
import numpy as np
from jax.experimental import pallas as pl
from jax.experimental.pallas import tpu as pltpu


def _round_up(x, m):
    return ((x + m - 1) // m) * m


def _num_tensorcores_per_chip():
    """2 TensorCores per chip on v7x; 1 on v5e/v6e.  Best-effort detection."""
    try:
        kind = jax.devices()[0].device_kind.lower()
    except Exception:
        return 1
    return 2 if ("v7" in kind or "7x" in kind) else 1


def _vmem_limit(buffer_bytes):
    """Scoped-VMEM limit: 2x the live blocks + margin, clamped to [32, 64] MiB
    so the same configuration also fits v7x's 64 MiB physical VMEM."""
    return int(min(max(2 * buffer_bytes + (4 << 20), 32 << 20), 64 << 20))


def _pick_tile(dim, preferred):
    """Pick a tile that divides `dim`.  Callers pad dims so the preferred tile
    (or the full extent for small dims) is always taken -- no silent collapse."""
    if dim <= preferred:
        return dim
    for c in (preferred, preferred // 2, 128, 64, 32, 16, 8):
        if c and dim % c == 0:
            return c
    return dim


# -----------------------------------------------------------------------------
# Kernel 1: time-parallel bias matmul   out[M, N] = x[M, K] @ w[K, N] + b[1, N]
# (used for both the input projection and the vocab/output projection)
# -----------------------------------------------------------------------------
def _matmul_bias_kernel(x_ref, w_ref, b_ref, o_ref):
    acc = jnp.dot(x_ref[...], w_ref[...], preferred_element_type=jnp.float32)
    o_ref[...] = (acc + b_ref[...]).astype(o_ref.dtype)


def matmul_bias(x, w, b, out_dtype=jnp.float32, *, tm=256, tn=512):
    M, K = x.shape
    K2, N = w.shape
    assert K == K2 and b.shape == (1, N)
    tm = _pick_tile(M, tm)           # M is a multiple of 256 (16*16 padding)
    tn = _pick_tile(N, tn)           # N is a multiple of 512 (4*H_pad / V_pad)
    assert M % tm == 0 and N % tn == 0, (M, tm, N, tn)

    block_bytes = 2 * (tm * K * x.dtype.itemsize                # x blocks
                       + K * tn * w.dtype.itemsize              # w blocks
                       + tn * b.dtype.itemsize                  # bias blocks
                       + tm * tn * jnp.dtype(out_dtype).itemsize)  # out blocks
    params = pltpu.CompilerParams(
        dimension_semantics=("parallel", "parallel"),
        vmem_limit_bytes=_vmem_limit(block_bytes))

    # Stream the larger operand from HBM exactly once: make its grid axis the
    # OUTER loop so its block index is constant across the whole inner sweep.
    weight_major = (K * N * w.dtype.itemsize) > (M * K * x.dtype.itemsize)
    if weight_major:
        grid = (N // tn, M // tm)
        in_specs = [
            pl.BlockSpec((tm, K), lambda n, m: (m, 0)),
            pl.BlockSpec((K, tn), lambda n, m: (0, n)),
            pl.BlockSpec((1, tn), lambda n, m: (0, n)),
        ]
        out_spec = pl.BlockSpec((tm, tn), lambda n, m: (m, n))
    else:
        grid = (M // tm, N // tn)
        in_specs = [
            pl.BlockSpec((tm, K), lambda m, n: (m, 0)),
            pl.BlockSpec((K, tn), lambda m, n: (0, n)),
            pl.BlockSpec((1, tn), lambda m, n: (0, n)),
        ]
        out_spec = pl.BlockSpec((tm, tn), lambda m, n: (m, n))

    return pl.pallas_call(
        _matmul_bias_kernel,
        out_shape=jax.ShapeDtypeStruct((M, N), out_dtype),
        grid_spec=pltpu.PrefetchScalarGridSpec(
            num_scalar_prefetch=0,
            grid=grid,
            in_specs=in_specs,
            out_specs=out_spec,
        ),
        compiler_params=params,
    )(x, w, b)


# -----------------------------------------------------------------------------
# Kernel 2: recurrent LSTM core.  grid = (batch_blocks, time_blocks);
# each grid step advances TT timesteps; h (bf16) / c (f32) live in VMEM scratch.
# -----------------------------------------------------------------------------
def _lstm_recurrent_kernel(gx_ref, whh_ref, hout_ref, h_ref, c_ref):
    TT = gx_ref.shape[0]          # timesteps in this block (static)
    H = h_ref.shape[1]            # padded hidden size (multiple of 128)

    @pl.when(pl.program_id(1) == 0)   # first time block of this batch block
    def _():
        h_ref[...] = jnp.zeros_like(h_ref)
        c_ref[...] = jnp.zeros_like(c_ref)

    def step(i, carry):
        h = h_ref[...]                       # bf16, used directly as MXU LHS
        c = c_ref[...]                       # f32 accumulator state
        # Single small recurrent matmul per step (x-projection was hoisted).
        gates = gx_ref[i].astype(jnp.float32) + jnp.dot(
            h, whh_ref[...], preferred_element_type=jnp.float32)
        # Gate slices are 128-lane aligned (H padded to a multiple of 128).
        i_g = jax.nn.sigmoid(gates[:, 0 * H:1 * H])
        f_g = jax.nn.sigmoid(gates[:, 1 * H:2 * H])
        g_g = jnp.tanh(gates[:, 2 * H:3 * H])
        o_g = jax.nn.sigmoid(gates[:, 3 * H:4 * H])
        c_new = f_g * c + i_g * g_g
        h_new = (o_g * jnp.tanh(c_new)).astype(jnp.bfloat16)
        c_ref[...] = c_new
        h_ref[...] = h_new
        hout_ref[i] = h_new
        return carry

    # TODO(synk): for large H (>=1024) chunk the gate math along H or lower the
    # unroll factor to bound vreg pressure (gates are ~32 vregs at H_pad=1024).
    jax.lax.fori_loop(0, TT, step, 0, unroll=True)


# -----------------------------------------------------------------------------
# Parameter prep: pad H/V to lane multiples, pre-transpose, cast to bf16.
# Gate order is PyTorch's (i, f, g, o); each gate's H axis is padded so the
# in-kernel gate slices land on 128-lane boundaries.  Call ONCE outside jit.
# -----------------------------------------------------------------------------
def prepare_kernel_params(params, H_pad, V_pad):
    H = params["w_hh"].shape[1]
    V = params["w_out"].shape[0]

    def pad_gate_axis(w):                                   # (4H, X) -> (4*H_pad, X)
        x_dim = w.shape[1]
        w4 = w.reshape(4, H, x_dim)
        w4 = jnp.pad(w4, ((0, 0), (0, H_pad - H), (0, 0)))
        return w4.reshape(4 * H_pad, x_dim)

    w_ih = pad_gate_axis(params["w_ih"])                    # (4H_pad, E)
    w_hh = pad_gate_axis(params["w_hh"])                    # (4H_pad, H)
    w_hh = jnp.pad(w_hh, ((0, 0), (0, H_pad - H)))          # (4H_pad, H_pad)
    b = (params["b_ih"] + params["b_hh"]).reshape(4, H)
    b = jnp.pad(b, ((0, 0), (0, H_pad - H))).reshape(1, 4 * H_pad)
    w_out = jnp.pad(params["w_out"], ((0, V_pad - V), (0, H_pad - H)))
    b_out = jnp.pad(params["b_out"], (0, V_pad - V)).reshape(1, V_pad)

    return {
        "emb_table": params["emb_table"].astype(jnp.bfloat16),  # (V, E)
        "wih_t": w_ih.T.astype(jnp.bfloat16),                   # (E, 4H_pad)
        "whh_t": w_hh.T.astype(jnp.bfloat16),                   # (H_pad, 4H_pad)
        "b": b.astype(jnp.float32),                             # (1, 4H_pad)
        "wout_t": w_out.T.astype(jnp.bfloat16),                 # (H_pad, V_pad)
        "bout": b_out.astype(jnp.float32),                      # (1, V_pad)
    }


def lm_lstm_forward(input_ids, kp, *, vocab_size, time_block=16):
    """Full forward pass of LM_LSTM (eval mode). Returns (B, V, T) f32 logits."""
    B, T = input_ids.shape
    E = kp["emb_table"].shape[1]
    H_pad = kp["whh_t"].shape[0]
    V_pad = kp["wout_t"].shape[1]

    B_pad = _round_up(B, 16)          # bf16 packs two rows per sublane
    TT = max(16, time_block)          # timesteps per grid iteration
    T_pad = _round_up(T, TT)          # padded tail timesteps are causally inert

    # Embedding gather directly in (T, B, E) order; eval-mode dropout = id.
    x_tbe = kp["emb_table"][input_ids.T]                       # (T, B, E) bf16
    x_tbe = jnp.pad(x_tbe, ((0, T_pad - T), (0, B_pad - B), (0, 0)))
    # NOTE: padded batch rows still receive the bias -> wasted (correct) work.

    # (1) Time-parallel input projection; gates_x kept bf16 to halve the HBM
    #     write+read stream feeding the recurrence.
    gates_x = matmul_bias(x_tbe.reshape(T_pad * B_pad, E), kp["wih_t"],
                          kp["b"], out_dtype=jnp.bfloat16)
    gates_x = gates_x.reshape(T_pad, B_pad, 4 * H_pad)

    # (2) Sequential recurrence.  Split the batch only when there are >= 2
    #     TensorCores (v7x); on 1-TC chips splitting just doubles serial steps.
    n_tc = _num_tensorcores_per_chip()
    if n_tc >= 2 and B_pad % (16 * n_tc) == 0:
        BB = B_pad // n_tc
    else:
        BB = B_pad

    rec_vmem = (H_pad * 4 * H_pad * 2                 # W_hh, single-buffered
                + 2 * TT * BB * 4 * H_pad * 2         # gx blocks (bf16, x2)
                + 2 * TT * BB * H_pad * 2             # hout blocks (bf16, x2)
                + BB * H_pad * (2 + 4))               # h (bf16) + c (f32)

    h_seq = pl.pallas_call(
        _lstm_recurrent_kernel,
        out_shape=jax.ShapeDtypeStruct((T_pad, B_pad, H_pad), jnp.bfloat16),
        grid_spec=pltpu.PrefetchScalarGridSpec(
            num_scalar_prefetch=0,
            grid=(B_pad // BB, T_pad // TT),
            in_specs=[
                pl.BlockSpec((TT, BB, 4 * H_pad), lambda b, t: (t, b, 0)),
                # W_hh: constant index_map -> single buffer (no VMEM waste).
                pl.BlockSpec((H_pad, 4 * H_pad), lambda b, t: (0, 0),
                             pipeline_mode=pl.Buffered(1)),
            ],
            out_specs=pl.BlockSpec((TT, BB, H_pad), lambda b, t: (t, b, 0)),
            scratch_shapes=[
                pltpu.VMEM((BB, H_pad), jnp.bfloat16),   # h state
                pltpu.VMEM((BB, H_pad), jnp.float32),    # c state
            ],
        ),
        compiler_params=pltpu.CompilerParams(
            dimension_semantics=("parallel", "arbitrary"),
            vmem_limit_bytes=_vmem_limit(rec_vmem)),
    )(gates_x, kp["whh_t"])

    # (3) Time-parallel, V-tiled output projection (big weight streamed once).
    logits = matmul_bias(h_seq.reshape(T_pad * B_pad, H_pad),
                         kp["wout_t"], kp["bout"], out_dtype=jnp.float32)
    logits = logits.reshape(T_pad, B_pad, V_pad)[:T, :B, :vocab_size]

    # (T, B, V) -> (B, V, T)  == PyTorch output.permute(0, 2, 1).
    # TODO(synk): for T >= 128 fuse this permute into the projection out_specs.
    return jnp.transpose(logits, (1, 2, 0))


# -----------------------------------------------------------------------------
# Pure-JAX f32 reference (lax.scan) for correctness check.
# -----------------------------------------------------------------------------
def reference_forward(input_ids, params):
    H = params["w_hh"].shape[1]
    emb = params["emb_table"][input_ids].astype(jnp.float32)   # (B, T, E)
    x_tbe = jnp.transpose(emb, (1, 0, 2))                       # (T, B, E)
    B = x_tbe.shape[1]
    wih_t = params["w_ih"].T
    whh_t = params["w_hh"].T
    b = (params["b_ih"] + params["b_hh"]).reshape(1, -1)
    wout_t = params["w_out"].T
    bout = params["b_out"].reshape(1, -1)

    def step(carry, x_t):
        h, c = carry
        gates = x_t @ wih_t + h @ whh_t + b
        i = jax.nn.sigmoid(gates[:, 0 * H:1 * H])
        f = jax.nn.sigmoid(gates[:, 1 * H:2 * H])
        g = jnp.tanh(gates[:, 2 * H:3 * H])
        o = jax.nn.sigmoid(gates[:, 3 * H:4 * H])
        c = f * c + i * g
        h = o * jnp.tanh(c)
        return (h, c), h

    init = (jnp.zeros((B, H), jnp.float32), jnp.zeros((B, H), jnp.float32))
    _, hs = jax.lax.scan(step, init, x_tbe)                     # (T, B, H)
    logits = hs @ wout_t + bout                                 # (T, B, V)
    return jnp.transpose(logits, (1, 2, 0))                     # (B, V, T)


def init_params(key, emb_size, hidden_size, output_size, pad_index=0):
    ks = jax.random.split(key, 7)
    E, H, V = emb_size, hidden_size, output_size
    emb_table = 0.1 * jax.random.normal(ks[0], (V, E), jnp.float32)
    emb_table = emb_table.at[pad_index].set(0.0)        # padding_idx row
    return {
        "emb_table": emb_table,                                      # (V, E)
        "w_ih": 0.1 * jax.random.normal(ks[1], (4 * H, E), jnp.float32),
        "w_hh": 0.1 * jax.random.normal(ks[2], (4 * H, H), jnp.float32),
        "b_ih": 0.1 * jax.random.normal(ks[3], (4 * H,), jnp.float32),
        "b_hh": 0.1 * jax.random.normal(ks[4], (4 * H,), jnp.float32),
        "w_out": 0.1 * jax.random.normal(ks[5], (V, H), jnp.float32),
        "b_out": 0.1 * jax.random.normal(ks[6], (V,), jnp.float32),
    }


if __name__ == "__main__":
    B, T = 2, 16           # batch, sequence length
    E, H, V = 32, 32, 64   # emb_size, hidden_size, output_size (vocab)

    key = jax.random.PRNGKey(0)
    k_par, k_ids = jax.random.split(key)
    params = init_params(k_par, E, H, V, pad_index=0)
    input_ids = jax.random.randint(k_ids, (B, T), 0, V, dtype=jnp.int32)

    # One-time parameter prep (padding / transpose / bf16 cast) outside the
    # per-call jitted forward.
    H_pad = _round_up(H, 128)
    V_pad = _round_up(V, 512)
    kp = jax.block_until_ready(prepare_kernel_params(params, H_pad, V_pad))

    fwd = jax.jit(functools.partial(lm_lstm_forward, vocab_size=V,
                                    time_block=16))
    out = jax.block_until_ready(fwd(input_ids, kp))
    ref = jax.block_until_ready(reference_forward(input_ids, params))

    assert out.shape == (B, V, T), out.shape
    # bf16 MXU inputs / bf16 gates_x and h streams (f32 accumulation, f32 c)
    # vs f32 reference.
    np.testing.assert_allclose(np.asarray(out), np.asarray(ref),
                               rtol=2e-2, atol=2e-2)
    print("KERNEL_OK")
</pallas_src>

<mosaic_0001>
module attributes {stable_mosaic.version = 11 : i64} {
  func.func @_matmul_bias_kernel(%arg0: i32, %arg1: i32, %arg2: memref<256x32xbf16, #tpu.memory_space<vmem>>, %arg3: memref<32x512xbf16, #tpu.memory_space<vmem>>, %arg4: memref<1x512xf32, #tpu.memory_space<vmem>>, %arg5: memref<256x512xbf16, #tpu.memory_space<vmem>>) attributes {dimension_semantics = [#tpu.dimension_semantics<parallel>, #tpu.dimension_semantics<parallel>], iteration_bounds = array<i64: 1, 1>, scalar_prefetch = 0 : i64, scratch_operands = 0 : i64, tpu.core_type = #tpu.core_type<tc>, window_params = [{transform_indices = @transform_0, window_bounds = array<i64: 256, 32>}, {transform_indices = @transform_1, window_bounds = array<i64: 32, 512>}, {transform_indices = @transform_2, window_bounds = array<i64: 1, 512>}, {transform_indices = @transform_3, window_bounds = array<i64: 256, 512>}]} {
    %c0 = arith.constant 0 : index
    %c0_0 = arith.constant 0 : index
    %0 = vector.load %arg2[%c0, %c0_0] : memref<256x32xbf16, #tpu.memory_space<vmem>>, vector<256x32xbf16>
    %c0_1 = arith.constant 0 : index
    %c0_2 = arith.constant 0 : index
    %1 = vector.load %arg3[%c0_1, %c0_2] : memref<32x512xbf16, #tpu.memory_space<vmem>>, vector<32x512xbf16>
    %cst = arith.constant dense<0.000000e+00> : vector<256x512xf32>
    %2 = tpu.matmul %0, %1, %cst {dimension_numbers = #tpu.dot_dimension_numbers<[1], [0], [0], [1], [0, 0, 1, 1], [], []>} : vector<256x32xbf16>, vector<32x512xbf16>, vector<256x512xf32> -> vector<256x512xf32>
    %c0_3 = arith.constant 0 : index
    %c0_4 = arith.constant 0 : index
    %3 = vector.load %arg4[%c0_3, %c0_4] : memref<1x512xf32, #tpu.memory_space<vmem>>, vector<1x512xf32>
    %4 = vector.broadcast %3 : vector<1x512xf32> to vector<256x512xf32>
    %5 = arith.addf %2, %4 : vector<256x512xf32>
    %6 = arith.truncf %5 : vector<256x512xf32> to vector<256x512xbf16>
    %c0_5 = arith.constant 0 : index
    %c0_6 = arith.constant 0 : index
    %7 = vector.load %arg5[%c0_5, %c0_6] : memref<256x512xbf16, #tpu.memory_space<vmem>>, vector<256x512xbf16>
    tpu.vector_store %arg5[%c0_5, %c0_6], %6 {strides = array<i32>} : memref<256x512xbf16, #tpu.memory_space<vmem>>, vector<256x512xbf16>,
    return
  }
  func.func @transform_0(%arg0: i32, %arg1: i32) -> (i32, i32) {
    %c0_i32 = arith.constant 0 : i32
    %c0_i32_0 = arith.constant 0 : i32
    return %arg1, %c0_i32 : i32, i32
  }
  func.func @transform_1(%arg0: i32, %arg1: i32) -> (i32, i32) {
    %c0_i32 = arith.constant 0 : i32
    %c0_i32_0 = arith.constant 0 : i32
    return %c0_i32, %arg0 : i32, i32
  }
  func.func @transform_2(%arg0: i32, %arg1: i32) -> (i32, i32) {
    %c0_i32 = arith.constant 0 : i32
    %c0_i32_0 = arith.constant 0 : i32
    return %c0_i32, %arg0 : i32, i32
  }
  func.func @transform_3(%arg0: i32, %arg1: i32) -> (i32, i32) {
    %c0_i32 = arith.constant 0 : i32
    return %arg1, %arg0 : i32, i32
  }
}

module attributes {stable_mosaic.version = 11 : i64} {
  func.func @_matmul_bias_kernel(%arg0: i32, %arg1: i32, %arg2: memref<256x128xbf16, #tpu.memory_space<vmem>>, %arg3: memref<128x512xbf16, #tpu.memory_space<vmem>>, %arg4: memref<1x512xf32, #tpu.memory_space<vmem>>, %arg5: memref<256x512xf32, #tpu.memory_space<vmem>>) attributes {dimension_semantics = [#tpu.dimension_semantics<parallel>, #tpu.dimension_semantics<parallel>], iteration_bounds = array<i64: 1, 1>, scalar_prefetch = 0 : i64, scratch_operands = 0 : i64, tpu.core_type = #tpu.core_type<tc>, window_params = [{transform_indices = @transform_0, window_bounds = array<i64: 256, 128>}, {transform_indices = @transform_1, window_bounds = array<i64: 128, 512>}, {transform_indices = @transform_2, window_bounds = array<i64: 1, 512>}, {transform_indices = @transform_3, window_bounds = array<i64: 256, 512>}]} {
    %c0 = arith.constant 0 : index
    %c0_0 = arith.constant 0 : index
    %0 = vector.load %arg2[%c0, %c0_0] : memref<256x128xbf16, #tpu.memory_space<vmem>>, vector<256x128xbf16>
    %c0_1 = arith.constant 0 : index
    %c0_2 = arith.constant 0 : index
    %1 = vector.load %arg3[%c0_1, %c0_2] : memref<128x512xbf16, #tpu.memory_space<vmem>>, vector<128x512xbf16>
    %cst = arith.constant dense<0.000000e+00> : vector<256x512xf32>
    %2 = tpu.matmul %0, %1, %cst {dimension_numbers = #tpu.dot_dimension_numbers<[1], [0], [0], [1], [0, 0, 1, 1], [], []>} : vector<256x128xbf16>, vector<128x512xbf16>, vector<256x512xf32> -> vector<256x512xf32>
    %c0_3 = arith.constant 0 : index
    %c0_4 = arith.constant 0 : index
    %3 = vector.load %arg4[%c0_3, %c0_4] : memref<1x512xf32, #tpu.memory_space<vmem>>, vector<1x512xf32>
    %4 = vector.broadcast %3 : vector<1x512xf32> to vector<256x512xf32>
    %5 = arith.addf %2, %4 : vector<256x512xf32>
    %c0_5 = arith.constant 0 : index
    %c0_6 = arith.constant 0 : index
    %6 = vector.load %arg5[%c0_5, %c0_6] : memref<256x512xf32, #tpu.memory_space<vmem>>, vector<256x512xf32>
    tpu.vector_store %arg5[%c0_5, %c0_6], %5 {strides = array<i32>} : memref<256x512xf32, #tpu.memory_space<vmem>>, vector<256x512xf32>,
    return
  }
  func.func @transform_0(%arg0: i32, %arg1: i32) -> (i32, i32) {
    %c0_i32 = arith.constant 0 : i32
    %c0_i32_0 = arith.constant 0 : i32
    return %arg1, %c0_i32 : i32, i32
  }
  func.func @transform_1(%arg0: i32, %arg1: i32) -> (i32, i32) {
    %c0_i32 = arith.constant 0 : i32
    %c0_i32_0 = arith.constant 0 : i32
    return %c0_i32, %arg0 : i32, i32
  }
  func.func @transform_2(%arg0: i32, %arg1: i32) -> (i32, i32) {
    %c0_i32 = arith.constant 0 : i32
    %c0_i32_0 = arith.constant 0 : i32
    return %c0_i32, %arg0 : i32, i32
  }
  func.func @transform_3(%arg0: i32, %arg1: i32) -> (i32, i32) {
    %c0_i32 = arith.constant 0 : i32
    return %arg1, %arg0 : i32, i32
  }
}

module attributes {stable_mosaic.version = 11 : i64} {
  func.func @_lstm_recurrent_kernel(%arg0: i32, %arg1: i32, %arg2: memref<16x16x512xbf16, #tpu.memory_space<vmem>>, %arg3: memref<128x512xbf16, #tpu.memory_space<vmem>>, %arg4: memref<16x16x128xbf16, #tpu.memory_space<vmem>>, %arg5: memref<16x128xbf16, #tpu.memory_space<vmem>>, %arg6: memref<16x128xf32, #tpu.memory_space<vmem>>) attributes {dimension_semantics = [#tpu.dimension_semantics<parallel>, #tpu.dimension_semantics<arbitrary>], iteration_bounds = array<i64: 1, 1>, scalar_prefetch = 0 : i64, scratch_operands = 2 : i64, tpu.core_type = #tpu.core_type<tc>, window_params = [{transform_indices = @transform_0, window_bounds = array<i64: 16, 16, 512>}, {pipeline_mode = #tpu.pipeline_mode<synchronous>, transform_indices = @transform_1, window_bounds = array<i64: 128, 512>}, {transform_indices = @transform_2, window_bounds = array<i64: 16, 16, 128>}]} {
    %c0_i32 = arith.constant 0 : i32
    %0 = arith.cmpi eq, %arg1, %c0_i32 : i32
    %1 = arith.extui %0 : i1 to i32
    %c0_i32_0 = arith.constant 0 : i32
    %2 = arith.cmpi ne, %1, %c0_i32_0 : i32
    scf.if %2 {
      %cst_288 = arith.constant 0.000000e+00 : bf16
      %659 = vector.broadcast %cst_288 : bf16 to vector<16x128xbf16>
      %c0_289 = arith.constant 0 : index
      %c0_290 = arith.constant 0 : index
      %660 = vector.load %arg5[%c0_289, %c0_290] : memref<16x128xbf16, #tpu.memory_space<vmem>>, vector<16x128xbf16>
      tpu.vector_store %arg5[%c0_289, %c0_290], %659 {strides = array<i32>} : memref<16x128xbf16, #tpu.memory_space<vmem>>, vector<16x128xbf16>,
      %cst_291 = arith.constant 0.000000e+00 : f32
      %661 = vector.broadcast %cst_291 : f32 to vector<16x128xf32>
      %c0_292 = arith.constant 0 : index
      %c0_293 = arith.constant 0 : index
      %662 = vector.load %arg6[%c0_292, %c0_293] : memref<16x128xf32, #tpu.memory_space<vmem>>, vector<16x128xf32>
      tpu.vector_store %arg6[%c0_292, %c0_293], %661 {strides = array<i32>} : memref<16x128xf32, #tpu.memory_space<vmem>>, vector<16x128xf32>,
    } else {
    }
    %c0_i32_1 = arith.constant 0 : i32
    %c0 = arith.constant 0 : index
    %c0_2 = arith.constant 0 : index
    %3 = vector.load %arg5[%c0, %c0_2] : memref<16x128xbf16, #tpu.memory_space<vmem>>, vector<16x128xbf16>
    %c0_3 = arith.constant 0 : index
    %c0_4 = arith.constant 0 : index
    %4 = vector.load %arg6[%c0_3, %c0_4] : memref<16x128xf32, #tpu.memory_space<vmem>>, vector<16x128xf32>
    %5 = arith.index_cast %c0_i32_1 : i32 to index
    %c0_5 = arith.constant 0 : index
    %c0_6 = arith.constant 0 : index
    %6 = vector.load %arg2[%5, %c0_5, %c0_6] : memref<16x16x512xbf16, #tpu.memory_space<vmem>>, vector<1x16x512xbf16>
    %7 = vector.shape_cast %6 : vector<1x16x512xbf16> to vector<16x512xbf16>
    %8 = arith.extf %7 : vector<16x512xbf16> to vector<16x512xf32>
    %c0_7 = arith.constant 0 : index
    %c0_8 = arith.constant 0 : index
    %9 = vector.load %arg3[%c0_7, %c0_8] : memref<128x512xbf16, #tpu.memory_space<vmem>>, vector<128x512xbf16>
    %cst = arith.constant dense<0.000000e+00> : vector<16x512xf32>
    %10 = tpu.matmul %3, %9, %cst {dimension_numbers = #tpu.dot_dimension_numbers<[1], [0], [0], [1], [0, 0, 1, 1], [], []>} : vector<16x128xbf16>, vector<128x512xbf16>, vector<16x512xf32> -> vector<16x512xf32>
    %11 = arith.addf %8, %10 : vector<16x512xf32>
    %12 = vector.extract_strided_slice %11 {offsets = [0, 0], sizes = [16, 128], strides = [1, 1]} : vector<16x512xf32> to vector<16x128xf32>
    %13 = arith.negf %12 : vector<16x128xf32>
    %14 = math.exp %13 : vector<16x128xf32>
    %cst_9 = arith.constant 1.000000e+00 : f32
    %15 = vector.broadcast %cst_9 : f32 to vector<16x128xf32>
    %16 = arith.addf %15, %14 : vector<16x128xf32>
    %17 = arith.divf %15, %16 : vector<16x128xf32>
    %18 = vector.extract_strided_slice %11 {offsets = [0, 128], sizes = [16, 128], strides = [1, 1]} : vector<16x512xf32> to vector<16x128xf32>
    %19 = arith.negf %18 : vector<16x128xf32>
    %20 = math.exp %19 : vector<16x128xf32>
    %cst_10 = arith.constant 1.000000e+00 : f32
    %21 = vector.broadcast %cst_10 : f32 to vector<16x128xf32>
    %22 = arith.addf %21, %20 : vector<16x128xf32>
    %23 = arith.divf %21, %22 : vector<16x128xf32>
    %24 = vector.extract_strided_slice %11 {offsets = [0, 256], sizes = [16, 128], strides = [1, 1]} : vector<16x512xf32> to vector<16x128xf32>
    %25 = math.tanh %24 : vector<16x128xf32>
    %26 = vector.extract_strided_slice %11 {offsets = [0, 384], sizes = [16, 128], strides = [1, 1]} : vector<16x512xf32> to vector<16x128xf32>
    %27 = arith.negf %26 : vector<16x128xf32>
    %28 = math.exp %27 : vector<16x128xf32>
    %cst_11 = arith.constant 1.000000e+00 : f32
    %29 = vector.broadcast %cst_11 : f32 to vector<16x128xf32>
    %30 = arith.addf %29, %28 : vector<16x128xf32>
    %31 = arith.divf %29, %30 : vector<16x128xf32>
    %32 = arith.mulf %23, %4 : vector<16x128xf32>
    %33 = arith.mulf %17, %25 : vector<16x128xf32>
    %34 = arith.addf %32, %33 : vector<16x128xf32>
    %35 = math.tanh %34 : vector<16x128xf32>
    %36 = arith.mulf %31, %35 : vector<16x128xf32>
    %37 = arith.truncf %36 : vector<16x128xf32> to vector<16x128xbf16>
    %c0_12 = arith.constant 0 : index
    %c0_13 = arith.constant 0 : index
    %38 = vector.load %arg6[%c0_12, %c0_13] : memref<16x128xf32, #tpu.memory_space<vmem>>, vector<16x128xf32>
    tpu.vector_store %arg6[%c0_12, %c0_13], %34 {strides = array<i32>} : memref<16x128xf32, #tpu.memory_space<vmem>>, vector<16x128xf32>,
    %c0_14 = arith.constant 0 : index
    %c0_15 = arith.constant 0 : index
    %39 = vector.load %arg5[%c0_14, %c0_15] : memref<16x128xbf16, #tpu.memory_space<vmem>>, vector<16x128xbf16>
    tpu.vector_store %arg5[%c0_14, %c0_15], %37 {strides = array<i32>} : memref<16x128xbf16, #tpu.memory_space<vmem>>, vector<16x128xbf16>,
    %40 = arith.index_cast %c0_i32_1 : i32 to index
    %c0_16 = arith.constant 0 : index
    %c0_17 = arith.constant 0 : index
    %41 = vector.load %arg4[%40, %c0_16, %c0_17] : memref<16x16x128xbf16, #tpu.memory_space<vmem>>, vector<1x16x128xbf16>
    %42 = vector.shape_cast %41 : vector<1x16x128xbf16> to vector<16x128xbf16>
    %43 = vector.shape_cast %37 : vector<16x128xbf16> to vector<1x16x128xbf16>
    tpu.vector_store %arg4[%40, %c0_16, %c0_17], %43 {strides = array<i32>} : memref<16x16x128xbf16, #tpu.memory_space<vmem>>, vector<1x16x128xbf16>,
    %c1_i32 = arith.constant 1 : i32
    %c0_18 = arith.constant 0 : index
    %c0_19 = arith.constant 0 : index
    %44 = vector.load %arg5[%c0_18, %c0_19] : memref<16x128xbf16, #tpu.memory_space<vmem>>, vector<16x128xbf16>
    %c0_20 = arith.constant 0 : index
    %c0_21 = arith.constant 0 : index
    %45 = vector.load %arg6[%c0_20, %c0_21] : memref<16x128xf32, #tpu.memory_space<vmem>>, vector<16x128xf32>
    %46 = arith.index_cast %c1_i32 : i32 to index
    %c0_22 = arith.constant 0 : index
    %c0_23 = arith.constant 0 : index
    %47 = vector.load %arg2[%46, %c0_22, %c0_23] : memref<16x16x512xbf16, #tpu.memory_space<vmem>>, vector<1x16x512xbf16>
    %48 = vector.shape_cast %47 : vector<1x16x512xbf16> to vector<16x512xbf16>
    %49 = arith.extf %48 : vector<16x512xbf16> to vector<16x512xf32>
    %c0_24 = arith.constant 0 : index
    %c0_25 = arith.constant 0 : index
    %50 = vector.load %arg3[%c0_24, %c0_25] : memref<128x512xbf16, #tpu.memory_space<vmem>>, vector<128x512xbf16>
    %cst_26 = arith.constant dense<0.000000e+00> : vector<16x512xf32>
    %51 = tpu.matmul %44, %50, %cst_26 {dimension_numbers = #tpu.dot_dimension_numbers<[1], [0], [0], [1], [0, 0, 1, 1], [], []>} : vector<16x128xbf16>, vector<128x512xbf16>, vector<16x512xf32> -> vector<16x512xf32>
    %52 = arith.addf %49, %51 : vector<16x512xf32>
    %53 = vector.extract_strided_slice %52 {offsets = [0, 0], sizes = [16, 128], strides = [1, 1]} : vector<16x512xf32> to vector<16x128xf32>
    %54 = arith.negf %53 : vector<16x128xf32>
    %55 = math.exp %54 : vector<16x128xf32>
    %cst_27 = arith.constant 1.000000e+00 : f32
    %56 = vector.broadcast %cst_27 : f32 to vector<16x128xf32>
    %57 = arith.addf %56, %55 : vector<16x128xf32>
    %58 = arith.divf %56, %57 : vector<16x128xf32>
    %59 = vector.extract_strided_slice %52 {offsets = [0, 128], sizes = [16, 128], strides = [1, 1]} : vector<16x512xf32> to vector<16x128xf32>
    %60 = arith.negf %59 : vector<16x128xf32>
    %61 = math.exp %60 : vector<16x128xf32>
    %cst_28 = arith.constant 1.000000e+00 : f32
    %62 = vector.broadcast %cst_28 : f32 to vector<16x128xf32>
    %63 = arith.addf %62, %61 : vector<16x128xf32>
    %64 = arith.divf %62, %63 : vector<16x128xf32>
    %65 = vector.extract_strided_slice %52 {offsets = [0, 256], sizes = [16, 128], strides = [1, 1]} : vector<16x512xf32> to vector<16x128xf32>
    %66 = math.tanh %65 : vector<16x128xf32>
    %67 = vector.extract_strided_slice %52 {offsets = [0, 384], sizes = [16, 128], strides = [1, 1]} : vector<16x512xf32> to vector<16x128xf32>
    %68 = arith.negf %67 : vector<16x128xf32>
    %69 = math.exp %68 : vector<16x128xf32>
    %cst_29 = arith.constant 1.000000e+00 : f32
    %70 = vector.broadcast %cst_29 : f32 to vector<16x128xf32>
    %71 = arith.addf %70, %69 : vector<16x128xf32>
    %72 = arith.divf %70, %71 : vector<16x128xf32>
    %73 = arith.mulf %64, %45 : vector<16x128xf32>
    %74 = arith.mulf %58, %66 : vector<16x128xf32>
    %75 = arith.addf %73, %74 : vector<16x128xf32>
    %76 = math.tanh %75 : vector<16x128xf32>
    %77 = arith.mulf %72, %76 : vector<16x128xf32>
    %78 = arith.truncf %77 : vector<16x128xf32> to vector<16x128xbf16>
    %c0_30 = arith.constant 0 : index
    %c0_31 = arith.constant 0 : index
    %79 = vector.load %arg6[%c0_30, %c0_31] : memref<16x128xf32, #tpu.memory_space<vmem>>, vector<16x128xf32>
    tpu.vector_store %arg6[%c0_30, %c0_31], %75 {strides = array<i32>} : memref<16x128xf32, #tpu.memory_space<vmem>>, vector<16x128xf32>,
    %c0_32 = arith.constant 0 : index
    %c0_33 = arith.constant 0 : index
    %80 = vector.load %arg5[%c0_32, %c0_33] : memref<16x128xbf16, #tpu.memory_space<vmem>>, vector<16x128xbf16>
    tpu.vector_store %arg5[%c0_32, %c0_33], %78 {strides = array<i32>} : memref<16x128xbf16, #tpu.memory_space<vmem>>, vector<16x128xbf16>,
    %81 = arith.index_cast %c1_i32 : i32 to index
    %c0_34 = arith.constant 0 : index
    %c0_35 = arith.constant 0 : index
    %82 = vector.load %arg4[%81, %c0_34, %c0_35] : memref<16x16x128xbf16, #tpu.memory_space<vmem>>, vector<1x16x128xbf16>
    %83 = vector.shape_cast %82 : vector<1x16x128xbf16> to vector<16x128xbf16>
    %84 = vector.shape_cast %78 : vector<16x128xbf16> to vector<1x16x128xbf16>
    tpu.vector_store %arg4[%81, %c0_34, %c0_35], %84 {strides = array<i32>} : memref<16x16x128xbf16, #tpu.memory_space<vmem>>, vector<1x16x128xbf16>,
    %c2_i32 = arith.constant 2 : i32
    %c0_36 = arith.constant 0 : index
    %c0_37 = arith.constant 0 : index
    %85 = vector.load %arg5[%c0_36, %c0_37] : memref<16x128xbf16, #tpu.memory_space<vmem>>, vector<16x128xbf16>
    %c0_38 = arith.constant 0 : index
    %c0_39 = arith.constant 0 : index
    %86 = vector.load %arg6[%c0_38, %c0_39] : memref<16x128xf32, #tpu.memory_space<vmem>>, vector<16x128xf32>
    %87 = arith.index_cast %c2_i32 : i32 to index
    %c0_40 = arith.constant 0 : index
    %c0_41 = arith.constant 0 : index
    %88 = vector.load %arg2[%87, %c0_40, %c0_41] : memref<16x16x512xbf16, #tpu.memory_space<vmem>>, vector<1x16x512xbf16>
    %89 = vector.shape_cast %88 : vector<1x16x512xbf16> to vector<16x512xbf16>
    %90 = arith.extf %89 : vector<16x512xbf16> to vector<16x512xf32>
    %c0_42 = arith.constant 0 : index
    %c0_43 = arith.constant 0 : index
    %91 = vector.load %arg3[%c0_42, %c0_43] : memref<128x512xbf16, #tpu.memory_space<vmem>>, vector<128x512xbf16>
    %cst_44 = arith.constant dense<0.000000e+00> : vector<16x512xf32>
    %92 = tpu.matmul %85, %91, %cst_44 {dimension_numbers = #tpu.dot_dimension_numbers<[1], [0], [0], [1], [0, 0, 1, 1], [], []>} : vector<16x128xbf16>, vector<128x512xbf16>, vector<16x512xf32> -> vector<16x512xf32>
    %93 = arith.addf %90, %92 : vector<16x512xf32>
    %94 = vector.extract_strided_slice %93 {offsets = [0, 0], sizes = [16, 128], strides = [1, 1]} : vector<16x512xf32> to vector<16x128xf32>
    %95 = arith.negf %94 : vector<16x128xf32>
    %96 = math.exp %95 : vector<16x128xf32>
    %cst_45 = arith.constant 1.000000e+00 : f32
    %97 = vector.broadcast %cst_45 : f32 to vector<16x128xf32>
    %98 = arith.addf %97, %96 : vector<16x128xf32>
    %99 = arith.divf %97, %98 : vector<16x128xf32>
    %100 = vector.extract_strided_slice %93 {offsets = [0, 128], sizes = [16, 128], strides = [1, 1]} : vector<16x512xf32> to vector<16x128xf32>
    %101 = arith.negf %100 : vector<16x128xf32>
    %102 = math.exp %101 : vector<16x128xf32>
    %cst_46 = arith.constant 1.000000e+00 : f32
    %103 = vector.broadcast %cst_46 : f32 to vector<16x128xf32>
    %104 = arith.addf %103, %102 : vector<16x128xf32>
    %105 = arith.divf %103, %104 : vector<16x128xf32>
    %106 = vector.extract_strided_slice %93 {offsets = [0, 256], sizes = [16, 128], strides = [1, 1]} : vector<16x512xf32> to vector<16x128xf32>
    %107 = math.tanh %106 : vector<16x128xf32>
    %108 = vector.extract_strided_slice %93 {offsets = [0, 384], sizes = [16, 128], strides = [1, 1]} : vector<16x512xf32> to vector<16x128xf32>
    %109 = arith.negf %108 : vector<16x128xf32>
    %110 = math.exp %109 : vector<16x128xf32>
    %cst_47 = arith.constant 1.000000e+00 : f32
    %111 = vector.broadcast %cst_47 : f32 to vector<16x128xf32>
    %112 = arith.addf %111, %110 : vector<16x128xf32>
    %113 = arith.divf %111, %112 : vector<16x128xf32>
    %114 = arith.mulf %105, %86 : vector<16x128xf32>
    %115 = arith.mulf %99, %107 : vector<16x128xf32>
    %116 = arith.addf %114, %115 : vector<16x128xf32>
    %117 = math.tanh %116 : vector<16x128xf32>
    %118 = arith.mulf %113, %117 : vector<16x128xf32>
    %119 = arith.truncf %118 : vector<16x128xf32> to vector<16x128xbf16>
    %c0_48 = arith.constant 0 : index
    %c0_49 = arith.constant 0 : index
    %120 = vector.load %arg6[%c0_48, %c0_49] : memref<16x128xf32, #tpu.memory_space<vmem>>, vector<16x128xf32>
    tpu.vector_store %arg6[%c0_48, %c0_49], %116 {strides = array<i32>} : memref<16x128xf32, #tpu.memory_space<vmem>>, vector<16x128xf32>,
    %c0_50 = arith.constant 0 : index
    %c0_51 = arith.constant 0 : index
    %121 = vector.load %arg5[%c0_50, %c0_51] : memref<16x128xbf16, #tpu.memory_space<vmem>>, vector<16x128xbf16>
    tpu.vector_store %arg5[%c0_50, %c0_51], %119 {strides = array<i32>} : memref<16x128xbf16, #tpu.memory_space<vmem>>, vector<16x128xbf16>,
    %122 = arith.index_cast %c2_i32 : i32 to index
    %c0_52 = arith.constant 0 : index
    %c0_53 = arith.constant 0 : index
    %123 = vector.load %arg4[%122, %c0_52, %c0_53] : memref<16x16x128xbf16, #tpu.memory_space<vmem>>, vector<1x16x128xbf16>
    %124 = vector.shape_cast %123 : vector<1x16x128xbf16> to vector<16x128xbf16>
    %125 = vector.shape_cast %119 : vector<16x128xbf16> to vector<1x16x128xbf16>
    tpu.vector_store %arg4[%122, %c0_52, %c0_53], %125 {strides = array<i32>} : memref<16x16x128xbf16, #tpu.memory_space<vmem>>, vector<1x16x128xbf16>,
    %c3_i32 = arith.constant 3 : i32
    %c0_54 = arith.constant 0 : index
    %c0_55 = arith.constant 0 : index
    %126 = vector.load %arg5[%c0_54, %c0_55] : memref<16x128xbf16, #tpu.memory_space<vmem>>, vector<16x128xbf16>
    %c0_56 = arith.constant 0 : index
    %c0_57 = arith.constant 0 : index
    %127 = vector.load %arg6[%c0_56, %c0_57] : memref<16x128xf32, #tpu.memory_space<vmem>>, vector<16x128xf32>
    %128 = arith.index_cast %c3_i32 : i32 to index
    %c0_58 = arith.constant 0 : index
    %c0_59 = arith.constant 0 : index
    %129 = vector.load %arg2[%128, %c0_58, %c0_59] : memref<16x16x512xbf16, #tpu.memory_space<vmem>>, vector<1x16x512xbf16>
    %130 = vector.shape_cast %129 : vector<1x16x512xbf16> to vector<16x512xbf16>
    %131 = arith.extf %130 : vector<16x512xbf16> to vector<16x512xf32>
    %c0_60 = arith.constant 0 : index
    %c0_61 = arith.constant 0 : index
    %132 = vector.load %arg3[%c0_60, %c0_61] : memref<128x512xbf16, #tpu.memory_space<vmem>>, vector<128x512xbf16>
    %cst_62 = arith.constant dense<0.000000e+00> : vector<16x512xf32>
    %133 = tpu.matmul %126, %132, %cst_62 {dimension_numbers = #tpu.dot_dimension_numbers<[1], [0], [0], [1], [0, 0, 1, 1], [], []>} : vector<16x128xbf16>, vector<128x512xbf16>, vector<16x512xf32> -> vector<16x512xf32>
    %134 = arith.addf %131, %133 : vector<16x512xf32>
    %135 = vector.extract_strided_slice %134 {offsets = [0, 0], sizes = [16, 128], strides = [1, 1]} : vector<16x512xf32> to vector<16x128xf32>
    %136 = arith.negf %135 : vector<16x128xf32>
    %137 = math.exp %136 : vector<16x128xf32>
    %cst_63 = arith.constant 1.000000e+00 : f32
    %138 = vector.broadcast %cst_63 : f32 to vector<16x128xf32>
    %139 = arith.addf %138, %137 : vector<16x128xf32>
    %140 = arith.divf %138, %139 : vector<16x128xf32>
    %141 = vector.extract_strided_slice %134 {offsets = [0, 128], sizes = [16, 128], strides = [1, 1]} : vector<16x512xf32> to vector<16x128xf32>
    %142 = arith.negf %141 : vector<16x128xf32>
    %143 = math.exp %142 : vector<16x128xf32>
    %cst_64 = arith.constant 1.000000e+00 : f32
    %144 = vector.broadcast %cst_64 : f32 to vector<16x128xf32>
    %145 = arith.addf %144, %143 : vector<16x128xf32>
    %146 = arith.divf %144, %145 : vector<16x128xf32>
    %147 = vector.extract_strided_slice %134 {offsets = [0, 256], sizes = [16, 128], strides = [1, 1]} : vector<16x512xf32> to vector<16x128xf32>
    %148 = math.tanh %147 : vector<16x128xf32>
    %149 = vector.extract_strided_slice %134 {offsets = [0, 384], sizes = [16, 128], strides = [1, 1]} : vector<16x512xf32> to vector<16x128xf32>
    %150 = arith.negf %149 : vector<16x128xf32>
    %151 = math.exp %150 : vector<16x128xf32>
    %cst_65 = arith.constant 1.000000e+00 : f32
    %152 = vector.broadcast %cst_65 : f32 to vector<16x128xf32>
    %153 = arith.addf %152, %151 : vector<16x128xf32>
    %154 = arith.divf %152, %153 : vector<16x128xf32>
    %155 = arith.mulf %146, %127 : vector<16x128xf32>
    %156 = arith.mulf %140, %148 : vector<16x128xf32>
    %157 = arith.addf %155, %156 : vector<16x128xf32>
    %158 = math.tanh %157 : vector<16x128xf32>
    %159 = arith.mulf %154, %158 : vector<16x128xf32>
    %160 = arith.truncf %159 : vector<16x128xf32> to vector<16x128xbf16>
    %c0_66 = arith.constant 0 : index
    %c0_67 = arith.constant 0 : index
    %161 = vector.load %arg6[%c0_66, %c0_67] : memref<16x128xf32, #tpu.memory_space<vmem>>, vector<16x128xf32>
    tpu.vector_store %arg6[%c0_66, %c0_67], %157 {strides = array<i32>} : memref<16x128xf32, #tpu.memory_space<vmem>>, vector<16x128xf32>,
    %c0_68 = arith.constant 0 : index
    %c0_69 = arith.constant 0 : index
    %162 = vector.load %arg5[%c0_68, %c0_69] : memref<16x128xbf16, #tpu.memory_space<vmem>>, vector<16x128xbf16>
    tpu.vector_store %arg5[%c0_68, %c0_69], %160 {strides = array<i32>} : memref<16x128xbf16, #tpu.memory_space<vmem>>, vector<16x128xbf16>,
    %163 = arith.index_cast %c3_i32 : i32 to index
    %c0_70 = arith.constant 0 : index
    %c0_71 = arith.constant 0 : index
    %164 = vector.load %arg4[%163, %c0_70, %c0_71] : memref<16x16x128xbf16, #tpu.memory_space<vmem>>, vector<1x16x128xbf16>
    %165 = vector.shape_cast %164 : vector<1x16x128xbf16> to vector<16x128xbf16>
    %166 = vector.shape_cast %160 : vector<16x128xbf16> to vector<1x16x128xbf16>
    tpu.vector_store %arg4[%163, %c0_70, %c0_71], %166 {strides = array<i32>} : memref<16x16x128xbf16, #tpu.memory_space<vmem>>, vector<1x16x128xbf16>,
    %c4_i32 = arith.constant 4 : i32
    %c0_72 = arith.constant 0 : index
    %c0_73 = arith.constant 0 : index
    %167 = vector.load %arg5[%c0_72, %c0_73] : memref<16x128xbf16, #tpu.memory_space<vmem>>, vector<16x128xbf16>
    %c0_74 = arith.constant 0 : index
    %c0_75 = arith.constant 0 : index
    %168 = vector.load %arg6[%c0_74, %c0_75] : memref<16x128xf32, #tpu.memory_space<vmem>>, vector<16x128xf32>
    %169 = arith.index_cast %c4_i32 : i32 to index
    %c0_76 = arith.constant 0 : index
    %c0_77 = arith.constant 0 : index
    %170 = vector.load %arg2[%169, %c0_76, %c0_77] : memref<16x16x512xbf16, #tpu.memory_space<vmem>>, vector<1x16x512xbf16>
    %171 = vector.shape_cast %170 : vector<1x16x512xbf16> to vector<16x512xbf16>
    %172 = arith.extf %171 : vector<16x512xbf16> to vector<16x512xf32>
    %c0_78 = arith.constant 0 : index
    %c0_79 = arith.constant 0 : index
    %173 = vector.load %arg3[%c0_78, %c0_79] : memref<128x512xbf16, #tpu.memory_space<vmem>>, vector<128x512xbf16>
    %cst_80 = arith.constant dense<0.000000e+00> : vector<16x512xf32>
    %174 = tpu.matmul %167, %173, %cst_80 {dimension_numbers = #tpu.dot_dimension_numbers<[1], [0], [0], [1], [0, 0, 1, 1], [], []>} : vector<16x128xbf16>, vector<128x512xbf16>, vector<16x512xf32> -> vector<16x512xf32>
    %175 = arith.addf %172, %174 : vector<16x512xf32>
    %176 = vector.extract_strided_slice %175 {offsets = [0, 0], sizes = [16, 128], strides = [1, 1]} : vector<16x512xf32> to vector<16x128xf32>
    %177 = arith.negf %176 : vector<16x128xf32>
    %178 = math.exp %177 : vector<16x128xf32>
    %cst_81 = arith.constant 1.000000e+00 : f32
    %179 = vector.broadcast %cst_81 : f32 to vector<16x128xf32>
    %180 = arith.addf %179, %178 : vector<16x128xf32>
    %181 = arith.divf %179, %180 : vector<16x128xf32>
    %182 = vector.extract_strided_slice %175 {offsets = [0, 128], sizes = [16, 128], strides = [1, 1]} : vector<16x512xf32> to vector<16x128xf32>
    %183 = arith.negf %182 : vector<16x128xf32>
    %184 = math.exp %183 : vector<16x128xf32>
    %cst_82 = arith.constant 1.000000e+00 : f32
    %185 = vector.broadcast %cst_82 : f32 to vector<16x128xf32>
    %186 = arith.addf %185, %184 : vector<16x128xf32>
    %187 = arith.divf %185, %186 : vector<16x128xf32>
    %188 = vector.extract_strided_slice %175 {offsets = [0, 256], sizes = [16, 128], strides = [1, 1]} : vector<16x512xf32> to vector<16x128xf32>
    %189 = math.tanh %188 : vector<16x128xf32>
    %190 = vector.extract_strided_slice %175 {offsets = [0, 384], sizes = [16, 128], strides = [1, 1]} : vector<16x512xf32> to vector<16x128xf32>
    %191 = arith.negf %190 : vector<16x128xf32>
    %192 = math.exp %191 : vector<16x128xf32>
    %cst_83 = arith.constant 1.000000e+00 : f32
    %193 = vector.broadcast %cst_83 : f32 to vector<16x128xf32>
    %194 = arith.addf %193, %192 : vector<16x128xf32>
    %195 = arith.divf %193, %194 : vector<16x128xf32>
    %196 = arith.mulf %187, %168 : vector<16x128xf32>
    %197 = arith.mulf %181, %189 : vector<16x128xf32>
    %198 = arith.addf %196, %197 : vector<16x128xf32>
    %199 = math.tanh %198 : vector<16x128xf32>
    %200 = arith.mulf %195, %199 : vector<16x128xf32>
    %201 = arith.truncf %200 : vector<16x128xf32> to vector<16x128xbf16>
    %c0_84 = arith.constant 0 : index
    %c0_85 = arith.constant 0 : index
    %202 = vector.load %arg6[%c0_84, %c0_85] : memref<16x128xf32, #tpu.memory_space<vmem>>, vector<16x128xf32>
    tpu.vector_store %arg6[%c0_84, %c0_85], %198 {strides = array<i32>} : memref<16x128xf32, #tpu.memory_space<vmem>>, vector<16x128xf32>,
    %c0_86 = arith.constant 0 : index
    %c0_87 = arith.constant 0 : index
    %203 = vector.load %arg5[%c0_86, %c0_87] : memref<16x128xbf16, #tpu.memory_space<vmem>>, vector<16x128xbf16>
    tpu.vector_store %arg5[%c0_86, %c0_87], %201 {strides = array<i32>} : memref<16x128xbf16, #tpu.memory_space<vmem>>, vector<16x128xbf16>,
    %204 = arith.index_cast %c4_i32 : i32 to index
    %c0_88 = arith.constant 0 : index
    %c0_89 = arith.constant 0 : index
    %205 = vector.load %arg4[%204, %c0_88, %c0_89] : memref<16x16x128xbf16, #tpu.memory_space<vmem>>, vector<1x16x128xbf16>
    %206 = vector.shape_cast %205 : vector<1x16x128xbf16> to vector<16x128xbf16>
    %207 = vector.shape_cast %201 : vector<16x128xbf16> to vector<1x16x128xbf16>
    tpu.vector_store %arg4[%204, %c0_88, %c0_89], %207 {strides = array<i32>} : memref<16x16x128xbf16, #tpu.memory_space<vmem>>, vector<1x16x128xbf16>,
    %c5_i32 = arith.constant 5 : i32
    %c0_90 = arith.constant 0 : index
    %c0_91 = arith.constant 0 : index
    %208 = vector.load %arg5[%c0_90, %c0_91] : memref<16x128xbf16, #tpu.memory_space<vmem>>, vector<16x128xbf16>
    %c0_92 = arith.constant 0 : index
    %c0_93 = arith.constant 0 : index
    %209 = vector.load %arg6[%c0_92, %c0_93] : memref<16x128xf32, #tpu.memory_space<vmem>>, vector<16x128xf32>
    %210 = arith.index_cast %c5_i32 : i32 to index
    %c0_94 = arith.constant 0 : index
    %c0_95 = arith.constant 0 : index
    %211 = vector.load %arg2[%210, %c0_94, %c0_95] : memref<16x16x512xbf16, #tpu.memory_space<vmem>>, vector<1x16x512xbf16>
    %212 = vector.shape_cast %211 : vector<1x16x512xbf16> to vector<16x512xbf16>
    %213 = arith.extf %212 : vector<16x512xbf16> to vector<16x512xf32>
    %c0_96 = arith.constant 0 : index
    %c0_97 = arith.constant 0 : index
    %214 = vector.load %arg3[%c0_96, %c0_97] : memref<128x512xbf16, #tpu.memory_space<vmem>>, vector<128x512xbf16>
    %cst_98 = arith.constant dense<0.000000e+00> : vector<16x512xf32>
    %215 = tpu.matmul %208, %214, %cst_98 {dimension_numbers = #tpu.dot_dimension_numbers<[1], [0], [0], [1], [0, 0, 1, 1], [], []>} : vector<16x128xbf16>, vector<128x512xbf16>, vector<16x512xf32> -> vector<16x512xf32>
    %216 = arith.addf %213, %215 : vector<16x512xf32>
    %217 = vector.extract_strided_slice %216 {offsets = [0, 0], sizes = [16, 128], strides = [1, 1]} : vector<16x512xf32> to vector<16x128xf32>
    %218 = arith.negf %217 : vector<16x128xf32>
    %219 = math.exp %218 : vector<16x128xf32>
    %cst_99 = arith.constant 1.000000e+00 : f32
    %220 = vector.broadcast %cst_99 : f32 to vector<16x128xf32>
    %221 = arith.addf %220, %219 : vector<16x128xf32>
    %222 = arith.divf %220, %221 : vector<16x128xf32>
    %223 = vector.extract_strided_slice %216 {offsets = [0, 128], sizes = [16, 128], strides = [1, 1]} : vector<16x512xf32> to vector<16x128xf32>
    %224 = arith.negf %223 : vector<16x128xf32>
    %225 = math.exp %224 : vector<16x128xf32>
    %cst_100 = arith.constant 1.000000e+00 : f32
    %226 = vector.broadcast %cst_100 : f32 to vector<16x128xf32>
    %227 = arith.addf %226, %225 : vector<16x128xf32>
    %228 = arith.divf %226, %227 : vector<16x128xf32>
    %229 = vector.extract_strided_slice %216 {offsets = [0, 256], sizes = [16, 128], strides = [1, 1]} : vector<16x512xf32> to vector<16x128xf32>
    %230 = math.tanh %229 : vector<16x128xf32>
    %231 = vector.extract_strided_slice %216 {offsets = [0, 384], sizes = [16, 128], strides = [1, 1]} : vector<16x512xf32> to vector<16x128xf32>
    %232 = arith.negf %231 : vector<16x128xf32>
    %233 = math.exp %232 : vector<16x128xf32>
    %cst_101 = arith.constant 1.000000e+00 : f32
    %234 = vector.broadcast %cst_101 : f32 to vector<16x128xf32>
    %235 = arith.addf %234, %233 : vector<16x128xf32>
    %236 = arith.divf %234, %235 : vector<16x128xf32>
    %237 = arith.mulf %228, %209 : vector<16x128xf32>
    %238 = arith.mulf %222, %230 : vector<16x128xf32>
    %239 = arith.addf %237, %238 : vector<16x128xf32>
    %240 = math.tanh %239 : vector<16x128xf32>
    %241 = arith.mulf %236, %240 : vector<16x128xf32>
    %242 = arith.truncf %241 : vector<16x128xf32> to vector<16x128xbf16>
    %c0_102 = arith.constant 0 : index
    %c0_103 = arith.constant 0 : index
    %243 = vector.load %arg6[%c0_102, %c0_103] : memref<16x128xf32, #tpu.memory_space<vmem>>, vector<16x128xf32>
    tpu.vector_store %arg6[%c0_102, %c0_103], %239 {strides = array<i32>} : memref<16x128xf32, #tpu.memory_space<vmem>>, vector<16x128xf32>,
    %c0_104 = arith.constant 0 : index
    %c0_105 = arith.constant 0 : index
    %244 = vector.load %arg5[%c0_104, %c0_105] : memref<16x128xbf16, #tpu.memory_space<vmem>>, vector<16x128xbf16>
    tpu.vector_store %arg5[%c0_104, %c0_105], %242 {strides = array<i32>} : memref<16x128xbf16, #tpu.memory_space<vmem>>, vector<16x128xbf16>,
    %245 = arith.index_cast %c5_i32 : i32 to index
    %c0_106 = arith.constant 0 : index
    %c0_107 = arith.constant 0 : index
    %246 = vector.load %arg4[%245, %c0_106, %c0_107] : memref<16x16x128xbf16, #tpu.memory_space<vmem>>, vector<1x16x128xbf16>
    %247 = vector.shape_cast %246 : vector<1x16x128xbf16> to vector<16x128xbf16>
    %248 = vector.shape_cast %242 : vector<16x128xbf16> to vector<1x16x128xbf16>
    tpu.vector_store %arg4[%245, %c0_106, %c0_107], %248 {strides = array<i32>} : memref<16x16x128xbf16, #tpu.memory_space<vmem>>, vector<1x16x128xbf16>,
    %c6_i32 = arith.constant 6 : i32
    %c0_108 = arith.constant 0 : index
    %c0_109 = arith.constant 0 : index
    %249 = vector.load %arg5[%c0_108, %c0_109] : memref<16x128xbf16, #tpu.memory_space<vmem>>, vector<16x128xbf16>
    %c0_110 = arith.constant 0 : index
    %c0_111 = arith.constant 0 : index
    %250 = vector.load %arg6[%c0_110, %c0_111] : memref<16x128xf32, #tpu.memory_space<vmem>>, vector<16x128xf32>
    %251 = arith.index_cast %c6_i32 : i32 to index
    %c0_112 = arith.constant 0 : index
    %c0_113 = arith.constant 0 : index
    %252 = vector.load %arg2[%251, %c0_112, %c0_113] : memref<16x16x512xbf16, #tpu.memory_space<vmem>>, vector<1x16x512xbf16>
    %253 = vector.shape_cast %252 : vector<1x16x512xbf16> to vector<16x512xbf16>
    %254 = arith.extf %253 : vector<16x512xbf16> to vector<16x512xf32>
    %c0_114 = arith.constant 0 : index
    %c0_115 = arith.constant 0 : index
    %255 = vector.load %arg3[%c0_114, %c0_115] : memref<128x512xbf16, #tpu.memory_space<vmem>>, vector<128x512xbf16>
    %cst_116 = arith.constant dense<0.000000e+00> : vector<16x512xf32>
    %256 = tpu.matmul %249, %255, %cst_116 {dimension_numbers = #tpu.dot_dimension_numbers<[1], [0], [0], [1], [0, 0, 1, 1], [], []>} : vector<16x128xbf16>, vector<128x512xbf16>, vector<16x512xf32> -> vector<16x512xf32>
    %257 = arith.addf %254, %256 : vector<16x512xf32>
    %258 = vector.extract_strided_slice %257 {offsets = [0, 0], sizes = [16, 128], strides = [1, 1]} : vector<16x512xf32> to vector<16x128xf32>
    %259 = arith.negf %258 : vector<16x128xf32>
    %260 = math.exp %259 : vector<16x128xf32>
    %cst_117 = arith.constant 1.000000e+00 : f32
    %261 = vector.broadcast %cst_117 : f32 to vector<16x128xf32>
    %262 = arith.addf %261, %260 : vector<16x128xf32>
    %263 = arith.divf %261, %262 : vector<16x128xf32>
    %264 = vector.extract_strided_slice %257 {offsets = [0, 128], sizes = [16, 128], strides = [1, 1]} : vector<16x512xf32> to vector<16x128xf32>
    %265 = arith.negf %264 : vector<16x128xf32>
    %266 = math.exp %265 : vector<16x128xf32>
    %cst_118 = arith.constant 1.000000e+00 : f32
    %267 = vector.broadcast %cst_118 : f32 to vector<16x128xf32>
    %268 = arith.addf %267, %266 : vector<16x128xf32>
    %269 = arith.divf %267, %268 : vector<16x128xf32>
    %270 = vector.extract_strided_slice %257 {offsets = [0, 256], sizes = [16, 128], strides = [1, 1]} : vector<16x512xf32> to vector<16x128xf32>
    %271 = math.tanh %270 : vector<16x128xf32>
    %272 = vector.extract_strided_slice %257 {offsets = [0, 384], sizes = [16, 128], strides = [1, 1]} : vector<16x512xf32> to vector<16x128xf32>
    %273 = arith.negf %272 : vector<16x128xf32>
    %274 = math.exp %273 : vector<16x128xf32>
    %cst_119 = arith.constant 1.000000e+00 : f32
    %275 = vector.broadcast %cst_119 : f32 to vector<16x128xf32>
    %276 = arith.addf %275, %274 : vector<16x128xf32>
    %277 = arith.divf %275, %276 : vector<16x128xf32>
    %278 = arith.mulf %269, %250 : vector<16x128xf32>
    %279 = arith.mulf %263, %271 : vector<16x128xf32>
    %280 = arith.addf %278, %279 : vector<16x128xf32>
    %281 = math.tanh %280 : vector<16x128xf32>
    %282 = arith.mulf %277, %281 : vector<16x128xf32>
    %283 = arith.truncf %282 : vector<16x128xf32> to vector<16x128xbf16>
    %c0_120 = arith.constant 0 : index
    %c0_121 = arith.constant 0 : index
    %284 = vector.load %arg6[%c0_120, %c0_121] : memref<16x128xf32, #tpu.memory_space<vmem>>, vector<16x128xf32>
    tpu.vector_store %arg6[%c0_120, %c0_121], %280 {strides = array<i32>} : memref<16x128xf32, #tpu.memory_space<vmem>>, vector<16x128xf32>,
    %c0_122 = arith.constant 0 : index
    %c0_123 = arith.constant 0 : index
    %285 = vector.load %arg5[%c0_122, %c0_123] : memref<16x128xbf16, #tpu.memory_space<vmem>>, vector<16x128xbf16>
    tpu.vector_store %arg5[%c0_122, %c0_123], %283 {strides = array<i32>} : memref<16x128xbf16, #tpu.memory_space<vmem>>, vector<16x128xbf16>,
    %286 = arith.index_cast %c6_i32 : i32 to index
    %c0_124 = arith.constant 0 : index
    %c0_125 = arith.constant 0 : index
    %287 = vector.load %arg4[%286, %c0_124, %c0_125] : memref<16x16x128xbf16, #tpu.memory_space<vmem>>, vector<1x16x128xbf16>
    %288 = vector.shape_cast %287 : vector<1x16x128xbf16> to vector<16x128xbf16>
    %289 = vector.shape_cast %283 : vector<16x128xbf16> to vector<1x16x128xbf16>
    tpu.vector_store %arg4[%286, %c0_124, %c0_125], %289 {strides = array<i32>} : memref<16x16x128xbf16, #tpu.memory_space<vmem>>, vector<1x16x128xbf16>,
    %c7_i32 = arith.constant 7 : i32
    %c0_126 = arith.constant 0 : index
    %c0_127 = arith.constant 0 : index
    %290 = vector.load %arg5[%c0_126, %c0_127] : memref<16x128xbf16, #tpu.memory_space<vmem>>, vector<16x128xbf16>
    %c0_128 = arith.constant 0 : index
    %c0_129 = arith.constant 0 : index
    %291 = vector.load %arg6[%c0_128, %c0_129] : memref<16x128xf32, #tpu.memory_space<vmem>>, vector<16x128xf32>
    %292 = arith.index_cast %c7_i32 : i32 to index
    %c0_130 = arith.constant 0 : index
    %c0_131 = arith.constant 0 : index
    %293 = vector.load %arg2[%292, %c0_130, %c0_131] : memref<16x16x512xbf16, #tpu.memory_space<vmem>>, vector<1x16x512xbf16>
    %294 = vector.shape_cast %293 : vector<1x16x512xbf16> to vector<16x512xbf16>
    %295 = arith.extf %294 : vector<16x512xbf16> to vector<16x512xf32>
    %c0_132 = arith.constant 0 : index
    %c0_133 = arith.constant 0 : index
    %296 = vector.load %arg3[%c0_132, %c0_133] : memref<128x512xbf16, #tpu.memory_space<vmem>>, vector<128x512xbf16>
    %cst_134 = arith.constant dense<0.000000e+00> : vector<16x512xf32>
    %297 = tpu.matmul %290, %296, %cst_134 {dimension_numbers = #tpu.dot_dimension_numbers<[1], [0], [0], [1], [0, 0, 1, 1], [], []>} : vector<16x128xbf16>, vector<128x512xbf16>, vector<16x512xf32> -> vector<16x512xf32>
    %298 = arith.addf %295, %297 : vector<16x512xf32>
    %299 = vector.extract_strided_slice %298 {offsets = [0, 0], sizes = [16, 128], strides = [1, 1]} : vector<16x512xf32> to vector<16x128xf32>
    %300 = arith.negf %299 : vector<16x128xf32>
    %301 = math.exp %300 : vector<16x128xf32>
    %cst_135 = arith.constant 1.000000e+00 : f32
    %302 = vector.broadcast %cst_135 : f32 to vector<16x128xf32>
    %303 = arith.addf %302, %301 : vector<16x128xf32>
    %304 = arith.divf %302, %303 : vector<16x128xf32>
    %305 = vector.extract_strided_slice %298 {offsets = [0, 128], sizes = [16, 128], strides = [1, 1]} : vector<16x512xf32> to vector<16x128xf32>
    %306 = arith.negf %305 : vector<16x128xf32>
    %307 = math.exp %306 : vector<16x128xf32>
    %cst_136 = arith.constant 1.000000e+00 : f32
    %308 = vector.broadcast %cst_136 : f32 to vector<16x128xf32>
    %309 = arith.addf %308, %307 : vector<16x128xf32>
    %310 = arith.divf %308, %309 : vector<16x128xf32>
    %311 = vector.extract_strided_slice %298 {offsets = [0, 256], sizes = [16, 128], strides = [1, 1]} : vector<16x512xf32> to vector<16x128xf32>
    %312 = math.tanh %311 : vector<16x128xf32>
    %313 = vector.extract_strided_slice %298 {offsets = [0, 384], sizes = [16, 128], strides = [1, 1]} : vector<16x512xf32> to vector<16x128xf32>
    %314 = arith.negf %313 : vector<16x128xf32>
    %315 = math.exp %314 : vector<16x128xf32>
    %cst_137 = arith.constant 1.000000e+00 : f32
    %316 = vector.broadcast %cst_137 : f32 to vector<16x128xf32>
    %317 = arith.addf %316, %315 : vector<16x128xf32>
    %318 = arith.divf %316, %317 : vector<16x128xf32>
    %319 = arith.mulf %310, %291 : vector<16x128xf32>
    %320 = arith.mulf %304, %312 : vector<16x128xf32>
    %321 = arith.addf %319, %320 : vector<16x128xf32>
    %322 = math.tanh %321 : vector<16x128xf32>
    %323 = arith.mulf %318, %322 : vector<16x128xf32>
    %324 = arith.truncf %323 : vector<16x128xf32> to vector<16x128xbf16>
    %c0_138 = arith.constant 0 : index
    %c0_139 = arith.constant 0 : index
    %325 = vector.load %arg6[%c0_138, %c0_139] : memref<16x128xf32, #tpu.memory_space<vmem>>, vector<16x128xf32>
    tpu.vector_store %arg6[%c0_138, %c0_139], %321 {strides = array<i32>} : memref<16x128xf32, #tpu.memory_space<vmem>>, vector<16x128xf32>,
    %c0_140 = arith.constant 0 : index
    %c0_141 = arith.constant 0 : index
    %326 = vector.load %arg5[%c0_140, %c0_141] : memref<16x128xbf16, #tpu.memory_space<vmem>>, vector<16x128xbf16>
    tpu.vector_store %arg5[%c0_140, %c0_141], %324 {strides = array<i32>} : memref<16x128xbf16, #tpu.memory_space<vmem>>, vector<16x128xbf16>,
    %327 = arith.index_cast %c7_i32 : i32 to index
    %c0_142 = arith.constant 0 : index
    %c0_143 = arith.constant 0 : index
    %328 = vector.load %arg4[%327, %c0_142, %c0_143] : memref<16x16x128xbf16, #tpu.memory_space<vmem>>, vector<1x16x128xbf16>
    %329 = vector.shape_cast %328 : vector<1x16x128xbf16> to vector<16x128xbf16>
    %330 = vector.shape_cast %324 : vector<16x128xbf16> to vector<1x16x128xbf16>
    tpu.vector_store %arg4[%327, %c0_142, %c0_143], %330 {strides = array<i32>} : memref<16x16x128xbf16, #tpu.memory_space<vmem>>, vector<1x16x128xbf16>,
    %c8_i32 = arith.constant 8 : i32
    %c0_144 = arith.constant 0 : index
    %c0_145 = arith.constant 0 : index
    %331 = vector.load %arg5[%c0_144, %c0_145] : memref<16x128xbf16, #tpu.memory_space<vmem>>, vector<16x128xbf16>
    %c0_146 = arith.constant 0 : index
    %c0_147 = arith.constant 0 : index
    %332 = vector.load %arg6[%c0_146, %c0_147] : memref<16x128xf32, #tpu.memory_space<vmem>>, vector<16x128xf32>
    %333 = arith.index_cast %c8_i32 : i32 to index
    %c0_148 = arith.constant 0 : index
    %c0_149 = arith.constant 0 : index
    %334 = vector.load %arg2[%333, %c0_148, %c0_149] : memref<16x16x512xbf16, #tpu.memory_space<vmem>>, vector<1x16x512xbf16>
    %335 = vector.shape_cast %334 : vector<1x16x512xbf16> to vector<16x512xbf16>
    %336 = arith.extf %335 : vector<16x512xbf16> to vector<16x512xf32>
    %c0_150 = arith.constant 0 : index
    %c0_151 = arith.constant 0 : index
    %337 = vector.load %arg3[%c0_150, %c0_151] : memref<128x512xbf16, #tpu.memory_space<vmem>>, vector<128x512xbf16>
    %cst_152 = arith.constant dense<0.000000e+00> : vector<16x512xf32>
    %338 = tpu.matmul %331, %337, %cst_152 {dimension_numbers = #tpu.dot_dimension_numbers<[1], [0], [0], [1], [0, 0, 1, 1], [], []>} : vector<16x128xbf16>, vector<128x512xbf16>, vector<16x512xf32> -> vector<16x512xf32>
    %339 = arith.addf %336, %338 : vector<16x512xf32>
    %340 = vector.extract_strided_slice %339 {offsets = [0, 0], sizes = [16, 128], strides = [1, 1]} : vector<16x512xf32> to vector<16x128xf32>
    %341 = arith.negf %340 : vector<16x128xf32>
    %342 = math.exp %341 : vector<16x128xf32>
    %cst_153 = arith.constant 1.000000e+00 : f32
    %343 = vector.broadcast %cst_153 : f32 to vector<16x128xf32>
    %344 = arith.addf %343, %342 : vector<16x128xf32>
    %345 = arith.divf %343, %344 : vector<16x128xf32>
    %346 = vector.extract_strided_slice %339 {offsets = [0, 128], sizes = [16, 128], strides = [1, 1]} : vector<16x512xf32> to vector<16x128xf32>
    %347 = arith.negf %346 : vector<16x128xf32>
    %348 = math.exp %347 : vector<16x128xf32>
    %cst_154 = arith.constant 1.000000e+00 : f32
    %349 = vector.broadcast %cst_154 : f32 to vector<16x128xf32>
    %350 = arith.addf %349, %348 : vector<16x128xf32>
    %351 = arith.divf %349, %350 : vector<16x128xf32>
    %352 = vector.extract_strided_slice %339 {offsets = [0, 256], sizes = [16, 128], strides = [1, 1]} : vector<16x512xf32> to vector<16x128xf32>
    %353 = math.tanh %352 : vector<16x128xf32>
    %354 = vector.extract_strided_slice %339 {offsets = [0, 384], sizes = [16, 128], strides = [1, 1]} : vector<16x512xf32> to vector<16x128xf32>
    %355 = arith.negf %354 : vector<16x128xf32>
    %356 = math.exp %355 : vector<16x128xf32>
    %cst_155 = arith.constant 1.000000e+00 : f32
    %357 = vector.broadcast %cst_155 : f32 to vector<16x128xf32>
    %358 = arith.addf %357, %356 : vector<16x128xf32>
    %359 = arith.divf %357, %358 : vector<16x128xf32>
    %360 = arith.mulf %351, %332 : vector<16x128xf32>
    %361 = arith.mulf %345, %353 : vector<16x128xf32>
    %362 = arith.addf %360, %361 : vector<16x128xf32>
    %363 = math.tanh %362 : vector<16x128xf32>
    %364 = arith.mulf %359, %363 : vector<16x128xf32>
    %365 = arith.truncf %364 : vector<16x128xf32> to vector<16x128xbf16>
    %c0_156 = arith.constant 0 : index
    %c0_157 = arith.constant 0 : index
    %366 = vector.load %arg6[%c0_156, %c0_157] : memref<16x128xf32, #tpu.memory_space<vmem>>, vector<16x128xf32>
    tpu.vector_store %arg6[%c0_156, %c0_157], %362 {strides = array<i32>} : memref<16x128xf32, #tpu.memory_space<vmem>>, vector<16x128xf32>,
    %c0_158 = arith.constant 0 : index
    %c0_159 = arith.constant 0 : index
    %367 = vector.load %arg5[%c0_158, %c0_159] : memref<16x128xbf16, #tpu.memory_space<vmem>>, vector<16x128xbf16>
    tpu.vector_store %arg5[%c0_158, %c0_159], %365 {strides = array<i32>} : memref<16x128xbf16, #tpu.memory_space<vmem>>, vector<16x128xbf16>,
    %368 = arith.index_cast %c8_i32 : i32 to index
    %c0_160 = arith.constant 0 : index
    %c0_161 = arith.constant 0 : index
    %369 = vector.load %arg4[%368, %c0_160, %c0_161] : memref<16x16x128xbf16, #tpu.memory_space<vmem>>, vector<1x16x128xbf16>
    %370 = vector.shape_cast %369 : vector<1x16x128xbf16> to vector<16x128xbf16>
    %371 = vector.shape_cast %365 : vector<16x128xbf16> to vector<1x16x128xbf16>
    tpu.vector_store %arg4[%368, %c0_160, %c0_161], %371 {strides = array<i32>} : memref<16x16x128xbf16, #tpu.memory_space<vmem>>, vector<1x16x128xbf16>,
    %c9_i32 = arith.constant 9 : i32
    %c0_162 = arith.constant 0 : index
    %c0_163 = arith.constant 0 : index
    %372 = vector.load %arg5[%c0_162, %c0_163] : memref<16x128xbf16, #tpu.memory_space<vmem>>, vector<16x128xbf16>
    %c0_164 = arith.constant 0 : index
    %c0_165 = arith.constant 0 : index
    %373 = vector.load %arg6[%c0_164, %c0_165] : memref<16x128xf32, #tpu.memory_space<vmem>>, vector<16x128xf32>
    %374 = arith.index_cast %c9_i32 : i32 to index
    %c0_166 = arith.constant 0 : index
    %c0_167 = arith.constant 0 : index
    %375 = vector.load %arg2[%374, %c0_166, %c0_167] : memref<16x16x512xbf16, #tpu.memory_space<vmem>>, vector<1x16x512xbf16>
    %376 = vector.shape_cast %375 : vector<1x16x512xbf16> to vector<16x512xbf16>
    %377 = arith.extf %376 : vector<16x512xbf16> to vector<16x512xf32>
    %c0_168 = arith.constant 0 : index
    %c0_169 = arith.constant 0 : index
    %378 = vector.load %arg3[%c0_168, %c0_169] : memref<128x512xbf16, #tpu.memory_space<vmem>>, vector<128x512xbf16>
    %cst_170 = arith.constant dense<0.000000e+00> : vector<16x512xf32>
    %379 = tpu.matmul %372, %378, %cst_170 {dimension_numbers = #tpu.dot_dimension_numbers<[1], [0], [0], [1], [0, 0, 1, 1], [], []>} : vector<16x128xbf16>, vector<128x512xbf16>, vector<16x512xf32> -> vector<16x512xf32>
    %380 = arith.addf %377, %379 : vector<16x512xf32>
    %381 = vector.extract_strided_slice %380 {offsets = [0, 0], sizes = [16, 128], strides = [1, 1]} : vector<16x512xf32> to vector<16x128xf32>
    %382 = arith.negf %381 : vector<16x128xf32>
    %383 = math.exp %382 : vector<16x128xf32>
    %cst_171 = arith.constant 1.000000e+00 : f32
    %384 = vector.broadcast %cst_171 : f32 to vector<16x128xf32>
    %385 = arith.addf %384, %383 : vector<16x128xf32>
    %386 = arith.divf %384, %385 : vector<16x128xf32>
    %387 = vector.extract_strided_slice %380 {offsets = [0, 128], sizes = [16, 128], strides = [1, 1]} : vector<16x512xf32> to vector<16x128xf32>
    %388 = arith.negf %387 : vector<16x128xf32>
    %389 = math.exp %388 : vector<16x128xf32>
    %cst_172 = arith.constant 1.000000e+00 : f32
    %390 = vector.broadcast %cst_172 : f32 to vector<16x128xf32>
    %391 = arith.addf %390, %389 : vector<16x128xf32>
    %392 = arith.divf %390, %391 : vector<16x128xf32>
    %393 = vector.extract_strided_slice %380 {offsets = [0, 256], sizes = [16, 128], strides = [1, 1]} : vector<16x512xf32> to vector<16x128xf32>
    %394 = math.tanh %393 : vector<16x128xf32>
    %395 = vector.extract_strided_slice %380 {offsets = [0, 384], sizes = [16, 128], strides = [1, 1]} : vector<16x512xf32> to vector<16x128xf32>
    %396 = arith.negf %395 : vector<16x128xf32>
    %397 = math.exp %396 : vector<16x128xf32>
    %cst_173 = arith.constant 1.000000e+00 : f32
    %398 = vector.broadcast %cst_173 : f32 to vector<16x128xf32>
    %399 = arith.addf %398, %397 : vector<16x128xf32>
    %400 = arith.divf %398, %399 : vector<16x128xf32>
    %401 = arith.mulf %392, %373 : vector<16x128xf32>
    %402 = arith.mulf %386, %394 : vector<16x128xf32>
    %403 = arith.addf %401, %402 : vector<16x128xf32>
    %404 = math.tanh %403 : vector<16x128xf32>
    %405 = arith.mulf %400, %404 : vector<16x128xf32>
    %406 = arith.truncf %405 : vector<16x128xf32> to vector<16x128xbf16>
    %c0_174 = arith.constant 0 : index
    %c0_175 = arith.constant 0 : index
    %407 = vector.load %arg6[%c0_174, %c0_175] : memref<16x128xf32, #tpu.memory_space<vmem>>, vector<16x128xf32>
    tpu.vector_store %arg6[%c0_174, %c0_175], %403 {strides = array<i32>} : memref<16x128xf32, #tpu.memory_space<vmem>>, vector<16x128xf32>,
    %c0_176 = arith.constant 0 : index
    %c0_177 = arith.constant 0 : index
    %408 = vector.load %arg5[%c0_176, %c0_177] : memref<16x128xbf16, #tpu.memory_space<vmem>>, vector<16x128xbf16>
    tpu.vector_store %arg5[%c0_176, %c0_177], %406 {strides = array<i32>} : memref<16x128xbf16, #tpu.memory_space<vmem>>, vector<16x128xbf16>,
    %409 = arith.index_cast %c9_i32 : i32 to index
    %c0_178 = arith.constant 0 : index
    %c0_179 = arith.constant 0 : index
    %410 = vector.load %arg4[%409, %c0_178, %c0_179] : memref<16x16x128xbf16, #tpu.memory_space<vmem>>, vector<1x16x128xbf16>
    %411 = vector.shape_cast %410 : vector<1x16x128xbf16> to vector<16x128xbf16>
    %412 = vector.shape_cast %406 : vector<16x128xbf16> to vector<1x16x128xbf16>
    tpu.vector_store %arg4[%409, %c0_178, %c0_179], %412 {strides = array<i32>} : memref<16x16x128xbf16, #tpu.memory_space<vmem>>, vector<1x16x128xbf16>,
    %c10_i32 = arith.constant 10 : i32
    %c0_180 = arith.constant 0 : index
    %c0_181 = arith.constant 0 : index
    %413 = vector.load %arg5[%c0_180, %c0_181] : memref<16x128xbf16, #tpu.memory_space<vmem>>, vector<16x128xbf16>
    %c0_182 = arith.constant 0 : index
    %c0_183 = arith.constant 0 : index
    %414 = vector.load %arg6[%c0_182, %c0_183] : memref<16x128xf32, #tpu.memory_space<vmem>>, vector<16x128xf32>
    %415 = arith.index_cast %c10_i32 : i32 to index
    %c0_184 = arith.constant 0 : index
    %c0_185 = arith.constant 0 : index
    %416 = vector.load %arg2[%415, %c0_184, %c0_185] : memref<16x16x512xbf16, #tpu.memory_space<vmem>>, vector<1x16x512xbf16>
    %417 = vector.shape_cast %416 : vector<1x16x512xbf16> to vector<16x512xbf16>
    %418 = arith.extf %417 : vector<16x512xbf16> to vector<16x512xf32>
    %c0_186 = arith.constant 0 : index
    %c0_187 = arith.constant 0 : index
    %419 = vector.load %arg3[%c0_186, %c0_187] : memref<128x512xbf16, #tpu.memory_space<vmem>>, vector<128x512xbf16>
    %cst_188 = arith.constant dense<0.000000e+00> : vector<16x512xf32>
    %420 = tpu.matmul %413, %419, %cst_188 {dimension_numbers = #tpu.dot_dimension_numbers<[1], [0], [0], [1], [0, 0, 1, 1], [], []>} : vector<16x128xbf16>, vector<128x512xbf16>, vector<16x512xf32> -> vector<16x512xf32>
    %421 = arith.addf %418, %420 : vector<16x512xf32>
    %422 = vector.extract_strided_slice %421 {offsets = [0, 0], sizes = [16, 128], strides = [1, 1]} : vector<16x512xf32> to vector<16x128xf32>
    %423 = arith.negf %422 : vector<16x128xf32>
    %424 = math.exp %423 : vector<16x128xf32>
    %cst_189 = arith.constant 1.000000e+00 : f32
    %425 = vector.broadcast %cst_189 : f32 to vector<16x128xf32>
    %426 = arith.addf %425, %424 : vector<16x128xf32>
    %427 = arith.divf %425, %426 : vector<16x128xf32>
    %428 = vector.extract_strided_slice %421 {offsets = [0, 128], sizes = [16, 128], strides = [1, 1]} : vector<16x512xf32> to vector<16x128xf32>
    %429 = arith.negf %428 : vector<16x128xf32>
    %430 = math.exp %429 : vector<16x128xf32>
    %cst_190 = arith.constant 1.000000e+00 : f32
    %431 = vector.broadcast %cst_190 : f32 to vector<16x128xf32>
    %432 = arith.addf %431, %430 : vector<16x128xf32>
    %433 = arith.divf %431, %432 : vector<16x128xf32>
    %434 = vector.extract_strided_slice %421 {offsets = [0, 256], sizes = [16, 128], strides = [1, 1]} : vector<16x512xf32> to vector<16x128xf32>
    %435 = math.tanh %434 : vector<16x128xf32>
    %436 = vector.extract_strided_slice %421 {offsets = [0, 384], sizes = [16, 128], strides = [1, 1]} : vector<16x512xf32> to vector<16x128xf32>
    %437 = arith.negf %436 : vector<16x128xf32>
    %438 = math.exp %437 : vector<16x128xf32>
    %cst_191 = arith.constant 1.000000e+00 : f32
    %439 = vector.broadcast %cst_191 : f32 to vector<16x128xf32>
    %440 = arith.addf %439, %438 : vector<16x128xf32>
    %441 = arith.divf %439, %440 : vector<16x128xf32>
    %442 = arith.mulf %433, %414 : vector<16x128xf32>
    %443 = arith.mulf %427, %435 : vector<16x128xf32>
    %444 = arith.addf %442, %443 : vector<16x128xf32>
    %445 = math.tanh %444 : vector<16x128xf32>
    %446 = arith.mulf %441, %445 : vector<16x128xf32>
    %447 = arith.truncf %446 : vector<16x128xf32> to vector<16x128xbf16>
    %c0_192 = arith.constant 0 : index
    %c0_193 = arith.constant 0 : index
    %448 = vector.load %arg6[%c0_192, %c0_193] : memref<16x128xf32, #tpu.memory_space<vmem>>, vector<16x128xf32>
    tpu.vector_store %arg6[%c0_192, %c0_193], %444 {strides = array<i32>} : memref<16x128xf32, #tpu.memory_space<vmem>>, vector<16x128xf32>,
    %c0_194 = arith.constant 0 : index
    %c0_195 = arith.constant 0 : index
    %449 = vector.load %arg5[%c0_194, %c0_195] : memref<16x128xbf16, #tpu.memory_space<vmem>>, vector<16x128xbf16>
    tpu.vector_store %arg5[%c0_194, %c0_195], %447 {strides = array<i32>} : memref<16x128xbf16, #tpu.memory_space<vmem>>, vector<16x128xbf16>,
    %450 = arith.index_cast %c10_i32 : i32 to index
    %c0_196 = arith.constant 0 : index
    %c0_197 = arith.constant 0 : index
    %451 = vector.load %arg4[%450, %c0_196, %c0_197] : memref<16x16x128xbf16, #tpu.memory_space<vmem>>, vector<1x16x128xbf16>
    %452 = vector.shape_cast %451 : vector<1x16x128xbf16> to vector<16x128xbf16>
    %453 = vector.shape_cast %447 : vector<16x128xbf16> to vector<1x16x128xbf16>
    tpu.vector_store %arg4[%450, %c0_196, %c0_197], %453 {strides = array<i32>} : memref<16x16x128xbf16, #tpu.memory_space<vmem>>, vector<1x16x128xbf16>,
    %c11_i32 = arith.constant 11 : i32
    %c0_198 = arith.constant 0 : index
    %c0_199 = arith.constant 0 : index
    %454 = vector.load %arg5[%c0_198, %c0_199] : memref<16x128xbf16, #tpu.memory_space<vmem>>, vector<16x128xbf16>
    %c0_200 = arith.constant 0 : index
    %c0_201 = arith.constant 0 : index
    %455 = vector.load %arg6[%c0_200, %c0_201] : memref<16x128xf32, #tpu.memory_space<vmem>>, vector<16x128xf32>
    %456 = arith.index_cast %c11_i32 : i32 to index
    %c0_202 = arith.constant 0 : index
    %c0_203 = arith.constant 0 : index
    %457 = vector.load %arg2[%456, %c0_202, %c0_203] : memref<16x16x512xbf16, #tpu.memory_space<vmem>>, vector<1x16x512xbf16>
    %458 = vector.shape_cast %457 : vector<1x16x512xbf16> to vector<16x512xbf16>
    %459 = arith.extf %458 : vector<16x512xbf16> to vector<16x512xf32>
    %c0_204 = arith.constant 0 : index
    %c0_205 = arith.constant 0 : index
    %460 = vector.load %arg3[%c0_204, %c0_205] : memref<128x512xbf16, #tpu.memory_space<vmem>>, vector<128x512xbf16>
    %cst_206 = arith.constant dense<0.000000e+00> : vector<16x512xf32>
    %461 = tpu.matmul %454, %460, %cst_206 {dimension_numbers = #tpu.dot_dimension_numbers<[1], [0], [0], [1], [0, 0, 1, 1], [], []>} : vector<16x128xbf16>, vector<128x512xbf16>, vector<16x512xf32> -> vector<16x512xf32>
    %462 = arith.addf %459, %461 : vector<16x512xf32>
    %463 = vector.extract_strided_slice %462 {offsets = [0, 0], sizes = [16, 128], strides = [1, 1]} : vector<16x512xf32> to vector<16x128xf32>
    %464 = arith.negf %463 : vector<16x128xf32>
    %465 = math.exp %464 : vector<16x128xf32>
    %cst_207 = arith.constant 1.000000e+00 : f32
    %466 = vector.broadcast %cst_207 : f32 to vector<16x128xf32>
    %467 = arith.addf %466, %465 : vector<16x128xf32>
    %468 = arith.divf %466, %467 : vector<16x128xf32>
    %469 = vector.extract_strided_slice %462 {offsets = [0, 128], sizes = [16, 128], strides = [1, 1]} : vector<16x512xf32> to vector<16x128xf32>
    %470 = arith.negf %469 : vector<16x128xf32>
    %471 = math.exp %470 : vector<16x128xf32>
    %cst_208 = arith.constant 1.000000e+00 : f32
    %472 = vector.broadcast %cst_208 : f32 to vector<16x128xf32>
    %473 = arith.addf %472, %471 : vector<16x128xf32>
    %474 = arith.divf %472, %473 : vector<16x128xf32>
    %475 = vector.extract_strided_slice %462 {offsets = [0, 256], sizes = [16, 128], strides = [1, 1]} : vector<16x512xf32> to vector<16x128xf32>
    %476 = math.tanh %475 : vector<16x128xf32>
    %477 = vector.extract_strided_slice %462 {offsets = [0, 384], sizes = [16, 128], strides = [1, 1]} : vector<16x512xf32> to vector<16x128xf32>
    %478 = arith.negf %477 : vector<16x128xf32>
    %479 = math.exp %478 : vector<16x128xf32>
    %cst_209 = arith.constant 1.000000e+00 : f32
    %480 = vector.broadcast %cst_209 : f32 to vector<16x128xf32>
    %481 = arith.addf %480, %479 : vector<16x128xf32>
    %482 = arith.divf %480, %481 : vector<16x128xf32>
    %483 = arith.mulf %474, %455 : vector<16x128xf32>
    %484 = arith.mulf %468, %476 : vector<16x128xf32>
    %485 = arith.addf %483, %484 : vector<16x128xf32>
    %486 = math.tanh %485 : vector<16x128xf32>
    %487 = arith.mulf %482, %486 : vector<16x128xf32>
    %488 = arith.truncf %487 : vector<16x128xf32> to vector<16x128xbf16>
    %c0_210 = arith.constant 0 : index
    %c0_211 = arith.constant 0 : index
    %489 = vector.load %arg6[%c0_210, %c0_211] : memref<16x128xf32, #tpu.memory_space<vmem>>, vector<16x128xf32>
    tpu.vector_store %arg6[%c0_210, %c0_211], %485 {strides = array<i32>} : memref<16x128xf32, #tpu.memory_space<vmem>>, vector<16x128xf32>,
    %c0_212 = arith.constant 0 : index
    %c0_213 = arith.constant 0 : index
    %490 = vector.load %arg5[%c0_212, %c0_213] : memref<16x128xbf16, #tpu.memory_space<vmem>>, vector<16x128xbf16>
    tpu.vector_store %arg5[%c0_212, %c0_213], %488 {strides = array<i32>} : memref<16x128xbf16, #tpu.memory_space<vmem>>, vector<16x128xbf16>,
    %491 = arith.index_cast %c11_i32 : i32 to index
    %c0_214 = arith.constant 0 : index
    %c0_215 = arith.constant 0 : index
    %492 = vector.load %arg4[%491, %c0_214, %c0_215] : memref<16x16x128xbf16, #tpu.memory_space<vmem>>, vector<1x16x128xbf16>
    %493 = vector.shape_cast %492 : vector<1x16x128xbf16> to vector<16x128xbf16>
    %494 = vector.shape_cast %488 : vector<16x128xbf16> to vector<1x16x128xbf16>
    tpu.vector_store %arg4[%491, %c0_214, %c0_215], %494 {strides = array<i32>} : memref<16x16x128xbf16, #tpu.memory_space<vmem>>, vector<1x16x128xbf16>,
    %c12_i32 = arith.constant 12 : i32
    %c0_216 = arith.constant 0 : index
    %c0_217 = arith.constant 0 : index
    %495 = vector.load %arg5[%c0_216, %c0_217] : memref<16x128xbf16, #tpu.memory_space<vmem>>, vector<16x128xbf16>
    %c0_218 = arith.constant 0 : index
    %c0_219 = arith.constant 0 : index
    %496 = vector.load %arg6[%c0_218, %c0_219] : memref<16x128xf32, #tpu.memory_space<vmem>>, vector<16x128xf32>
    %497 = arith.index_cast %c12_i32 : i32 to index
    %c0_220 = arith.constant 0 : index
    %c0_221 = arith.constant 0 : index
    %498 = vector.load %arg2[%497, %c0_220, %c0_221] : memref<16x16x512xbf16, #tpu.memory_space<vmem>>, vector<1x16x512xbf16>
    %499 = vector.shape_cast %498 : vector<1x16x512xbf16> to vector<16x512xbf16>
    %500 = arith.extf %499 : vector<16x512xbf16> to vector<16x512xf32>
    %c0_222 = arith.constant 0 : index
    %c0_223 = arith.constant 0 : index
    %501 = vector.load %arg3[%c0_222, %c0_223] : memref<128x512xbf16, #tpu.memory_space<vmem>>, vector<128x512xbf16>
    %cst_224 = arith.constant dense<0.000000e+00> : vector<16x512xf32>
    %502 = tpu.matmul %495, %501, %cst_224 {dimension_numbers = #tpu.dot_dimension_numbers<[1], [0], [0], [1], [0, 0, 1, 1], [], []>} : vector<16x128xbf16>, vector<128x512xbf16>, vector<16x512xf32> -> vector<16x512xf32>
    %503 = arith.addf %500, %502 : vector<16x512xf32>
    %504 = vector.extract_strided_slice %503 {offsets = [0, 0], sizes = [16, 128], strides = [1, 1]} : vector<16x512xf32> to vector<16x128xf32>
    %505 = arith.negf %504 : vector<16x128xf32>
    %506 = math.exp %505 : vector<16x128xf32>
    %cst_225 = arith.constant 1.000000e+00 : f32
    %507 = vector.broadcast %cst_225 : f32 to vector<16x128xf32>
    %508 = arith.addf %507, %506 : vector<16x128xf32>
    %509 = arith.divf %507, %508 : vector<16x128xf32>
    %510 = vector.extract_strided_slice %503 {offsets = [0, 128], sizes = [16, 128], strides = [1, 1]} : vector<16x512xf32> to vector<16x128xf32>
    %511 = arith.negf %510 : vector<16x128xf32>
    %512 = math.exp %511 : vector<16x128xf32>
    %cst_226 = arith.constant 1.000000e+00 : f32
    %513 = vector.broadcast %cst_226 : f32 to vector<16x128xf32>
    %514 = arith.addf %513, %512 : vector<16x128xf32>
    %515 = arith.divf %513, %514 : vector<16x128xf32>
    %516 = vector.extract_strided_slice %503 {offsets = [0, 256], sizes = [16, 128], strides = [1, 1]} : vector<16x512xf32> to vector<16x128xf32>
    %517 = math.tanh %516 : vector<16x128xf32>
    %518 = vector.extract_strided_slice %503 {offsets = [0, 384], sizes = [16, 128], strides = [1, 1]} : vector<16x512xf32> to vector<16x128xf32>
    %519 = arith.negf %518 : vector<16x128xf32>
    %520 = math.exp %519 : vector<16x128xf32>
    %cst_227 = arith.constant 1.000000e+00 : f32
    %521 = vector.broadcast %cst_227 : f32 to vector<16x128xf32>
    %522 = arith.addf %521, %520 : vector<16x128xf32>
    %523 = arith.divf %521, %522 : vector<16x128xf32>
    %524 = arith.mulf %515, %496 : vector<16x128xf32>
    %525 = arith.mulf %509, %517 : vector<16x128xf32>
    %526 = arith.addf %524, %525 : vector<16x128xf32>
    %527 = math.tanh %526 : vector<16x128xf32>
    %528 = arith.mulf %523, %527 : vector<16x128xf32>
    %529 = arith.truncf %528 : vector<16x128xf32> to vector<16x128xbf16>
    %c0_228 = arith.constant 0 : index
    %c0_229 = arith.constant 0 : index
    %530 = vector.load %arg6[%c0_228, %c0_229] : memref<16x128xf32, #tpu.memory_space<vmem>>, vector<16x128xf32>
    tpu.vector_store %arg6[%c0_228, %c0_229], %526 {strides = array<i32>} : memref<16x128xf32, #tpu.memory_space<vmem>>, vector<16x128xf32>,
    %c0_230 = arith.constant 0 : index
    %c0_231 = arith.constant 0 : index
    %531 = vector.load %arg5[%c0_230, %c0_231] : memref<16x128xbf16, #tpu.memory_space<vmem>>, vector<16x128xbf16>
    tpu.vector_store %arg5[%c0_230, %c0_231], %529 {strides = array<i32>} : memref<16x128xbf16, #tpu.memory_space<vmem>>, vector<16x128xbf16>,
    %532 = arith.index_cast %c12_i32 : i32 to index
    %c0_232 = arith.constant 0 : index
    %c0_233 = arith.constant 0 : index
    %533 = vector.load %arg4[%532, %c0_232, %c0_233] : memref<16x16x128xbf16, #tpu.memory_space<vmem>>, vector<1x16x128xbf16>
    %534 = vector.shape_cast %533 : vector<1x16x128xbf16> to vector<16x128xbf16>
    %535 = vector.shape_cast %529 : vector<16x128xbf16> to vector<1x16x128xbf16>
    tpu.vector_store %arg4[%532, %c0_232, %c0_233], %535 {strides = array<i32>} : memref<16x16x128xbf16, #tpu.memory_space<vmem>>, vector<1x16x128xbf16>,
    %c13_i32 = arith.constant 13 : i32
    %c0_234 = arith.constant 0 : index
    %c0_235 = arith.constant 0 : index
    %536 = vector.load %arg5[%c0_234, %c0_235] : memref<16x128xbf16, #tpu.memory_space<vmem>>, vector<16x128xbf16>
    %c0_236 = arith.constant 0 : index
    %c0_237 = arith.constant 0 : index
    %537 = vector.load %arg6[%c0_236, %c0_237] : memref<16x128xf32, #tpu.memory_space<vmem>>, vector<16x128xf32>
    %538 = arith.index_cast %c13_i32 : i32 to index
    %c0_238 = arith.constant 0 : index
    %c0_239 = arith.constant 0 : index
    %539 = vector.load %arg2[%538, %c0_238, %c0_239] : memref<16x16x512xbf16, #tpu.memory_space<vmem>>, vector<1x16x512xbf16>
    %540 = vector.shape_cast %539 : vector<1x16x512xbf16> to vector<16x512xbf16>
    %541 = arith.extf %540 : vector<16x512xbf16> to vector<16x512xf32>
    %c0_240 = arith.constant 0 : index
    %c0_241 = arith.constant 0 : index
    %542 = vector.load %arg3[%c0_240, %c0_241] : memref<128x512xbf16, #tpu.memory_space<vmem>>, vector<128x512xbf16>
    %cst_242 = arith.constant dense<0.000000e+00> : vector<16x512xf32>
    %543 = tpu.matmul %536, %542, %cst_242 {dimension_numbers = #tpu.dot_dimension_numbers<[1], [0], [0], [1], [0, 0, 1, 1], [], []>} : vector<16x128xbf16>, vector<128x512xbf16>, vector<16x512xf32> -> vector<16x512xf32>
    %544 = arith.addf %541, %543 : vector<16x512xf32>
    %545 = vector.extract_strided_slice %544 {offsets = [0, 0], sizes = [16, 128], strides = [1, 1]} : vector<16x512xf32> to vector<16x128xf32>
    %546 = arith.negf %545 : vector<16x128xf32>
    %547 = math.exp %546 : vector<16x128xf32>
    %cst_243 = arith.constant 1.000000e+00 : f32
    %548 = vector.broadcast %cst_243 : f32 to vector<16x128xf32>
    %549 = arith.addf %548, %547 : vector<16x128xf32>
    %550 = arith.divf %548, %549 : vector<16x128xf32>
    %551 = vector.extract_strided_slice %544 {offsets = [0, 128], sizes = [16, 128], strides = [1, 1]} : vector<16x512xf32> to vector<16x128xf32>
    %552 = arith.negf %551 : vector<16x128xf32>
    %553 = math.exp %552 : vector<16x128xf32>
    %cst_244 = arith.constant 1.000000e+00 : f32
    %554 = vector.broadcast %cst_244 : f32 to vector<16x128xf32>
    %555 = arith.addf %554, %553 : vector<16x128xf32>
    %556 = arith.divf %554, %555 : vector<16x128xf32>
    %557 = vector.extract_strided_slice %544 {offsets = [0, 256], sizes = [16, 128], strides = [1, 1]} : vector<16x512xf32> to vector<16x128xf32>
    %558 = math.tanh %557 : vector<16x128xf32>
    %559 = vector.extract_strided_slice %544 {offsets = [0, 384], sizes = [16, 128], strides = [1, 1]} : vector<16x512xf32> to vector<16x128xf32>
    %560 = arith.negf %559 : vector<16x128xf32>
    %561 = math.exp %560 : vector<16x128xf32>
    %cst_245 = arith.constant 1.000000e+00 : f32
    %562 = vector.broadcast %cst_245 : f32 to vector<16x128xf32>
    %563 = arith.addf %562, %561 : vector<16x128xf32>
    %564 = arith.divf %562, %563 : vector<16x128xf32>
    %565 = arith.mulf %556, %537 : vector<16x128xf32>
    %566 = arith.mulf %550, %558 : vector<16x128xf32>
    %567 = arith.addf %565, %566 : vector<16x128xf32>
    %568 = math.tanh %567 : vector<16x128xf32>
    %569 = arith.mulf %564, %568 : vector<16x128xf32>
    %570 = arith.truncf %569 : vector<16x128xf32> to vector<16x128xbf16>
    %c0_246 = arith.constant 0 : index
    %c0_247 = arith.constant 0 : index
    %571 = vector.load %arg6[%c0_246, %c0_247] : memref<16x128xf32, #tpu.memory_space<vmem>>, vector<16x128xf32>
    tpu.vector_store %arg6[%c0_246, %c0_247], %567 {strides = array<i32>} : memref<16x128xf32, #tpu.memory_space<vmem>>, vector<16x128xf32>,
    %c0_248 = arith.constant 0 : index
    %c0_249 = arith.constant 0 : index
    %572 = vector.load %arg5[%c0_248, %c0_249] : memref<16x128xbf16, #tpu.memory_space<vmem>>, vector<16x128xbf16>
    tpu.vector_store %arg5[%c0_248, %c0_249], %570 {strides = array<i32>} : memref<16x128xbf16, #tpu.memory_space<vmem>>, vector<16x128xbf16>,
    %573 = arith.index_cast %c13_i32 : i32 to index
    %c0_250 = arith.constant 0 : index
    %c0_251 = arith.constant 0 : index
    %574 = vector.load %arg4[%573, %c0_250, %c0_251] : memref<16x16x128xbf16, #tpu.memory_space<vmem>>, vector<1x16x128xbf16>
    %575 = vector.shape_cast %574 : vector<1x16x128xbf16> to vector<16x128xbf16>
    %576 = vector.shape_cast %570 : vector<16x128xbf16> to vector<1x16x128xbf16>
    tpu.vector_store %arg4[%573, %c0_250, %c0_251], %576 {strides = array<i32>} : memref<16x16x128xbf16, #tpu.memory_space<vmem>>, vector<1x16x128xbf16>,
    %c14_i32 = arith.constant 14 : i32
    %c0_252 = arith.constant 0 : index
    %c0_253 = arith.constant 0 : index
    %577 = vector.load %arg5[%c0_252, %c0_253] : memref<16x128xbf16, #tpu.memory_space<vmem>>, vector<16x128xbf16>
    %c0_254 = arith.constant 0 : index
    %c0_255 = arith.constant 0 : index
    %578 = vector.load %arg6[%c0_254, %c0_255] : memref<16x128xf32, #tpu.memory_space<vmem>>, vector<16x128xf32>
    %579 = arith.index_cast %c14_i32 : i32 to index
    %c0_256 = arith.constant 0 : index
    %c0_257 = arith.constant 0 : index
    %580 = vector.load %arg2[%579, %c0_256, %c0_257] : memref<16x16x512xbf16, #tpu.memory_space<vmem>>, vector<1x16x512xbf16>
    %581 = vector.shape_cast %580 : vector<1x16x512xbf16> to vector<16x512xbf16>
    %582 = arith.extf %581 : vector<16x512xbf16> to vector<16x512xf32>
    %c0_258 = arith.constant 0 : index
    %c0_259 = arith.constant 0 : index
    %583 = vector.load %arg3[%c0_258, %c0_259] : memref<128x512xbf16, #tpu.memory_space<vmem>>, vector<128x512xbf16>
    %cst_260 = arith.constant dense<0.000000e+00> : vector<16x512xf32>
    %584 = tpu.matmul %577, %583, %cst_260 {dimension_numbers = #tpu.dot_dimension_numbers<[1], [0], [0], [1], [0, 0, 1, 1], [], []>} : vector<16x128xbf16>, vector<128x512xbf16>, vector<16x512xf32> -> vector<16x512xf32>
    %585 = arith.addf %582, %584 : vector<16x512xf32>
    %586 = vector.extract_strided_slice %585 {offsets = [0, 0], sizes = [16, 128], strides = [1, 1]} : vector<16x512xf32> to vector<16x128xf32>
    %587 = arith.negf %586 : vector<16x128xf32>
    %588 = math.exp %587 : vector<16x128xf32>
    %cst_261 = arith.constant 1.000000e+00 : f32
    %589 = vector.broadcast %cst_261 : f32 to vector<16x128xf32>
    %590 = arith.addf %589, %588 : vector<16x128xf32>
    %591 = arith.divf %589, %590 : vector<16x128xf32>
    %592 = vector.extract_strided_slice %585 {offsets = [0, 128], sizes = [16, 128], strides = [1, 1]} : vector<16x512xf32> to vector<16x128xf32>
    %593 = arith.negf %592 : vector<16x128xf32>
    %594 = math.exp %593 : vector<16x128xf32>
    %cst_262 = arith.constant 1.000000e+00 : f32
    %595 = vector.broadcast %cst_262 : f32 to vector<16x128xf32>
    %596 = arith.addf %595, %594 : vector<16x128xf32>
    %597 = arith.divf %595, %596 : vector<16x128xf32>
    %598 = vector.extract_strided_slice %585 {offsets = [0, 256], sizes = [16, 128], strides = [1, 1]} : vector<16x512xf32> to vector<16x128xf32>
    %599 = math.tanh %598 : vector<16x128xf32>
    %600 = vector.extract_strided_slice %585 {offsets = [0, 384], sizes = [16, 128], strides = [1, 1]} : vector<16x512xf32> to vector<16x128xf32>
    %601 = arith.negf %600 : vector<16x128xf32>
    %602 = math.exp %601 : vector<16x128xf32>
    %cst_263 = arith.constant 1.000000e+00 : f32
    %603 = vector.broadcast %cst_263 : f32 to vector<16x128xf32>
    %604 = arith.addf %603, %602 : vector<16x128xf32>
    %605 = arith.divf %603, %604 : vector<16x128xf32>
    %606 = arith.mulf %597, %578 : vector<16x128xf32>
    %607 = arith.mulf %591, %599 : vector<16x128xf32>
    %608 = arith.addf %606, %607 : vector<16x128xf32>
    %609 = math.tanh %608 : vector<16x128xf32>
    %610 = arith.mulf %605, %609 : vector<16x128xf32>
    %611 = arith.truncf %610 : vector<16x128xf32> to vector<16x128xbf16>
    %c0_264 = arith.constant 0 : index
    %c0_265 = arith.constant 0 : index
    %612 = vector.load %arg6[%c0_264, %c0_265] : memref<16x128xf32, #tpu.memory_space<vmem>>, vector<16x128xf32>
    tpu.vector_store %arg6[%c0_264, %c0_265], %608 {strides = array<i32>} : memref<16x128xf32, #tpu.memory_space<vmem>>, vector<16x128xf32>,
    %c0_266 = arith.constant 0 : index
    %c0_267 = arith.constant 0 : index
    %613 = vector.load %arg5[%c0_266, %c0_267] : memref<16x128xbf16, #tpu.memory_space<vmem>>, vector<16x128xbf16>
    tpu.vector_store %arg5[%c0_266, %c0_267], %611 {strides = array<i32>} : memref<16x128xbf16, #tpu.memory_space<vmem>>, vector<16x128xbf16>,
    %614 = arith.index_cast %c14_i32 : i32 to index
    %c0_268 = arith.constant 0 : index
    %c0_269 = arith.constant 0 : index
    %615 = vector.load %arg4[%614, %c0_268, %c0_269] : memref<16x16x128xbf16, #tpu.memory_space<vmem>>, vector<1x16x128xbf16>
    %616 = vector.shape_cast %615 : vector<1x16x128xbf16> to vector<16x128xbf16>
    %617 = vector.shape_cast %611 : vector<16x128xbf16> to vector<1x16x128xbf16>
    tpu.vector_store %arg4[%614, %c0_268, %c0_269], %617 {strides = array<i32>} : memref<16x16x128xbf16, #tpu.memory_space<vmem>>, vector<1x16x128xbf16>,
    %c15_i32 = arith.constant 15 : i32
    %c0_270 = arith.constant 0 : index
    %c0_271 = arith.constant 0 : index
    %618 = vector.load %arg5[%c0_270, %c0_271] : memref<16x128xbf16, #tpu.memory_space<vmem>>, vector<16x128xbf16>
    %c0_272 = arith.constant 0 : index
    %c0_273 = arith.constant 0 : index
    %619 = vector.load %arg6[%c0_272, %c0_273] : memref<16x128xf32, #tpu.memory_space<vmem>>, vector<16x128xf32>
    %620 = arith.index_cast %c15_i32 : i32 to index
    %c0_274 = arith.constant 0 : index
    %c0_275 = arith.constant 0 : index
    %621 = vector.load %arg2[%620, %c0_274, %c0_275] : memref<16x16x512xbf16, #tpu.memory_space<vmem>>, vector<1x16x512xbf16>
    %622 = vector.shape_cast %621 : vector<1x16x512xbf16> to vector<16x512xbf16>
    %623 = arith.extf %622 : vector<16x512xbf16> to vector<16x512xf32>
    %c0_276 = arith.constant 0 : index
    %c0_277 = arith.constant 0 : index
    %624 = vector.load %arg3[%c0_276, %c0_277] : memref<128x512xbf16, #tpu.memory_space<vmem>>, vector<128x512xbf16>
    %cst_278 = arith.constant dense<0.000000e+00> : vector<16x512xf32>
    %625 = tpu.matmul %618, %624, %cst_278 {dimension_numbers = #tpu.dot_dimension_numbers<[1], [0], [0], [1], [0, 0, 1, 1], [], []>} : vector<16x128xbf16>, vector<128x512xbf16>, vector<16x512xf32> -> vector<16x512xf32>
    %626 = arith.addf %623, %625 : vector<16x512xf32>
    %627 = vector.extract_strided_slice %626 {offsets = [0, 0], sizes = [16, 128], strides = [1, 1]} : vector<16x512xf32> to vector<16x128xf32>
    %628 = arith.negf %627 : vector<16x128xf32>
    %629 = math.exp %628 : vector<16x128xf32>
    %cst_279 = arith.constant 1.000000e+00 : f32
    %630 = vector.broadcast %cst_279 : f32 to vector<16x128xf32>
    %631 = arith.addf %630, %629 : vector<16x128xf32>
    %632 = arith.divf %630, %631 : vector<16x128xf32>
    %633 = vector.extract_strided_slice %626 {offsets = [0, 128], sizes = [16, 128], strides = [1, 1]} : vector<16x512xf32> to vector<16x128xf32>
    %634 = arith.negf %633 : vector<16x128xf32>
    %635 = math.exp %634 : vector<16x128xf32>
    %cst_280 = arith.constant 1.000000e+00 : f32
    %636 = vector.broadcast %cst_280 : f32 to vector<16x128xf32>
    %637 = arith.addf %636, %635 : vector<16x128xf32>
    %638 = arith.divf %636, %637 : vector<16x128xf32>
    %639 = vector.extract_strided_slice %626 {offsets = [0, 256], sizes = [16, 128], strides = [1, 1]} : vector<16x512xf32> to vector<16x128xf32>
    %640 = math.tanh %639 : vector<16x128xf32>
    %641 = vector.extract_strided_slice %626 {offsets = [0, 384], sizes = [16, 128], strides = [1, 1]} : vector<16x512xf32> to vector<16x128xf32>
    %642 = arith.negf %641 : vector<16x128xf32>
    %643 = math.exp %642 : vector<16x128xf32>
    %cst_281 = arith.constant 1.000000e+00 : f32
    %644 = vector.broadcast %cst_281 : f32 to vector<16x128xf32>
    %645 = arith.addf %644, %643 : vector<16x128xf32>
    %646 = arith.divf %644, %645 : vector<16x128xf32>
    %647 = arith.mulf %638, %619 : vector<16x128xf32>
    %648 = arith.mulf %632, %640 : vector<16x128xf32>
    %649 = arith.addf %647, %648 : vector<16x128xf32>
    %650 = math.tanh %649 : vector<16x128xf32>
    %651 = arith.mulf %646, %650 : vector<16x128xf32>
    %652 = arith.truncf %651 : vector<16x128xf32> to vector<16x128xbf16>
    %c0_282 = arith.constant 0 : index
    %c0_283 = arith.constant 0 : index
    %653 = vector.load %arg6[%c0_282, %c0_283] : memref<16x128xf32, #tpu.memory_space<vmem>>, vector<16x128xf32>
    tpu.vector_store %arg6[%c0_282, %c0_283], %649 {strides = array<i32>} : memref<16x128xf32, #tpu.memory_space<vmem>>, vector<16x128xf32>,
    %c0_284 = arith.constant 0 : index
    %c0_285 = arith.constant 0 : index
    %654 = vector.load %arg5[%c0_284, %c0_285] : memref<16x128xbf16, #tpu.memory_space<vmem>>, vector<16x128xbf16>
    tpu.vector_store %arg5[%c0_284, %c0_285], %652 {strides = array<i32>} : memref<16x128xbf16, #tpu.memory_space<vmem>>, vector<16x128xbf16>,
    %655 = arith.index_cast %c15_i32 : i32 to index
    %c0_286 = arith.constant 0 : index
    %c0_287 = arith.constant 0 : index
    %656 = vector.load %arg4[%655, %c0_286, %c0_287] : memref<16x16x128xbf16, #tpu.memory_space<vmem>>, vector<1x16x128xbf16>
    %657 = vector.shape_cast %656 : vector<1x16x128xbf16> to vector<16x128xbf16>
    %658 = vector.shape_cast %652 : vector<16x128xbf16> to vector<1x16x128xbf16>
    tpu.vector_store %arg4[%655, %c0_286, %c0_287], %658 {strides = array<i32>} : memref<16x16x128xbf16, #tpu.memory_space<vmem>>, vector<1x16x128xbf16>,
    %c16_i32 = arith.constant 16 : i32
    return
  }
  func.func @transform_0(%arg0: i32, %arg1: i32) -> (i32, i32, i32) {
    %c0_i32 = arith.constant 0 : i32
    %c0_i32_0 = arith.constant 0 : i32
    return %arg1, %arg0, %c0_i32 : i32, i32, i32
  }
  func.func @transform_1(%arg0: i32, %arg1: i32) -> (i32, i32) {
    %c0_i32 = arith.constant 0 : i32
    %c0_i32_0 = arith.constant 0 : i32
    %c0_i32_1 = arith.constant 0 : i32
    return %c0_i32, %c0_i32_0 : i32, i32
  }
  func.func @transform_2(%arg0: i32, %arg1: i32) -> (i32, i32, i32) {
    %c0_i32 = arith.constant 0 : i32
    %c0_i32_0 = arith.constant 0 : i32
    return %arg1, %arg0, %c0_i32 : i32, i32, i32
  }
}

</mosaic_0001>

<llo_original>
// kernel: lm_lstm_forward.5
$region0: #{lm_lstm_forward.5}
  #allocation0 [shape = 'u32[]', space=smem, size = 0x4, offset = 0x4, fixed_abs, tag = 'smem constant byte address 0x4 - core index']
  #allocation1 [shape = 'u32[144,128]{1,0:T(1,128)}', space=vmem, size = 0x12000, scoped, tag = 'internal scratch']
  %s0 = inlined_call_operand.vmem [shape: bf16[256,128], index: 0, kind: input, shape index: {}]
  %s1 = inlined_call_operand.vmem [shape: bf16[128,512], index: 1, kind: input, shape index: {}]
  %s2 = inlined_call_operand.vmem [shape: f32[1,512], index: 2, kind: input, shape index: {}]
  %s3 = inlined_call_operand.vmem [shape: f32[256,512], index: 3, kind: output, shape index: {}]
  %s4 = sld [smem:[#allocation0]]
  $region22: #{lm_lstm_forward.5} parent=0
    _
  %s6 = ssub.s32 1, %s4
  %s7 = scalar_select 0, %s6, %s4
  // Predicated region
  $region2: #{lm_lstm_forward.5} parent=0 // pred_check
    _
  $region3: #{lm_lstm_forward.5} parent=0 // pred_check_branch
    %9 = sbr.rel (0) target = $region5
  $region4: #{lm_lstm_forward.5} parent=0 // pred_region
    _
  $region5: #{lm_lstm_forward.5} parent=0 // pred_fallthru
    _
  // Predicated region
  $region6: #{lm_lstm_forward.5} parent=0 // pred_check
    _
  $region7: #{lm_lstm_forward.5} parent=0 // pred_check_branch
    %11 = sbr.rel (0) target = $region9
  $region8: #{lm_lstm_forward.5} parent=0 // pred_region
    _
  $region9: #{lm_lstm_forward.5} parent=0 // pred_fallthru
    _
  // Predicated region
  $region10: #{lm_lstm_forward.5} parent=0 // pred_check
    _
  $region11: #{lm_lstm_forward.5} parent=0 // pred_check_branch
    %13 = sbr.rel (0) target = $region13
  $region12: #{lm_lstm_forward.5} parent=0 // pred_region
    _
  $region13: #{lm_lstm_forward.5} parent=0 // pred_fallthru
    _
  %v15 = vld [vmem:[%s0] sm:$0xf]
  %v16 = vld [vmem:[%s0 + $0x4] sm:$0xf]
  %v17 = vld [vmem:[%s0 + $0x8] sm:$0xf]
  %v18 = vld [vmem:[%s0 + $0xc] sm:$0xf]
  %v19 = vld [vmem:[%s0 + $0x10] sm:$0xf]
  %v20 = vld [vmem:[%s0 + $0x14] sm:$0xf]
  %v21 = vld [vmem:[%s0 + $0x18] sm:$0xf]
  %v22 = vld [vmem:[%s0 + $0x1c] sm:$0xf]
  %v23 = vld [vmem:[%s0 + $0x20] sm:$0xf]
  %v24 = vld [vmem:[%s0 + $0x24] sm:$0xf]
  %v25 = vld [vmem:[%s0 + $0x28] sm:$0xf]
  %v26 = vld [vmem:[%s0 + $0x2c] sm:$0xf]
  %v27 = vld [vmem:[%s0 + $0x30] sm:$0xf]
  %v28 = vld [vmem:[%s0 + $0x34] sm:$0xf]
  %v29 = vld [vmem:[%s0 + $0x38] sm:$0xf]
  %v30 = vld [vmem:[%s0 + $0x3c] sm:$0xf]
  %v31 = vld [vmem:[%s0 + $0x40] sm:$0xf]
  %v32 = vld [vmem:[%s0 + $0x44] sm:$0xf]
  %v33 = vld [vmem:[%s0 + $0x48] sm:$0xf]
  %v34 = vld [vmem:[%s0 + $0x4c] sm:$0xf]
  %v35 = vld [vmem:[%s0 + $0x50] sm:$0xf]
  %v36 = vld [vmem:[%s0 + $0x54] sm:$0xf]
  %v37 = vld [vmem:[%s0 + $0x58] sm:$0xf]
  %v38 = vld [vmem:[%s0 + $0x5c] sm:$0xf]
  %v39 = vld [vmem:[%s0 + $0x60] sm:$0xf]
  %v40 = vld [vmem:[%s0 + $0x64] sm:$0xf]
  %v41 = vld [vmem:[%s0 + $0x68] sm:$0xf]
  %v42 = vld [vmem:[%s0 + $0x6c] sm:$0xf]
  %v43 = vld [vmem:[%s0 + $0x70] sm:$0xf]
  %v44 = vld [vmem:[%s0 + $0x74] sm:$0xf]
  %v45 = vld [vmem:[%s0 + $0x78] sm:$0xf]
  %v46 = vld [vmem:[%s0 + $0x7c] sm:$0xf]
  %v47 = vld [vmem:[%s1] sm:$0xff]
  %v48 = vld [vmem:[%s1 + $0x8] sm:$0xff]
  %v49 = vld [vmem:[%s1 + $0x10] sm:$0xff]
  %v50 = vld [vmem:[%s1 + $0x18] sm:$0xff]
  %v51 = vld [vmem:[%s1 + $0x20] sm:$0xff]
  %v52 = vld [vmem:[%s1 + $0x28] sm:$0xff]
  %v53 = vld [vmem:[%s1 + $0x30] sm:$0xff]
  %v54 = vld [vmem:[%s1 + $0x38] sm:$0xff]
  %v55 = vld [vmem:[%s1 + $0x40] sm:$0xff]
  %v56 = vld [vmem:[%s1 + $0x48] sm:$0xff]
  %v57 = vld [vmem:[%s1 + $0x50] sm:$0xff]
  %v58 = vld [vmem:[%s1 + $0x58] sm:$0xff]
  %v59 = vld [vmem:[%s1 + $0x60] sm:$0xff]
  %v60 = vld [vmem:[%s1 + $0x68] sm:$0xff]
  %v61 = vld [vmem:[%s1 + $0x70] sm:$0xff]
  %v62 = vld [vmem:[%s1 + $0x78] sm:$0xff]
  %v63 = vld [vmem:[%s1 + $0x80] sm:$0xff]
  %v64 = vld [vmem:[%s1 + $0x88] sm:$0xff]
  %v65 = vld [vmem:[%s1 + $0x90] sm:$0xff]
  %v66 = vld [vmem:[%s1 + $0x98] sm:$0xff]
  %v67 = vld [vmem:[%s1 + $0xa0] sm:$0xff]
  %v68 = vld [vmem:[%s1 + $0xa8] sm:$0xff]
  %v69 = vld [vmem:[%s1 + $0xb0] sm:$0xff]
  %v70 = vld [vmem:[%s1 + $0xb8] sm:$0xff]
  %v71 = vld [vmem:[%s1 + $0xc0] sm:$0xff]
  %v72 = vld [vmem:[%s1 + $0xc8] sm:$0xff]
  %v73 = vld [vmem:[%s1 + $0xd0] sm:$0xff]
  %v74 = vld [vmem:[%s1 + $0xd8] sm:$0xff]
  %v75 = vld [vmem:[%s1 + $0xe0] sm:$0xff]
  %v76 = vld [vmem:[%s1 + $0xe8] sm:$0xff]
  %v77 = vld [vmem:[%s1 + $0xf0] sm:$0xff]
  %v78 = vld [vmem:[%s1 + $0xf8] sm:$0xff]
  %v79 = vld [vmem:[%s2] sm:$0xf]
  %v81 = vlaneseq
  %v82 = vshrl.u32 %v81, 7
  %v83 = vsub.s32 0, %v82
  %v84 = vrot.slane %v79, %v83
  %v85 = vlaneseq
  %v86 = vshrl.u32 %v85, 7
  %v87 = vsub.s32 1, %v86
  %v88 = vrot.slane %v79, %v87
  %v89 = vlaneseq
  %v90 = vshrl.u32 %v89, 7
  %v91 = vsub.s32 2, %v90
  %v92 = vrot.slane %v79, %v91
  %v93 = vlaneseq
  %v94 = vshrl.u32 %v93, 7
  %v95 = vsub.s32 3, %v94
  %v96 = vrot.slane %v79, %v95
  %v133 = vunpack.c.l.b16 %v15
  %v134 = vunpack.c.l.b16 %v16
  %v135 = vunpack.c.l.b16 %v17
  %v136 = vunpack.c.l.b16 %v18
  %v137 = vunpack.c.l.b16 %v19
  %v138 = vunpack.c.l.b16 %v20
  %v139 = vunpack.c.l.b16 %v21
  %v140 = vunpack.c.l.b16 %v22
  %v141 = vunpack.c.l.b16 %v23
  %v142 = vunpack.c.l.b16 %v24
  %v143 = vunpack.c.l.b16 %v25
  %v144 = vunpack.c.l.b16 %v26
  %v145 = vunpack.c.l.b16 %v27
  %v146 = vunpack.c.l.b16 %v28
  %v147 = vunpack.c.l.b16 %v29
  %v148 = vunpack.c.l.b16 %v30
  %v149 = vunpack.c.l.b16 %v31
  %v150 = vunpack.c.l.b16 %v32
  %v151 = vunpack.c.l.b16 %v33
  %v152 = vunpack.c.l.b16 %v34
  %v153 = vunpack.c.l.b16 %v35
  %v154 = vunpack.c.l.b16 %v36
  %v155 = vunpack.c.l.b16 %v37
  %v156 = vunpack.c.l.b16 %v38
  %v157 = vunpack.c.l.b16 %v39
  %v158 = vunpack.c.l.b16 %v40
  %v159 = vunpack.c.l.b16 %v41
  %v160 = vunpack.c.l.b16 %v42
  %v161 = vunpack.c.l.b16 %v43
  %v162 = vunpack.c.l.b16 %v44
  %v163 = vunpack.c.l.b16 %v45
  %v164 = vunpack.c.l.b16 %v46
  %v165 = vpack.c.b16 %v134, %v133
  %v166 = vpack.c.b16 %v136, %v135
  %v167 = vpack.c.b16 %v138, %v137
  %v168 = vpack.c.b16 %v140, %v139
  %v169 = vpack.c.b16 %v142, %v141
  %v170 = vpack.c.b16 %v144, %v143
  %v171 = vpack.c.b16 %v146, %v145
  %v172 = vpack.c.b16 %v148, %v147
  %v173 = vpack.c.b16 %v150, %v149
  %v174 = vpack.c.b16 %v152, %v151
  %v175 = vpack.c.b16 %v154, %v153
  %v176 = vpack.c.b16 %v156, %v155
  %v177 = vpack.c.b16 %v158, %v157
  %v178 = vpack.c.b16 %v160, %v159
  %v179 = vpack.c.b16 %v162, %v161
  %v180 = vpack.c.b16 %v164, %v163
  %v229 = vunpack.c.l.b16 %v47
  %v230 = vunpack.c.h.b16 %v47
  %v231 = vunpack.c.l.b16 %v48
  %v232 = vunpack.c.h.b16 %v48
  %v233 = vunpack.c.l.b16 %v49
  %v234 = vunpack.c.h.b16 %v49
  %v235 = vunpack.c.l.b16 %v50
  %v236 = vunpack.c.h.b16 %v50
  %v237 = vunpack.c.l.b16 %v51
  %v238 = vunpack.c.h.b16 %v51
  %v239 = vunpack.c.l.b16 %v52
  %v240 = vunpack.c.h.b16 %v52
  %v241 = vunpack.c.l.b16 %v53
  %v242 = vunpack.c.h.b16 %v53
  %v243 = vunpack.c.l.b16 %v54
  %v244 = vunpack.c.h.b16 %v54
  %v245 = vunpack.c.l.b16 %v55
  %v246 = vunpack.c.h.b16 %v55
  %v247 = vunpack.c.l.b16 %v56
  %v248 = vunpack.c.h.b16 %v56
  %v249 = vunpack.c.l.b16 %v57
  %v250 = vunpack.c.h.b16 %v57
  %v251 = vunpack.c.l.b16 %v58
  %v252 = vunpack.c.h.b16 %v58
  %v253 = vunpack.c.l.b16 %v59
  %v254 = vunpack.c.h.b16 %v59
  %v255 = vunpack.c.l.b16 %v60
  %v256 = vunpack.c.h.b16 %v60
  %v257 = vunpack.c.l.b16 %v61
  %v258 = vunpack.c.h.b16 %v61
  %v259 = vunpack.c.l.b16 %v62
  %v260 = vunpack.c.h.b16 %v62
  %v261 = vunpack.c.l.b16 %v63
  %v262 = vunpack.c.h.b16 %v63
  %v263 = vunpack.c.l.b16 %v64
  %v264 = vunpack.c.h.b16 %v64
  %v265 = vunpack.c.l.b16 %v65
  %v266 = vunpack.c.h.b16 %v65
  %v267 = vunpack.c.l.b16 %v66
  %v268 = vunpack.c.h.b16 %v66
  %v269 = vunpack.c.l.b16 %v67
  %v270 = vunpack.c.h.b16 %v67
  %v271 = vunpack.c.l.b16 %v68
  %v272 = vunpack.c.h.b16 %v68
  %v273 = vunpack.c.l.b16 %v69
  %v274 = vunpack.c.h.b16 %v69
  %v275 = vunpack.c.l.b16 %v70
  %v276 = vunpack.c.h.b16 %v70
  %v277 = vunpack.c.l.b16 %v71
  %v278 = vunpack.c.h.b16 %v71
  %v279 = vunpack.c.l.b16 %v72
  %v280 = vunpack.c.h.b16 %v72
  %v281 = vunpack.c.l.b16 %v73
  %v282 = vunpack.c.h.b16 %v73
  %v283 = vunpack.c.l.b16 %v74
  %v284 = vunpack.c.h.b16 %v74
  %v285 = vunpack.c.l.b16 %v75
  %v286 = vunpack.c.h.b16 %v75
  %v287 = vunpack.c.l.b16 %v76
  %v288 = vunpack.c.h.b16 %v76
  %v289 = vunpack.c.l.b16 %v77
  %v290 = vunpack.c.h.b16 %v77
  %v291 = vunpack.c.l.b16 %v78
  %v292 = vunpack.c.h.b16 %v78
  %v293 = vpack.c.b16 %v233, %v229
  %v294 = vpack.c.b16 %v234, %v230
  %v295 = vpack.c.b16 %v235, %v231
  %v296 = vpack.c.b16 %v236, %v232
  %v297 = vpack.c.b16 %v241, %v237
  %v298 = vpack.c.b16 %v242, %v238
  %v299 = vpack.c.b16 %v243, %v239
  %v300 = vpack.c.b16 %v244, %v240
  %v301 = vpack.c.b16 %v249, %v245
  %v302 = vpack.c.b16 %v250, %v246
  %v303 = vpack.c.b16 %v251, %v247
  %v304 = vpack.c.b16 %v252, %v248
  %v305 = vpack.c.b16 %v257, %v253
  %v306 = vpack.c.b16 %v258, %v254
  %v307 = vpack.c.b16 %v259, %v255
  %v308 = vpack.c.b16 %v260, %v256
  %v309 = vpack.c.b16 %v265, %v261
  %v310 = vpack.c.b16 %v266, %v262
  %v311 = vpack.c.b16 %v267, %v263
  %v312 = vpack.c.b16 %v268, %v264
  %v313 = vpack.c.b16 %v273, %v269
  %v314 = vpack.c.b16 %v274, %v270
  %v315 = vpack.c.b16 %v275, %v271
  %v316 = vpack.c.b16 %v276, %v272
  %v317 = vpack.c.b16 %v281, %v277
  %v318 = vpack.c.b16 %v282, %v278
  %v319 = vpack.c.b16 %v283, %v279
  %v320 = vpack.c.b16 %v284, %v280
  %v321 = vpack.c.b16 %v289, %v285
  %v322 = vpack.c.b16 %v290, %v286
  %v323 = vpack.c.b16 %v291, %v287
  %v324 = vpack.c.b16 %v292, %v288
  %357 = vmatprep.subr.bf16.mxu0 %v294
  %358 = vmatpush1.bf16.msra.mxu0 %v293
  %359 = vmatprep.subr.bf16.mxu0 %v298
  %360 = vmatpush1.bf16.msra.mxu0 %v297
  %361 = vmatprep.subr.bf16.mxu0 %v302
  %362 = vmatpush1.bf16.msra.mxu0 %v301
  %363 = vmatprep.subr.bf16.mxu0 %v306
  %364 = vmatpush1.bf16.msra.mxu0 %v305
  %365 = vmatprep.subr.bf16.mxu0 %v310
  %366 = vmatpush1.bf16.msra.mxu0 %v309
  %367 = vmatprep.subr.bf16.mxu0 %v314
  %368 = vmatpush1.bf16.msra.mxu0 %v313
  %369 = vmatprep.subr.bf16.mxu0 %v318
  %370 = vmatpush1.bf16.msra.mxu0 %v317
  %371 = vmatprep.subr.bf16.mxu0 %v322
  %372 = vmatpush1.bf16.msra.mxu0 %v321
  %373 = vmatprep.subr.bf16.mxu0 0
  %374 = vmatpush1.bf16.msra.mxu0 0
  %375 = vmatprep.subr.bf16.mxu0 0
  %376 = vmatpush1.bf16.msra.mxu0 0
  %377 = vmatprep.subr.bf16.mxu0 0
  %378 = vmatpush1.bf16.msra.mxu0 0
  %379 = vmatprep.subr.bf16.mxu0 0
  %380 = vmatpush1.bf16.msra.mxu0 0
  %381 = vmatprep.subr.bf16.mxu0 0
  %382 = vmatpush1.bf16.msra.mxu0 0
  %383 = vmatprep.subr.bf16.mxu0 0
  %384 = vmatpush1.bf16.msra.mxu0 0
  %385 = vmatprep.subr.bf16.mxu0 0
  %386 = vmatpush1.bf16.msra.mxu0 0
  %387 = vmatprep.subr.bf16.mxu0 0
  %388 = vmatpush1.bf16.msra.mxu0 0
  %389 = vmatprep.mubr.bf16.mxu0 0
  %390 = vmatmul.mubr.bf16.gmra.mrb[0].mxu0 %v165
  %v391 = vpop.f32.mrb[0].mxu0
  %v392 = vadd.f32 %v84, %v391
  %v393 = vpop.f32.mrb[0].mxu0
  %v394 = vadd.f32 %v88, %v393
  %v395 = vpop.f32.mrb[0].mxu0
  %v396 = vadd.f32 %v84, %v395
  %v397 = vpop.f32.mrb[0].mxu0
  %v398 = vadd.f32 %v88, %v397
  %399 = vmatprep.mubr.bf16.mxu0 0
  %400 = vmatmul.mubr.bf16.gmra.mrb[0].mxu0 %v166
  %v401 = vpop.f32.mrb[0].mxu0
  %v402 = vadd.f32 %v84, %v401
  %v403 = vpop.f32.mrb[0].mxu0
  %v404 = vadd.f32 %v88, %v403
  %v405 = vpop.f32.mrb[0].mxu0
  %v406 = vadd.f32 %v84, %v405
  %v407 = vpop.f32.mrb[0].mxu0
  %v408 = vadd.f32 %v88, %v407
  %409 = vmatprep.mubr.bf16.mxu0 0
  %410 = vmatmul.mubr.bf16.gmra.mrb[0].mxu0 %v167
  %v411 = vpop.f32.mrb[0].mxu0
  %v412 = vadd.f32 %v84, %v411
  %v413 = vpop.f32.mrb[0].mxu0
  %v414 = vadd.f32 %v88, %v413
  %v415 = vpop.f32.mrb[0].mxu0
  %v416 = vadd.f32 %v84, %v415
  %v417 = vpop.f32.mrb[0].mxu0
  %v418 = vadd.f32 %v88, %v417
  %419 = vmatprep.mubr.bf16.mxu0 0
  %420 = vmatmul.mubr.bf16.gmra.mrb[0].mxu0 %v168
  %v421 = vpop.f32.mrb[0].mxu0
  %v422 = vadd.f32 %v84, %v421
  %v423 = vpop.f32.mrb[0].mxu0
  %v424 = vadd.f32 %v88, %v423
  %v425 = vpop.f32.mrb[0].mxu0
  %v426 = vadd.f32 %v84, %v425
  %v427 = vpop.f32.mrb[0].mxu0
  %v428 = vadd.f32 %v88, %v427
  %429 = vmatprep.mubr.bf16.mxu0 0
  %430 = vmatmul.mubr.bf16.gmra.mrb[0].mxu0 %v169
  %v431 = vpop.f32.mrb[0].mxu0
  %v432 = vadd.f32 %v84, %v431
  %v433 = vpop.f32.mrb[0].mxu0
  %v434 = vadd.f32 %v88, %v433
  %v435 = vpop.f32.mrb[0].mxu0
  %v436 = vadd.f32 %v84, %v435
  %v437 = vpop.f32.mrb[0].mxu0
  %v438 = vadd.f32 %v88, %v437
  %439 = vmatprep.mubr.bf16.mxu0 0
  %440 = vmatmul.mubr.bf16.gmra.mrb[0].mxu0 %v170
  %v441 = vpop.f32.mrb[0].mxu0
  %v442 = vadd.f32 %v84, %v441
  %v443 = vpop.f32.mrb[0].mxu0
  %v444 = vadd.f32 %v88, %v443
  %v445 = vpop.f32.mrb[0].mxu0
  %v446 = vadd.f32 %v84, %v445
  %v447 = vpop.f32.mrb[0].mxu0
  %v448 = vadd.f32 %v88, %v447
  %449 = vmatprep.mubr.bf16.mxu0 0
  %450 = vmatmul.mubr.bf16.gmra.mrb[0].mxu0 %v171
  %v451 = vpop.f32.mrb[0].mxu0
  %v452 = vadd.f32 %v84, %v451
  %v453 = vpop.f32.mrb[0].mxu0
  %v454 = vadd.f32 %v88, %v453
  %v455 = vpop.f32.mrb[0].mxu0
  %v456 = vadd.f32 %v84, %v455
  %v457 = vpop.f32.mrb[0].mxu0
  %v458 = vadd.f32 %v88, %v457
  %459 = vmatprep.mubr.bf16.mxu0 0
  %460 = vmatmul.mubr.bf16.gmra.mrb[0].mxu0 %v172
  %v461 = vpop.f32.mrb[0].mxu0
  %v462 = vadd.f32 %v84, %v461
  %v463 = vpop.f32.mrb[0].mxu0
  %v464 = vadd.f32 %v88, %v463
  %v465 = vpop.f32.mrb[0].mxu0
  %v466 = vadd.f32 %v84, %v465
  %v467 = vpop.f32.mrb[0].mxu0
  %v468 = vadd.f32 %v88, %v467
  %469 = vmatprep.mubr.bf16.mxu0 0
  %470 = vmatmul.mubr.bf16.gmra.mrb[0].mxu0 %v173
  %v471 = vpop.f32.mrb[0].mxu0
  %v472 = vadd.f32 %v84, %v471
  %v473 = vpop.f32.mrb[0].mxu0
  %v474 = vadd.f32 %v88, %v473
  %v475 = vpop.f32.mrb[0].mxu0
  %v476 = vadd.f32 %v84, %v475
  %v477 = vpop.f32.mrb[0].mxu0
  %v478 = vadd.f32 %v88, %v477
  %479 = vmatprep.mubr.bf16.mxu0 0
  %480 = vmatmul.mubr.bf16.gmra.mrb[0].mxu0 %v174
  %v481 = vpop.f32.mrb[0].mxu0
  %v482 = vadd.f32 %v84, %v481
  %v483 = vpop.f32.mrb[0].mxu0
  %v484 = vadd.f32 %v88, %v483
  %v485 = vpop.f32.mrb[0].mxu0
  %v486 = vadd.f32 %v84, %v485
  %v487 = vpop.f32.mrb[0].mxu0
  %v488 = vadd.f32 %v88, %v487
  %489 = vmatprep.mubr.bf16.mxu0 0
  %490 = vmatmul.mubr.bf16.gmra.mrb[0].mxu0 %v175
  %v491 = vpop.f32.mrb[0].mxu0
  %v492 = vadd.f32 %v84, %v491
  %v493 = vpop.f32.mrb[0].mxu0
  %v494 = vadd.f32 %v88, %v493
  %v495 = vpop.f32.mrb[0].mxu0
  %v496 = vadd.f32 %v84, %v495
  %v497 = vpop.f32.mrb[0].mxu0
  %v498 = vadd.f32 %v88, %v497
  %499 = vmatprep.mubr.bf16.mxu0 0
  %500 = vmatmul.mubr.bf16.gmra.mrb[0].mxu0 %v176
  %v501 = vpop.f32.mrb[0].mxu0
  %v502 = vadd.f32 %v84, %v501
  %v503 = vpop.f32.mrb[0].mxu0
  %v504 = vadd.f32 %v88, %v503
  %v505 = vpop.f32.mrb[0].mxu0
  %v506 = vadd.f32 %v84, %v505
  %v507 = vpop.f32.mrb[0].mxu0
  %v508 = vadd.f32 %v88, %v507
  %509 = vmatprep.mubr.bf16.mxu0 0
  %510 = vmatmul.mubr.bf16.gmra.mrb[0].mxu0 %v177
  %v511 = vpop.f32.mrb[0].mxu0
  %v512 = vadd.f32 %v84, %v511
  %v513 = vpop.f32.mrb[0].mxu0
  %v514 = vadd.f32 %v88, %v513
  %v515 = vpop.f32.mrb[0].mxu0
  %v516 = vadd.f32 %v84, %v515
  %v517 = vpop.f32.mrb[0].mxu0
  %v518 = vadd.f32 %v88, %v517
  %519 = vmatprep.mubr.bf16.mxu0 0
  %520 = vmatmul.mubr.bf16.gmra.mrb[0].mxu0 %v178
  %v521 = vpop.f32.mrb[0].mxu0
  %v522 = vadd.f32 %v84, %v521
  %v523 = vpop.f32.mrb[0].mxu0
  %v524 = vadd.f32 %v88, %v523
  %v525 = vpop.f32.mrb[0].mxu0
  %v526 = vadd.f32 %v84, %v525
  %v527 = vpop.f32.mrb[0].mxu0
  %v528 = vadd.f32 %v88, %v527
  %529 = vmatprep.mubr.bf16.mxu0 0
  %530 = vmatmul.mubr.bf16.gmra.mrb[0].mxu0 %v179
  %v531 = vpop.f32.mrb[0].mxu0
  %v532 = vadd.f32 %v84, %v531
  %v533 = vpop.f32.mrb[0].mxu0
  %v534 = vadd.f32 %v88, %v533
  %v535 = vpop.f32.mrb[0].mxu0
  %v536 = vadd.f32 %v84, %v535
  %v537 = vpop.f32.mrb[0].mxu0
  %v538 = vadd.f32 %v88, %v537
  %539 = vmatprep.mubr.bf16.mxu0 0
  %540 = vmatmul.mubr.bf16.gmra.mrb[0].mxu0 %v180
  %v541 = vpop.f32.mrb[0].mxu0
  %v542 = vadd.f32 %v84, %v541
  %v543 = vpop.f32.mrb[0].mxu0
  %v544 = vadd.f32 %v88, %v543
  %v545 = vpop.f32.mrb[0].mxu0
  %v546 = vadd.f32 %v84, %v545
  %v547 = vpop.f32.mrb[0].mxu0
  %v548 = vadd.f32 %v88, %v547
  %549 = vdwg.mxu0
  %550 = vmatprep.subr.bf16.mxu0 %v296
  %551 = vmatpush1.bf16.msra.mxu0 %v295
  %552 = vmatprep.subr.bf16.mxu0 %v300
  %553 = vmatpush1.bf16.msra.mxu0 %v299
  %554 = vmatprep.subr.bf16.mxu0 %v304
  %555 = vmatpush1.bf16.msra.mxu0 %v303
  %556 = vmatprep.subr.bf16.mxu0 %v308
  %557 = vmatpush1.bf16.msra.mxu0 %v307
  %558 = vmatprep.subr.bf16.mxu0 %v312
  %559 = vmatpush1.bf16.msra.mxu0 %v311
  %560 = vmatprep.subr.bf16.mxu0 %v316
  %561 = vmatpush1.bf16.msra.mxu0 %v315
  %562 = vmatprep.subr.bf16.mxu0 %v320
  %563 = vmatpush1.bf16.msra.mxu0 %v319
  %564 = vmatprep.subr.bf16.mxu0 %v324
  %565 = vmatpush1.bf16.msra.mxu0 %v323
  %566 = vmatprep.subr.bf16.mxu0 0
  %567 = vmatpush1.bf16.msra.mxu0 0
  %568 = vmatprep.subr.bf16.mxu0 0
  %569 = vmatpush1.bf16.msra.mxu0 0
  %570 = vmatprep.subr.bf16.mxu0 0
  %571 = vmatpush1.bf16.msra.mxu0 0
  %572 = vmatprep.subr.bf16.mxu0 0
  %573 = vmatpush1.bf16.msra.mxu0 0
  %574 = vmatprep.subr.bf16.mxu0 0
  %575 = vmatpush1.bf16.msra.mxu0 0
  %576 = vmatprep.subr.bf16.mxu0 0
  %577 = vmatpush1.bf16.msra.mxu0 0
  %578 = vmatprep.subr.bf16.mxu0 0
  %579 = vmatpush1.bf16.msra.mxu0 0
  %580 = vmatprep.subr.bf16.mxu0 0
  %581 = vmatpush1.bf16.msra.mxu0 0
  %582 = vmatprep.mubr.bf16.mxu0 0
  %583 = vmatmul.mubr.bf16.gmra.mrb[0].mxu0 %v165
  %v584 = vpop.f32.mrb[0].mxu0
  %v585 = vadd.f32 %v92, %v584
  %v586 = vpop.f32.mrb[0].mxu0
  %v587 = vadd.f32 %v96, %v586
  %v588 = vpop.f32.mrb[0].mxu0
  %v589 = vadd.f32 %v92, %v588
  %v590 = vpop.f32.mrb[0].mxu0
  %v591 = vadd.f32 %v96, %v590
  %592 = vmatprep.mubr.bf16.mxu0 0
  %593 = vmatmul.mubr.bf16.gmra.mrb[0].mxu0 %v166
  %v594 = vpop.f32.mrb[0].mxu0
  %v595 = vadd.f32 %v92, %v594
  %v596 = vpop.f32.mrb[0].mxu0
  %v597 = vadd.f32 %v96, %v596
  %v598 = vpop.f32.mrb[0].mxu0
  %v599 = vadd.f32 %v92, %v598
  %v600 = vpop.f32.mrb[0].mxu0
  %v601 = vadd.f32 %v96, %v600
  %602 = vmatprep.mubr.bf16.mxu0 0
  %603 = vmatmul.mubr.bf16.gmra.mrb[0].mxu0 %v167
  %v604 = vpop.f32.mrb[0].mxu0
  %v605 = vadd.f32 %v92, %v604
  %v606 = vpop.f32.mrb[0].mxu0
  %v607 = vadd.f32 %v96, %v606
  %v608 = vpop.f32.mrb[0].mxu0
  %v609 = vadd.f32 %v92, %v608
  %v610 = vpop.f32.mrb[0].mxu0
  %v611 = vadd.f32 %v96, %v610
  %612 = vmatprep.mubr.bf16.mxu0 0
  %613 = vmatmul.mubr.bf16.gmra.mrb[0].mxu0 %v168
  %v614 = vpop.f32.mrb[0].mxu0
  %v615 = vadd.f32 %v92, %v614
  %v616 = vpop.f32.mrb[0].mxu0
  %v617 = vadd.f32 %v96, %v616
  %v618 = vpop.f32.mrb[0].mxu0
  %v619 = vadd.f32 %v92, %v618
  %v620 = vpop.f32.mrb[0].mxu0
  %v621 = vadd.f32 %v96, %v620
  %622 = vmatprep.mubr.bf16.mxu0 0
  %623 = vmatmul.mubr.bf16.gmra.mrb[0].mxu0 %v169
  %v624 = vpop.f32.mrb[0].mxu0
  %v625 = vadd.f32 %v92, %v624
  %v626 = vpop.f32.mrb[0].mxu0
  %v627 = vadd.f32 %v96, %v626
  %v628 = vpop.f32.mrb[0].mxu0
  %v629 = vadd.f32 %v92, %v628
  %v630 = vpop.f32.mrb[0].mxu0
  %v631 = vadd.f32 %v96, %v630
  %632 = vmatprep.mubr.bf16.mxu0 0
  %633 = vmatmul.mubr.bf16.gmra.mrb[0].mxu0 %v170
  %v634 = vpop.f32.mrb[0].mxu0
  %v635 = vadd.f32 %v92, %v634
  %v636 = vpop.f32.mrb[0].mxu0
  %v637 = vadd.f32 %v96, %v636
  %v638 = vpop.f32.mrb[0].mxu0
  %v639 = vadd.f32 %v92, %v638
  %v640 = vpop.f32.mrb[0].mxu0
  %v641 = vadd.f32 %v96, %v640
  %642 = vmatprep.mubr.bf16.mxu0 0
  %643 = vmatmul.mubr.bf16.gmra.mrb[0].mxu0 %v171
  %v644 = vpop.f32.mrb[0].mxu0
  %v645 = vadd.f32 %v92, %v644
  %v646 = vpop.f32.mrb[0].mxu0
  %v647 = vadd.f32 %v96, %v646
  %v648 = vpop.f32.mrb[0].mxu0
  %v649 = vadd.f32 %v92, %v648
  %v650 = vpop.f32.mrb[0].mxu0
  %v651 = vadd.f32 %v96, %v650
  %652 = vmatprep.mubr.bf16.mxu0 0
  %653 = vmatmul.mubr.bf16.gmra.mrb[0].mxu0 %v172
  %v654 = vpop.f32.mrb[0].mxu0
  %v655 = vadd.f32 %v92, %v654
  %v656 = vpop.f32.mrb[0].mxu0
  %v657 = vadd.f32 %v96, %v656
  %v658 = vpop.f32.mrb[0].mxu0
  %v659 = vadd.f32 %v92, %v658
  %v660 = vpop.f32.mrb[0].mxu0
  %v661 = vadd.f32 %v96, %v660
  %662 = vmatprep.mubr.bf16.mxu0 0
  %663 = vmatmul.mubr.bf16.gmra.mrb[0].mxu0 %v173
  %v664 = vpop.f32.mrb[0].mxu0
  %v665 = vadd.f32 %v92, %v664
  %v666 = vpop.f32.mrb[0].mxu0
  %v667 = vadd.f32 %v96, %v666
  %v668 = vpop.f32.mrb[0].mxu0
  %v669 = vadd.f32 %v92, %v668
  %v670 = vpop.f32.mrb[0].mxu0
  %v671 = vadd.f32 %v96, %v670
  %672 = vmatprep.mubr.bf16.mxu0 0
  %673 = vmatmul.mubr.bf16.gmra.mrb[0].mxu0 %v174
  %v674 = vpop.f32.mrb[0].mxu0
  %v675 = vadd.f32 %v92, %v674
  %v676 = vpop.f32.mrb[0].mxu0
  %v677 = vadd.f32 %v96, %v676
  %v678 = vpop.f32.mrb[0].mxu0
  %v679 = vadd.f32 %v92, %v678
  %v680 = vpop.f32.mrb[0].mxu0
  %v681 = vadd.f32 %v96, %v680
  %682 = vmatprep.mubr.bf16.mxu0 0
  %683 = vmatmul.mubr.bf16.gmra.mrb[0].mxu0 %v175
  %v684 = vpop.f32.mrb[0].mxu0
  %v685 = vadd.f32 %v92, %v684
  %v686 = vpop.f32.mrb[0].mxu0
  %v687 = vadd.f32 %v96, %v686
  %v688 = vpop.f32.mrb[0].mxu0
  %v689 = vadd.f32 %v92, %v688
  %v690 = vpop.f32.mrb[0].mxu0
  %v691 = vadd.f32 %v96, %v690
  %692 = vmatprep.mubr.bf16.mxu0 0
  %693 = vmatmul.mubr.bf16.gmra.mrb[0].mxu0 %v176
  %v694 = vpop.f32.mrb[0].mxu0
  %v695 = vadd.f32 %v92, %v694
  %v696 = vpop.f32.mrb[0].mxu0
  %v697 = vadd.f32 %v96, %v696
  %v698 = vpop.f32.mrb[0].mxu0
  %v699 = vadd.f32 %v92, %v698
  %v700 = vpop.f32.mrb[0].mxu0
  %v701 = vadd.f32 %v96, %v700
  %702 = vmatprep.mubr.bf16.mxu0 0
  %703 = vmatmul.mubr.bf16.gmra.mrb[0].mxu0 %v177
  %v704 = vpop.f32.mrb[0].mxu0
  %v705 = vadd.f32 %v92, %v704
  %v706 = vpop.f32.mrb[0].mxu0
  %v707 = vadd.f32 %v96, %v706
  %v708 = vpop.f32.mrb[0].mxu0
  %v709 = vadd.f32 %v92, %v708
  %v710 = vpop.f32.mrb[0].mxu0
  %v711 = vadd.f32 %v96, %v710
  %712 = vmatprep.mubr.bf16.mxu0 0
  %713 = vmatmul.mubr.bf16.gmra.mrb[0].mxu0 %v178
  %v714 = vpop.f32.mrb[0].mxu0
  %v715 = vadd.f32 %v92, %v714
  %v716 = vpop.f32.mrb[0].mxu0
  %v717 = vadd.f32 %v96, %v716
  %v718 = vpop.f32.mrb[0].mxu0
  %v719 = vadd.f32 %v92, %v718
  %v720 = vpop.f32.mrb[0].mxu0
  %v721 = vadd.f32 %v96, %v720
  %722 = vmatprep.mubr.bf16.mxu0 0
  %723 = vmatmul.mubr.bf16.gmra.mrb[0].mxu0 %v179
  %v724 = vpop.f32.mrb[0].mxu0
  %v725 = vadd.f32 %v92, %v724
  %v726 = vpop.f32.mrb[0].mxu0
  %v727 = vadd.f32 %v96, %v726
  %v728 = vpop.f32.mrb[0].mxu0
  %v729 = vadd.f32 %v92, %v728
  %v730 = vpop.f32.mrb[0].mxu0
  %v731 = vadd.f32 %v96, %v730
  %732 = vmatprep.mubr.bf16.mxu0 0
  %733 = vmatmul.mubr.bf16.gmra.mrb[0].mxu0 %v180
  %v734 = vpop.f32.mrb[0].mxu0
  %v735 = vadd.f32 %v92, %v734
  %v736 = vpop.f32.mrb[0].mxu0
  %v737 = vadd.f32 %v96, %v736
  %v738 = vpop.f32.mrb[0].mxu0
  %v739 = vadd.f32 %v92, %v738
  %v740 = vpop.f32.mrb[0].mxu0
  %v741 = vadd.f32 %v96, %v740
  %742 = vdwg.mxu0
  %743 = vst [vmem:[%s3] sm:$0xff] %v392
  %744 = vst [vmem:[%s3 + $0x8] sm:$0xff] %v394
  %745 = vst [vmem:[%s3 + $0x10] sm:$0xff] %v585
  %746 = vst [vmem:[%s3 + $0x18] sm:$0xff] %v587
  %747 = vst [vmem:[%s3 + $0x20] sm:$0xff] %v396
  %748 = vst [vmem:[%s3 + $0x28] sm:$0xff] %v398
  %749 = vst [vmem:[%s3 + $0x30] sm:$0xff] %v589
  %750 = vst [vmem:[%s3 + $0x38] sm:$0xff] %v591
  %751 = vst [vmem:[%s3 + $0x40] sm:$0xff] %v402
  %752 = vst [vmem:[%s3 + $0x48] sm:$0xff] %v404
  %753 = vst [vmem:[%s3 + $0x50] sm:$0xff] %v595
  %754 = vst [vmem:[%s3 + $0x58] sm:$0xff] %v597
  %755 = vst [vmem:[%s3 + $0x60] sm:$0xff] %v406
  %756 = vst [vmem:[%s3 + $0x68] sm:$0xff] %v408
  %757 = vst [vmem:[%s3 + $0x70] sm:$0xff] %v599
  %758 = vst [vmem:[%s3 + $0x78] sm:$0xff] %v601
  %759 = vst [vmem:[%s3 + $0x80] sm:$0xff] %v412
  %760 = vst [vmem:[%s3 + $0x88] sm:$0xff] %v414
  %761 = vst [vmem:[%s3 + $0x90] sm:$0xff] %v605
  %762 = vst [vmem:[%s3 + $0x98] sm:$0xff] %v607
  %763 = vst [vmem:[%s3 + $0xa0] sm:$0xff] %v416
  %764 = vst [vmem:[%s3 + $0xa8] sm:$0xff] %v418
  %765 = vst [vmem:[%s3 + $0xb0] sm:$0xff] %v609
  %766 = vst [vmem:[%s3 + $0xb8] sm:$0xff] %v611
  %767 = vst [vmem:[%s3 + $0xc0] sm:$0xff] %v422
  %768 = vst [vmem:[%s3 + $0xc8] sm:$0xff] %v424
  %769 = vst [vmem:[%s3 + $0xd0] sm:$0xff] %v615
  %770 = vst [vmem:[%s3 + $0xd8] sm:$0xff] %v617
  %771 = vst [vmem:[%s3 + $0xe0] sm:$0xff] %v426
  %772 = vst [vmem:[%s3 + $0xe8] sm:$0xff] %v428
  %773 = vst [vmem:[%s3 + $0xf0] sm:$0xff] %v619
  %774 = vst [vmem:[%s3 + $0xf8] sm:$0xff] %v621
  %775 = vst [vmem:[%s3 + $0x100] sm:$0xff] %v432
  %776 = vst [vmem:[%s3 + $0x108] sm:$0xff] %v434
  %777 = vst [vmem:[%s3 + $0x110] sm:$0xff] %v625
  %778 = vst [vmem:[%s3 + $0x118] sm:$0xff] %v627
  %779 = vst [vmem:[%s3 + $0x120] sm:$0xff] %v436
  %780 = vst [vmem:[%s3 + $0x128] sm:$0xff] %v438
  %781 = vst [vmem:[%s3 + $0x130] sm:$0xff] %v629
  %782 = vst [vmem:[%s3 + $0x138] sm:$0xff] %v631
  %783 = vst [vmem:[%s3 + $0x140] sm:$0xff] %v442
  %784 = vst [vmem:[%s3 + $0x148] sm:$0xff] %v444
  %785 = vst [vmem:[%s3 + $0x150] sm:$0xff] %v635
  %786 = vst [vmem:[%s3 + $0x158] sm:$0xff] %v637
  %787 = vst [vmem:[%s3 + $0x160] sm:$0xff] %v446
  %788 = vst [vmem:[%s3 + $0x168] sm:$0xff] %v448
  %789 = vst [vmem:[%s3 + $0x170] sm:$0xff] %v639
  %790 = vst [vmem:[%s3 + $0x178] sm:$0xff] %v641
  %791 = vst [vmem:[%s3 + $0x180] sm:$0xff] %v452
  %792 = vst [vmem:[%s3 + $0x188] sm:$0xff] %v454
  %793 = vst [vmem:[%s3 + $0x190] sm:$0xff] %v645
  %794 = vst [vmem:[%s3 + $0x198] sm:$0xff] %v647
  %795 = vst [vmem:[%s3 + $0x1a0] sm:$0xff] %v456
  %796 = vst [vmem:[%s3 + $0x1a8] sm:$0xff] %v458
  %797 = vst [vmem:[%s3 + $0x1b0] sm:$0xff] %v649
  %798 = vst [vmem:[%s3 + $0x1b8] sm:$0xff] %v651
  %799 = vst [vmem:[%s3 + $0x1c0] sm:$0xff] %v462
  %800 = vst [vmem:[%s3 + $0x1c8] sm:$0xff] %v464
  %801 = vst [vmem:[%s3 + $0x1d0] sm:$0xff] %v655
  %802 = vst [vmem:[%s3 + $0x1d8] sm:$0xff] %v657
  %803 = vst [vmem:[%s3 + $0x1e0] sm:$0xff] %v466
  %804 = vst [vmem:[%s3 + $0x1e8] sm:$0xff] %v468
  %805 = vst [vmem:[%s3 + $0x1f0] sm:$0xff] %v659
  %806 = vst [vmem:[%s3 + $0x1f8] sm:$0xff] %v661
  %807 = vst [vmem:[%s3 + $0x200] sm:$0xff] %v472
  %808 = vst [vmem:[%s3 + $0x208] sm:$0xff] %v474
  %809 = vst [vmem:[%s3 + $0x210] sm:$0xff] %v665
  %810 = vst [vmem:[%s3 + $0x218] sm:$0xff] %v667
  %811 = vst [vmem:[%s3 + $0x220] sm:$0xff] %v476
  %812 = vst [vmem:[%s3 + $0x228] sm:$0xff] %v478
  %813 = vst [vmem:[%s3 + $0x230] sm:$0xff] %v669
  %814 = vst [vmem:[%s3 + $0x238] sm:$0xff] %v671
  %815 = vst [vmem:[%s3 + $0x240] sm:$0xff] %v482
  %816 = vst [vmem:[%s3 + $0x248] sm:$0xff] %v484
  %817 = vst [vmem:[%s3 + $0x250] sm:$0xff] %v675
  %818 = vst [vmem:[%s3 + $0x258] sm:$0xff] %v677
  %819 = vst [vmem:[%s3 + $0x260] sm:$0xff] %v486
  %820 = vst [vmem:[%s3 + $0x268] sm:$0xff] %v488
  %821 = vst [vmem:[%s3 + $0x270] sm:$0xff] %v679
  %822 = vst [vmem:[%s3 + $0x278] sm:$0xff] %v681
  %823 = vst [vmem:[%s3 + $0x280] sm:$0xff] %v492
  %824 = vst [vmem:[%s3 + $0x288] sm:$0xff] %v494
  %825 = vst [vmem:[%s3 + $0x290] sm:$0xff] %v685
  %826 = vst [vmem:[%s3 + $0x298] sm:$0xff] %v687
  %827 = vst [vmem:[%s3 + $0x2a0] sm:$0xff] %v496
  %828 = vst [vmem:[%s3 + $0x2a8] sm:$0xff] %v498
  %829 = vst [vmem:[%s3 + $0x2b0] sm:$0xff] %v689
  %830 = vst [vmem:[%s3 + $0x2b8] sm:$0xff] %v691
  %831 = vst [vmem:[%s3 + $0x2c0] sm:$0xff] %v502
  %832 = vst [vmem:[%s3 + $0x2c8] sm:$0xff] %v504
  %833 = vst [vmem:[%s3 + $0x2d0] sm:$0xff] %v695
  %834 = vst [vmem:[%s3 + $0x2d8] sm:$0xff] %v697
  %835 = vst [vmem:[%s3 + $0x2e0] sm:$0xff] %v506
  %836 = vst [vmem:[%s3 + $0x2e8] sm:$0xff] %v508
  %837 = vst [vmem:[%s3 + $0x2f0] sm:$0xff] %v699
  %838 = vst [vmem:[%s3 + $0x2f8] sm:$0xff] %v701
  %839 = vst [vmem:[%s3 + $0x300] sm:$0xff] %v512
  %840 = vst [vmem:[%s3 + $0x308] sm:$0xff] %v514
  %841 = vst [vmem:[%s3 + $0x310] sm:$0xff] %v705
  %842 = vst [vmem:[%s3 + $0x318] sm:$0xff] %v707
  %843 = vst [vmem:[%s3 + $0x320] sm:$0xff] %v516
  %844 = vst [vmem:[%s3 + $0x328] sm:$0xff] %v518
  %845 = vst [vmem:[%s3 + $0x330] sm:$0xff] %v709
  %846 = vst [vmem:[%s3 + $0x338] sm:$0xff] %v711
  %847 = vst [vmem:[%s3 + $0x340] sm:$0xff] %v522
  %848 = vst [vmem:[%s3 + $0x348] sm:$0xff] %v524
  %849 = vst [vmem:[%s3 + $0x350] sm:$0xff] %v715
  %850 = vst [vmem:[%s3 + $0x358] sm:$0xff] %v717
  %851 = vst [vmem:[%s3 + $0x360] sm:$0xff] %v526
  %852 = vst [vmem:[%s3 + $0x368] sm:$0xff] %v528
  %853 = vst [vmem:[%s3 + $0x370] sm:$0xff] %v719
  %854 = vst [vmem:[%s3 + $0x378] sm:$0xff] %v721
  %855 = vst [vmem:[%s3 + $0x380] sm:$0xff] %v532
  %856 = vst [vmem:[%s3 + $0x388] sm:$0xff] %v534
  %857 = vst [vmem:[%s3 + $0x390] sm:$0xff] %v725
  %858 = vst [vmem:[%s3 + $0x398] sm:$0xff] %v727
  %859 = vst [vmem:[%s3 + $0x3a0] sm:$0xff] %v536
  %860 = vst [vmem:[%s3 + $0x3a8] sm:$0xff] %v538
  %861 = vst [vmem:[%s3 + $0x3b0] sm:$0xff] %v729
  %862 = vst [vmem:[%s3 + $0x3b8] sm:$0xff] %v731
  %863 = vst [vmem:[%s3 + $0x3c0] sm:$0xff] %v542
  %864 = vst [vmem:[%s3 + $0x3c8] sm:$0xff] %v544
  %865 = vst [vmem:[%s3 + $0x3d0] sm:$0xff] %v735
  %866 = vst [vmem:[%s3 + $0x3d8] sm:$0xff] %v737
  %867 = vst [vmem:[%s3 + $0x3e0] sm:$0xff] %v546
  %868 = vst [vmem:[%s3 + $0x3e8] sm:$0xff] %v548
  %869 = vst [vmem:[%s3 + $0x3f0] sm:$0xff] %v739
  %870 = vst [vmem:[%s3 + $0x3f8] sm:$0xff] %v741
  // Predicated region
  $region14: #{lm_lstm_forward.5} parent=0 // pred_check
    _
  $region15: #{lm_lstm_forward.5} parent=0 // pred_check_branch
    %872 = sbr.rel (0) target = $region17
  $region16: #{lm_lstm_forward.5} parent=0 // pred_region
    _
  $region17: #{lm_lstm_forward.5} parent=0 // pred_fallthru
    _
  // Predicated region
  $region18: #{lm_lstm_forward.5} parent=0 // pred_check
    _
  $region19: #{lm_lstm_forward.5} parent=0 // pred_check_branch
    %874 = sbr.rel (0) target = $region21
  $region20: #{lm_lstm_forward.5} parent=0 // pred_region
    _
  $region21: #{lm_lstm_forward.5} parent=0 // pred_fallthru
    _

// kernel: lm_lstm_forward.3
$region0: #{lm_lstm_forward.3}
  #allocation0 [shape = 'u32[]', space=smem, size = 0x4, offset = 0x4, fixed_abs, tag = 'smem constant byte address 0x4 - core index']
  #allocation1 [shape = 'u32[144,128]{1,0:T(1,128)}', space=vmem, size = 0x12000, scoped, tag = 'internal scratch']
  %s0 = inlined_call_operand.vmem [shape: bf16[256,32], index: 0, kind: input, shape index: {}]
  %s1 = inlined_call_operand.vmem [shape: bf16[32,512], index: 1, kind: input, shape index: {}]
  %s2 = inlined_call_operand.vmem [shape: f32[1,512], index: 2, kind: input, shape index: {}]
  %s3 = inlined_call_operand.vmem [shape: bf16[256,512], index: 3, kind: output, shape index: {}]
  %s4 = sld [smem:[#allocation0]]
  $region22: #{lm_lstm_forward.3} parent=0
    _
  %s6 = ssub.s32 1, %s4
  %s7 = scalar_select 0, %s6, %s4
  // Predicated region
  $region2: #{lm_lstm_forward.3} parent=0 // pred_check
    _
  $region3: #{lm_lstm_forward.3} parent=0 // pred_check_branch
    %9 = sbr.rel (0) target = $region5
  $region4: #{lm_lstm_forward.3} parent=0 // pred_region
    _
  $region5: #{lm_lstm_forward.3} parent=0 // pred_fallthru
    _
  // Predicated region
  $region6: #{lm_lstm_forward.3} parent=0 // pred_check
    _
  $region7: #{lm_lstm_forward.3} parent=0 // pred_check_branch
    %11 = sbr.rel (0) target = $region9
  $region8: #{lm_lstm_forward.3} parent=0 // pred_region
    _
  $region9: #{lm_lstm_forward.3} parent=0 // pred_fallthru
    _
  // Predicated region
  $region10: #{lm_lstm_forward.3} parent=0 // pred_check
    _
  $region11: #{lm_lstm_forward.3} parent=0 // pred_check_branch
    %13 = sbr.rel (0) target = $region13
  $region12: #{lm_lstm_forward.3} parent=0 // pred_region
    _
  $region13: #{lm_lstm_forward.3} parent=0 // pred_fallthru
    _
  %v15 = vld [vmem:[%s0] sm:$0xf]
  %v16 = vld [vmem:[%s0 + $0x4] sm:$0xf]
  %v17 = vld [vmem:[%s0 + $0x8] sm:$0xf]
  %v18 = vld [vmem:[%s0 + $0xc] sm:$0xf]
  %v19 = vld [vmem:[%s0 + $0x10] sm:$0xf]
  %v20 = vld [vmem:[%s0 + $0x14] sm:$0xf]
  %v21 = vld [vmem:[%s0 + $0x18] sm:$0xf]
  %v22 = vld [vmem:[%s0 + $0x1c] sm:$0xf]
  %v23 = vld [vmem:[%s0 + $0x20] sm:$0xf]
  %v24 = vld [vmem:[%s0 + $0x24] sm:$0xf]
  %v25 = vld [vmem:[%s0 + $0x28] sm:$0xf]
  %v26 = vld [vmem:[%s0 + $0x2c] sm:$0xf]
  %v27 = vld [vmem:[%s0 + $0x30] sm:$0xf]
  %v28 = vld [vmem:[%s0 + $0x34] sm:$0xf]
  %v29 = vld [vmem:[%s0 + $0x38] sm:$0xf]
  %v30 = vld [vmem:[%s0 + $0x3c] sm:$0xf]
  %v31 = vld [vmem:[%s0 + $0x40] sm:$0xf]
  %v32 = vld [vmem:[%s0 + $0x44] sm:$0xf]
  %v33 = vld [vmem:[%s0 + $0x48] sm:$0xf]
  %v34 = vld [vmem:[%s0 + $0x4c] sm:$0xf]
  %v35 = vld [vmem:[%s0 + $0x50] sm:$0xf]
  %v36 = vld [vmem:[%s0 + $0x54] sm:$0xf]
  %v37 = vld [vmem:[%s0 + $0x58] sm:$0xf]
  %v38 = vld [vmem:[%s0 + $0x5c] sm:$0xf]
  %v39 = vld [vmem:[%s0 + $0x60] sm:$0xf]
  %v40 = vld [vmem:[%s0 + $0x64] sm:$0xf]
  %v41 = vld [vmem:[%s0 + $0x68] sm:$0xf]
  %v42 = vld [vmem:[%s0 + $0x6c] sm:$0xf]
  %v43 = vld [vmem:[%s0 + $0x70] sm:$0xf]
  %v44 = vld [vmem:[%s0 + $0x74] sm:$0xf]
  %v45 = vld [vmem:[%s0 + $0x78] sm:$0xf]
  %v46 = vld [vmem:[%s0 + $0x7c] sm:$0xf]
  %v47 = vld [vmem:[%s1] sm:$0xff]
  %v48 = vld [vmem:[%s1 + $0x8] sm:$0xff]
  %v49 = vld [vmem:[%s1 + $0x10] sm:$0xff]
  %v50 = vld [vmem:[%s1 + $0x18] sm:$0xff]
  %v51 = vld [vmem:[%s1 + $0x20] sm:$0xff]
  %v52 = vld [vmem:[%s1 + $0x28] sm:$0xff]
  %v53 = vld [vmem:[%s1 + $0x30] sm:$0xff]
  %v54 = vld [vmem:[%s1 + $0x38] sm:$0xff]
  %v55 = vld [vmem:[%s2] sm:$0xf]
  %v57 = vlaneseq
  %v58 = vshrl.u32 %v57, 7
  %v59 = vsub.s32 0, %v58
  %v60 = vrot.slane %v55, %v59
  %v61 = vlaneseq
  %v62 = vshrl.u32 %v61, 7
  %v63 = vsub.s32 1, %v62
  %v64 = vrot.slane %v55, %v63
  %v65 = vlaneseq
  %v66 = vshrl.u32 %v65, 7
  %v67 = vsub.s32 2, %v66
  %v68 = vrot.slane %v55, %v67
  %v69 = vlaneseq
  %v70 = vshrl.u32 %v69, 7
  %v71 = vsub.s32 3, %v70
  %v72 = vrot.slane %v55, %v71
  %v109 = vunpack.c.l.b16 %v15
  %v110 = vunpack.c.l.b16 %v16
  %v111 = vunpack.c.l.b16 %v17
  %v112 = vunpack.c.l.b16 %v18
  %v113 = vunpack.c.l.b16 %v19
  %v114 = vunpack.c.l.b16 %v20
  %v115 = vunpack.c.l.b16 %v21
  %v116 = vunpack.c.l.b16 %v22
  %v117 = vunpack.c.l.b16 %v23
  %v118 = vunpack.c.l.b16 %v24
  %v119 = vunpack.c.l.b16 %v25
  %v120 = vunpack.c.l.b16 %v26
  %v121 = vunpack.c.l.b16 %v27
  %v122 = vunpack.c.l.b16 %v28
  %v123 = vunpack.c.l.b16 %v29
  %v124 = vunpack.c.l.b16 %v30
  %v125 = vunpack.c.l.b16 %v31
  %v126 = vunpack.c.l.b16 %v32
  %v127 = vunpack.c.l.b16 %v33
  %v128 = vunpack.c.l.b16 %v34
  %v129 = vunpack.c.l.b16 %v35
  %v130 = vunpack.c.l.b16 %v36
  %v131 = vunpack.c.l.b16 %v37
  %v132 = vunpack.c.l.b16 %v38
  %v133 = vunpack.c.l.b16 %v39
  %v134 = vunpack.c.l.b16 %v40
  %v135 = vunpack.c.l.b16 %v41
  %v136 = vunpack.c.l.b16 %v42
  %v137 = vunpack.c.l.b16 %v43
  %v138 = vunpack.c.l.b16 %v44
  %v139 = vunpack.c.l.b16 %v45
  %v140 = vunpack.c.l.b16 %v46
  %v141 = vpack.c.b16 %v110, %v109
  %v142 = vpack.c.b16 %v112, %v111
  %v143 = vpack.c.b16 %v114, %v113
  %v144 = vpack.c.b16 %v116, %v115
  %v145 = vpack.c.b16 %v118, %v117
  %v146 = vpack.c.b16 %v120, %v119
  %v147 = vpack.c.b16 %v122, %v121
  %v148 = vpack.c.b16 %v124, %v123
  %v149 = vpack.c.b16 %v126, %v125
  %v150 = vpack.c.b16 %v128, %v127
  %v151 = vpack.c.b16 %v130, %v129
  %v152 = vpack.c.b16 %v132, %v131
  %v153 = vpack.c.b16 %v134, %v133
  %v154 = vpack.c.b16 %v136, %v135
  %v155 = vpack.c.b16 %v138, %v137
  %v156 = vpack.c.b16 %v140, %v139
  %v165 = vunpack.c.l.b16 %v47
  %v166 = vunpack.c.h.b16 %v47
  %v167 = vunpack.c.l.b16 %v48
  %v168 = vunpack.c.h.b16 %v48
  %v169 = vunpack.c.l.b16 %v49
  %v170 = vunpack.c.h.b16 %v49
  %v171 = vunpack.c.l.b16 %v50
  %v172 = vunpack.c.h.b16 %v50
  %v173 = vunpack.c.l.b16 %v51
  %v174 = vunpack.c.h.b16 %v51
  %v175 = vunpack.c.l.b16 %v52
  %v176 = vunpack.c.h.b16 %v52
  %v177 = vunpack.c.l.b16 %v53
  %v178 = vunpack.c.h.b16 %v53
  %v179 = vunpack.c.l.b16 %v54
  %v180 = vunpack.c.h.b16 %v54
  %v181 = vpack.c.b16 %v169, %v165
  %v182 = vpack.c.b16 %v170, %v166
  %v183 = vpack.c.b16 %v171, %v167
  %v184 = vpack.c.b16 %v172, %v168
  %v185 = vpack.c.b16 %v177, %v173
  %v186 = vpack.c.b16 %v178, %v174
  %v187 = vpack.c.b16 %v179, %v175
  %v188 = vpack.c.b16 %v180, %v176
  %vm197 = vcmask 261120
  %v199 = vsel %vm197, %v141, 0
  %v202 = vsel %vm197, %v142, 0
  %v205 = vsel %vm197, %v143, 0
  %v208 = vsel %vm197, %v144, 0
  %v211 = vsel %vm197, %v145, 0
  %v214 = vsel %vm197, %v146, 0
  %v217 = vsel %vm197, %v147, 0
  %v220 = vsel %vm197, %v148, 0
  %v223 = vsel %vm197, %v149, 0
  %v226 = vsel %vm197, %v150, 0
  %v229 = vsel %vm197, %v151, 0
  %v232 = vsel %vm197, %v152, 0
  %v235 = vsel %vm197, %v153, 0
  %v238 = vsel %vm197, %v154, 0
  %v241 = vsel %vm197, %v155, 0
  %v244 = vsel %vm197, %v156, 0
  %246 = vmatprep.subr.bf16.mxu0 %v182
  %247 = vmatpush1.bf16.msra.mxu0 %v181
  %248 = vmatprep.subr.bf16.mxu0 %v186
  %249 = vmatpush1.bf16.msra.mxu0 %v185
  %250 = vmatprep.subr.bf16.mxu0 0
  %251 = vmatpush1.bf16.msra.mxu0 0
  %252 = vmatprep.subr.bf16.mxu0 0
  %253 = vmatpush1.bf16.msra.mxu0 0
  %254 = vmatprep.subr.bf16.mxu0 0
  %255 = vmatpush1.bf16.msra.mxu0 0
  %256 = vmatprep.subr.bf16.mxu0 0
  %257 = vmatpush1.bf16.msra.mxu0 0
  %258 = vmatprep.subr.bf16.mxu0 0
  %259 = vmatpush1.bf16.msra.mxu0 0
  %260 = vmatprep.subr.bf16.mxu0 0
  %261 = vmatpush1.bf16.msra.mxu0 0
  %262 = vmatprep.subr.bf16.mxu0 0
  %263 = vmatpush1.bf16.msra.mxu0 0
  %264 = vmatprep.subr.bf16.mxu0 0
  %265 = vmatpush1.bf16.msra.mxu0 0
  %266 = vmatprep.subr.bf16.mxu0 0
  %267 = vmatpush1.bf16.msra.mxu0 0
  %268 = vmatprep.subr.bf16.mxu0 0
  %269 = vmatpush1.bf16.msra.mxu0 0
  %270 = vmatprep.subr.bf16.mxu0 0
  %271 = vmatpush1.bf16.msra.mxu0 0
  %272 = vmatprep.subr.bf16.mxu0 0
  %273 = vmatpush1.bf16.msra.mxu0 0
  %274 = vmatprep.subr.bf16.mxu0 0
  %275 = vmatpush1.bf16.msra.mxu0 0
  %276 = vmatprep.subr.bf16.mxu0 0
  %277 = vmatpush1.bf16.msra.mxu0 0
  %278 = vmatprep.mubr.bf16.mxu0 0
  %279 = vmatmul.mubr.bf16.gmra.mrb[0].mxu0 %v199
  %v280 = vpop.f32.mrb[0].mxu0
  %v281 = vadd.f32 %v60, %v280
  %v282 = vpop.f32.mrb[0].mxu0
  %v283 = vadd.f32 %v64, %v282
  %v284 = vpop.f32.mrb[0].mxu0
  %v285 = vadd.f32 %v60, %v284
  %v286 = vpop.f32.mrb[0].mxu0
  %v287 = vadd.f32 %v64, %v286
  %288 = vmatprep.mubr.bf16.mxu0 0
  %289 = vmatmul.mubr.bf16.gmra.mrb[0].mxu0 %v202
  %v290 = vpop.f32.mrb[0].mxu0
  %v291 = vadd.f32 %v60, %v290
  %v292 = vpop.f32.mrb[0].mxu0
  %v293 = vadd.f32 %v64, %v292
  %v294 = vpop.f32.mrb[0].mxu0
  %v295 = vadd.f32 %v60, %v294
  %v296 = vpop.f32.mrb[0].mxu0
  %v297 = vadd.f32 %v64, %v296
  %298 = vmatprep.mubr.bf16.mxu0 0
  %299 = vmatmul.mubr.bf16.gmra.mrb[0].mxu0 %v205
  %v300 = vpop.f32.mrb[0].mxu0
  %v301 = vadd.f32 %v60, %v300
  %v302 = vpop.f32.mrb[0].mxu0
  %v303 = vadd.f32 %v64, %v302
  %v304 = vpop.f32.mrb[0].mxu0
  %v305 = vadd.f32 %v60, %v304
  %v306 = vpop.f32.mrb[0].mxu0
  %v307 = vadd.f32 %v64, %v306
  %308 = vmatprep.mubr.bf16.mxu0 0
  %309 = vmatmul.mubr.bf16.gmra.mrb[0].mxu0 %v208
  %v310 = vpop.f32.mrb[0].mxu0
  %v311 = vadd.f32 %v60, %v310
  %v312 = vpop.f32.mrb[0].mxu0
  %v313 = vadd.f32 %v64, %v312
  %v314 = vpop.f32.mrb[0].mxu0
  %v315 = vadd.f32 %v60, %v314
  %v316 = vpop.f32.mrb[0].mxu0
  %v317 = vadd.f32 %v64, %v316
  %318 = vmatprep.mubr.bf16.mxu0 0
  %319 = vmatmul.mubr.bf16.gmra.mrb[0].mxu0 %v211
  %v320 = vpop.f32.mrb[0].mxu0
  %v321 = vadd.f32 %v60, %v320
  %v322 = vpop.f32.mrb[0].mxu0
  %v323 = vadd.f32 %v64, %v322
  %v324 = vpop.f32.mrb[0].mxu0
  %v325 = vadd.f32 %v60, %v324
  %v326 = vpop.f32.mrb[0].mxu0
  %v327 = vadd.f32 %v64, %v326
  %328 = vmatprep.mubr.bf16.mxu0 0
  %329 = vmatmul.mubr.bf16.gmra.mrb[0].mxu0 %v214
  %v330 = vpop.f32.mrb[0].mxu0
  %v331 = vadd.f32 %v60, %v330
  %v332 = vpop.f32.mrb[0].mxu0
  %v333 = vadd.f32 %v64, %v332
  %v334 = vpop.f32.mrb[0].mxu0
  %v335 = vadd.f32 %v60, %v334
  %v336 = vpop.f32.mrb[0].mxu0
  %v337 = vadd.f32 %v64, %v336
  %338 = vmatprep.mubr.bf16.mxu0 0
  %339 = vmatmul.mubr.bf16.gmra.mrb[0].mxu0 %v217
  %v340 = vpop.f32.mrb[0].mxu0
  %v341 = vadd.f32 %v60, %v340
  %v342 = vpop.f32.mrb[0].mxu0
  %v343 = vadd.f32 %v64, %v342
  %v344 = vpop.f32.mrb[0].mxu0
  %v345 = vadd.f32 %v60, %v344
  %v346 = vpop.f32.mrb[0].mxu0
  %v347 = vadd.f32 %v64, %v346
  %348 = vmatprep.mubr.bf16.mxu0 0
  %349 = vmatmul.mubr.bf16.gmra.mrb[0].mxu0 %v220
  %v350 = vpop.f32.mrb[0].mxu0
  %v351 = vadd.f32 %v60, %v350
  %v352 = vpop.f32.mrb[0].mxu0
  %v353 = vadd.f32 %v64, %v352
  %v354 = vpop.f32.mrb[0].mxu0
  %v355 = vadd.f32 %v60, %v354
  %v356 = vpop.f32.mrb[0].mxu0
  %v357 = vadd.f32 %v64, %v356
  %358 = vmatprep.mubr.bf16.mxu0 0
  %359 = vmatmul.mubr.bf16.gmra.mrb[0].mxu0 %v223
  %v360 = vpop.f32.mrb[0].mxu0
  %v361 = vadd.f32 %v60, %v360
  %v362 = vpop.f32.mrb[0].mxu0
  %v363 = vadd.f32 %v64, %v362
  %v364 = vpop.f32.mrb[0].mxu0
  %v365 = vadd.f32 %v60, %v364
  %v366 = vpop.f32.mrb[0].mxu0
  %v367 = vadd.f32 %v64, %v366
  %368 = vmatprep.mubr.bf16.mxu0 0
  %369 = vmatmul.mubr.bf16.gmra.mrb[0].mxu0 %v226
  %v370 = vpop.f32.mrb[0].mxu0
  %v371 = vadd.f32 %v60, %v370
  %v372 = vpop.f32.mrb[0].mxu0
  %v373 = vadd.f32 %v64, %v372
  %v374 = vpop.f32.mrb[0].mxu0
  %v375 = vadd.f32 %v60, %v374
  %v376 = vpop.f32.mrb[0].mxu0
  %v377 = vadd.f32 %v64, %v376
  %378 = vmatprep.mubr.bf16.mxu0 0
  %379 = vmatmul.mubr.bf16.gmra.mrb[0].mxu0 %v229
  %v380 = vpop.f32.mrb[0].mxu0
  %v381 = vadd.f32 %v60, %v380
  %v382 = vpop.f32.mrb[0].mxu0
  %v383 = vadd.f32 %v64, %v382
  %v384 = vpop.f32.mrb[0].mxu0
  %v385 = vadd.f32 %v60, %v384
  %v386 = vpop.f32.mrb[0].mxu0
  %v387 = vadd.f32 %v64, %v386
  %388 = vmatprep.mubr.bf16.mxu0 0
  %389 = vmatmul.mubr.bf16.gmra.mrb[0].mxu0 %v232
  %v390 = vpop.f32.mrb[0].mxu0
  %v391 = vadd.f32 %v60, %v390
  %v392 = vpop.f32.mrb[0].mxu0
  %v393 = vadd.f32 %v64, %v392
  %v394 = vpop.f32.mrb[0].mxu0
  %v395 = vadd.f32 %v60, %v394
  %v396 = vpop.f32.mrb[0].mxu0
  %v397 = vadd.f32 %v64, %v396
  %398 = vmatprep.mubr.bf16.mxu0 0
  %399 = vmatmul.mubr.bf16.gmra.mrb[0].mxu0 %v235
  %v400 = vpop.f32.mrb[0].mxu0
  %v401 = vadd.f32 %v60, %v400
  %v402 = vpop.f32.mrb[0].mxu0
  %v403 = vadd.f32 %v64, %v402
  %v404 = vpop.f32.mrb[0].mxu0
  %v405 = vadd.f32 %v60, %v404
  %v406 = vpop.f32.mrb[0].mxu0
  %v407 = vadd.f32 %v64, %v406
  %408 = vmatprep.mubr.bf16.mxu0 0
  %409 = vmatmul.mubr.bf16.gmra.mrb[0].mxu0 %v238
  %v410 = vpop.f32.mrb[0].mxu0
  %v411 = vadd.f32 %v60, %v410
  %v412 = vpop.f32.mrb[0].mxu0
  %v413 = vadd.f32 %v64, %v412
  %v414 = vpop.f32.mrb[0].mxu0
  %v415 = vadd.f32 %v60, %v414
  %v416 = vpop.f32.mrb[0].mxu0
  %v417 = vadd.f32 %v64, %v416
  %418 = vmatprep.mubr.bf16.mxu0 0
  %419 = vmatmul.mubr.bf16.gmra.mrb[0].mxu0 %v241
  %v420 = vpop.f32.mrb[0].mxu0
  %v421 = vadd.f32 %v60, %v420
  %v422 = vpop.f32.mrb[0].mxu0
  %v423 = vadd.f32 %v64, %v422
  %v424 = vpop.f32.mrb[0].mxu0
  %v425 = vadd.f32 %v60, %v424
  %v426 = vpop.f32.mrb[0].mxu0
  %v427 = vadd.f32 %v64, %v426
  %428 = vmatprep.mubr.bf16.mxu0 0
  %429 = vmatmul.mubr.bf16.gmra.mrb[0].mxu0 %v244
  %v430 = vpop.f32.mrb[0].mxu0
  %v431 = vadd.f32 %v60, %v430
  %v432 = vpop.f32.mrb[0].mxu0
  %v433 = vadd.f32 %v64, %v432
  %v434 = vpop.f32.mrb[0].mxu0
  %v435 = vadd.f32 %v60, %v434
  %v436 = vpop.f32.mrb[0].mxu0
  %v437 = vadd.f32 %v64, %v436
  %438 = vdwg.mxu0
  %439 = vmatprep.subr.bf16.mxu0 %v184
  %440 = vmatpush1.bf16.msra.mxu0 %v183
  %441 = vmatprep.subr.bf16.mxu0 %v188
  %442 = vmatpush1.bf16.msra.mxu0 %v187
  %443 = vmatprep.subr.bf16.mxu0 0
  %444 = vmatpush1.bf16.msra.mxu0 0
  %445 = vmatprep.subr.bf16.mxu0 0
  %446 = vmatpush1.bf16.msra.mxu0 0
  %447 = vmatprep.subr.bf16.mxu0 0
  %448 = vmatpush1.bf16.msra.mxu0 0
  %449 = vmatprep.subr.bf16.mxu0 0
  %450 = vmatpush1.bf16.msra.mxu0 0
  %451 = vmatprep.subr.bf16.mxu0 0
  %452 = vmatpush1.bf16.msra.mxu0 0
  %453 = vmatprep.subr.bf16.mxu0 0
  %454 = vmatpush1.bf16.msra.mxu0 0
  %455 = vmatprep.subr.bf16.mxu0 0
  %456 = vmatpush1.bf16.msra.mxu0 0
  %457 = vmatprep.subr.bf16.mxu0 0
  %458 = vmatpush1.bf16.msra.mxu0 0
  %459 = vmatprep.subr.bf16.mxu0 0
  %460 = vmatpush1.bf16.msra.mxu0 0
  %461 = vmatprep.subr.bf16.mxu0 0
  %462 = vmatpush1.bf16.msra.mxu0 0
  %463 = vmatprep.subr.bf16.mxu0 0
  %464 = vmatpush1.bf16.msra.mxu0 0
  %465 = vmatprep.subr.bf16.mxu0 0
  %466 = vmatpush1.bf16.msra.mxu0 0
  %467 = vmatprep.subr.bf16.mxu0 0
  %468 = vmatpush1.bf16.msra.mxu0 0
  %469 = vmatprep.subr.bf16.mxu0 0
  %470 = vmatpush1.bf16.msra.mxu0 0
  %471 = vmatprep.mubr.bf16.mxu0 0
  %472 = vmatmul.mubr.bf16.gmra.mrb[0].mxu0 %v199
  %v473 = vpop.f32.mrb[0].mxu0
  %v474 = vadd.f32 %v68, %v473
  %v475 = vpop.f32.mrb[0].mxu0
  %v476 = vadd.f32 %v72, %v475
  %v477 = vpop.f32.mrb[0].mxu0
  %v478 = vadd.f32 %v68, %v477
  %v479 = vpop.f32.mrb[0].mxu0
  %v480 = vadd.f32 %v72, %v479
  %481 = vmatprep.mubr.bf16.mxu0 0
  %482 = vmatmul.mubr.bf16.gmra.mrb[0].mxu0 %v202
  %v483 = vpop.f32.mrb[0].mxu0
  %v484 = vadd.f32 %v68, %v483
  %v485 = vpop.f32.mrb[0].mxu0
  %v486 = vadd.f32 %v72, %v485
  %v487 = vpop.f32.mrb[0].mxu0
  %v488 = vadd.f32 %v68, %v487
  %v489 = vpop.f32.mrb[0].mxu0
  %v490 = vadd.f32 %v72, %v489
  %491 = vmatprep.mubr.bf16.mxu0 0
  %492 = vmatmul.mubr.bf16.gmra.mrb[0].mxu0 %v205
  %v493 = vpop.f32.mrb[0].mxu0
  %v494 = vadd.f32 %v68, %v493
  %v495 = vpop.f32.mrb[0].mxu0
  %v496 = vadd.f32 %v72, %v495
  %v497 = vpop.f32.mrb[0].mxu0
  %v498 = vadd.f32 %v68, %v497
  %v499 = vpop.f32.mrb[0].mxu0
  %v500 = vadd.f32 %v72, %v499
  %501 = vmatprep.mubr.bf16.mxu0 0
  %502 = vmatmul.mubr.bf16.gmra.mrb[0].mxu0 %v208
  %v503 = vpop.f32.mrb[0].mxu0
  %v504 = vadd.f32 %v68, %v503
  %v505 = vpop.f32.mrb[0].mxu0
  %v506 = vadd.f32 %v72, %v505
  %v507 = vpop.f32.mrb[0].mxu0
  %v508 = vadd.f32 %v68, %v507
  %v509 = vpop.f32.mrb[0].mxu0
  %v510 = vadd.f32 %v72, %v509
  %511 = vmatprep.mubr.bf16.mxu0 0
  %512 = vmatmul.mubr.bf16.gmra.mrb[0].mxu0 %v211
  %v513 = vpop.f32.mrb[0].mxu0
  %v514 = vadd.f32 %v68, %v513
  %v515 = vpop.f32.mrb[0].mxu0
  %v516 = vadd.f32 %v72, %v515
  %v517 = vpop.f32.mrb[0].mxu0
  %v518 = vadd.f32 %v68, %v517
  %v519 = vpop.f32.mrb[0].mxu0
  %v520 = vadd.f32 %v72, %v519
  %521 = vmatprep.mubr.bf16.mxu0 0
  %522 = vmatmul.mubr.bf16.gmra.mrb[0].mxu0 %v214
  %v523 = vpop.f32.mrb[0].mxu0
  %v524 = vadd.f32 %v68, %v523
  %v525 = vpop.f32.mrb[0].mxu0
  %v526 = vadd.f32 %v72, %v525
  %v527 = vpop.f32.mrb[0].mxu0
  %v528 = vadd.f32 %v68, %v527
  %v529 = vpop.f32.mrb[0].mxu0
  %v530 = vadd.f32 %v72, %v529
  %531 = vmatprep.mubr.bf16.mxu0 0
  %532 = vmatmul.mubr.bf16.gmra.mrb[0].mxu0 %v217
  %v533 = vpop.f32.mrb[0].mxu0
  %v534 = vadd.f32 %v68, %v533
  %v535 = vpop.f32.mrb[0].mxu0
  %v536 = vadd.f32 %v72, %v535
  %v537 = vpop.f32.mrb[0].mxu0
  %v538 = vadd.f32 %v68, %v537
  %v539 = vpop.f32.mrb[0].mxu0
  %v540 = vadd.f32 %v72, %v539
  %541 = vmatprep.mubr.bf16.mxu0 0
  %542 = vmatmul.mubr.bf16.gmra.mrb[0].mxu0 %v220
  %v543 = vpop.f32.mrb[0].mxu0
  %v544 = vadd.f32 %v68, %v543
  %v545 = vpop.f32.mrb[0].mxu0
  %v546 = vadd.f32 %v72, %v545
  %v547 = vpop.f32.mrb[0].mxu0
  %v548 = vadd.f32 %v68, %v547
  %v549 = vpop.f32.mrb[0].mxu0
  %v550 = vadd.f32 %v72, %v549
  %551 = vmatprep.mubr.bf16.mxu0 0
  %552 = vmatmul.mubr.bf16.gmra.mrb[0].mxu0 %v223
  %v553 = vpop.f32.mrb[0].mxu0
  %v554 = vadd.f32 %v68, %v553
  %v555 = vpop.f32.mrb[0].mxu0
  %v556 = vadd.f32 %v72, %v555
  %v557 = vpop.f32.mrb[0].mxu0
  %v558 = vadd.f32 %v68, %v557
  %v559 = vpop.f32.mrb[0].mxu0
  %v560 = vadd.f32 %v72, %v559
  %561 = vmatprep.mubr.bf16.mxu0 0
  %562 = vmatmul.mubr.bf16.gmra.mrb[0].mxu0 %v226
  %v563 = vpop.f32.mrb[0].mxu0
  %v564 = vadd.f32 %v68, %v563
  %v565 = vpop.f32.mrb[0].mxu0
  %v566 = vadd.f32 %v72, %v565
  %v567 = vpop.f32.mrb[0].mxu0
  %v568 = vadd.f32 %v68, %v567
  %v569 = vpop.f32.mrb[0].mxu0
  %v570 = vadd.f32 %v72, %v569
  %571 = vmatprep.mubr.bf16.mxu0 0
  %572 = vmatmul.mubr.bf16.gmra.mrb[0].mxu0 %v229
  %v573 = vpop.f32.mrb[0].mxu0
  %v574 = vadd.f32 %v68, %v573
  %v575 = vpop.f32.mrb[0].mxu0
  %v576 = vadd.f32 %v72, %v575
  %v577 = vpop.f32.mrb[0].mxu0
  %v578 = vadd.f32 %v68, %v577
  %v579 = vpop.f32.mrb[0].mxu0
  %v580 = vadd.f32 %v72, %v579
  %581 = vmatprep.mubr.bf16.mxu0 0
  %582 = vmatmul.mubr.bf16.gmra.mrb[0].mxu0 %v232
  %v583 = vpop.f32.mrb[0].mxu0
  %v584 = vadd.f32 %v68, %v583
  %v585 = vpop.f32.mrb[0].mxu0
  %v586 = vadd.f32 %v72, %v585
  %v587 = vpop.f32.mrb[0].mxu0
  %v588 = vadd.f32 %v68, %v587
  %v589 = vpop.f32.mrb[0].mxu0
  %v590 = vadd.f32 %v72, %v589
  %591 = vmatprep.mubr.bf16.mxu0 0
  %592 = vmatmul.mubr.bf16.gmra.mrb[0].mxu0 %v235
  %v593 = vpop.f32.mrb[0].mxu0
  %v594 = vadd.f32 %v68, %v593
  %v595 = vpop.f32.mrb[0].mxu0
  %v596 = vadd.f32 %v72, %v595
  %v597 = vpop.f32.mrb[0].mxu0
  %v598 = vadd.f32 %v68, %v597
  %v599 = vpop.f32.mrb[0].mxu0
  %v600 = vadd.f32 %v72, %v599
  %601 = vmatprep.mubr.bf16.mxu0 0
  %602 = vmatmul.mubr.bf16.gmra.mrb[0].mxu0 %v238
  %v603 = vpop.f32.mrb[0].mxu0
  %v604 = vadd.f32 %v68, %v603
  %v605 = vpop.f32.mrb[0].mxu0
  %v606 = vadd.f32 %v72, %v605
  %v607 = vpop.f32.mrb[0].mxu0
  %v608 = vadd.f32 %v68, %v607
  %v609 = vpop.f32.mrb[0].mxu0
  %v610 = vadd.f32 %v72, %v609
  %611 = vmatprep.mubr.bf16.mxu0 0
  %612 = vmatmul.mubr.bf16.gmra.mrb[0].mxu0 %v241
  %v613 = vpop.f32.mrb[0].mxu0
  %v614 = vadd.f32 %v68, %v613
  %v615 = vpop.f32.mrb[0].mxu0
  %v616 = vadd.f32 %v72, %v615
  %v617 = vpop.f32.mrb[0].mxu0
  %v618 = vadd.f32 %v68, %v617
  %v619 = vpop.f32.mrb[0].mxu0
  %v620 = vadd.f32 %v72, %v619
  %621 = vmatprep.mubr.bf16.mxu0 0
  %622 = vmatmul.mubr.bf16.gmra.mrb[0].mxu0 %v244
  %v623 = vpop.f32.mrb[0].mxu0
  %v624 = vadd.f32 %v68, %v623
  %v625 = vpop.f32.mrb[0].mxu0
  %v626 = vadd.f32 %v72, %v625
  %v627 = vpop.f32.mrb[0].mxu0
  %v628 = vadd.f32 %v68, %v627
  %v629 = vpop.f32.mrb[0].mxu0
  %v630 = vadd.f32 %v72, %v629
  %631 = vdwg.mxu0
  %v632 = vpack.c.bf16 %v285, %v281
  %v633 = vpack.c.bf16 %v287, %v283
  %v634 = vpack.c.bf16 %v478, %v474
  %v635 = vpack.c.bf16 %v480, %v476
  %v636 = vpack.c.bf16 %v295, %v291
  %v637 = vpack.c.bf16 %v297, %v293
  %v638 = vpack.c.bf16 %v488, %v484
  %v639 = vpack.c.bf16 %v490, %v486
  %v640 = vpack.c.bf16 %v305, %v301
  %v641 = vpack.c.bf16 %v307, %v303
  %v642 = vpack.c.bf16 %v498, %v494
  %v643 = vpack.c.bf16 %v500, %v496
  %v644 = vpack.c.bf16 %v315, %v311
  %v645 = vpack.c.bf16 %v317, %v313
  %v646 = vpack.c.bf16 %v508, %v504
  %v647 = vpack.c.bf16 %v510, %v506
  %v648 = vpack.c.bf16 %v325, %v321
  %v649 = vpack.c.bf16 %v327, %v323
  %v650 = vpack.c.bf16 %v518, %v514
  %v651 = vpack.c.bf16 %v520, %v516
  %v652 = vpack.c.bf16 %v335, %v331
  %v653 = vpack.c.bf16 %v337, %v333
  %v654 = vpack.c.bf16 %v528, %v524
  %v655 = vpack.c.bf16 %v530, %v526
  %v656 = vpack.c.bf16 %v345, %v341
  %v657 = vpack.c.bf16 %v347, %v343
  %v658 = vpack.c.bf16 %v538, %v534
  %v659 = vpack.c.bf16 %v540, %v536
  %v660 = vpack.c.bf16 %v355, %v351
  %v661 = vpack.c.bf16 %v357, %v353
  %v662 = vpack.c.bf16 %v548, %v544
  %v663 = vpack.c.bf16 %v550, %v546
  %v664 = vpack.c.bf16 %v365, %v361
  %v665 = vpack.c.bf16 %v367, %v363
  %v666 = vpack.c.bf16 %v558, %v554
  %v667 = vpack.c.bf16 %v560, %v556
  %v668 = vpack.c.bf16 %v375, %v371
  %v669 = vpack.c.bf16 %v377, %v373
  %v670 = vpack.c.bf16 %v568, %v564
  %v671 = vpack.c.bf16 %v570, %v566
  %v672 = vpack.c.bf16 %v385, %v381
  %v673 = vpack.c.bf16 %v387, %v383
  %v674 = vpack.c.bf16 %v578, %v574
  %v675 = vpack.c.bf16 %v580, %v576
  %v676 = vpack.c.bf16 %v395, %v391
  %v677 = vpack.c.bf16 %v397, %v393
  %v678 = vpack.c.bf16 %v588, %v584
  %v679 = vpack.c.bf16 %v590, %v586
  %v680 = vpack.c.bf16 %v405, %v401
  %v681 = vpack.c.bf16 %v407, %v403
  %v682 = vpack.c.bf16 %v598, %v594
  %v683 = vpack.c.bf16 %v600, %v596
  %v684 = vpack.c.bf16 %v415, %v411
  %v685 = vpack.c.bf16 %v417, %v413
  %v686 = vpack.c.bf16 %v608, %v604
  %v687 = vpack.c.bf16 %v610, %v606
  %v688 = vpack.c.bf16 %v425, %v421
  %v689 = vpack.c.bf16 %v427, %v423
  %v690 = vpack.c.bf16 %v618, %v614
  %v691 = vpack.c.bf16 %v620, %v616
  %v692 = vpack.c.bf16 %v435, %v431
  %v693 = vpack.c.bf16 %v437, %v433
  %v694 = vpack.c.bf16 %v628, %v624
  %v695 = vpack.c.bf16 %v630, %v626
  %v760 = vunpack.c.l.b16 %v632
  %v761 = vunpack.c.l.b16 %v633
  %v762 = vunpack.c.l.b16 %v634
  %v763 = vunpack.c.l.b16 %v635
  %v764 = vunpack.c.h.b16 %v632
  %v765 = vunpack.c.h.b16 %v633
  %v766 = vunpack.c.h.b16 %v634
  %v767 = vunpack.c.h.b16 %v635
  %v768 = vunpack.c.l.b16 %v636
  %v769 = vunpack.c.l.b16 %v637
  %v770 = vunpack.c.l.b16 %v638
  %v771 = vunpack.c.l.b16 %v639
  %v772 = vunpack.c.h.b16 %v636
  %v773 = vunpack.c.h.b16 %v637
  %v774 = vunpack.c.h.b16 %v638
  %v775 = vunpack.c.h.b16 %v639
  %v776 = vunpack.c.l.b16 %v640
  %v777 = vunpack.c.l.b16 %v641
  %v778 = vunpack.c.l.b16 %v642
  %v779 = vunpack.c.l.b16 %v643
  %v780 = vunpack.c.h.b16 %v640
  %v781 = vunpack.c.h.b16 %v641
  %v782 = vunpack.c.h.b16 %v642
  %v783 = vunpack.c.h.b16 %v643
  %v784 = vunpack.c.l.b16 %v644
  %v785 = vunpack.c.l.b16 %v645
  %v786 = vunpack.c.l.b16 %v646
  %v787 = vunpack.c.l.b16 %v647
  %v788 = vunpack.c.h.b16 %v644
  %v789 = vunpack.c.h.b16 %v645
  %v790 = vunpack.c.h.b16 %v646
  %v791 = vunpack.c.h.b16 %v647
  %v792 = vunpack.c.l.b16 %v648
  %v793 = vunpack.c.l.b16 %v649
  %v794 = vunpack.c.l.b16 %v650
  %v795 = vunpack.c.l.b16 %v651
  %v796 = vunpack.c.h.b16 %v648
  %v797 = vunpack.c.h.b16 %v649
  %v798 = vunpack.c.h.b16 %v650
  %v799 = vunpack.c.h.b16 %v651
  %v800 = vunpack.c.l.b16 %v652
  %v801 = vunpack.c.l.b16 %v653
  %v802 = vunpack.c.l.b16 %v654
  %v803 = vunpack.c.l.b16 %v655
  %v804 = vunpack.c.h.b16 %v652
  %v805 = vunpack.c.h.b16 %v653
  %v806 = vunpack.c.h.b16 %v654
  %v807 = vunpack.c.h.b16 %v655
  %v808 = vunpack.c.l.b16 %v656
  %v809 = vunpack.c.l.b16 %v657
  %v810 = vunpack.c.l.b16 %v658
  %v811 = vunpack.c.l.b16 %v659
  %v812 = vunpack.c.h.b16 %v656
  %v813 = vunpack.c.h.b16 %v657
  %v814 = vunpack.c.h.b16 %v658
  %v815 = vunpack.c.h.b16 %v659
  %v816 = vunpack.c.l.b16 %v660
  %v817 = vunpack.c.l.b16 %v661
  %v818 = vunpack.c.l.b16 %v662
  %v819 = vunpack.c.l.b16 %v663
  %v820 = vunpack.c.h.b16 %v660
  %v821 = vunpack.c.h.b16 %v661
  %v822 = vunpack.c.h.b16 %v662
  %v823 = vunpack.c.h.b16 %v663
  %v824 = vunpack.c.l.b16 %v664
  %v825 = vunpack.c.l.b16 %v665
  %v826 = vunpack.c.l.b16 %v666
  %v827 = vunpack.c.l.b16 %v667
  %v828 = vunpack.c.h.b16 %v664
  %v829 = vunpack.c.h.b16 %v665
  %v830 = vunpack.c.h.b16 %v666
  %v831 = vunpack.c.h.b16 %v667
  %v832 = vunpack.c.l.b16 %v668
  %v833 = vunpack.c.l.b16 %v669
  %v834 = vunpack.c.l.b16 %v670
  %v835 = vunpack.c.l.b16 %v671
  %v836 = vunpack.c.h.b16 %v668
  %v837 = vunpack.c.h.b16 %v669
  %v838 = vunpack.c.h.b16 %v670
  %v839 = vunpack.c.h.b16 %v671
  %v840 = vunpack.c.l.b16 %v672
  %v841 = vunpack.c.l.b16 %v673
  %v842 = vunpack.c.l.b16 %v674
  %v843 = vunpack.c.l.b16 %v675
  %v844 = vunpack.c.h.b16 %v672
  %v845 = vunpack.c.h.b16 %v673
  %v846 = vunpack.c.h.b16 %v674
  %v847 = vunpack.c.h.b16 %v675
  %v848 = vunpack.c.l.b16 %v676
  %v849 = vunpack.c.l.b16 %v677
  %v850 = vunpack.c.l.b16 %v678
  %v851 = vunpack.c.l.b16 %v679
  %v852 = vunpack.c.h.b16 %v676
  %v853 = vunpack.c.h.b16 %v677
  %v854 = vunpack.c.h.b16 %v678
  %v855 = vunpack.c.h.b16 %v679
  %v856 = vunpack.c.l.b16 %v680
  %v857 = vunpack.c.l.b16 %v681
  %v858 = vunpack.c.l.b16 %v682
  %v859 = vunpack.c.l.b16 %v683
  %v860 = vunpack.c.h.b16 %v680
  %v861 = vunpack.c.h.b16 %v681
  %v862 = vunpack.c.h.b16 %v682
  %v863 = vunpack.c.h.b16 %v683
  %v864 = vunpack.c.l.b16 %v684
  %v865 = vunpack.c.l.b16 %v685
  %v866 = vunpack.c.l.b16 %v686
  %v867 = vunpack.c.l.b16 %v687
  %v868 = vunpack.c.h.b16 %v684
  %v869 = vunpack.c.h.b16 %v685
  %v870 = vunpack.c.h.b16 %v686
  %v871 = vunpack.c.h.b16 %v687
  %v872 = vunpack.c.l.b16 %v688
  %v873 = vunpack.c.l.b16 %v689
  %v874 = vunpack.c.l.b16 %v690
  %v875 = vunpack.c.l.b16 %v691
  %v876 = vunpack.c.h.b16 %v688
  %v877 = vunpack.c.h.b16 %v689
  %v878 = vunpack.c.h.b16 %v690
  %v879 = vunpack.c.h.b16 %v691
  %v880 = vunpack.c.l.b16 %v692
  %v881 = vunpack.c.l.b16 %v693
  %v882 = vunpack.c.l.b16 %v694
  %v883 = vunpack.c.l.b16 %v695
  %v884 = vunpack.c.h.b16 %v692
  %v885 = vunpack.c.h.b16 %v693
  %v886 = vunpack.c.h.b16 %v694
  %v887 = vunpack.c.h.b16 %v695
  %v888 = vpack.c.b16 %v761, %v760
  %v889 = vpack.c.b16 %v763, %v762
  %v890 = vpack.c.b16 %v765, %v764
  %v891 = vpack.c.b16 %v767, %v766
  %v892 = vpack.c.b16 %v769, %v768
  %v893 = vpack.c.b16 %v771, %v770
  %v894 = vpack.c.b16 %v773, %v772
  %v895 = vpack.c.b16 %v775, %v774
  %v896 = vpack.c.b16 %v777, %v776
  %v897 = vpack.c.b16 %v779, %v778
  %v898 = vpack.c.b16 %v781, %v780
  %v899 = vpack.c.b16 %v783, %v782
  %v900 = vpack.c.b16 %v785, %v784
  %v901 = vpack.c.b16 %v787, %v786
  %v902 = vpack.c.b16 %v789, %v788
  %v903 = vpack.c.b16 %v791, %v790
  %v904 = vpack.c.b16 %v793, %v792
  %v905 = vpack.c.b16 %v795, %v794
  %v906 = vpack.c.b16 %v797, %v796
  %v907 = vpack.c.b16 %v799, %v798
  %v908 = vpack.c.b16 %v801, %v800
  %v909 = vpack.c.b16 %v803, %v802
  %v910 = vpack.c.b16 %v805, %v804
  %v911 = vpack.c.b16 %v807, %v806
  %v912 = vpack.c.b16 %v809, %v808
  %v913 = vpack.c.b16 %v811, %v810
  %v914 = vpack.c.b16 %v813, %v812
  %v915 = vpack.c.b16 %v815, %v814
  %v916 = vpack.c.b16 %v817, %v816
  %v917 = vpack.c.b16 %v819, %v818
  %v918 = vpack.c.b16 %v821, %v820
  %v919 = vpack.c.b16 %v823, %v822
  %v920 = vpack.c.b16 %v825, %v824
  %v921 = vpack.c.b16 %v827, %v826
  %v922 = vpack.c.b16 %v829, %v828
  %v923 = vpack.c.b16 %v831, %v830
  %v924 = vpack.c.b16 %v833, %v832
  %v925 = vpack.c.b16 %v835, %v834
  %v926 = vpack.c.b16 %v837, %v836
  %v927 = vpack.c.b16 %v839, %v838
  %v928 = vpack.c.b16 %v841, %v840
  %v929 = vpack.c.b16 %v843, %v842
  %v930 = vpack.c.b16 %v845, %v844
  %v931 = vpack.c.b16 %v847, %v846
  %v932 = vpack.c.b16 %v849, %v848
  %v933 = vpack.c.b16 %v851, %v850
  %v934 = vpack.c.b16 %v853, %v852
  %v935 = vpack.c.b16 %v855, %v854
  %v936 = vpack.c.b16 %v857, %v856
  %v937 = vpack.c.b16 %v859, %v858
  %v938 = vpack.c.b16 %v861, %v860
  %v939 = vpack.c.b16 %v863, %v862
  %v940 = vpack.c.b16 %v865, %v864
  %v941 = vpack.c.b16 %v867, %v866
  %v942 = vpack.c.b16 %v869, %v868
  %v943 = vpack.c.b16 %v871, %v870
  %v944 = vpack.c.b16 %v873, %v872
  %v945 = vpack.c.b16 %v875, %v874
  %v946 = vpack.c.b16 %v877, %v876
  %v947 = vpack.c.b16 %v879, %v878
  %v948 = vpack.c.b16 %v881, %v880
  %v949 = vpack.c.b16 %v883, %v882
  %v950 = vpack.c.b16 %v885, %v884
  %v951 = vpack.c.b16 %v887, %v886
  %1016 = vst [vmem:[%s3] sm:$0xff] %v888
  %1017 = vst [vmem:[%s3 + $0x8] sm:$0xff] %v889
  %1018 = vst [vmem:[%s3 + $0x10] sm:$0xff] %v890
  %1019 = vst [vmem:[%s3 + $0x18] sm:$0xff] %v891
  %1020 = vst [vmem:[%s3 + $0x20] sm:$0xff] %v892
  %1021 = vst [vmem:[%s3 + $0x28] sm:$0xff] %v893
  %1022 = vst [vmem:[%s3 + $0x30] sm:$0xff] %v894
  %1023 = vst [vmem:[%s3 + $0x38] sm:$0xff] %v895
  %1024 = vst [vmem:[%s3 + $0x40] sm:$0xff] %v896
  %1025 = vst [vmem:[%s3 + $0x48] sm:$0xff] %v897
  %1026 = vst [vmem:[%s3 + $0x50] sm:$0xff] %v898
  %1027 = vst [vmem:[%s3 + $0x58] sm:$0xff] %v899
  %1028 = vst [vmem:[%s3 + $0x60] sm:$0xff] %v900
  %1029 = vst [vmem:[%s3 + $0x68] sm:$0xff] %v901
  %1030 = vst [vmem:[%s3 + $0x70] sm:$0xff] %v902
  %1031 = vst [vmem:[%s3 + $0x78] sm:$0xff] %v903
  %1032 = vst [vmem:[%s3 + $0x80] sm:$0xff] %v904
  %1033 = vst [vmem:[%s3 + $0x88] sm:$0xff] %v905
  %1034 = vst [vmem:[%s3 + $0x90] sm:$0xff] %v906
  %1035 = vst [vmem:[%s3 + $0x98] sm:$0xff] %v907
  %1036 = vst [vmem:[%s3 + $0xa0] sm:$0xff] %v908
  %1037 = vst [vmem:[%s3 + $0xa8] sm:$0xff] %v909
  %1038 = vst [vmem:[%s3 + $0xb0] sm:$0xff] %v910
  %1039 = vst [vmem:[%s3 + $0xb8] sm:$0xff] %v911
  %1040 = vst [vmem:[%s3 + $0xc0] sm:$0xff] %v912
  %1041 = vst [vmem:[%s3 + $0xc8] sm:$0xff] %v913
  %1042 = vst [vmem:[%s3 + $0xd0] sm:$0xff] %v914
  %1043 = vst [vmem:[%s3 + $0xd8] sm:$0xff] %v915
  %1044 = vst [vmem:[%s3 + $0xe0] sm:$0xff] %v916
  %1045 = vst [vmem:[%s3 + $0xe8] sm:$0xff] %v917
  %1046 = vst [vmem:[%s3 + $0xf0] sm:$0xff] %v918
  %1047 = vst [vmem:[%s3 + $0xf8] sm:$0xff] %v919
  %1048 = vst [vmem:[%s3 + $0x100] sm:$0xff] %v920
  %1049 = vst [vmem:[%s3 + $0x108] sm:$0xff] %v921
  %1050 = vst [vmem:[%s3 + $0x110] sm:$0xff] %v922
  %1051 = vst [vmem:[%s3 + $0x118] sm:$0xff] %v923
  %1052 = vst [vmem:[%s3 + $0x120] sm:$0xff] %v924
  %1053 = vst [vmem:[%s3 + $0x128] sm:$0xff] %v925
  %1054 = vst [vmem:[%s3 + $0x130] sm:$0xff] %v926
  %1055 = vst [vmem:[%s3 + $0x138] sm:$0xff] %v927
  %1056 = vst [vmem:[%s3 + $0x140] sm:$0xff] %v928
  %1057 = vst [vmem:[%s3 + $0x148] sm:$0xff] %v929
  %1058 = vst [vmem:[%s3 + $0x150] sm:$0xff] %v930
  %1059 = vst [vmem:[%s3 + $0x158] sm:$0xff] %v931
  %1060 = vst [vmem:[%s3 + $0x160] sm:$0xff] %v932
  %1061 = vst [vmem:[%s3 + $0x168] sm:$0xff] %v933
  %1062 = vst [vmem:[%s3 + $0x170] sm:$0xff] %v934
  %1063 = vst [vmem:[%s3 + $0x178] sm:$0xff] %v935
  %1064 = vst [vmem:[%s3 + $0x180] sm:$0xff] %v936
  %1065 = vst [vmem:[%s3 + $0x188] sm:$0xff] %v937
  %1066 = vst [vmem:[%s3 + $0x190] sm:$0xff] %v938
  %1067 = vst [vmem:[%s3 + $0x198] sm:$0xff] %v939
  %1068 = vst [vmem:[%s3 + $0x1a0] sm:$0xff] %v940
  %1069 = vst [vmem:[%s3 + $0x1a8] sm:$0xff] %v941
  %1070 = vst [vmem:[%s3 + $0x1b0] sm:$0xff] %v942
  %1071 = vst [vmem:[%s3 + $0x1b8] sm:$0xff] %v943
  %1072 = vst [vmem:[%s3 + $0x1c0] sm:$0xff] %v944
  %1073 = vst [vmem:[%s3 + $0x1c8] sm:$0xff] %v945
  %1074 = vst [vmem:[%s3 + $0x1d0] sm:$0xff] %v946
  %1075 = vst [vmem:[%s3 + $0x1d8] sm:$0xff] %v947
  %1076 = vst [vmem:[%s3 + $0x1e0] sm:$0xff] %v948
  %1077 = vst [vmem:[%s3 + $0x1e8] sm:$0xff] %v949
  %1078 = vst [vmem:[%s3 + $0x1f0] sm:$0xff] %v950
  %1079 = vst [vmem:[%s3 + $0x1f8] sm:$0xff] %v951
  // Predicated region
  $region14: #{lm_lstm_forward.3} parent=0 // pred_check
    _
  $region15: #{lm_lstm_forward.3} parent=0 // pred_check_branch
    %1081 = sbr.rel (0) target = $region17
  $region16: #{lm_lstm_forward.3} parent=0 // pred_region
    _
  $region17: #{lm_lstm_forward.3} parent=0 // pred_fallthru
    _
  // Predicated region
  $region18: #{lm_lstm_forward.3} parent=0 // pred_check
    _
  $region19: #{lm_lstm_forward.3} parent=0 // pred_check_branch
    %1083 = sbr.rel (0) target = $region21
  $region20: #{lm_lstm_forward.3} parent=0 // pred_region
    _
  $region21: #{lm_lstm_forward.3} parent=0 // pred_fallthru
    _

// kernel: lm_lstm_forward.4
$region0: #{lm_lstm_forward.4}
  #allocation0 [shape = 'u32[]', space=smem, size = 0x4, offset = 0x4, fixed_abs, tag = 'smem constant byte address 0x4 - core index']
  #allocation1 [shape = 'u32[144,128]{1,0:T(1,128)}', space=vmem, size = 0x12000, scoped, tag = 'internal scratch']
  #allocation2 [shape = 'bf16[16,128]{1,0:T(16,128)(2,1)}', space=vmem, size = 0x1000, scoped, tag = 'scratch operand']
  #allocation3 [shape = 'f32[16,128]{1,0:T(8,128)}', space=vmem, size = 0x2000, scoped, tag = 'scratch operand']
  %s0 = inlined_call_operand.vmem [shape: bf16[16,16,512], index: 0, kind: input, shape index: {}]
  %s1 = inlined_call_operand.vmem [shape: bf16[128,512], index: 1, kind: input, shape index: {}]
  %s2 = inlined_call_operand.vmem [shape: bf16[16,16,128], index: 2, kind: output, shape index: {}]
  %s3 = sld [smem:[#allocation0]]
  $region22: #{lm_lstm_forward.4} parent=0
    _
  %s5 = ssub.s32 1, %s3
  %s6 = scalar_select 0, %s5, %s3
  // Predicated region
  $region2: #{lm_lstm_forward.4} parent=0 // pred_check
    _
  $region3: #{lm_lstm_forward.4} parent=0 // pred_check_branch
    %8 = sbr.rel (0) target = $region5
  $region4: #{lm_lstm_forward.4} parent=0 // pred_region
    _
  $region5: #{lm_lstm_forward.4} parent=0 // pred_fallthru
    _
  // Predicated region
  $region6: #{lm_lstm_forward.4} parent=0 // pred_check
    _
  $region7: #{lm_lstm_forward.4} parent=0 // pred_check_branch
    %10 = sbr.rel (0) target = $region9
  $region8: #{lm_lstm_forward.4} parent=0 // pred_region
    _
  $region9: #{lm_lstm_forward.4} parent=0 // pred_fallthru
    _
  %p12 = scmp.eq.s32.totalorder 0, 0
  // Predicated region
  $region10: #{lm_lstm_forward.4} parent=0 // pred_check
    %p13 = pneg %p12
  $region11: #{lm_lstm_forward.4} parent=0 // pred_check_branch
    %15 = sbr.rel (%p13) target = $region13
  $region12: #{lm_lstm_forward.4} parent=0 // pred_region
    %16 = vst [vmem:[#allocation2] sm:$0xff] 0
    %17 = vst [vmem:[#allocation3] sm:$0xff] 0.0
    %18 = vst [vmem:[#allocation3 + $0x8] sm:$0xff] 0.0
  $region13: #{lm_lstm_forward.4} parent=0 // pred_fallthru
    _
  %v19 = vld [vmem:[#allocation2] sm:$0xff]
  %v20 = vld [vmem:[#allocation3] sm:$0xff]
  %v21 = vld [vmem:[#allocation3 + $0x8] sm:$0xff]
  %v22 = vld [vmem:[%s0] sm:$0xff]
  %v23 = vld [vmem:[%s0 + $0x8] sm:$0xff]
  %v24 = vld [vmem:[%s0 + $0x10] sm:$0xff]
  %v25 = vld [vmem:[%s0 + $0x18] sm:$0xff]
  %v26 = vunpack.c.l.bf16 %v22
  %v27 = vunpack.c.h.bf16 %v22
  %v28 = vunpack.c.l.bf16 %v23
  %v29 = vunpack.c.h.bf16 %v23
  %v30 = vunpack.c.l.bf16 %v24
  %v31 = vunpack.c.h.bf16 %v24
  %v32 = vunpack.c.l.bf16 %v25
  %v33 = vunpack.c.h.bf16 %v25
  %v34 = vld [vmem:[%s1] sm:$0xff]
  %v35 = vld [vmem:[%s1 + $0x8] sm:$0xff]
  %v36 = vld [vmem:[%s1 + $0x10] sm:$0xff]
  %v37 = vld [vmem:[%s1 + $0x18] sm:$0xff]
  %v38 = vld [vmem:[%s1 + $0x20] sm:$0xff]
  %v39 = vld [vmem:[%s1 + $0x28] sm:$0xff]
  %v40 = vld [vmem:[%s1 + $0x30] sm:$0xff]
  %v41 = vld [vmem:[%s1 + $0x38] sm:$0xff]
  %v42 = vld [vmem:[%s1 + $0x40] sm:$0xff]
  %v43 = vld [vmem:[%s1 + $0x48] sm:$0xff]
  %v44 = vld [vmem:[%s1 + $0x50] sm:$0xff]
  %v45 = vld [vmem:[%s1 + $0x58] sm:$0xff]
  %v46 = vld [vmem:[%s1 + $0x60] sm:$0xff]
  %v47 = vld [vmem:[%s1 + $0x68] sm:$0xff]
  %v48 = vld [vmem:[%s1 + $0x70] sm:$0xff]
  %v49 = vld [vmem:[%s1 + $0x78] sm:$0xff]
  %v50 = vld [vmem:[%s1 + $0x80] sm:$0xff]
  %v51 = vld [vmem:[%s1 + $0x88] sm:$0xff]
  %v52 = vld [vmem:[%s1 + $0x90] sm:$0xff]
  %v53 = vld [vmem:[%s1 + $0x98] sm:$0xff]
  %v54 = vld [vmem:[%s1 + $0xa0] sm:$0xff]
  %v55 = vld [vmem:[%s1 + $0xa8] sm:$0xff]
  %v56 = vld [vmem:[%s1 + $0xb0] sm:$0xff]
  %v57 = vld [vmem:[%s1 + $0xb8] sm:$0xff]
  %v58 = vld [vmem:[%s1 + $0xc0] sm:$0xff]
  %v59 = vld [vmem:[%s1 + $0xc8] sm:$0xff]
  %v60 = vld [vmem:[%s1 + $0xd0] sm:$0xff]
  %v61 = vld [vmem:[%s1 + $0xd8] sm:$0xff]
  %v62 = vld [vmem:[%s1 + $0xe0] sm:$0xff]
  %v63 = vld [vmem:[%s1 + $0xe8] sm:$0xff]
  %v64 = vld [vmem:[%s1 + $0xf0] sm:$0xff]
  %v65 = vld [vmem:[%s1 + $0xf8] sm:$0xff]
  %v98 = vunpack.c.l.b16 %v34
  %v99 = vunpack.c.h.b16 %v34
  %v100 = vunpack.c.l.b16 %v35
  %v101 = vunpack.c.h.b16 %v35
  %v102 = vunpack.c.l.b16 %v36
  %v103 = vunpack.c.h.b16 %v36
  %v104 = vunpack.c.l.b16 %v37
  %v105 = vunpack.c.h.b16 %v37
  %v106 = vunpack.c.l.b16 %v38
  %v107 = vunpack.c.h.b16 %v38
  %v108 = vunpack.c.l.b16 %v39
  %v109 = vunpack.c.h.b16 %v39
  %v110 = vunpack.c.l.b16 %v40
  %v111 = vunpack.c.h.b16 %v40
  %v112 = vunpack.c.l.b16 %v41
  %v113 = vunpack.c.h.b16 %v41
  %v114 = vunpack.c.l.b16 %v42
  %v115 = vunpack.c.h.b16 %v42
  %v116 = vunpack.c.l.b16 %v43
  %v117 = vunpack.c.h.b16 %v43
  %v118 = vunpack.c.l.b16 %v44
  %v119 = vunpack.c.h.b16 %v44
  %v120 = vunpack.c.l.b16 %v45
  %v121 = vunpack.c.h.b16 %v45
  %v122 = vunpack.c.l.b16 %v46
  %v123 = vunpack.c.h.b16 %v46
  %v124 = vunpack.c.l.b16 %v47
  %v125 = vunpack.c.h.b16 %v47
  %v126 = vunpack.c.l.b16 %v48
  %v127 = vunpack.c.h.b16 %v48
  %v128 = vunpack.c.l.b16 %v49
  %v129 = vunpack.c.h.b16 %v49
  %v130 = vunpack.c.l.b16 %v50
  %v131 = vunpack.c.h.b16 %v50
  %v132 = vunpack.c.l.b16 %v51
  %v133 = vunpack.c.h.b16 %v51
  %v134 = vunpack.c.l.b16 %v52
  %v135 = vunpack.c.h.b16 %v52
  %v136 = vunpack.c.l.b16 %v53
  %v137 = vunpack.c.h.b16 %v53
  %v138 = vunpack.c.l.b16 %v54
  %v139 = vunpack.c.h.b16 %v54
  %v140 = vunpack.c.l.b16 %v55
  %v141 = vunpack.c.h.b16 %v55
  %v142 = vunpack.c.l.b16 %v56
  %v143 = vunpack.c.h.b16 %v56
  %v144 = vunpack.c.l.b16 %v57
  %v145 = vunpack.c.h.b16 %v57
  %v146 = vunpack.c.l.b16 %v58
  %v147 = vunpack.c.h.b16 %v58
  %v148 = vunpack.c.l.b16 %v59
  %v149 = vunpack.c.h.b16 %v59
  %v150 = vunpack.c.l.b16 %v60
  %v151 = vunpack.c.h.b16 %v60
  %v152 = vunpack.c.l.b16 %v61
  %v153 = vunpack.c.h.b16 %v61
  %v154 = vunpack.c.l.b16 %v62
  %v155 = vunpack.c.h.b16 %v62
  %v156 = vunpack.c.l.b16 %v63
  %v157 = vunpack.c.h.b16 %v63
  %v158 = vunpack.c.l.b16 %v64
  %v159 = vunpack.c.h.b16 %v64
  %v160 = vunpack.c.l.b16 %v65
  %v161 = vunpack.c.h.b16 %v65
  %v162 = vpack.c.b16 %v102, %v98
  %v163 = vpack.c.b16 %v103, %v99
  %v164 = vpack.c.b16 %v104, %v100
  %v165 = vpack.c.b16 %v105, %v101
  %v166 = vpack.c.b16 %v110, %v106
  %v167 = vpack.c.b16 %v111, %v107
  %v168 = vpack.c.b16 %v112, %v108
  %v169 = vpack.c.b16 %v113, %v109
  %v170 = vpack.c.b16 %v118, %v114
  %v171 = vpack.c.b16 %v119, %v115
  %v172 = vpack.c.b16 %v120, %v116
  %v173 = vpack.c.b16 %v121, %v117
  %v174 = vpack.c.b16 %v126, %v122
  %v175 = vpack.c.b16 %v127, %v123
  %v176 = vpack.c.b16 %v128, %v124
  %v177 = vpack.c.b16 %v129, %v125
  %v178 = vpack.c.b16 %v134, %v130
  %v179 = vpack.c.b16 %v135, %v131
  %v180 = vpack.c.b16 %v136, %v132
  %v181 = vpack.c.b16 %v137, %v133
  %v182 = vpack.c.b16 %v142, %v138
  %v183 = vpack.c.b16 %v143, %v139
  %v184 = vpack.c.b16 %v144, %v140
  %v185 = vpack.c.b16 %v145, %v141
  %v186 = vpack.c.b16 %v150, %v146
  %v187 = vpack.c.b16 %v151, %v147
  %v188 = vpack.c.b16 %v152, %v148
  %v189 = vpack.c.b16 %v153, %v149
  %v190 = vpack.c.b16 %v158, %v154
  %v191 = vpack.c.b16 %v159, %v155
  %v192 = vpack.c.b16 %v160, %v156
  %v193 = vpack.c.b16 %v161, %v157
  %226 = vmatprep.subr.bf16.mxu0 %v163
  %227 = vmatpush1.bf16.msra.mxu0 %v162
  %228 = vmatprep.subr.bf16.mxu0 %v167
  %229 = vmatpush1.bf16.msra.mxu0 %v166
  %230 = vmatprep.subr.bf16.mxu0 %v171
  %231 = vmatpush1.bf16.msra.mxu0 %v170
  %232 = vmatprep.subr.bf16.mxu0 %v175
  %233 = vmatpush1.bf16.msra.mxu0 %v174
  %234 = vmatprep.subr.bf16.mxu0 %v179
  %235 = vmatpush1.bf16.msra.mxu0 %v178
  %236 = vmatprep.subr.bf16.mxu0 %v183
  %237 = vmatpush1.bf16.msra.mxu0 %v182
  %238 = vmatprep.subr.bf16.mxu0 %v187
  %239 = vmatpush1.bf16.msra.mxu0 %v186
  %240 = vmatprep.subr.bf16.mxu0 %v191
  %241 = vmatpush1.bf16.msra.mxu0 %v190
  %242 = vmatprep.subr.bf16.mxu0 0
  %243 = vmatpush1.bf16.msra.mxu0 0
  %244 = vmatprep.subr.bf16.mxu0 0
  %245 = vmatpush1.bf16.msra.mxu0 0
  %246 = vmatprep.subr.bf16.mxu0 0
  %247 = vmatpush1.bf16.msra.mxu0 0
  %248 = vmatprep.subr.bf16.mxu0 0
  %249 = vmatpush1.bf16.msra.mxu0 0
  %250 = vmatprep.subr.bf16.mxu0 0
  %251 = vmatpush1.bf16.msra.mxu0 0
  %252 = vmatprep.subr.bf16.mxu0 0
  %253 = vmatpush1.bf16.msra.mxu0 0
  %254 = vmatprep.subr.bf16.mxu0 0
  %255 = vmatpush1.bf16.msra.mxu0 0
  %256 = vmatprep.subr.bf16.mxu0 0
  %257 = vmatpush1.bf16.msra.mxu0 0
  %258 = vmatprep.mubr.bf16.mxu0 0
  %259 = vmatmul.mubr.bf16.gmra.mrb[0].mxu0 %v19
  %v260 = vpop.f32.mrb[0].mxu0
  %v261 = vadd.f32 0.0, %v260
  %v262 = vpop.f32.mrb[0].mxu0
  %v263 = vadd.f32 0.0, %v262
  %v264 = vpop.f32.mrb[0].mxu0
  %v265 = vadd.f32 0.0, %v264
  %v266 = vpop.f32.mrb[0].mxu0
  %v267 = vadd.f32 0.0, %v266
  %268 = vdwg.mxu0
  %269 = vmatprep.subr.bf16.mxu0 %v165
  %270 = vmatpush1.bf16.msra.mxu0 %v164
  %271 = vmatprep.subr.bf16.mxu0 %v169
  %272 = vmatpush1.bf16.msra.mxu0 %v168
  %273 = vmatprep.subr.bf16.mxu0 %v173
  %274 = vmatpush1.bf16.msra.mxu0 %v172
  %275 = vmatprep.subr.bf16.mxu0 %v177
  %276 = vmatpush1.bf16.msra.mxu0 %v176
  %277 = vmatprep.subr.bf16.mxu0 %v181
  %278 = vmatpush1.bf16.msra.mxu0 %v180
  %279 = vmatprep.subr.bf16.mxu0 %v185
  %280 = vmatpush1.bf16.msra.mxu0 %v184
  %281 = vmatprep.subr.bf16.mxu0 %v189
  %282 = vmatpush1.bf16.msra.mxu0 %v188
  %283 = vmatprep.subr.bf16.mxu0 %v193
  %284 = vmatpush1.bf16.msra.mxu0 %v192
  %285 = vmatprep.subr.bf16.mxu0 0
  %286 = vmatpush1.bf16.msra.mxu0 0
  %287 = vmatprep.subr.bf16.mxu0 0
  %288 = vmatpush1.bf16.msra.mxu0 0
  %289 = vmatprep.subr.bf16.mxu0 0
  %290 = vmatpush1.bf16.msra.mxu0 0
  %291 = vmatprep.subr.bf16.mxu0 0
  %292 = vmatpush1.bf16.msra.mxu0 0
  %293 = vmatprep.subr.bf16.mxu0 0
  %294 = vmatpush1.bf16.msra.mxu0 0
  %295 = vmatprep.subr.bf16.mxu0 0
  %296 = vmatpush1.bf16.msra.mxu0 0
  %297 = vmatprep.subr.bf16.mxu0 0
  %298 = vmatpush1.bf16.msra.mxu0 0
  %299 = vmatprep.subr.bf16.mxu0 0
  %300 = vmatpush1.bf16.msra.mxu0 0
  %301 = vmatprep.mubr.bf16.mxu0 0
  %302 = vmatmul.mubr.bf16.gmra.mrb[0].mxu0 %v19
  %v303 = vpop.f32.mrb[0].mxu0
  %v304 = vadd.f32 0.0, %v303
  %v305 = vpop.f32.mrb[0].mxu0
  %v306 = vadd.f32 0.0, %v305
  %v307 = vpop.f32.mrb[0].mxu0
  %v308 = vadd.f32 0.0, %v307
  %v309 = vpop.f32.mrb[0].mxu0
  %v310 = vadd.f32 0.0, %v309
  %311 = vdwg.mxu0
  %v312 = vadd.f32 %v26, %v261
  %v313 = vadd.f32 %v27, %v263
  %v314 = vadd.f32 %v28, %v304
  %v315 = vadd.f32 %v29, %v306
  %v316 = vadd.f32 %v30, %v265
  %v317 = vadd.f32 %v31, %v267
  %v318 = vadd.f32 %v32, %v308
  %v319 = vadd.f32 %v33, %v310
  %v320 = vxor.u32 %v312, 2147483648
  %v321 = vxor.u32 %v316, 2147483648
  %v322 = vmul.f32 %v320, 1.442695
  %v323 = vpow.pop %v322
  %v324 = vmul.f32 %v321, 1.442695
  %v325 = vpow.pop %v324
  %v326 = vadd.f32 %v323, 1.0
  %v327 = vadd.f32 %v325, 1.0
  %v328 = vrcp.pop %v326
  %v329 = vmul.f32 1.0, %v328
  %v330 = vrcp.pop %v327
  %v331 = vmul.f32 1.0, %v330
  %v332 = vxor.u32 %v313, 2147483648
  %v333 = vxor.u32 %v317, 2147483648
  %v334 = vmul.f32 %v332, 1.442695
  %v335 = vpow.pop %v334
  %v336 = vmul.f32 %v333, 1.442695
  %v337 = vpow.pop %v336
  %v338 = vadd.f32 %v335, 1.0
  %v339 = vadd.f32 %v337, 1.0
  %v340 = vrcp.pop %v338
  %v341 = vmul.f32 1.0, %v340
  %v342 = vrcp.pop %v339
  %v343 = vmul.f32 1.0, %v342
  %v344 = vtanh.pop %v314
  %v345 = vtanh.pop %v318
  %v346 = vxor.u32 %v315, 2147483648
  %v347 = vxor.u32 %v319, 2147483648
  %v348 = vmul.f32 %v346, 1.442695
  %v349 = vpow.pop %v348
  %v350 = vmul.f32 %v347, 1.442695
  %v351 = vpow.pop %v350
  %v352 = vadd.f32 %v349, 1.0
  %v353 = vadd.f32 %v351, 1.0
  %v354 = vrcp.pop %v352
  %v355 = vmul.f32 1.0, %v354
  %v356 = vrcp.pop %v353
  %v357 = vmul.f32 1.0, %v356
  %v358 = vmul.f32 %v341, %v20
  %v359 = vmul.f32 %v343, %v21
  %v360 = vmul.f32 %v329, %v344
  %v361 = vmul.f32 %v331, %v345
  %v362 = vadd.f32 %v358, %v360
  %v363 = vadd.f32 %v359, %v361
  %v364 = vtanh.pop %v362
  %v365 = vtanh.pop %v363
  %v366 = vmul.f32 %v355, %v364
  %v367 = vmul.f32 %v357, %v365
  %v368 = vpack.c.bf16 %v367, %v366
  %369 = vst [vmem:[#allocation3] sm:$0xff] %v362
  %370 = vst [vmem:[#allocation3 + $0x8] sm:$0xff] %v363
  %371 = vst [vmem:[#allocation2] sm:$0xff] %v368
  %v373 = vunpack.c.l.b16 %v368
  %v374 = vunpack.c.h.b16 %v368
  %v375 = vpack.c.b16 %v373, %v373
  %v376 = vpack.c.b16 %v374, %v374
  %379 = vst [vmem:[%s2] sm:$0xf] %v375
  %380 = vst [vmem:[%s2 + $0x4] sm:$0xf] %v376
  %v381 = vld [vmem:[#allocation2] sm:$0xff]
  %v382 = vld [vmem:[#allocation3] sm:$0xff]
  %v383 = vld [vmem:[#allocation3 + $0x8] sm:$0xff]
  %s384 = scalar_lea.vmem %s0, 32
  %v385 = vld [vmem:[%s384] sm:$0xff]
  %v386 = vld [vmem:[%s384 + $0x8] sm:$0xff]
  %v387 = vld [vmem:[%s384 + $0x10] sm:$0xff]
  %v388 = vld [vmem:[%s384 + $0x18] sm:$0xff]
  %v389 = vunpack.c.l.bf16 %v385
  %v390 = vunpack.c.h.bf16 %v385
  %v391 = vunpack.c.l.bf16 %v386
  %v392 = vunpack.c.h.bf16 %v386
  %v393 = vunpack.c.l.bf16 %v387
  %v394 = vunpack.c.h.bf16 %v387
  %v395 = vunpack.c.l.bf16 %v388
  %v396 = vunpack.c.h.bf16 %v388
  %v397 = vld [vmem:[%s1] sm:$0xff]
  %v398 = vld [vmem:[%s1 + $0x8] sm:$0xff]
  %v399 = vld [vmem:[%s1 + $0x10] sm:$0xff]
  %v400 = vld [vmem:[%s1 + $0x18] sm:$0xff]
  %v401 = vld [vmem:[%s1 + $0x20] sm:$0xff]
  %v402 = vld [vmem:[%s1 + $0x28] sm:$0xff]
  %v403 = vld [vmem:[%s1 + $0x30] sm:$0xff]
  %v404 = vld [vmem:[%s1 + $0x38] sm:$0xff]
  %v405 = vld [vmem:[%s1 + $0x40] sm:$0xff]
  %v406 = vld [vmem:[%s1 + $0x48] sm:$0xff]
  %v407 = vld [vmem:[%s1 + $0x50] sm:$0xff]
  %v408 = vld [vmem:[%s1 + $0x58] sm:$0xff]
  %v409 = vld [vmem:[%s1 + $0x60] sm:$0xff]
  %v410 = vld [vmem:[%s1 + $0x68] sm:$0xff]
  %v411 = vld [vmem:[%s1 + $0x70] sm:$0xff]
  %v412 = vld [vmem:[%s1 + $0x78] sm:$0xff]
  %v413 = vld [vmem:[%s1 + $0x80] sm:$0xff]
  %v414 = vld [vmem:[%s1 + $0x88] sm:$0xff]
  %v415 = vld [vmem:[%s1 + $0x90] sm:$0xff]
  %v416 = vld [vmem:[%s1 + $0x98] sm:$0xff]
  %v417 = vld [vmem:[%s1 + $0xa0] sm:$0xff]
  %v418 = vld [vmem:[%s1 + $0xa8] sm:$0xff]
  %v419 = vld [vmem:[%s1 + $0xb0] sm:$0xff]
  %v420 = vld [vmem:[%s1 + $0xb8] sm:$0xff]
  %v421 = vld [vmem:[%s1 + $0xc0] sm:$0xff]
  %v422 = vld [vmem:[%s1 + $0xc8] sm:$0xff]
  %v423 = vld [vmem:[%s1 + $0xd0] sm:$0xff]
  %v424 = vld [vmem:[%s1 + $0xd8] sm:$0xff]
  %v425 = vld [vmem:[%s1 + $0xe0] sm:$0xff]
  %v426 = vld [vmem:[%s1 + $0xe8] sm:$0xff]
  %v427 = vld [vmem:[%s1 + $0xf0] sm:$0xff]
  %v428 = vld [vmem:[%s1 + $0xf8] sm:$0xff]
  %v461 = vunpack.c.l.b16 %v397
  %v462 = vunpack.c.h.b16 %v397
  %v463 = vunpack.c.l.b16 %v398
  %v464 = vunpack.c.h.b16 %v398
  %v465 = vunpack.c.l.b16 %v399
  %v466 = vunpack.c.h.b16 %v399
  %v467 = vunpack.c.l.b16 %v400
  %v468 = vunpack.c.h.b16 %v400
  %v469 = vunpack.c.l.b16 %v401
  %v470 = vunpack.c.h.b16 %v401
  %v471 = vunpack.c.l.b16 %v402
  %v472 = vunpack.c.h.b16 %v402
  %v473 = vunpack.c.l.b16 %v403
  %v474 = vunpack.c.h.b16 %v403
  %v475 = vunpack.c.l.b16 %v404
  %v476 = vunpack.c.h.b16 %v404
  %v477 = vunpack.c.l.b16 %v405
  %v478 = vunpack.c.h.b16 %v405
  %v479 = vunpack.c.l.b16 %v406
  %v480 = vunpack.c.h.b16 %v406
  %v481 = vunpack.c.l.b16 %v407
  %v482 = vunpack.c.h.b16 %v407
  %v483 = vunpack.c.l.b16 %v408
  %v484 = vunpack.c.h.b16 %v408
  %v485 = vunpack.c.l.b16 %v409
  %v486 = vunpack.c.h.b16 %v409
  %v487 = vunpack.c.l.b16 %v410
  %v488 = vunpack.c.h.b16 %v410
  %v489 = vunpack.c.l.b16 %v411
  %v490 = vunpack.c.h.b16 %v411
  %v491 = vunpack.c.l.b16 %v412
  %v492 = vunpack.c.h.b16 %v412
  %v493 = vunpack.c.l.b16 %v413
  %v494 = vunpack.c.h.b16 %v413
  %v495 = vunpack.c.l.b16 %v414
  %v496 = vunpack.c.h.b16 %v414
  %v497 = vunpack.c.l.b16 %v415
  %v498 = vunpack.c.h.b16 %v415
  %v499 = vunpack.c.l.b16 %v416
  %v500 = vunpack.c.h.b16 %v416
  %v501 = vunpack.c.l.b16 %v417
  %v502 = vunpack.c.h.b16 %v417
  %v503 = vunpack.c.l.b16 %v418
  %v504 = vunpack.c.h.b16 %v418
  %v505 = vunpack.c.l.b16 %v419
  %v506 = vunpack.c.h.b16 %v419
  %v507 = vunpack.c.l.b16 %v420
  %v508 = vunpack.c.h.b16 %v420
  %v509 = vunpack.c.l.b16 %v421
  %v510 = vunpack.c.h.b16 %v421
  %v511 = vunpack.c.l.b16 %v422
  %v512 = vunpack.c.h.b16 %v422
  %v513 = vunpack.c.l.b16 %v423
  %v514 = vunpack.c.h.b16 %v423
  %v515 = vunpack.c.l.b16 %v424
  %v516 = vunpack.c.h.b16 %v424
  %v517 = vunpack.c.l.b16 %v425
  %v518 = vunpack.c.h.b16 %v425
  %v519 = vunpack.c.l.b16 %v426
  %v520 = vunpack.c.h.b16 %v426
  %v521 = vunpack.c.l.b16 %v427
  %v522 = vunpack.c.h.b16 %v427
  %v523 = vunpack.c.l.b16 %v428
  %v524 = vunpack.c.h.b16 %v428
  %v525 = vpack.c.b16 %v465, %v461
  %v526 = vpack.c.b16 %v466, %v462
  %v527 = vpack.c.b16 %v467, %v463
  %v528 = vpack.c.b16 %v468, %v464
  %v529 = vpack.c.b16 %v473, %v469
  %v530 = vpack.c.b16 %v474, %v470
  %v531 = vpack.c.b16 %v475, %v471
  %v532 = vpack.c.b16 %v476, %v472
  %v533 = vpack.c.b16 %v481, %v477
  %v534 = vpack.c.b16 %v482, %v478
  %v535 = vpack.c.b16 %v483, %v479
  %v536 = vpack.c.b16 %v484, %v480
  %v537 = vpack.c.b16 %v489, %v485
  %v538 = vpack.c.b16 %v490, %v486
  %v539 = vpack.c.b16 %v491, %v487
  %v540 = vpack.c.b16 %v492, %v488
  %v541 = vpack.c.b16 %v497, %v493
  %v542 = vpack.c.b16 %v498, %v494
  %v543 = vpack.c.b16 %v499, %v495
  %v544 = vpack.c.b16 %v500, %v496
  %v545 = vpack.c.b16 %v505, %v501
  %v546 = vpack.c.b16 %v506, %v502
  %v547 = vpack.c.b16 %v507, %v503
  %v548 = vpack.c.b16 %v508, %v504
  %v549 = vpack.c.b16 %v513, %v509
  %v550 = vpack.c.b16 %v514, %v510
  %v551 = vpack.c.b16 %v515, %v511
  %v552 = vpack.c.b16 %v516, %v512
  %v553 = vpack.c.b16 %v521, %v517
  %v554 = vpack.c.b16 %v522, %v518
  %v555 = vpack.c.b16 %v523, %v519
  %v556 = vpack.c.b16 %v524, %v520
  %589 = vmatprep.subr.bf16.mxu0 %v526
  %590 = vmatpush1.bf16.msra.mxu0 %v525
  %591 = vmatprep.subr.bf16.mxu0 %v530
  %592 = vmatpush1.bf16.msra.mxu0 %v529
  %593 = vmatprep.subr.bf16.mxu0 %v534
  %594 = vmatpush1.bf16.msra.mxu0 %v533
  %595 = vmatprep.subr.bf16.mxu0 %v538
  %596 = vmatpush1.bf16.msra.mxu0 %v537
  %597 = vmatprep.subr.bf16.mxu0 %v542
  %598 = vmatpush1.bf16.msra.mxu0 %v541
  %599 = vmatprep.subr.bf16.mxu0 %v546
  %600 = vmatpush1.bf16.msra.mxu0 %v545
  %601 = vmatprep.subr.bf16.mxu0 %v550
  %602 = vmatpush1.bf16.msra.mxu0 %v549
  %603 = vmatprep.subr.bf16.mxu0 %v554
  %604 = vmatpush1.bf16.msra.mxu0 %v553
  %605 = vmatprep.subr.bf16.mxu0 0
  %606 = vmatpush1.bf16.msra.mxu0 0
  %607 = vmatprep.subr.bf16.mxu0 0
  %608 = vmatpush1.bf16.msra.mxu0 0
  %609 = vmatprep.subr.bf16.mxu0 0
  %610 = vmatpush1.bf16.msra.mxu0 0
  %611 = vmatprep.subr.bf16.mxu0 0
  %612 = vmatpush1.bf16.msra.mxu0 0
  %613 = vmatprep.subr.bf16.mxu0 0
  %614 = vmatpush1.bf16.msra.mxu0 0
  %615 = vmatprep.subr.bf16.mxu0 0
  %616 = vmatpush1.bf16.msra.mxu0 0
  %617 = vmatprep.subr.bf16.mxu0 0
  %618 = vmatpush1.bf16.msra.mxu0 0
  %619 = vmatprep.subr.bf16.mxu0 0
  %620 = vmatpush1.bf16.msra.mxu0 0
  %621 = vmatprep.mubr.bf16.mxu0 0
  %622 = vmatmul.mubr.bf16.gmra.mrb[0].mxu0 %v381
  %v623 = vpop.f32.mrb[0].mxu0
  %v624 = vadd.f32 0.0, %v623
  %v625 = vpop.f32.mrb[0].mxu0
  %v626 = vadd.f32 0.0, %v625
  %v627 = vpop.f32.mrb[0].mxu0
  %v628 = vadd.f32 0.0, %v627
  %v629 = vpop.f32.mrb[0].mxu0
  %v630 = vadd.f32 0.0, %v629
  %631 = vdwg.mxu0
  %632 = vmatprep.subr.bf16.mxu0 %v528
  %633 = vmatpush1.bf16.msra.mxu0 %v527
  %634 = vmatprep.subr.bf16.mxu0 %v532
  %635 = vmatpush1.bf16.msra.mxu0 %v531
  %636 = vmatprep.subr.bf16.mxu0 %v536
  %637 = vmatpush1.bf16.msra.mxu0 %v535
  %638 = vmatprep.subr.bf16.mxu0 %v540
  %639 = vmatpush1.bf16.msra.mxu0 %v539
  %640 = vmatprep.subr.bf16.mxu0 %v544
  %641 = vmatpush1.bf16.msra.mxu0 %v543
  %642 = vmatprep.subr.bf16.mxu0 %v548
  %643 = vmatpush1.bf16.msra.mxu0 %v547
  %644 = vmatprep.subr.bf16.mxu0 %v552
  %645 = vmatpush1.bf16.msra.mxu0 %v551
  %646 = vmatprep.subr.bf16.mxu0 %v556
  %647 = vmatpush1.bf16.msra.mxu0 %v555
  %648 = vmatprep.subr.bf16.mxu0 0
  %649 = vmatpush1.bf16.msra.mxu0 0
  %650 = vmatprep.subr.bf16.mxu0 0
  %651 = vmatpush1.bf16.msra.mxu0 0
  %652 = vmatprep.subr.bf16.mxu0 0
  %653 = vmatpush1.bf16.msra.mxu0 0
  %654 = vmatprep.subr.bf16.mxu0 0
  %655 = vmatpush1.bf16.msra.mxu0 0
  %656 = vmatprep.subr.bf16.mxu0 0
  %657 = vmatpush1.bf16.msra.mxu0 0
  %658 = vmatprep.subr.bf16.mxu0 0
  %659 = vmatpush1.bf16.msra.mxu0 0
  %660 = vmatprep.subr.bf16.mxu0 0
  %661 = vmatpush1.bf16.msra.mxu0 0
  %662 = vmatprep.subr.bf16.mxu0 0
  %663 = vmatpush1.bf16.msra.mxu0 0
  %664 = vmatprep.mubr.bf16.mxu0 0
  %665 = vmatmul.mubr.bf16.gmra.mrb[0].mxu0 %v381
  %v666 = vpop.f32.mrb[0].mxu0
  %v667 = vadd.f32 0.0, %v666
  %v668 = vpop.f32.mrb[0].mxu0
  %v669 = vadd.f32 0.0, %v668
  %v670 = vpop.f32.mrb[0].mxu0
  %v671 = vadd.f32 0.0, %v670
  %v672 = vpop.f32.mrb[0].mxu0
  %v673 = vadd.f32 0.0, %v672
  %674 = vdwg.mxu0
  %v675 = vadd.f32 %v389, %v624
  %v676 = vadd.f32 %v390, %v626
  %v677 = vadd.f32 %v391, %v667
  %v678 = vadd.f32 %v392, %v669
  %v679 = vadd.f32 %v393, %v628
  %v680 = vadd.f32 %v394, %v630
  %v681 = vadd.f32 %v395, %v671
  %v682 = vadd.f32 %v396, %v673
  %v683 = vxor.u32 %v675, 2147483648
  %v684 = vxor.u32 %v679, 2147483648
  %v685 = vmul.f32 %v683, 1.442695
  %v686 = vpow.pop %v685
  %v687 = vmul.f32 %v684, 1.442695
  %v688 = vpow.pop %v687
  %v689 = vadd.f32 %v686, 1.0
  %v690 = vadd.f32 %v688, 1.0
  %v691 = vrcp.pop %v689
  %v692 = vmul.f32 1.0, %v691
  %v693 = vrcp.pop %v690
  %v694 = vmul.f32 1.0, %v693
  %v695 = vxor.u32 %v676, 2147483648
  %v696 = vxor.u32 %v680, 2147483648
  %v697 = vmul.f32 %v695, 1.442695
  %v698 = vpow.pop %v697
  %v699 = vmul.f32 %v696, 1.442695
  %v700 = vpow.pop %v699
  %v701 = vadd.f32 %v698, 1.0
  %v702 = vadd.f32 %v700, 1.0
  %v703 = vrcp.pop %v701
  %v704 = vmul.f32 1.0, %v703
  %v705 = vrcp.pop %v702
  %v706 = vmul.f32 1.0, %v705
  %v707 = vtanh.pop %v677
  %v708 = vtanh.pop %v681
  %v709 = vxor.u32 %v678, 2147483648
  %v710 = vxor.u32 %v682, 2147483648
  %v711 = vmul.f32 %v709, 1.442695
  %v712 = vpow.pop %v711
  %v713 = vmul.f32 %v710, 1.442695
  %v714 = vpow.pop %v713
  %v715 = vadd.f32 %v712, 1.0
  %v716 = vadd.f32 %v714, 1.0
  %v717 = vrcp.pop %v715
  %v718 = vmul.f32 1.0, %v717
  %v719 = vrcp.pop %v716
  %v720 = vmul.f32 1.0, %v719
  %v721 = vmul.f32 %v704, %v382
  %v722 = vmul.f32 %v706, %v383
  %v723 = vmul.f32 %v692, %v707
  %v724 = vmul.f32 %v694, %v708
  %v725 = vadd.f32 %v721, %v723
  %v726 = vadd.f32 %v722, %v724
  %v727 = vtanh.pop %v725
  %v728 = vtanh.pop %v726
  %v729 = vmul.f32 %v718, %v727
  %v730 = vmul.f32 %v720, %v728
  %v731 = vpack.c.bf16 %v730, %v729
  %732 = vst [vmem:[#allocation3] sm:$0xff] %v725
  %733 = vst [vmem:[#allocation3 + $0x8] sm:$0xff] %v726
  %734 = vst [vmem:[#allocation2] sm:$0xff] %v731
  %v736 = vunpack.c.l.b16 %v731
  %v737 = vunpack.c.h.b16 %v731
  %v738 = vpack.c.b16 %v736, %v736
  %v739 = vpack.c.b16 %v737, %v737
  %s742 = scalar_lea.vmem %s2, 8
  %743 = vst [vmem:[%s742] sm:$0xf] %v738
  %744 = vst [vmem:[%s742 + $0x4] sm:$0xf] %v739
  %v745 = vld [vmem:[#allocation2] sm:$0xff]
  %v746 = vld [vmem:[#allocation3] sm:$0xff]
  %v747 = vld [vmem:[#allocation3 + $0x8] sm:$0xff]
  %s748 = scalar_lea.vmem %s0, 64
  %v749 = vld [vmem:[%s748] sm:$0xff]
  %v750 = vld [vmem:[%s748 + $0x8] sm:$0xff]
  %v751 = vld [vmem:[%s748 + $0x10] sm:$0xff]
  %v752 = vld [vmem:[%s748 + $0x18] sm:$0xff]
  %v753 = vunpack.c.l.bf16 %v749
  %v754 = vunpack.c.h.bf16 %v749
  %v755 = vunpack.c.l.bf16 %v750
  %v756 = vunpack.c.h.bf16 %v750
  %v757 = vunpack.c.l.bf16 %v751
  %v758 = vunpack.c.h.bf16 %v751
  %v759 = vunpack.c.l.bf16 %v752
  %v760 = vunpack.c.h.bf16 %v752
  %v761 = vld [vmem:[%s1] sm:$0xff]
  %v762 = vld [vmem:[%s1 + $0x8] sm:$0xff]
  %v763 = vld [vmem:[%s1 + $0x10] sm:$0xff]
  %v764 = vld [vmem:[%s1 + $0x18] sm:$0xff]
  %v765 = vld [vmem:[%s1 + $0x20] sm:$0xff]
  %v766 = vld [vmem:[%s1 + $0x28] sm:$0xff]
  %v767 = vld [vmem:[%s1 + $0x30] sm:$0xff]
  %v768 = vld [vmem:[%s1 + $0x38] sm:$0xff]
  %v769 = vld [vmem:[%s1 + $0x40] sm:$0xff]
  %v770 = vld [vmem:[%s1 + $0x48] sm:$0xff]
  %v771 = vld [vmem:[%s1 + $0x50] sm:$0xff]
  %v772 = vld [vmem:[%s1 + $0x58] sm:$0xff]
  %v773 = vld [vmem:[%s1 + $0x60] sm:$0xff]
  %v774 = vld [vmem:[%s1 + $0x68] sm:$0xff]
  %v775 = vld [vmem:[%s1 + $0x70] sm:$0xff]
  %v776 = vld [vmem:[%s1 + $0x78] sm:$0xff]
  %v777 = vld [vmem:[%s1 + $0x80] sm:$0xff]
  %v778 = vld [vmem:[%s1 + $0x88] sm:$0xff]
  %v779 = vld [vmem:[%s1 + $0x90] sm:$0xff]
  %v780 = vld [vmem:[%s1 + $0x98] sm:$0xff]
  %v781 = vld [vmem:[%s1 + $0xa0] sm:$0xff]
  %v782 = vld [vmem:[%s1 + $0xa8] sm:$0xff]
  %v783 = vld [vmem:[%s1 + $0xb0] sm:$0xff]
  %v784 = vld [vmem:[%s1 + $0xb8] sm:$0xff]
  %v785 = vld [vmem:[%s1 + $0xc0] sm:$0xff]
  %v786 = vld [vmem:[%s1 + $0xc8] sm:$0xff]
  %v787 = vld [vmem:[%s1 + $0xd0] sm:$0xff]
  %v788 = vld [vmem:[%s1 + $0xd8] sm:$0xff]
  %v789 = vld [vmem:[%s1 + $0xe0] sm:$0xff]
  %v790 = vld [vmem:[%s1 + $0xe8] sm:$0xff]
  %v791 = vld [vmem:[%s1 + $0xf0] sm:$0xff]
  %v792 = vld [vmem:[%s1 + $0xf8] sm:$0xff]
  %v825 = vunpack.c.l.b16 %v761
  %v826 = vunpack.c.h.b16 %v761
  %v827 = vunpack.c.l.b16 %v762
  %v828 = vunpack.c.h.b16 %v762
  %v829 = vunpack.c.l.b16 %v763
  %v830 = vunpack.c.h.b16 %v763
  %v831 = vunpack.c.l.b16 %v764
  %v832 = vunpack.c.h.b16 %v764
  %v833 = vunpack.c.l.b16 %v765
  %v834 = vunpack.c.h.b16 %v765
  %v835 = vunpack.c.l.b16 %v766
  %v836 = vunpack.c.h.b16 %v766
  %v837 = vunpack.c.l.b16 %v767
  %v838 = vunpack.c.h.b16 %v767
  %v839 = vunpack.c.l.b16 %v768
  %v840 = vunpack.c.h.b16 %v768
  %v841 = vunpack.c.l.b16 %v769
  %v842 = vunpack.c.h.b16 %v769
  %v843 = vunpack.c.l.b16 %v770
  %v844 = vunpack.c.h.b16 %v770
  %v845 = vunpack.c.l.b16 %v771
  %v846 = vunpack.c.h.b16 %v771
  %v847 = vunpack.c.l.b16 %v772
  %v848 = vunpack.c.h.b16 %v772
  %v849 = vunpack.c.l.b16 %v773
  %v850 = vunpack.c.h.b16 %v773
  %v851 = vunpack.c.l.b16 %v774
  %v852 = vunpack.c.h.b16 %v774
  %v853 = vunpack.c.l.b16 %v775
  %v854 = vunpack.c.h.b16 %v775
  %v855 = vunpack.c.l.b16 %v776
  %v856 = vunpack.c.h.b16 %v776
  %v857 = vunpack.c.l.b16 %v777
  %v858 = vunpack.c.h.b16 %v777
  %v859 = vunpack.c.l.b16 %v778
  %v860 = vunpack.c.h.b16 %v778
  %v861 = vunpack.c.l.b16 %v779
  %v862 = vunpack.c.h.b16 %v779
  %v863 = vunpack.c.l.b16 %v780
  %v864 = vunpack.c.h.b16 %v780
  %v865 = vunpack.c.l.b16 %v781
  %v866 = vunpack.c.h.b16 %v781
  %v867 = vunpack.c.l.b16 %v782
  %v868 = vunpack.c.h.b16 %v782
  %v869 = vunpack.c.l.b16 %v783
  %v870 = vunpack.c.h.b16 %v783
  %v871 = vunpack.c.l.b16 %v784
  %v872 = vunpack.c.h.b16 %v784
  %v873 = vunpack.c.l.b16 %v785
  %v874 = vunpack.c.h.b16 %v785
  %v875 = vunpack.c.l.b16 %v786
  %v876 = vunpack.c.h.b16 %v786
  %v877 = vunpack.c.l.b16 %v787
  %v878 = vunpack.c.h.b16 %v787
  %v879 = vunpack.c.l.b16 %v788
  %v880 = vunpack.c.h.b16 %v788
  %v881 = vunpack.c.l.b16 %v789
  %v882 = vunpack.c.h.b16 %v789
  %v883 = vunpack.c.l.b16 %v790
  %v884 = vunpack.c.h.b16 %v790
  %v885 = vunpack.c.l.b16 %v791
  %v886 = vunpack.c.h.b16 %v791
  %v887 = vunpack.c.l.b16 %v792
  %v888 = vunpack.c.h.b16 %v792
  %v889 = vpack.c.b16 %v829, %v825
  %v890 = vpack.c.b16 %v830, %v826
  %v891 = vpack.c.b16 %v831, %v827
  %v892 = vpack.c.b16 %v832, %v828
  %v893 = vpack.c.b16 %v837, %v833
  %v894 = vpack.c.b16 %v838, %v834
  %v895 = vpack.c.b16 %v839, %v835
  %v896 = vpack.c.b16 %v840, %v836
  %v897 = vpack.c.b16 %v845, %v841
  %v898 = vpack.c.b16 %v846, %v842
  %v899 = vpack.c.b16 %v847, %v843
  %v900 = vpack.c.b16 %v848, %v844
  %v901 = vpack.c.b16 %v853, %v849
  %v902 = vpack.c.b16 %v854, %v850
  %v903 = vpack.c.b16 %v855, %v851
  %v904 = vpack.c.b16 %v856, %v852
  %v905 = vpack.c.b16 %v861, %v857
  %v906 = vpack.c.b16 %v862, %v858
  %v907 = vpack.c.b16 %v863, %v859
  %v908 = vpack.c.b16 %v864, %v860
  %v909 = vpack.c.b16 %v869, %v865
  %v910 = vpack.c.b16 %v870, %v866
  %v911 = vpack.c.b16 %v871, %v867
  %v912 = vpack.c.b16 %v872, %v868
  %v913 = vpack.c.b16 %v877, %v873
  %v914 = vpack.c.b16 %v878, %v874
  %v915 = vpack.c.b16 %v879, %v875
  %v916 = vpack.c.b16 %v880, %v876
  %v917 = vpack.c.b16 %v885, %v881
  %v918 = vpack.c.b16 %v886, %v882
  %v919 = vpack.c.b16 %v887, %v883
  %v920 = vpack.c.b16 %v888, %v884
  %953 = vmatprep.subr.bf16.mxu0 %v890
  %954 = vmatpush1.bf16.msra.mxu0 %v889
  %955 = vmatprep.subr.bf16.mxu0 %v894
  %956 = vmatpush1.bf16.msra.mxu0 %v893
  %957 = vmatprep.subr.bf16.mxu0 %v898
  %958 = vmatpush1.bf16.msra.mxu0 %v897
  %959 = vmatprep.subr.bf16.mxu0 %v902
  %960 = vmatpush1.bf16.msra.mxu0 %v901
  %961 = vmatprep.subr.bf16.mxu0 %v906
  %962 = vmatpush1.bf16.msra.mxu0 %v905
  %963 = vmatprep.subr.bf16.mxu0 %v910
  %964 = vmatpush1.bf16.msra.mxu0 %v909
  %965 = vmatprep.subr.bf16.mxu0 %v914
  %966 = vmatpush1.bf16.msra.mxu0 %v913
  %967 = vmatprep.subr.bf16.mxu0 %v918
  %968 = vmatpush1.bf16.msra.mxu0 %v917
  %969 = vmatprep.subr.bf16.mxu0 0
  %970 = vmatpush1.bf16.msra.mxu0 0
  %971 = vmatprep.subr.bf16.mxu0 0
  %972 = vmatpush1.bf16.msra.mxu0 0
  %973 = vmatprep.subr.bf16.mxu0 0
  %974 = vmatpush1.bf16.msra.mxu0 0
  %975 = vmatprep.subr.bf16.mxu0 0
  %976 = vmatpush1.bf16.msra.mxu0 0
  %977 = vmatprep.subr.bf16.mxu0 0
  %978 = vmatpush1.bf16.msra.mxu0 0
  %979 = vmatprep.subr.bf16.mxu0 0
  %980 = vmatpush1.bf16.msra.mxu0 0
  %981 = vmatprep.subr.bf16.mxu0 0
  %982 = vmatpush1.bf16.msra.mxu0 0
  %983 = vmatprep.subr.bf16.mxu0 0
  %984 = vmatpush1.bf16.msra.mxu0 0
  %985 = vmatprep.mubr.bf16.mxu0 0
  %986 = vmatmul.mubr.bf16.gmra.mrb[0].mxu0 %v745
  %v987 = vpop.f32.mrb[0].mxu0
  %v988 = vadd.f32 0.0, %v987
  %v989 = vpop.f32.mrb[0].mxu0
  %v990 = vadd.f32 0.0, %v989
  %v991 = vpop.f32.mrb[0].mxu0
  %v992 = vadd.f32 0.0, %v991
  %v993 = vpop.f32.mrb[0].mxu0
  %v994 = vadd.f32 0.0, %v993
  %995 = vdwg.mxu0
  %996 = vmatprep.subr.bf16.mxu0 %v892
  %997 = vmatpush1.bf16.msra.mxu0 %v891
  %998 = vmatprep.subr.bf16.mxu0 %v896
  %999 = vmatpush1.bf16.msra.mxu0 %v895
  %1000 = vmatprep.subr.bf16.mxu0 %v900
  %1001 = vmatpush1.bf16.msra.mxu0 %v899
  %1002 = vmatprep.subr.bf16.mxu0 %v904
  %1003 = vmatpush1.bf16.msra.mxu0 %v903
  %1004 = vmatprep.subr.bf16.mxu0 %v908
  %1005 = vmatpush1.bf16.msra.mxu0 %v907
  %1006 = vmatprep.subr.bf16.mxu0 %v912
  %1007 = vmatpush1.bf16.msra.mxu0 %v911
  %1008 = vmatprep.subr.bf16.mxu0 %v916
  %1009 = vmatpush1.bf16.msra.mxu0 %v915
  %1010 = vmatprep.subr.bf16.mxu0 %v920
  %1011 = vmatpush1.bf16.msra.mxu0 %v919
  %1012 = vmatprep.subr.bf16.mxu0 0
  %1013 = vmatpush1.bf16.msra.mxu0 0
  %1014 = vmatprep.subr.bf16.mxu0 0
  %1015 = vmatpush1.bf16.msra.mxu0 0
  %1016 = vmatprep.subr.bf16.mxu0 0
  %1017 = vmatpush1.bf16.msra.mxu0 0
  %1018 = vmatprep.subr.bf16.mxu0 0
  %1019 = vmatpush1.bf16.msra.mxu0 0
  %1020 = vmatprep.subr.bf16.mxu0 0
  %1021 = vmatpush1.bf16.msra.mxu0 0
  %1022 = vmatprep.subr.bf16.mxu0 0
  %1023 = vmatpush1.bf16.msra.mxu0 0
  %1024 = vmatprep.subr.bf16.mxu0 0
  %1025 = vmatpush1.bf16.msra.mxu0 0
  %1026 = vmatprep.subr.bf16.mxu0 0
  %1027 = vmatpush1.bf16.msra.mxu0 0
  %1028 = vmatprep.mubr.bf16.mxu0 0
  %1029 = vmatmul.mubr.bf16.gmra.mrb[0].mxu0 %v745
  %v1030 = vpop.f32.mrb[0].mxu0
  %v1031 = vadd.f32 0.0, %v1030
  %v1032 = vpop.f32.mrb[0].mxu0
  %v1033 = vadd.f32 0.0, %v1032
  %v1034 = vpop.f32.mrb[0].mxu0
  %v1035 = vadd.f32 0.0, %v1034
  %v1036 = vpop.f32.mrb[0].mxu0
  %v1037 = vadd.f32 0.0, %v1036
  %1038 = vdwg.mxu0
  %v1039 = vadd.f32 %v753, %v988
  %v1040 = vadd.f32 %v754, %v990
  %v1041 = vadd.f32 %v755, %v1031
  %v1042 = vadd.f32 %v756, %v1033
  %v1043 = vadd.f32 %v757, %v992
  %v1044 = vadd.f32 %v758, %v994
  %v1045 = vadd.f32 %v759, %v1035
  %v1046 = vadd.f32 %v760, %v1037
  %v1047 = vxor.u32 %v1039, 2147483648
  %v1048 = vxor.u32 %v1043, 2147483648
  %v1049 = vmul.f32 %v1047, 1.442695
  %v1050 = vpow.pop %v1049
  %v1051 = vmul.f32 %v1048, 1.442695
  %v1052 = vpow.pop %v1051
  %v1053 = vadd.f32 %v1050, 1.0
  %v1054 = vadd.f32 %v1052, 1.0
  %v1055 = vrcp.pop %v1053
  %v1056 = vmul.f32 1.0, %v1055
  %v1057 = vrcp.pop %v1054
  %v1058 = vmul.f32 1.0, %v1057
  %v1059 = vxor.u32 %v1040, 2147483648
  %v1060 = vxor.u32 %v1044, 2147483648
  %v1061 = vmul.f32 %v1059, 1.442695
  %v1062 = vpow.pop %v1061
  %v1063 = vmul.f32 %v1060, 1.442695
  %v1064 = vpow.pop %v1063
  %v1065 = vadd.f32 %v1062, 1.0
  %v1066 = vadd.f32 %v1064, 1.0
  %v1067 = vrcp.pop %v1065
  %v1068 = vmul.f32 1.0, %v1067
  %v1069 = vrcp.pop %v1066
  %v1070 = vmul.f32 1.0, %v1069
  %v1071 = vtanh.pop %v1041
  %v1072 = vtanh.pop %v1045
  %v1073 = vxor.u32 %v1042, 2147483648
  %v1074 = vxor.u32 %v1046, 2147483648
  %v1075 = vmul.f32 %v1073, 1.442695
  %v1076 = vpow.pop %v1075
  %v1077 = vmul.f32 %v1074, 1.442695
  %v1078 = vpow.pop %v1077
  %v1079 = vadd.f32 %v1076, 1.0
  %v1080 = vadd.f32 %v1078, 1.0
  %v1081 = vrcp.pop %v1079
  %v1082 = vmul.f32 1.0, %v1081
  %v1083 = vrcp.pop %v1080
  %v1084 = vmul.f32 1.0, %v1083
  %v1085 = vmul.f32 %v1068, %v746
  %v1086 = vmul.f32 %v1070, %v747
  %v1087 = vmul.f32 %v1056, %v1071
  %v1088 = vmul.f32 %v1058, %v1072
  %v1089 = vadd.f32 %v1085, %v1087
  %v1090 = vadd.f32 %v1086, %v1088
  %v1091 = vtanh.pop %v1089
  %v1092 = vtanh.pop %v1090
  %v1093 = vmul.f32 %v1082, %v1091
  %v1094 = vmul.f32 %v1084, %v1092
  %v1095 = vpack.c.bf16 %v1094, %v1093
  %1096 = vst [vmem:[#allocation3] sm:$0xff] %v1089
  %1097 = vst [vmem:[#allocation3 + $0x8] sm:$0xff] %v1090
  %1098 = vst [vmem:[#allocation2] sm:$0xff] %v1095
  %v1100 = vunpack.c.l.b16 %v1095
  %v1101 = vunpack.c.h.b16 %v1095
  %v1102 = vpack.c.b16 %v1100, %v1100
  %v1103 = vpack.c.b16 %v1101, %v1101
  %s1106 = scalar_lea.vmem %s2, 16
  %1107 = vst [vmem:[%s1106] sm:$0xf] %v1102
  %1108 = vst [vmem:[%s1106 + $0x4] sm:$0xf] %v1103
  %v1109 = vld [vmem:[#allocation2] sm:$0xff]
  %v1110 = vld [vmem:[#allocation3] sm:$0xff]
  %v1111 = vld [vmem:[#allocation3 + $0x8] sm:$0xff]
  %s1112 = scalar_lea.vmem %s0, 96
  %v1113 = vld [vmem:[%s1112] sm:$0xff]
  %v1114 = vld [vmem:[%s1112 + $0x8] sm:$0xff]
  %v1115 = vld [vmem:[%s1112 + $0x10] sm:$0xff]
  %v1116 = vld [vmem:[%s1112 + $0x18] sm:$0xff]
  %v1117 = vunpack.c.l.bf16 %v1113
  %v1118 = vunpack.c.h.bf16 %v1113
  %v1119 = vunpack.c.l.bf16 %v1114
  %v1120 = vunpack.c.h.bf16 %v1114
  %v1121 = vunpack.c.l.bf16 %v1115
  %v1122 = vunpack.c.h.bf16 %v1115
  %v1123 = vunpack.c.l.bf16 %v1116
  %v1124 = vunpack.c.h.bf16 %v1116
  %v1125 = vld [vmem:[%s1] sm:$0xff]
  %v1126 = vld [vmem:[%s1 + $0x8] sm:$0xff]
  %v1127 = vld [vmem:[%s1 + $0x10] sm:$0xff]
  %v1128 = vld [vmem:[%s1 + $0x18] sm:$0xff]
  %v1129 = vld [vmem:[%s1 + $0x20] sm:$0xff]
  %v1130 = vld [vmem:[%s1 + $0x28] sm:$0xff]
  %v1131 = vld [vmem:[%s1 + $0x30] sm:$0xff]
  %v1132 = vld [vmem:[%s1 + $0x38] sm:$0xff]
  %v1133 = vld [vmem:[%s1 + $0x40] sm:$0xff]
  %v1134 = vld [vmem:[%s1 + $0x48] sm:$0xff]
  %v1135 = vld [vmem:[%s1 + $0x50] sm:$0xff]
  %v1136 = vld [vmem:[%s1 + $0x58] sm:$0xff]
  %v1137 = vld [vmem:[%s1 + $0x60] sm:$0xff]
  %v1138 = vld [vmem:[%s1 + $0x68] sm:$0xff]
  %v1139 = vld [vmem:[%s1 + $0x70] sm:$0xff]
  %v1140 = vld [vmem:[%s1 + $0x78] sm:$0xff]
  %v1141 = vld [vmem:[%s1 + $0x80] sm:$0xff]
  %v1142 = vld [vmem:[%s1 + $0x88] sm:$0xff]
  %v1143 = vld [vmem:[%s1 + $0x90] sm:$0xff]
  %v1144 = vld [vmem:[%s1 + $0x98] sm:$0xff]
  %v1145 = vld [vmem:[%s1 + $0xa0] sm:$0xff]
  %v1146 = vld [vmem:[%s1 + $0xa8] sm:$0xff]
  %v1147 = vld [vmem:[%s1 + $0xb0] sm:$0xff]
  %v1148 = vld [vmem:[%s1 + $0xb8] sm:$0xff]
  %v1149 = vld [vmem:[%s1 + $0xc0] sm:$0xff]
  %v1150 = vld [vmem:[%s1 + $0xc8] sm:$0xff]
  %v1151 = vld [vmem:[%s1 + $0xd0] sm:$0xff]
  %v1152 = vld [vmem:[%s1 + $0xd8] sm:$0xff]
  %v1153 = vld [vmem:[%s1 + $0xe0] sm:$0xff]
  %v1154 = vld [vmem:[%s1 + $0xe8] sm:$0xff]
  %v1155 = vld [vmem:[%s1 + $0xf0] sm:$0xff]
  %v1156 = vld [vmem:[%s1 + $0xf8] sm:$0xff]
  %v1189 = vunpack.c.l.b16 %v1125
  %v1190 = vunpack.c.h.b16 %v1125
  %v1191 = vunpack.c.l.b16 %v1126
  %v1192 = vunpack.c.h.b16 %v1126
  %v1193 = vunpack.c.l.b16 %v1127
  %v1194 = vunpack.c.h.b16 %v1127
  %v1195 = vunpack.c.l.b16 %v1128
  %v1196 = vunpack.c.h.b16 %v1128
  %v1197 = vunpack.c.l.b16 %v1129
  %v1198 = vunpack.c.h.b16 %v1129
  %v1199 = vunpack.c.l.b16 %v1130
  %v1200 = vunpack.c.h.b16 %v1130
  %v1201 = vunpack.c.l.b16 %v1131
  %v1202 = vunpack.c.h.b16 %v1131
  %v1203 = vunpack.c.l.b16 %v1132
  %v1204 = vunpack.c.h.b16 %v1132
  %v1205 = vunpack.c.l.b16 %v1133
  %v1206 = vunpack.c.h.b16 %v1133
  %v1207 = vunpack.c.l.b16 %v1134
  %v1208 = vunpack.c.h.b16 %v1134
  %v1209 = vunpack.c.l.b16 %v1135
  %v1210 = vunpack.c.h.b16 %v1135
  %v1211 = vunpack.c.l.b16 %v1136
  %v1212 = vunpack.c.h.b16 %v1136
  %v1213 = vunpack.c.l.b16 %v1137
  %v1214 = vunpack.c.h.b16 %v1137
  %v1215 = vunpack.c.l.b16 %v1138
  %v1216 = vunpack.c.h.b16 %v1138
  %v1217 = vunpack.c.l.b16 %v1139
  %v1218 = vunpack.c.h.b16 %v1139
  %v1219 = vunpack.c.l.b16 %v1140
  %v1220 = vunpack.c.h.b16 %v1140
  %v1221 = vunpack.c.l.b16 %v1141
  %v1222 = vunpack.c.h.b16 %v1141
  %v1223 = vunpack.c.l.b16 %v1142
  %v1224 = vunpack.c.h.b16 %v1142
  %v1225 = vunpack.c.l.b16 %v1143
  %v1226 = vunpack.c.h.b16 %v1143
  %v1227 = vunpack.c.l.b16 %v1144
  %v1228 = vunpack.c.h.b16 %v1144
  %v1229 = vunpack.c.l.b16 %v1145
  %v1230 = vunpack.c.h.b16 %v1145
  %v1231 = vunpack.c.l.b16 %v1146
  %v1232 = vunpack.c.h.b16 %v1146
  %v1233 = vunpack.c.l.b16 %v1147
  %v1234 = vunpack.c.h.b16 %v1147
  %v1235 = vunpack.c.l.b16 %v1148
  %v1236 = vunpack.c.h.b16 %v1148
  %v1237 = vunpack.c.l.b16 %v1149
  %v1238 = vunpack.c.h.b16 %v1149
  %v1239 = vunpack.c.l.b16 %v1150
  %v1240 = vunpack.c.h.b16 %v1150
  %v1241 = vunpack.c.l.b16 %v1151
  %v1242 = vunpack.c.h.b16 %v1151
  %v1243 = vunpack.c.l.b16 %v1152
  %v1244 = vunpack.c.h.b16 %v1152
  %v1245 = vunpack.c.l.b16 %v1153
  %v1246 = vunpack.c.h.b16 %v1153
  %v1247 = vunpack.c.l.b16 %v1154
  %v1248 = vunpack.c.h.b16 %v1154
  %v1249 = vunpack.c.l.b16 %v1155
  %v1250 = vunpack.c.h.b16 %v1155
  %v1251 = vunpack.c.l.b16 %v1156
  %v1252 = vunpack.c.h.b16 %v1156
  %v1253 = vpack.c.b16 %v1193, %v1189
  %v1254 = vpack.c.b16 %v1194, %v1190
  %v1255 = vpack.c.b16 %v1195, %v1191
  %v1256 = vpack.c.b16 %v1196, %v1192
  %v1257 = vpack.c.b16 %v1201, %v1197
  %v1258 = vpack.c.b16 %v1202, %v1198
  %v1259 = vpack.c.b16 %v1203, %v1199
  %v1260 = vpack.c.b16 %v1204, %v1200
  %v1261 = vpack.c.b16 %v1209, %v1205
  %v1262 = vpack.c.b16 %v1210, %v1206
  %v1263 = vpack.c.b16 %v1211, %v1207
  %v1264 = vpack.c.b16 %v1212, %v1208
  %v1265 = vpack.c.b16 %v1217, %v1213
  %v1266 = vpack.c.b16 %v1218, %v1214
  %v1267 = vpack.c.b16 %v1219, %v1215
  %v1268 = vpack.c.b16 %v1220, %v1216
  %v1269 = vpack.c.b16 %v1225, %v1221
  %v1270 = vpack.c.b16 %v1226, %v1222
  %v1271 = vpack.c.b16 %v1227, %v1223
  %v1272 = vpack.c.b16 %v1228, %v1224
  %v1273 = vpack.c.b16 %v1233, %v1229
  %v1274 = vpack.c.b16 %v1234, %v1230
  %v1275 = vpack.c.b16 %v1235, %v1231
  %v1276 = vpack.c.b16 %v1236, %v1232
  %v1277 = vpack.c.b16 %v1241, %v1237
  %v1278 = vpack.c.b16 %v1242, %v1238
  %v1279 = vpack.c.b16 %v1243, %v1239
  %v1280 = vpack.c.b16 %v1244, %v1240
  %v1281 = vpack.c.b16 %v1249, %v1245
  %v1282 = vpack.c.b16 %v1250, %v1246
  %v1283 = vpack.c.b16 %v1251, %v1247
  %v1284 = vpack.c.b16 %v1252, %v1248
  %1317 = vmatprep.subr.bf16.mxu0 %v1254
  %1318 = vmatpush1.bf16.msra.mxu0 %v1253
  %1319 = vmatprep.subr.bf16.mxu0 %v1258
  %1320 = vmatpush1.bf16.msra.mxu0 %v1257
  %1321 = vmatprep.subr.bf16.mxu0 %v1262
  %1322 = vmatpush1.bf16.msra.mxu0 %v1261
  %1323 = vmatprep.subr.bf16.mxu0 %v1266
  %1324 = vmatpush1.bf16.msra.mxu0 %v1265
  %1325 = vmatprep.subr.bf16.mxu0 %v1270
  %1326 = vmatpush1.bf16.msra.mxu0 %v1269
  %1327 = vmatprep.subr.bf16.mxu0 %v1274
  %1328 = vmatpush1.bf16.msra.mxu0 %v1273
  %1329 = vmatprep.subr.bf16.mxu0 %v1278
  %1330 = vmatpush1.bf16.msra.mxu0 %v1277
  %1331 = vmatprep.subr.bf16.mxu0 %v1282
  %1332 = vmatpush1.bf16.msra.mxu0 %v1281
  %1333 = vmatprep.subr.bf16.mxu0 0
  %1334 = vmatpush1.bf16.msra.mxu0 0
  %1335 = vmatprep.subr.bf16.mxu0 0
  %1336 = vmatpush1.bf16.msra.mxu0 0
  %1337 = vmatprep.subr.bf16.mxu0 0
  %1338 = vmatpush1.bf16.msra.mxu0 0
  %1339 = vmatprep.subr.bf16.mxu0 0
  %1340 = vmatpush1.bf16.msra.mxu0 0
  %1341 = vmatprep.subr.bf16.mxu0 0
  %1342 = vmatpush1.bf16.msra.mxu0 0
  %1343 = vmatprep.subr.bf16.mxu0 0
  %1344 = vmatpush1.bf16.msra.mxu0 0
  %1345 = vmatprep.subr.bf16.mxu0 0
  %1346 = vmatpush1.bf16.msra.mxu0 0
  %1347 = vmatprep.subr.bf16.mxu0 0
  %1348 = vmatpush1.bf16.msra.mxu0 0
  %1349 = vmatprep.mubr.bf16.mxu0 0
  %1350 = vmatmul.mubr.bf16.gmra.mrb[0].mxu0 %v1109
  %v1351 = vpop.f32.mrb[0].mxu0
  %v1352 = vadd.f32 0.0, %v1351
  %v1353 = vpop.f32.mrb[0].mxu0
  %v1354 = vadd.f32 0.0, %v1353
  %v1355 = vpop.f32.mrb[0].mxu0
  %v1356 = vadd.f32 0.0, %v1355
  %v1357 = vpop.f32.mrb[0].mxu0
  %v1358 = vadd.f32 0.0, %v1357
  %1359 = vdwg.mxu0
  %1360 = vmatprep.subr.bf16.mxu0 %v1256
  %1361 = vmatpush1.bf16.msra.mxu0 %v1255
  %1362 = vmatprep.subr.bf16.mxu0 %v1260
  %1363 = vmatpush1.bf16.msra.mxu0 %v1259
  %1364 = vmatprep.subr.bf16.mxu0 %v1264
  %1365 = vmatpush1.bf16.msra.mxu0 %v1263
  %1366 = vmatprep.subr.bf16.mxu0 %v1268
  %1367 = vmatpush1.bf16.msra.mxu0 %v1267
  %1368 = vmatprep.subr.bf16.mxu0 %v1272
  %1369 = vmatpush1.bf16.msra.mxu0 %v1271
  %1370 = vmatprep.subr.bf16.mxu0 %v1276
  %1371 = vmatpush1.bf16.msra.mxu0 %v1275
  %1372 = vmatprep.subr.bf16.mxu0 %v1280
  %1373 = vmatpush1.bf16.msra.mxu0 %v1279
  %1374 = vmatprep.subr.bf16.mxu0 %v1284
  %1375 = vmatpush1.bf16.msra.mxu0 %v1283
  %1376 = vmatprep.subr.bf16.mxu0 0
  %1377 = vmatpush1.bf16.msra.mxu0 0
  %1378 = vmatprep.subr.bf16.mxu0 0
  %1379 = vmatpush1.bf16.msra.mxu0 0
  %1380 = vmatprep.subr.bf16.mxu0 0
  %1381 = vmatpush1.bf16.msra.mxu0 0
  %1382 = vmatprep.subr.bf16.mxu0 0
  %1383 = vmatpush1.bf16.msra.mxu0 0
  %1384 = vmatprep.subr.bf16.mxu0 0
  %1385 = vmatpush1.bf16.msra.mxu0 0
  %1386 = vmatprep.subr.bf16.mxu0 0
  %1387 = vmatpush1.bf16.msra.mxu0 0
  %1388 = vmatprep.subr.bf16.mxu0 0
  %1389 = vmatpush1.bf16.msra.mxu0 0
  %1390 = vmatprep.subr.bf16.mxu0 0
  %1391 = vmatpush1.bf16.msra.mxu0 0
  %1392 = vmatprep.mubr.bf16.mxu0 0
  %1393 = vmatmul.mubr.bf16.gmra.mrb[0].mxu0 %v1109
  %v1394 = vpop.f32.mrb[0].mxu0
  %v1395 = vadd.f32 0.0, %v1394
  %v1396 = vpop.f32.mrb[0].mxu0
  %v1397 = vadd.f32 0.0, %v1396
  %v1398 = vpop.f32.mrb[0].mxu0
  %v1399 = vadd.f32 0.0, %v1398
  %v1400 = vpop.f32.mrb[0].mxu0
  %v1401 = vadd.f32 0.0, %v1400
  %1402 = vdwg.mxu0
  %v1403 = vadd.f32 %v1117, %v1352
  %v1404 = vadd.f32 %v1118, %v1354
  %v1405 = vadd.f32 %v1119, %v1395
  %v1406 = vadd.f32 %v1120, %v1397
  %v1407 = vadd.f32 %v1121, %v1356
  %v1408 = vadd.f32 %v1122, %v1358
  %v1409 = vadd.f32 %v1123, %v1399
  %v1410 = vadd.f32 %v1124, %v1401
  %v1411 = vxor.u32 %v1403, 2147483648
  %v1412 = vxor.u32 %v1407, 2147483648
  %v1413 = vmul.f32 %v1411, 1.442695
  %v1414 = vpow.pop %v1413
  %v1415 = vmul.f32 %v1412, 1.442695
  %v1416 = vpow.pop %v1415
  %v1417 = vadd.f32 %v1414, 1.0
  %v1418 = vadd.f32 %v1416, 1.0
  %v1419 = vrcp.pop %v1417
  %v1420 = vmul.f32 1.0, %v1419
  %v1421 = vrcp.pop %v1418
  %v1422 = vmul.f32 1.0, %v1421
  %v1423 = vxor.u32 %v1404, 2147483648
  %v1424 = vxor.u32 %v1408, 2147483648
  %v1425 = vmul.f32 %v1423, 1.442695
  %v1426 = vpow.pop %v1425
  %v1427 = vmul.f32 %v1424, 1.442695
  %v1428 = vpow.pop %v1427
  %v1429 = vadd.f32 %v1426, 1.0
  %v1430 = vadd.f32 %v1428, 1.0
  %v1431 = vrcp.pop %v1429
  %v1432 = vmul.f32 1.0, %v1431
  %v1433 = vrcp.pop %v1430
  %v1434 = vmul.f32 1.0, %v1433
  %v1435 = vtanh.pop %v1405
  %v1436 = vtanh.pop %v1409
  %v1437 = vxor.u32 %v1406, 2147483648
  %v1438 = vxor.u32 %v1410, 2147483648
  %v1439 = vmul.f32 %v1437, 1.442695
  %v1440 = vpow.pop %v1439
  %v1441 = vmul.f32 %v1438, 1.442695
  %v1442 = vpow.pop %v1441
  %v1443 = vadd.f32 %v1440, 1.0
  %v1444 = vadd.f32 %v1442, 1.0
  %v1445 = vrcp.pop %v1443
  %v1446 = vmul.f32 1.0, %v1445
  %v1447 = vrcp.pop %v1444
  %v1448 = vmul.f32 1.0, %v1447
  %v1449 = vmul.f32 %v1432, %v1110
  %v1450 = vmul.f32 %v1434, %v1111
  %v1451 = vmul.f32 %v1420, %v1435
  %v1452 = vmul.f32 %v1422, %v1436
  %v1453 = vadd.f32 %v1449, %v1451
  %v1454 = vadd.f32 %v1450, %v1452
  %v1455 = vtanh.pop %v1453
  %v1456 = vtanh.pop %v1454
  %v1457 = vmul.f32 %v1446, %v1455
  %v1458 = vmul.f32 %v1448, %v1456
  %v1459 = vpack.c.bf16 %v1458, %v1457
  %1460 = vst [vmem:[#allocation3] sm:$0xff] %v1453
  %1461 = vst [vmem:[#allocation3 + $0x8] sm:$0xff] %v1454
  %1462 = vst [vmem:[#allocation2] sm:$0xff] %v1459
  %v1464 = vunpack.c.l.b16 %v1459
  %v1465 = vunpack.c.h.b16 %v1459
  %v1466 = vpack.c.b16 %v1464, %v1464
  %v1467 = vpack.c.b16 %v1465, %v1465
  %s1470 = scalar_lea.vmem %s2, 24
  %1471 = vst [vmem:[%s1470] sm:$0xf] %v1466
  %1472 = vst [vmem:[%s1470 + $0x4] sm:$0xf] %v1467
  %v1473 = vld [vmem:[#allocation2] sm:$0xff]
  %v1474 = vld [vmem:[#allocation3] sm:$0xff]
  %v1475 = vld [vmem:[#allocation3 + $0x8] sm:$0xff]
  %s1476 = scalar_lea.vmem %s0, 128
  %v1477 = vld [vmem:[%s1476] sm:$0xff]
  %v1478 = vld [vmem:[%s1476 + $0x8] sm:$0xff]
  %v1479 = vld [vmem:[%s1476 + $0x10] sm:$0xff]
  %v1480 = vld [vmem:[%s1476 + $0x18] sm:$0xff]
  %v1481 = vunpack.c.l.bf16 %v1477
  %v1482 = vunpack.c.h.bf16 %v1477
  %v1483 = vunpack.c.l.bf16 %v1478
  %v1484 = vunpack.c.h.bf16 %v1478
  %v1485 = vunpack.c.l.bf16 %v1479
  %v1486 = vunpack.c.h.bf16 %v1479
  %v1487 = vunpack.c.l.bf16 %v1480
  %v1488 = vunpack.c.h.bf16 %v1480
  %v1489 = vld [vmem:[%s1] sm:$0xff]
  %v1490 = vld [vmem:[%s1 + $0x8] sm:$0xff]
  %v1491 = vld [vmem:[%s1 + $0x10] sm:$0xff]
  %v1492 = vld [vmem:[%s1 + $0x18] sm:$0xff]
  %v1493 = vld [vmem:[%s1 + $0x20] sm:$0xff]
  %v1494 = vld [vmem:[%s1 + $0x28] sm:$0xff]
  %v1495 = vld [vmem:[%s1 + $0x30] sm:$0xff]
  %v1496 = vld [vmem:[%s1 + $0x38] sm:$0xff]
  %v1497 = vld [vmem:[%s1 + $0x40] sm:$0xff]
  %v1498 = vld [vmem:[%s1 + $0x48] sm:$0xff]
  %v1499 = vld [vmem:[%s1 + $0x50] sm:$0xff]
  %v1500 = vld [vmem:[%s1 + $0x58] sm:$0xff]
  %v1501 = vld [vmem:[%s1 + $0x60] sm:$0xff]
  %v1502 = vld [vmem:[%s1 + $0x68] sm:$0xff]
  %v1503 = vld [vmem:[%s1 + $0x70] sm:$0xff]
  %v1504 = vld [vmem:[%s1 + $0x78] sm:$0xff]
  %v1505 = vld [vmem:[%s1 + $0x80] sm:$0xff]
  %v1506 = vld [vmem:[%s1 + $0x88] sm:$0xff]
  %v1507 = vld [vmem:[%s1 + $0x90] sm:$0xff]
  %v1508 = vld [vmem:[%s1 + $0x98] sm:$0xff]
  %v1509 = vld [vmem:[%s1 + $0xa0] sm:$0xff]
  %v1510 = vld [vmem:[%s1 + $0xa8] sm:$0xff]
  %v1511 = vld [vmem:[%s1 + $0xb0] sm:$0xff]
  %v1512 = vld [vmem:[%s1 + $0xb8] sm:$0xff]
  %v1513 = vld [vmem:[%s1 + $0xc0] sm:$0xff]
  %v1514 = vld [vmem:[%s1 + $0xc8] sm:$0xff]
  %v1515 = vld [vmem:[%s1 + $0xd0] sm:$0xff]
  %v1516 = vld [vmem:[%s1 + $0xd8] sm:$0xff]
  %v1517 = vld [vmem:[%s1 + $0xe0] sm:$0xff]
  %v1518 = vld [vmem:[%s1 + $0xe8] sm:$0xff]
  %v1519 = vld [vmem:[%s1 + $0xf0] sm:$0xff]
  %v1520 = vld [vmem:[%s1 + $0xf8] sm:$0xff]
  %v1553 = vunpack.c.l.b16 %v1489
  %v1554 = vunpack.c.h.b16 %v1489
  %v1555 = vunpack.c.l.b16 %v1490
  %v1556 = vunpack.c.h.b16 %v1490
  %v1557 = vunpack.c.l.b16 %v1491
  %v1558 = vunpack.c.h.b16 %v1491
  %v1559 = vunpack.c.l.b16 %v1492
  %v1560 = vunpack.c.h.b16 %v1492
  %v1561 = vunpack.c.l.b16 %v1493
  %v1562 = vunpack.c.h.b16 %v1493
  %v1563 = vunpack.c.l.b16 %v1494
  %v1564 = vunpack.c.h.b16 %v1494
  %v1565 = vunpack.c.l.b16 %v1495
  %v1566 = vunpack.c.h.b16 %v1495
  %v1567 = vunpack.c.l.b16 %v1496
  %v1568 = vunpack.c.h.b16 %v1496
  %v1569 = vunpack.c.l.b16 %v1497
  %v1570 = vunpack.c.h.b16 %v1497
  %v1571 = vunpack.c.l.b16 %v1498
  %v1572 = vunpack.c.h.b16 %v1498
  %v1573 = vunpack.c.l.b16 %v1499
  %v1574 = vunpack.c.h.b16 %v1499
  %v1575 = vunpack.c.l.b16 %v1500
  %v1576 = vunpack.c.h.b16 %v1500
  %v1577 = vunpack.c.l.b16 %v1501
  %v1578 = vunpack.c.h.b16 %v1501
  %v1579 = vunpack.c.l.b16 %v1502
  %v1580 = vunpack.c.h.b16 %v1502
  %v1581 = vunpack.c.l.b16 %v1503
  %v1582 = vunpack.c.h.b16 %v1503
  %v1583 = vunpack.c.l.b16 %v1504
  %v1584 = vunpack.c.h.b16 %v1504
  %v1585 = vunpack.c.l.b16 %v1505
  %v1586 = vunpack.c.h.b16 %v1505
  %v1587 = vunpack.c.l.b16 %v1506
  %v1588 = vunpack.c.h.b16 %v1506
  %v1589 = vunpack.c.l.b16 %v1507
  %v1590 = vunpack.c.h.b16 %v1507
  %v1591 = vunpack.c.l.b16 %v1508
  %v1592 = vunpack.c.h.b16 %v1508
  %v1593 = vunpack.c.l.b16 %v1509
  %v1594 = vunpack.c.h.b16 %v1509
  %v1595 = vunpack.c.l.b16 %v1510
  %v1596 = vunpack.c.h.b16 %v1510
  %v1597 = vunpack.c.l.b16 %v1511
  %v1598 = vunpack.c.h.b16 %v1511
  %v1599 = vunpack.c.l.b16 %v1512
  %v1600 = vunpack.c.h.b16 %v1512
  %v1601 = vunpack.c.l.b16 %v1513
  %v1602 = vunpack.c.h.b16 %v1513
  %v1603 = vunpack.c.l.b16 %v1514
  %v1604 = vunpack.c.h.b16 %v1514
  %v1605 = vunpack.c.l.b16 %v1515
  %v1606 = vunpack.c.h.b16 %v1515
  %v1607 = vunpack.c.l.b16 %v1516
  %v1608 = vunpack.c.h.b16 %v1516
  %v1609 = vunpack.c.l.b16 %v1517
  %v1610 = vunpack.c.h.b16 %v1517
  %v1611 = vunpack.c.l.b16 %v1518
  %v1612 = vunpack.c.h.b16 %v1518
  %v1613 = vunpack.c.l.b16 %v1519
  %v1614 = vunpack.c.h.b16 %v1519
  %v1615 = vunpack.c.l.b16 %v1520
  %v1616 = vunpack.c.h.b16 %v1520
  %v1617 = vpack.c.b16 %v1557, %v1553
  %v1618 = vpack.c.b16 %v1558, %v1554
  %v1619 = vpack.c.b16 %v1559, %v1555
  %v1620 = vpack.c.b16 %v1560, %v1556
  %v1621 = vpack.c.b16 %v1565, %v1561
  %v1622 = vpack.c.b16 %v1566, %v1562
  %v1623 = vpack.c.b16 %v1567, %v1563
  %v1624 = vpack.c.b16 %v1568, %v1564
  %v1625 = vpack.c.b16 %v1573, %v1569
  %v1626 = vpack.c.b16 %v1574, %v1570
  %v1627 = vpack.c.b16 %v1575, %v1571
  %v1628 = vpack.c.b16 %v1576, %v1572
  %v1629 = vpack.c.b16 %v1581, %v1577
  %v1630 = vpack.c.b16 %v1582, %v1578
  %v1631 = vpack.c.b16 %v1583, %v1579
  %v1632 = vpack.c.b16 %v1584, %v1580
  %v1633 = vpack.c.b16 %v1589, %v1585
  %v1634 = vpack.c.b16 %v1590, %v1586
  %v1635 = vpack.c.b16 %v1591, %v1587
  %v1636 = vpack.c.b16 %v1592, %v1588
  %v1637 = vpack.c.b16 %v1597, %v1593
  %v1638 = vpack.c.b16 %v1598, %v1594
  %v1639 = vpack.c.b16 %v1599, %v1595
  %v1640 = vpack.c.b16 %v1600, %v1596
  %v1641 = vpack.c.b16 %v1605, %v1601
  %v1642 = vpack.c.b16 %v1606, %v1602
  %v1643 = vpack.c.b16 %v1607, %v1603
  %v1644 = vpack.c.b16 %v1608, %v1604
  %v1645 = vpack.c.b16 %v1613, %v1609
  %v1646 = vpack.c.b16 %v1614, %v1610
  %v1647 = vpack.c.b16 %v1615, %v1611
  %v1648 = vpack.c.b16 %v1616, %v1612
  %1681 = vmatprep.subr.bf16.mxu0 %v1618
  %1682 = vmatpush1.bf16.msra.mxu0 %v1617
  %1683 = vmatprep.subr.bf16.mxu0 %v1622
  %1684 = vmatpush1.bf16.msra.mxu0 %v1621
  %1685 = vmatprep.subr.bf16.mxu0 %v1626
  %1686 = vmatpush1.bf16.msra.mxu0 %v1625
  %1687 = vmatprep.subr.bf16.mxu0 %v1630
  %1688 = vmatpush1.bf16.msra.mxu0 %v1629
  %1689 = vmatprep.subr.bf16.mxu0 %v1634
  %1690 = vmatpush1.bf16.msra.mxu0 %v1633
  %1691 = vmatprep.subr.bf16.mxu0 %v1638
  %1692 = vmatpush1.bf16.msra.mxu0 %v1637
  %1693 = vmatprep.subr.bf16.mxu0 %v1642
  %1694 = vmatpush1.bf16.msra.mxu0 %v1641
  %1695 = vmatprep.subr.bf16.mxu0 %v1646
  %1696 = vmatpush1.bf16.msra.mxu0 %v1645
  %1697 = vmatprep.subr.bf16.mxu0 0
  %1698 = vmatpush1.bf16.msra.mxu0 0
  %1699 = vmatprep.subr.bf16.mxu0 0
  %1700 = vmatpush1.bf16.msra.mxu0 0
  %1701 = vmatprep.subr.bf16.mxu0 0
  %1702 = vmatpush1.bf16.msra.mxu0 0
  %1703 = vmatprep.subr.bf16.mxu0 0
  %1704 = vmatpush1.bf16.msra.mxu0 0
  %1705 = vmatprep.subr.bf16.mxu0 0
  %1706 = vmatpush1.bf16.msra.mxu0 0
  %1707 = vmatprep.subr.bf16.mxu0 0
  %1708 = vmatpush1.bf16.msra.mxu0 0
  %1709 = vmatprep.subr.bf16.mxu0 0
  %1710 = vmatpush1.bf16.msra.mxu0 0
  %1711 = vmatprep.subr.bf16.mxu0 0
  %1712 = vmatpush1.bf16.msra.mxu0 0
  %1713 = vmatprep.mubr.bf16.mxu0 0
  %1714 = vmatmul.mubr.bf16.gmra.mrb[0].mxu0 %v1473
  %v1715 = vpop.f32.mrb[0].mxu0
  %v1716 = vadd.f32 0.0, %v1715
  %v1717 = vpop.f32.mrb[0].mxu0
  %v1718 = vadd.f32 0.0, %v1717
  %v1719 = vpop.f32.mrb[0].mxu0
  %v1720 = vadd.f32 0.0, %v1719
  %v1721 = vpop.f32.mrb[0].mxu0
  %v1722 = vadd.f32 0.0, %v1721
  %1723 = vdwg.mxu0
  %1724 = vmatprep.subr.bf16.mxu0 %v1620
  %1725 = vmatpush1.bf16.msra.mxu0 %v1619
  %1726 = vmatprep.subr.bf16.mxu0 %v1624
  %1727 = vmatpush1.bf16.msra.mxu0 %v1623
  %1728 = vmatprep.subr.bf16.mxu0 %v1628
  %1729 = vmatpush1.bf16.msra.mxu0 %v1627
  %1730 = vmatprep.subr.bf16.mxu0 %v1632
  %1731 = vmatpush1.bf16.msra.mxu0 %v1631
  %1732 = vmatprep.subr.bf16.mxu0 %v1636
  %1733 = vmatpush1.bf16.msra.mxu0 %v1635
  %1734 = vmatprep.subr.bf16.mxu0 %v1640
  %1735 = vmatpush1.bf16.msra.mxu0 %v1639
  %1736 = vmatprep.subr.bf16.mxu0 %v1644
  %1737 = vmatpush1.bf16.msra.mxu0 %v1643
  %1738 = vmatprep.subr.bf16.mxu0 %v1648
  %1739 = vmatpush1.bf16.msra.mxu0 %v1647
  %1740 = vmatprep.subr.bf16.mxu0 0
  %1741 = vmatpush1.bf16.msra.mxu0 0
  %1742 = vmatprep.subr.bf16.mxu0 0
  %1743 = vmatpush1.bf16.msra.mxu0 0
  %1744 = vmatprep.subr.bf16.mxu0 0
  %1745 = vmatpush1.bf16.msra.mxu0 0
  %1746 = vmatprep.subr.bf16.mxu0 0
  %1747 = vmatpush1.bf16.msra.mxu0 0
  %1748 = vmatprep.subr.bf16.mxu0 0
  %1749 = vmatpush1.bf16.msra.mxu0 0
  %1750 = vmatprep.subr.bf16.mxu0 0
  %1751 = vmatpush1.bf16.msra.mxu0 0
  %1752 = vmatprep.subr.bf16.mxu0 0
  %1753 = vmatpush1.bf16.msra.mxu0 0
  %1754 = vmatprep.subr.bf16.mxu0 0
  %1755 = vmatpush1.bf16.msra.mxu0 0
  %1756 = vmatprep.mubr.bf16.mxu0 0
  %1757 = vmatmul.mubr.bf16.gmra.mrb[0].mxu0 %v1473
  %v1758 = vpop.f32.mrb[0].mxu0
  %v1759 = vadd.f32 0.0, %v1758
  %v1760 = vpop.f32.mrb[0].mxu0
  %v1761 = vadd.f32 0.0, %v1760
  %v1762 = vpop.f32.mrb[0].mxu0
  %v1763 = vadd.f32 0.0, %v1762
  %v1764 = vpop.f32.mrb[0].mxu0
  %v1765 = vadd.f32 0.0, %v1764
  %1766 = vdwg.mxu0
  %v1767 = vadd.f32 %v1481, %v1716
  %v1768 = vadd.f32 %v1482, %v1718
  %v1769 = vadd.f32 %v1483, %v1759
  %v1770 = vadd.f32 %v1484, %v1761
  %v1771 = vadd.f32 %v1485, %v1720
  %v1772 = vadd.f32 %v1486, %v1722
  %v1773 = vadd.f32 %v1487, %v1763
  %v1774 = vadd.f32 %v1488, %v1765
  %v1775 = vxor.u32 %v1767, 2147483648
  %v1776 = vxor.u32 %v1771, 2147483648
  %v1777 = vmul.f32 %v1775, 1.442695
  %v1778 = vpow.pop %v1777
  %v1779 = vmul.f32 %v1776, 1.442695
  %v1780 = vpow.pop %v1779
  %v1781 = vadd.f32 %v1778, 1.0
  %v1782 = vadd.f32 %v1780, 1.0
  %v1783 = vrcp.pop %v1781
  %v1784 = vmul.f32 1.0, %v1783
  %v1785 = vrcp.pop %v1782
  %v1786 = vmul.f32 1.0, %v1785
  %v1787 = vxor.u32 %v1768, 2147483648
  %v1788 = vxor.u32 %v1772, 2147483648
  %v1789 = vmul.f32 %v1787, 1.442695
  %v1790 = vpow.pop %v1789
  %v1791 = vmul.f32 %v1788, 1.442695
  %v1792 = vpow.pop %v1791
  %v1793 = vadd.f32 %v1790, 1.0
  %v1794 = vadd.f32 %v1792, 1.0
  %v1795 = vrcp.pop %v1793
  %v1796 = vmul.f32 1.0, %v1795
  %v1797 = vrcp.pop %v1794
  %v1798 = vmul.f32 1.0, %v1797
  %v1799 = vtanh.pop %v1769
  %v1800 = vtanh.pop %v1773
  %v1801 = vxor.u32 %v1770, 2147483648
  %v1802 = vxor.u32 %v1774, 2147483648
  %v1803 = vmul.f32 %v1801, 1.442695
  %v1804 = vpow.pop %v1803
  %v1805 = vmul.f32 %v1802, 1.442695
  %v1806 = vpow.pop %v1805
  %v1807 = vadd.f32 %v1804, 1.0
  %v1808 = vadd.f32 %v1806, 1.0
  %v1809 = vrcp.pop %v1807
  %v1810 = vmul.f32 1.0, %v1809
  %v1811 = vrcp.pop %v1808
  %v1812 = vmul.f32 1.0, %v1811
  %v1813 = vmul.f32 %v1796, %v1474
  %v1814 = vmul.f32 %v1798, %v1475
  %v1815 = vmul.f32 %v1784, %v1799
  %v1816 = vmul.f32 %v1786, %v1800
  %v1817 = vadd.f32 %v1813, %v1815
  %v1818 = vadd.f32 %v1814, %v1816
  %v1819 = vtanh.pop %v1817
  %v1820 = vtanh.pop %v1818
  %v1821 = vmul.f32 %v1810, %v1819
  %v1822 = vmul.f32 %v1812, %v1820
  %v1823 = vpack.c.bf16 %v1822, %v1821
  %1824 = vst [vmem:[#allocation3] sm:$0xff] %v1817
  %1825 = vst [vmem:[#allocation3 + $0x8] sm:$0xff] %v1818
  %1826 = vst [vmem:[#allocation2] sm:$0xff] %v1823
  %v1828 = vunpack.c.l.b16 %v1823
  %v1829 = vunpack.c.h.b16 %v1823
  %v1830 = vpack.c.b16 %v1828, %v1828
  %v1831 = vpack.c.b16 %v1829, %v1829
  %s1834 = scalar_lea.vmem %s2, 32
  %1835 = vst [vmem:[%s1834] sm:$0xf] %v1830
  %1836 = vst [vmem:[%s1834 + $0x4] sm:$0xf] %v1831
  %v1837 = vld [vmem:[#allocation2] sm:$0xff]
  %v1838 = vld [vmem:[#allocation3] sm:$0xff]
  %v1839 = vld [vmem:[#allocation3 + $0x8] sm:$0xff]
  %s1840 = scalar_lea.vmem %s0, 160
  %v1841 = vld [vmem:[%s1840] sm:$0xff]
  %v1842 = vld [vmem:[%s1840 + $0x8] sm:$0xff]
  %v1843 = vld [vmem:[%s1840 + $0x10] sm:$0xff]
  %v1844 = vld [vmem:[%s1840 + $0x18] sm:$0xff]
  %v1845 = vunpack.c.l.bf16 %v1841
  %v1846 = vunpack.c.h.bf16 %v1841
  %v1847 = vunpack.c.l.bf16 %v1842
  %v1848 = vunpack.c.h.bf16 %v1842
  %v1849 = vunpack.c.l.bf16 %v1843
  %v1850 = vunpack.c.h.bf16 %v1843
  %v1851 = vunpack.c.l.bf16 %v1844
  %v1852 = vunpack.c.h.bf16 %v1844
  %v1853 = vld [vmem:[%s1] sm:$0xff]
  %v1854 = vld [vmem:[%s1 + $0x8] sm:$0xff]
  %v1855 = vld [vmem:[%s1 + $0x10] sm:$0xff]
  %v1856 = vld [vmem:[%s1 + $0x18] sm:$0xff]
  %v1857 = vld [vmem:[%s1 + $0x20] sm:$0xff]
  %v1858 = vld [vmem:[%s1 + $0x28] sm:$0xff]
  %v1859 = vld [vmem:[%s1 + $0x30] sm:$0xff]
  %v1860 = vld [vmem:[%s1 + $0x38] sm:$0xff]
  %v1861 = vld [vmem:[%s1 + $0x40] sm:$0xff]
  %v1862 = vld [vmem:[%s1 + $0x48] sm:$0xff]
  %v1863 = vld [vmem:[%s1 + $0x50] sm:$0xff]
  %v1864 = vld [vmem:[%s1 + $0x58] sm:$0xff]
  %v1865 = vld [vmem:[%s1 + $0x60] sm:$0xff]
  %v1866 = vld [vmem:[%s1 + $0x68] sm:$0xff]
  %v1867 = vld [vmem:[%s1 + $0x70] sm:$0xff]
  %v1868 = vld [vmem:[%s1 + $0x78] sm:$0xff]
  %v1869 = vld [vmem:[%s1 + $0x80] sm:$0xff]
  %v1870 = vld [vmem:[%s1 + $0x88] sm:$0xff]
  %v1871 = vld [vmem:[%s1 + $0x90] sm:$0xff]
  %v1872 = vld [vmem:[%s1 + $0x98] sm:$0xff]
  %v1873 = vld [vmem:[%s1 + $0xa0] sm:$0xff]
  %v1874 = vld [vmem:[%s1 + $0xa8] sm:$0xff]
  %v1875 = vld [vmem:[%s1 + $0xb0] sm:$0xff]
  %v1876 = vld [vmem:[%s1 + $0xb8] sm:$0xff]
  %v1877 = vld [vmem:[%s1 + $0xc0] sm:$0xff]
  %v1878 = vld [vmem:[%s1 + $0xc8] sm:$0xff]
  %v1879 = vld [vmem:[%s1 + $0xd0] sm:$0xff]
  %v1880 = vld [vmem:[%s1 + $0xd8] sm:$0xff]
  %v1881 = vld [vmem:[%s1 + $0xe0] sm:$0xff]
  %v1882 = vld [vmem:[%s1 + $0xe8] sm:$0xff]
  %v1883 = vld [vmem:[%s1 + $0xf0] sm:$0xff]
  %v1884 = vld [vmem:[%s1 + $0xf8] sm:$0xff]
  %v1917 = vunpack.c.l.b16 %v1853
  %v1918 = vunpack.c.h.b16 %v1853
  %v1919 = vunpack.c.l.b16 %v1854
  %v1920 = vunpack.c.h.b16 %v1854
  %v1921 = vunpack.c.l.b16 %v1855
  %v1922 = vunpack.c.h.b16 %v1855
  %v1923 = vunpack.c.l.b16 %v1856
  %v1924 = vunpack.c.h.b16 %v1856
  %v1925 = vunpack.c.l.b16 %v1857
  %v1926 = vunpack.c.h.b16 %v1857
  %v1927 = vunpack.c.l.b16 %v1858
  %v1928 = vunpack.c.h.b16 %v1858
  %v1929 = vunpack.c.l.b16 %v1859
  %v1930 = vunpack.c.h.b16 %v1859
  %v1931 = vunpack.c.l.b16 %v1860
  %v1932 = vunpack.c.h.b16 %v1860
  %v1933 = vunpack.c.l.b16 %v1861
  %v1934 = vunpack.c.h.b16 %v1861
  %v1935 = vunpack.c.l.b16 %v1862
  %v1936 = vunpack.c.h.b16 %v1862
  %v1937 = vunpack.c.l.b16 %v1863
  %v1938 = vunpack.c.h.b16 %v1863
  %v1939 = vunpack.c.l.b16 %v1864
  %v1940 = vunpack.c.h.b16 %v1864
  %v1941 = vunpack.c.l.b16 %v1865
  %v1942 = vunpack.c.h.b16 %v1865
  %v1943 = vunpack.c.l.b16 %v1866
  %v1944 = vunpack.c.h.b16 %v1866
  %v1945 = vunpack.c.l.b16 %v1867
  %v1946 = vunpack.c.h.b16 %v1867
  %v1947 = vunpack.c.l.b16 %v1868
  %v1948 = vunpack.c.h.b16 %v1868
  %v1949 = vunpack.c.l.b16 %v1869
  %v1950 = vunpack.c.h.b16 %v1869
  %v1951 = vunpack.c.l.b16 %v1870
  %v1952 = vunpack.c.h.b16 %v1870
  %v1953 = vunpack.c.l.b16 %v1871
  %v1954 = vunpack.c.h.b16 %v1871
  %v1955 = vunpack.c.l.b16 %v1872
  %v1956 = vunpack.c.h.b16 %v1872
  %v1957 = vunpack.c.l.b16 %v1873
  %v1958 = vunpack.c.h.b16 %v1873
  %v1959 = vunpack.c.l.b16 %v1874
  %v1960 = vunpack.c.h.b16 %v1874
  %v1961 = vunpack.c.l.b16 %v1875
  %v1962 = vunpack.c.h.b16 %v1875
  %v1963 = vunpack.c.l.b16 %v1876
  %v1964 = vunpack.c.h.b16 %v1876
  %v1965 = vunpack.c.l.b16 %v1877
  %v1966 = vunpack.c.h.b16 %v1877
  %v1967 = vunpack.c.l.b16 %v1878
  %v1968 = vunpack.c.h.b16 %v1878
  %v1969 = vunpack.c.l.b16 %v1879
  %v1970 = vunpack.c.h.b16 %v1879
  %v1971 = vunpack.c.l.b16 %v1880
  %v1972 = vunpack.c.h.b16 %v1880
  %v1973 = vunpack.c.l.b16 %v1881
  %v1974 = vunpack.c.h.b16 %v1881
  %v1975 = vunpack.c.l.b16 %v1882
  %v1976 = vunpack.c.h.b16 %v1882
  %v1977 = vunpack.c.l.b16 %v1883
  %v1978 = vunpack.c.h.b16 %v1883
  %v1979 = vunpack.c.l.b16 %v1884
  %v1980 = vunpack.c.h.b16 %v1884
  %v1981 = vpack.c.b16 %v1921, %v1917
  %v1982 = vpack.c.b16 %v1922, %v1918
  %v1983 = vpack.c.b16 %v1923, %v1919
  %v1984 = vpack.c.b16 %v1924, %v1920
  %v1985 = vpack.c.b16 %v1929, %v1925
  %v1986 = vpack.c.b16 %v1930, %v1926
  %v1987 = vpack.c.b16 %v1931, %v1927
  %v1988 = vpack.c.b16 %v1932, %v1928
  %v1989 = vpack.c.b16 %v1937, %v1933
  %v1990 = vpack.c.b16 %v1938, %v1934
  %v1991 = vpack.c.b16 %v1939, %v1935
  %v1992 = vpack.c.b16 %v1940, %v1936
  %v1993 = vpack.c.b16 %v1945, %v1941
  %v1994 = vpack.c.b16 %v1946, %v1942
  %v1995 = vpack.c.b16 %v1947, %v1943
  %v1996 = vpack.c.b16 %v1948, %v1944
  %v1997 = vpack.c.b16 %v1953, %v1949
  %v1998 = vpack.c.b16 %v1954, %v1950
  %v1999 = vpack.c.b16 %v1955, %v1951
  %v2000 = vpack.c.b16 %v1956, %v1952
  %v2001 = vpack.c.b16 %v1961, %v1957
  %v2002 = vpack.c.b16 %v1962, %v1958
  %v2003 = vpack.c.b16 %v1963, %v1959
  %v2004 = vpack.c.b16 %v1964, %v1960
  %v2005 = vpack.c.b16 %v1969, %v1965
  %v2006 = vpack.c.b16 %v1970, %v1966
  %v2007 = vpack.c.b16 %v1971, %v1967
  %v2008 = vpack.c.b16 %v1972, %v1968
  %v2009 = vpack.c.b16 %v1977, %v1973
  %v2010 = vpack.c.b16 %v1978, %v1974
  %v2011 = vpack.c.b16 %v1979, %v1975
  %v2012 = vpack.c.b16 %v1980, %v1976
  %2045 = vmatprep.subr.bf16.mxu0 %v1982
  %2046 = vmatpush1.bf16.msra.mxu0 %v1981
  %2047 = vmatprep.subr.bf16.mxu0 %v1986
  %2048 = vmatpush1.bf16.msra.mxu0 %v1985
  %2049 = vmatprep.subr.bf16.mxu0 %v1990
  %2050 = vmatpush1.bf16.msra.mxu0 %v1989
  %2051 = vmatprep.subr.bf16.mxu0 %v1994
  %2052 = vmatpush1.bf16.msra.mxu0 %v1993
  %2053 = vmatprep.subr.bf16.mxu0 %v1998
  %2054 = vmatpush1.bf16.msra.mxu0 %v1997
  %2055 = vmatprep.subr.bf16.mxu0 %v2002
  %2056 = vmatpush1.bf16.msra.mxu0 %v2001
  %2057 = vmatprep.subr.bf16.mxu0 %v2006
  %2058 = vmatpush1.bf16.msra.mxu0 %v2005
  %2059 = vmatprep.subr.bf16.mxu0 %v2010
  %2060 = vmatpush1.bf16.msra.mxu0 %v2009
  %2061 = vmatprep.subr.bf16.mxu0 0
  %2062 = vmatpush1.bf16.msra.mxu0 0
  %2063 = vmatprep.subr.bf16.mxu0 0
  %2064 = vmatpush1.bf16.msra.mxu0 0
  %2065 = vmatprep.subr.bf16.mxu0 0
  %2066 = vmatpush1.bf16.msra.mxu0 0
  %2067 = vmatprep.subr.bf16.mxu0 0
  %2068 = vmatpush1.bf16.msra.mxu0 0
  %2069 = vmatprep.subr.bf16.mxu0 0
  %2070 = vmatpush1.bf16.msra.mxu0 0
  %2071 = vmatprep.subr.bf16.mxu0 0
  %2072 = vmatpush1.bf16.msra.mxu0 0
  %2073 = vmatprep.subr.bf16.mxu0 0
  %2074 = vmatpush1.bf16.msra.mxu0 0
  %2075 = vmatprep.subr.bf16.mxu0 0
  %2076 = vmatpush1.bf16.msra.mxu0 0
  %2077 = vmatprep.mubr.bf16.mxu0 0
  %2078 = vmatmul.mubr.bf16.gmra.mrb[0].mxu0 %v1837
  %v2079 = vpop.f32.mrb[0].mxu0
  %v2080 = vadd.f32 0.0, %v2079
  %v2081 = vpop.f32.mrb[0].mxu0
  %v2082 = vadd.f32 0.0, %v2081
  %v2083 = vpop.f32.mrb[0].mxu0
  %v2084 = vadd.f32 0.0, %v2083
  %v2085 = vpop.f32.mrb[0].mxu0
  %v2086 = vadd.f32 0.0, %v2085
  %2087 = vdwg.mxu0
  %2088 = vmatprep.subr.bf16.mxu0 %v1984
  %2089 = vmatpush1.bf16.msra.mxu0 %v1983
  %2090 = vmatprep.subr.bf16.mxu0 %v1988
  %2091 = vmatpush1.bf16.msra.mxu0 %v1987
  %2092 = vmatprep.subr.bf16.mxu0 %v1992
  %2093 = vmatpush1.bf16.msra.mxu0 %v1991
  %2094 = vmatprep.subr.bf16.mxu0 %v1996
  %2095 = vmatpush1.bf16.msra.mxu0 %v1995
  %2096 = vmatprep.subr.bf16.mxu0 %v2000
  %2097 = vmatpush1.bf16.msra.mxu0 %v1999
  %2098 = vmatprep.subr.bf16.mxu0 %v2004
  %2099 = vmatpush1.bf16.msra.mxu0 %v2003
  %2100 = vmatprep.subr.bf16.mxu0 %v2008
  %2101 = vmatpush1.bf16.msra.mxu0 %v2007
  %2102 = vmatprep.subr.bf16.mxu0 %v2012
  %2103 = vmatpush1.bf16.msra.mxu0 %v2011
  %2104 = vmatprep.subr.bf16.mxu0 0
  %2105 = vmatpush1.bf16.msra.mxu0 0
  %2106 = vmatprep.subr.bf16.mxu0 0
  %2107 = vmatpush1.bf16.msra.mxu0 0
  %2108 = vmatprep.subr.bf16.mxu0 0
  %2109 = vmatpush1.bf16.msra.mxu0 0
  %2110 = vmatprep.subr.bf16.mxu0 0
  %2111 = vmatpush1.bf16.msra.mxu0 0
  %2112 = vmatprep.subr.bf16.mxu0 0
  %2113 = vmatpush1.bf16.msra.mxu0 0
  %2114 = vmatprep.subr.bf16.mxu0 0
  %2115 = vmatpush1.bf16.msra.mxu0 0
  %2116 = vmatprep.subr.bf16.mxu0 0
  %2117 = vmatpush1.bf16.msra.mxu0 0
  %2118 = vmatprep.subr.bf16.mxu0 0
  %2119 = vmatpush1.bf16.msra.mxu0 0
  %2120 = vmatprep.mubr.bf16.mxu0 0
  %2121 = vmatmul.mubr.bf16.gmra.mrb[0].mxu0 %v1837
  %v2122 = vpop.f32.mrb[0].mxu0
  %v2123 = vadd.f32 0.0, %v2122
  %v2124 = vpop.f32.mrb[0].mxu0
  %v2125 = vadd.f32 0.0, %v2124
  %v2126 = vpop.f32.mrb[0].mxu0
  %v2127 = vadd.f32 0.0, %v2126
  %v2128 = vpop.f32.mrb[0].mxu0
  %v2129 = vadd.f32 0.0, %v2128
  %2130 = vdwg.mxu0
  %v2131 = vadd.f32 %v1845, %v2080
  %v2132 = vadd.f32 %v1846, %v2082
  %v2133 = vadd.f32 %v1847, %v2123
  %v2134 = vadd.f32 %v1848, %v2125
  %v2135 = vadd.f32 %v1849, %v2084
  %v2136 = vadd.f32 %v1850, %v2086
  %v2137 = vadd.f32 %v1851, %v2127
  %v2138 = vadd.f32 %v1852, %v2129
  %v2139 = vxor.u32 %v2131, 2147483648
  %v2140 = vxor.u32 %v2135, 2147483648
  %v2141 = vmul.f32 %v2139, 1.442695
  %v2142 = vpow.pop %v2141
  %v2143 = vmul.f32 %v2140, 1.442695
  %v2144 = vpow.pop %v2143
  %v2145 = vadd.f32 %v2142, 1.0
  %v2146 = vadd.f32 %v2144, 1.0
  %v2147 = vrcp.pop %v2145
  %v2148 = vmul.f32 1.0, %v2147
  %v2149 = vrcp.pop %v2146
  %v2150 = vmul.f32 1.0, %v2149
  %v2151 = vxor.u32 %v2132, 2147483648
  %v2152 = vxor.u32 %v2136, 2147483648
  %v2153 = vmul.f32 %v2151, 1.442695
  %v2154 = vpow.pop %v2153
  %v2155 = vmul.f32 %v2152, 1.442695
  %v2156 = vpow.pop %v2155
  %v2157 = vadd.f32 %v2154, 1.0
  %v2158 = vadd.f32 %v2156, 1.0
  %v2159 = vrcp.pop %v2157
  %v2160 = vmul.f32 1.0, %v2159
  %v2161 = vrcp.pop %v2158
  %v2162 = vmul.f32 1.0, %v2161
  %v2163 = vtanh.pop %v2133
  %v2164 = vtanh.pop %v2137
  %v2165 = vxor.u32 %v2134, 2147483648
  %v2166 = vxor.u32 %v2138, 2147483648
  %v2167 = vmul.f32 %v2165, 1.442695
  %v2168 = vpow.pop %v2167
  %v2169 = vmul.f32 %v2166, 1.442695
  %v2170 = vpow.pop %v2169
  %v2171 = vadd.f32 %v2168, 1.0
  %v2172 = vadd.f32 %v2170, 1.0
  %v2173 = vrcp.pop %v2171
  %v2174 = vmul.f32 1.0, %v2173
  %v2175 = vrcp.pop %v2172
  %v2176 = vmul.f32 1.0, %v2175
  %v2177 = vmul.f32 %v2160, %v1838
  %v2178 = vmul.f32 %v2162, %v1839
  %v2179 = vmul.f32 %v2148, %v2163
  %v2180 = vmul.f32 %v2150, %v2164
  %v2181 = vadd.f32 %v2177, %v2179
  %v2182 = vadd.f32 %v2178, %v2180
  %v2183 = vtanh.pop %v2181
  %v2184 = vtanh.pop %v2182
  %v2185 = vmul.f32 %v2174, %v2183
  %v2186 = vmul.f32 %v2176, %v2184
  %v2187 = vpack.c.bf16 %v2186, %v2185
  %2188 = vst [vmem:[#allocation3] sm:$0xff] %v2181
  %2189 = vst [vmem:[#allocation3 + $0x8] sm:$0xff] %v2182
  %2190 = vst [vmem:[#allocation2] sm:$0xff] %v2187
  %v2192 = vunpack.c.l.b16 %v2187
  %v2193 = vunpack.c.h.b16 %v2187
  %v2194 = vpack.c.b16 %v2192, %v2192
  %v2195 = vpack.c.b16 %v2193, %v2193
  %s2198 = scalar_lea.vmem %s2, 40
  %2199 = vst [vmem:[%s2198] sm:$0xf] %v2194
  %2200 = vst [vmem:[%s2198 + $0x4] sm:$0xf] %v2195
  %v2201 = vld [vmem:[#allocation2] sm:$0xff]
  %v2202 = vld [vmem:[#allocation3] sm:$0xff]
  %v2203 = vld [vmem:[#allocation3 + $0x8] sm:$0xff]
  %s2204 = scalar_lea.vmem %s0, 192
  %v2205 = vld [vmem:[%s2204] sm:$0xff]
  %v2206 = vld [vmem:[%s2204 + $0x8] sm:$0xff]
  %v2207 = vld [vmem:[%s2204 + $0x10] sm:$0xff]
  %v2208 = vld [vmem:[%s2204 + $0x18] sm:$0xff]
  %v2209 = vunpack.c.l.bf16 %v2205
  %v2210 = vunpack.c.h.bf16 %v2205
  %v2211 = vunpack.c.l.bf16 %v2206
  %v2212 = vunpack.c.h.bf16 %v2206
  %v2213 = vunpack.c.l.bf16 %v2207
  %v2214 = vunpack.c.h.bf16 %v2207
  %v2215 = vunpack.c.l.bf16 %v2208
  %v2216 = vunpack.c.h.bf16 %v2208
  %v2217 = vld [vmem:[%s1] sm:$0xff]
  %v2218 = vld [vmem:[%s1 + $0x8] sm:$0xff]
  %v2219 = vld [vmem:[%s1 + $0x10] sm:$0xff]
  %v2220 = vld [vmem:[%s1 + $0x18] sm:$0xff]
  %v2221 = vld [vmem:[%s1 + $0x20] sm:$0xff]
  %v2222 = vld [vmem:[%s1 + $0x28] sm:$0xff]
  %v2223 = vld [vmem:[%s1 + $0x30] sm:$0xff]
  %v2224 = vld [vmem:[%s1 + $0x38] sm:$0xff]
  %v2225 = vld [vmem:[%s1 + $0x40] sm:$0xff]
  %v2226 = vld [vmem:[%s1 + $0x48] sm:$0xff]
  %v2227 = vld [vmem:[%s1 + $0x50] sm:$0xff]
  %v2228 = vld [vmem:[%s1 + $0x58] sm:$0xff]
  %v2229 = vld [vmem:[%s1 + $0x60] sm:$0xff]
  %v2230 = vld [vmem:[%s1 + $0x68] sm:$0xff]
  %v2231 = vld [vmem:[%s1 + $0x70] sm:$0xff]
  %v2232 = vld [vmem:[%s1 + $0x78] sm:$0xff]
  %v2233 = vld [vmem:[%s1 + $0x80] sm:$0xff]
  %v2234 = vld [vmem:[%s1 + $0x88] sm:$0xff]
  %v2235 = vld [vmem:[%s1 + $0x90] sm:$0xff]
  %v2236 = vld [vmem:[%s1 + $0x98] sm:$0xff]
  %v2237 = vld [vmem:[%s1 + $0xa0] sm:$0xff]
  %v2238 = vld [vmem:[%s1 + $0xa8] sm:$0xff]
  %v2239 = vld [vmem:[%s1 + $0xb0] sm:$0xff]
  %v2240 = vld [vmem:[%s1 + $0xb8] sm:$0xff]
  %v2241 = vld [vmem:[%s1 + $0xc0] sm:$0xff]
  %v2242 = vld [vmem:[%s1 + $0xc8] sm:$0xff]
  %v2243 = vld [vmem:[%s1 + $0xd0] sm:$0xff]
  %v2244 = vld [vmem:[%s1 + $0xd8] sm:$0xff]
  %v2245 = vld [vmem:[%s1 + $0xe0] sm:$0xff]
  %v2246 = vld [vmem:[%s1 + $0xe8] sm:$0xff]
  %v2247 = vld [vmem:[%s1 + $0xf0] sm:$0xff]
  %v2248 = vld [vmem:[%s1 + $0xf8] sm:$0xff]
  %v2281 = vunpack.c.l.b16 %v2217
  %v2282 = vunpack.c.h.b16 %v2217
  %v2283 = vunpack.c.l.b16 %v2218
  %v2284 = vunpack.c.h.b16 %v2218
  %v2285 = vunpack.c.l.b16 %v2219
  %v2286 = vunpack.c.h.b16 %v2219
  %v2287 = vunpack.c.l.b16 %v2220
  %v2288 = vunpack.c.h.b16 %v2220
  %v2289 = vunpack.c.l.b16 %v2221
  %v2290 = vunpack.c.h.b16 %v2221
  %v2291 = vunpack.c.l.b16 %v2222
  %v2292 = vunpack.c.h.b16 %v2222
  %v2293 = vunpack.c.l.b16 %v2223
  %v2294 = vunpack.c.h.b16 %v2223
  %v2295 = vunpack.c.l.b16 %v2224
  %v2296 = vunpack.c.h.b16 %v2224
  %v2297 = vunpack.c.l.b16 %v2225
  %v2298 = vunpack.c.h.b16 %v2225
  %v2299 = vunpack.c.l.b16 %v2226
  %v2300 = vunpack.c.h.b16 %v2226
  %v2301 = vunpack.c.l.b16 %v2227
  %v2302 = vunpack.c.h.b16 %v2227
  %v2303 = vunpack.c.l.b16 %v2228
  %v2304 = vunpack.c.h.b16 %v2228
  %v2305 = vunpack.c.l.b16 %v2229
  %v2306 = vunpack.c.h.b16 %v2229
  %v2307 = vunpack.c.l.b16 %v2230
  %v2308 = vunpack.c.h.b16 %v2230
  %v2309 = vunpack.c.l.b16 %v2231
  %v2310 = vunpack.c.h.b16 %v2231
  %v2311 = vunpack.c.l.b16 %v2232
  %v2312 = vunpack.c.h.b16 %v2232
  %v2313 = vunpack.c.l.b16 %v2233
  %v2314 = vunpack.c.h.b16 %v2233
  %v2315 = vunpack.c.l.b16 %v2234
  %v2316 = vunpack.c.h.b16 %v2234
  %v2317 = vunpack.c.l.b16 %v2235
  %v2318 = vunpack.c.h.b16 %v2235
  %v2319 = vunpack.c.l.b16 %v2236
  %v2320 = vunpack.c.h.b16 %v2236
  %v2321 = vunpack.c.l.b16 %v2237
  %v2322 = vunpack.c.h.b16 %v2237
  %v2323 = vunpack.c.l.b16 %v2238
  %v2324 = vunpack.c.h.b16 %v2238
  %v2325 = vunpack.c.l.b16 %v2239
  %v2326 = vunpack.c.h.b16 %v2239
  %v2327 = vunpack.c.l.b16 %v2240
  %v2328 = vunpack.c.h.b16 %v2240
  %v2329 = vunpack.c.l.b16 %v2241
  %v2330 = vunpack.c.h.b16 %v2241
  %v2331 = vunpack.c.l.b16 %v2242
  %v2332 = vunpack.c.h.b16 %v2242
  %v2333 = vunpack.c.l.b16 %v2243
  %v2334 = vunpack.c.h.b16 %v2243
  %v2335 = vunpack.c.l.b16 %v2244
  %v2336 = vunpack.c.h.b16 %v2244
  %v2337 = vunpack.c.l.b16 %v2245
  %v2338 = vunpack.c.h.b16 %v2245
  %v2339 = vunpack.c.l.b16 %v2246
  %v2340 = vunpack.c.h.b16 %v2246
  %v2341 = vunpack.c.l.b16 %v2247
  %v2342 = vunpack.c.h.b16 %v2247
  %v2343 = vunpack.c.l.b16 %v2248
  %v2344 = vunpack.c.h.b16 %v2248
  %v2345 = vpack.c.b16 %v2285, %v2281
  %v2346 = vpack.c.b16 %v2286, %v2282
  %v2347 = vpack.c.b16 %v2287, %v2283
  %v2348 = vpack.c.b16 %v2288, %v2284
  %v2349 = vpack.c.b16 %v2293, %v2289
  %v2350 = vpack.c.b16 %v2294, %v2290
  %v2351 = vpack.c.b16 %v2295, %v2291
  %v2352 = vpack.c.b16 %v2296, %v2292
  %v2353 = vpack.c.b16 %v2301, %v2297
  %v2354 = vpack.c.b16 %v2302, %v2298
  %v2355 = vpack.c.b16 %v2303, %v2299
  %v2356 = vpack.c.b16 %v2304, %v2300
  %v2357 = vpack.c.b16 %v2309, %v2305
  %v2358 = vpack.c.b16 %v2310, %v2306
  %v2359 = vpack.c.b16 %v2311, %v2307
  %v2360 = vpack.c.b16 %v2312, %v2308
  %v2361 = vpack.c.b16 %v2317, %v2313
  %v2362 = vpack.c.b16 %v2318, %v2314
  %v2363 = vpack.c.b16 %v2319, %v2315
  %v2364 = vpack.c.b16 %v2320, %v2316
  %v2365 = vpack.c.b16 %v2325, %v2321
  %v2366 = vpack.c.b16 %v2326, %v2322
  %v2367 = vpack.c.b16 %v2327, %v2323
  %v2368 = vpack.c.b16 %v2328, %v2324
  %v2369 = vpack.c.b16 %v2333, %v2329
  %v2370 = vpack.c.b16 %v2334, %v2330
  %v2371 = vpack.c.b16 %v2335, %v2331
  %v2372 = vpack.c.b16 %v2336, %v2332
  %v2373 = vpack.c.b16 %v2341, %v2337
  %v2374 = vpack.c.b16 %v2342, %v2338
  %v2375 = vpack.c.b16 %v2343, %v2339
  %v2376 = vpack.c.b16 %v2344, %v2340
  %2409 = vmatprep.subr.bf16.mxu0 %v2346
  %2410 = vmatpush1.bf16.msra.mxu0 %v2345
  %2411 = vmatprep.subr.bf16.mxu0 %v2350
  %2412 = vmatpush1.bf16.msra.mxu0 %v2349
  %2413 = vmatprep.subr.bf16.mxu0 %v2354
  %2414 = vmatpush1.bf16.msra.mxu0 %v2353
  %2415 = vmatprep.subr.bf16.mxu0 %v2358
  %2416 = vmatpush1.bf16.msra.mxu0 %v2357
  %2417 = vmatprep.subr.bf16.mxu0 %v2362
  %2418 = vmatpush1.bf16.msra.mxu0 %v2361
  %2419 = vmatprep.subr.bf16.mxu0 %v2366
  %2420 = vmatpush1.bf16.msra.mxu0 %v2365
  %2421 = vmatprep.subr.bf16.mxu0 %v2370
  %2422 = vmatpush1.bf16.msra.mxu0 %v2369
  %2423 = vmatprep.subr.bf16.mxu0 %v2374
  %2424 = vmatpush1.bf16.msra.mxu0 %v2373
  %2425 = vmatprep.subr.bf16.mxu0 0
  %2426 = vmatpush1.bf16.msra.mxu0 0
  %2427 = vmatprep.subr.bf16.mxu0 0
  %2428 = vmatpush1.bf16.msra.mxu0 0
  %2429 = vmatprep.subr.bf16.mxu0 0
  %2430 = vmatpush1.bf16.msra.mxu0 0
  %2431 = vmatprep.subr.bf16.mxu0 0
  %2432 = vmatpush1.bf16.msra.mxu0 0
  %2433 = vmatprep.subr.bf16.mxu0 0
  %2434 = vmatpush1.bf16.msra.mxu0 0
  %2435 = vmatprep.subr.bf16.mxu0 0
  %2436 = vmatpush1.bf16.msra.mxu0 0
  %2437 = vmatprep.subr.bf16.mxu0 0
  %2438 = vmatpush1.bf16.msra.mxu0 0
  %2439 = vmatprep.subr.bf16.mxu0 0
  %2440 = vmatpush1.bf16.msra.mxu0 0
  %2441 = vmatprep.mubr.bf16.mxu0 0
  %2442 = vmatmul.mubr.bf16.gmra.mrb[0].mxu0 %v2201
  %v2443 = vpop.f32.mrb[0].mxu0
  %v2444 = vadd.f32 0.0, %v2443
  %v2445 = vpop.f32.mrb[0].mxu0
  %v2446 = vadd.f32 0.0, %v2445
  %v2447 = vpop.f32.mrb[0].mxu0
  %v2448 = vadd.f32 0.0, %v2447
  %v2449 = vpop.f32.mrb[0].mxu0
  %v2450 = vadd.f32 0.0, %v2449
  %2451 = vdwg.mxu0
  %2452 = vmatprep.subr.bf16.mxu0 %v2348
  %2453 = vmatpush1.bf16.msra.mxu0 %v2347
  %2454 = vmatprep.subr.bf16.mxu0 %v2352
  %2455 = vmatpush1.bf16.msra.mxu0 %v2351
  %2456 = vmatprep.subr.bf16.mxu0 %v2356
  %2457 = vmatpush1.bf16.msra.mxu0 %v2355
  %2458 = vmatprep.subr.bf16.mxu0 %v2360
  %2459 = vmatpush1.bf16.msra.mxu0 %v2359
  %2460 = vmatprep.subr.bf16.mxu0 %v2364
  %2461 = vmatpush1.bf16.msra.mxu0 %v2363
  %2462 = vmatprep.subr.bf16.mxu0 %v2368
  %2463 = vmatpush1.bf16.msra.mxu0 %v2367
  %2464 = vmatprep.subr.bf16.mxu0 %v2372
  %2465 = vmatpush1.bf16.msra.mxu0 %v2371
  %2466 = vmatprep.subr.bf16.mxu0 %v2376
  %2467 = vmatpush1.bf16.msra.mxu0 %v2375
  %2468 = vmatprep.subr.bf16.mxu0 0
  %2469 = vmatpush1.bf16.msra.mxu0 0
  %2470 = vmatprep.subr.bf16.mxu0 0
  %2471 = vmatpush1.bf16.msra.mxu0 0
  %2472 = vmatprep.subr.bf16.mxu0 0
  %2473 = vmatpush1.bf16.msra.mxu0 0
  %2474 = vmatprep.subr.bf16.mxu0 0
  %2475 = vmatpush1.bf16.msra.mxu0 0
  %2476 = vmatprep.subr.bf16.mxu0 0
  %2477 = vmatpush1.bf16.msra.mxu0 0
  %2478 = vmatprep.subr.bf16.mxu0 0
  %2479 = vmatpush1.bf16.msra.mxu0 0
  %2480 = vmatprep.subr.bf16.mxu0 0
  %2481 = vmatpush1.bf16.msra.mxu0 0
  %2482 = vmatprep.subr.bf16.mxu0 0
  %2483 = vmatpush1.bf16.msra.mxu0 0
  %2484 = vmatprep.mubr.bf16.mxu0 0
  %2485 = vmatmul.mubr.bf16.gmra.mrb[0].mxu0 %v2201
  %v2486 = vpop.f32.mrb[0].mxu0
  %v2487 = vadd.f32 0.0, %v2486
  %v2488 = vpop.f32.mrb[0].mxu0
  %v2489 = vadd.f32 0.0, %v2488
  %v2490 = vpop.f32.mrb[0].mxu0
  %v2491 = vadd.f32 0.0, %v2490
  %v2492 = vpop.f32.mrb[0].mxu0
  %v2493 = vadd.f32 0.0, %v2492
  %2494 = vdwg.mxu0
  %v2495 = vadd.f32 %v2209, %v2444
  %v2496 = vadd.f32 %v2210, %v2446
  %v2497 = vadd.f32 %v2211, %v2487
  %v2498 = vadd.f32 %v2212, %v2489
  %v2499 = vadd.f32 %v2213, %v2448
  %v2500 = vadd.f32 %v2214, %v2450
  %v2501 = vadd.f32 %v2215, %v2491
  %v2502 = vadd.f32 %v2216, %v2493
  %v2503 = vxor.u32 %v2495, 2147483648
  %v2504 = vxor.u32 %v2499, 2147483648
  %v2505 = vmul.f32 %v2503, 1.442695
  %v2506 = vpow.pop %v2505
  %v2507 = vmul.f32 %v2504, 1.442695
  %v2508 = vpow.pop %v2507
  %v2509 = vadd.f32 %v2506, 1.0
  %v2510 = vadd.f32 %v2508, 1.0
  %v2511 = vrcp.pop %v2509
  %v2512 = vmul.f32 1.0, %v2511
  %v2513 = vrcp.pop %v2510
  %v2514 = vmul.f32 1.0, %v2513
  %v2515 = vxor.u32 %v2496, 2147483648
  %v2516 = vxor.u32 %v2500, 2147483648
  %v2517 = vmul.f32 %v2515, 1.442695
  %v2518 = vpow.pop %v2517
  %v2519 = vmul.f32 %v2516, 1.442695
  %v2520 = vpow.pop %v2519
  %v2521 = vadd.f32 %v2518, 1.0
  %v2522 = vadd.f32 %v2520, 1.0
  %v2523 = vrcp.pop %v2521
  %v2524 = vmul.f32 1.0, %v2523
  %v2525 = vrcp.pop %v2522
  %v2526 = vmul.f32 1.0, %v2525
  %v2527 = vtanh.pop %v2497
  %v2528 = vtanh.pop %v2501
  %v2529 = vxor.u32 %v2498, 2147483648
  %v2530 = vxor.u32 %v2502, 2147483648
  %v2531 = vmul.f32 %v2529, 1.442695
  %v2532 = vpow.pop %v2531
  %v2533 = vmul.f32 %v2530, 1.442695
  %v2534 = vpow.pop %v2533
  %v2535 = vadd.f32 %v2532, 1.0
  %v2536 = vadd.f32 %v2534, 1.0
  %v2537 = vrcp.pop %v2535
  %v2538 = vmul.f32 1.0, %v2537
  %v2539 = vrcp.pop %v2536
  %v2540 = vmul.f32 1.0, %v2539
  %v2541 = vmul.f32 %v2524, %v2202
  %v2542 = vmul.f32 %v2526, %v2203
  %v2543 = vmul.f32 %v2512, %v2527
  %v2544 = vmul.f32 %v2514, %v2528
  %v2545 = vadd.f32 %v2541, %v2543
  %v2546 = vadd.f32 %v2542, %v2544
  %v2547 = vtanh.pop %v2545
  %v2548 = vtanh.pop %v2546
  %v2549 = vmul.f32 %v2538, %v2547
  %v2550 = vmul.f32 %v2540, %v2548
  %v2551 = vpack.c.bf16 %v2550, %v2549
  %2552 = vst [vmem:[#allocation3] sm:$0xff] %v2545
  %2553 = vst [vmem:[#allocation3 + $0x8] sm:$0xff] %v2546
  %2554 = vst [vmem:[#allocation2] sm:$0xff] %v2551
  %v2556 = vunpack.c.l.b16 %v2551
  %v2557 = vunpack.c.h.b16 %v2551
  %v2558 = vpack.c.b16 %v2556, %v2556
  %v2559 = vpack.c.b16 %v2557, %v2557
  %s2562 = scalar_lea.vmem %s2, 48
  %2563 = vst [vmem:[%s2562] sm:$0xf] %v2558
  %2564 = vst [vmem:[%s2562 + $0x4] sm:$0xf] %v2559
  %v2565 = vld [vmem:[#allocation2] sm:$0xff]
  %v2566 = vld [vmem:[#allocation3] sm:$0xff]
  %v2567 = vld [vmem:[#allocation3 + $0x8] sm:$0xff]
  %s2568 = scalar_lea.vmem %s0, 224
  %v2569 = vld [vmem:[%s2568] sm:$0xff]
  %v2570 = vld [vmem:[%s2568 + $0x8] sm:$0xff]
  %v2571 = vld [vmem:[%s2568 + $0x10] sm:$0xff]
  %v2572 = vld [vmem:[%s2568 + $0x18] sm:$0xff]
  %v2573 = vunpack.c.l.bf16 %v2569
  %v2574 = vunpack.c.h.bf16 %v2569
  %v2575 = vunpack.c.l.bf16 %v2570
  %v2576 = vunpack.c.h.bf16 %v2570
  %v2577 = vunpack.c.l.bf16 %v2571
  %v2578 = vunpack.c.h.bf16 %v2571
  %v2579 = vunpack.c.l.bf16 %v2572
  %v2580 = vunpack.c.h.bf16 %v2572
  %v2581 = vld [vmem:[%s1] sm:$0xff]
  %v2582 = vld [vmem:[%s1 + $0x8] sm:$0xff]
  %v2583 = vld [vmem:[%s1 + $0x10] sm:$0xff]
  %v2584 = vld [vmem:[%s1 + $0x18] sm:$0xff]
  %v2585 = vld [vmem:[%s1 + $0x20] sm:$0xff]
  %v2586 = vld [vmem:[%s1 + $0x28] sm:$0xff]
  %v2587 = vld [vmem:[%s1 + $0x30] sm:$0xff]
  %v2588 = vld [vmem:[%s1 + $0x38] sm:$0xff]
  %v2589 = vld [vmem:[%s1 + $0x40] sm:$0xff]
  %v2590 = vld [vmem:[%s1 + $0x48] sm:$0xff]
  %v2591 = vld [vmem:[%s1 + $0x50] sm:$0xff]
  %v2592 = vld [vmem:[%s1 + $0x58] sm:$0xff]
  %v2593 = vld [vmem:[%s1 + $0x60] sm:$0xff]
  %v2594 = vld [vmem:[%s1 + $0x68] sm:$0xff]
  %v2595 = vld [vmem:[%s1 + $0x70] sm:$0xff]
  %v2596 = vld [vmem:[%s1 + $0x78] sm:$0xff]
  %v2597 = vld [vmem:[%s1 + $0x80] sm:$0xff]
  %v2598 = vld [vmem:[%s1 + $0x88] sm:$0xff]
  %v2599 = vld [vmem:[%s1 + $0x90] sm:$0xff]
  %v2600 = vld [vmem:[%s1 + $0x98] sm:$0xff]
  %v2601 = vld [vmem:[%s1 + $0xa0] sm:$0xff]
  %v2602 = vld [vmem:[%s1 + $0xa8] sm:$0xff]
  %v2603 = vld [vmem:[%s1 + $0xb0] sm:$0xff]
  %v2604 = vld [vmem:[%s1 + $0xb8] sm:$0xff]
  %v2605 = vld [vmem:[%s1 + $0xc0] sm:$0xff]
  %v2606 = vld [vmem:[%s1 + $0xc8] sm:$0xff]
  %v2607 = vld [vmem:[%s1 + $0xd0] sm:$0xff]
  %v2608 = vld [vmem:[%s1 + $0xd8] sm:$0xff]
  %v2609 = vld [vmem:[%s1 + $0xe0] sm:$0xff]
  %v2610 = vld [vmem:[%s1 + $0xe8] sm:$0xff]
  %v2611 = vld [vmem:[%s1 + $0xf0] sm:$0xff]
  %v2612 = vld [vmem:[%s1 + $0xf8] sm:$0xff]
  %v2645 = vunpack.c.l.b16 %v2581
  %v2646 = vunpack.c.h.b16 %v2581
  %v2647 = vunpack.c.l.b16 %v2582
  %v2648 = vunpack.c.h.b16 %v2582
  %v2649 = vunpack.c.l.b16 %v2583
  %v2650 = vunpack.c.h.b16 %v2583
  %v2651 = vunpack.c.l.b16 %v2584
  %v2652 = vunpack.c.h.b16 %v2584
  %v2653 = vunpack.c.l.b16 %v2585
  %v2654 = vunpack.c.h.b16 %v2585
  %v2655 = vunpack.c.l.b16 %v2586
  %v2656 = vunpack.c.h.b16 %v2586
  %v2657 = vunpack.c.l.b16 %v2587
  %v2658 = vunpack.c.h.b16 %v2587
  %v2659 = vunpack.c.l.b16 %v2588
  %v2660 = vunpack.c.h.b16 %v2588
  %v2661 = vunpack.c.l.b16 %v2589
  %v2662 = vunpack.c.h.b16 %v2589
  %v2663 = vunpack.c.l.b16 %v2590
  %v2664 = vunpack.c.h.b16 %v2590
  %v2665 = vunpack.c.l.b16 %v2591
  %v2666 = vunpack.c.h.b16 %v2591
  %v2667 = vunpack.c.l.b16 %v2592
  %v2668 = vunpack.c.h.b16 %v2592
  %v2669 = vunpack.c.l.b16 %v2593
  %v2670 = vunpack.c.h.b16 %v2593
  %v2671 = vunpack.c.l.b16 %v2594
  %v2672 = vunpack.c.h.b16 %v2594
  %v2673 = vunpack.c.l.b16 %v2595
  %v2674 = vunpack.c.h.b16 %v2595
  %v2675 = vunpack.c.l.b16 %v2596
  %v2676 = vunpack.c.h.b16 %v2596
  %v2677 = vunpack.c.l.b16 %v2597
  %v2678 = vunpack.c.h.b16 %v2597
  %v2679 = vunpack.c.l.b16 %v2598
  %v2680 = vunpack.c.h.b16 %v2598
  %v2681 = vunpack.c.l.b16 %v2599
  %v2682 = vunpack.c.h.b16 %v2599
  %v2683 = vunpack.c.l.b16 %v2600
  %v2684 = vunpack.c.h.b16 %v2600
  %v2685 = vunpack.c.l.b16 %v2601
  %v2686 = vunpack.c.h.b16 %v2601
  %v2687 = vunpack.c.l.b16 %v2602
  %v2688 = vunpack.c.h.b16 %v2602
  %v2689 = vunpack.c.l.b16 %v2603
  %v2690 = vunpack.c.h.b16 %v2603
  %v2691 = vunpack.c.l.b16 %v2604
  %v2692 = vunpack.c.h.b16 %v2604
  %v2693 = vunpack.c.l.b16 %v2605
  %v2694 = vunpack.c.h.b16 %v2605
  %v2695 = vunpack.c.l.b16 %v2606
  %v2696 = vunpack.c.h.b16 %v2606
  %v2697 = vunpack.c.l.b16 %v2607
  %v2698 = vunpack.c.h.b16 %v2607
  %v2699 = vunpack.c.l.b16 %v2608
  %v2700 = vunpack.c.h.b16 %v2608
  %v2701 = vunpack.c.l.b16 %v2609
  %v2702 = vunpack.c.h.b16 %v2609
  %v2703 = vunpack.c.l.b16 %v2610
  %v2704 = vunpack.c.h.b16 %v2610
  %v2705 = vunpack.c.l.b16 %v2611
  %v2706 = vunpack.c.h.b16 %v2611
  %v2707 = vunpack.c.l.b16 %v2612
  %v2708 = vunpack.c.h.b16 %v2612
  %v2709 = vpack.c.b16 %v2649, %v2645
  %v2710 = vpack.c.b16 %v2650, %v2646
  %v2711 = vpack.c.b16 %v2651, %v2647
  %v2712 = vpack.c.b16 %v2652, %v2648
  %v2713 = vpack.c.b16 %v2657, %v2653
  %v2714 = vpack.c.b16 %v2658, %v2654
  %v2715 = vpack.c.b16 %v2659, %v2655
  %v2716 = vpack.c.b16 %v2660, %v2656
  %v2717 = vpack.c.b16 %v2665, %v2661
  %v2718 = vpack.c.b16 %v2666, %v2662
  %v2719 = vpack.c.b16 %v2667, %v2663
  %v2720 = vpack.c.b16 %v2668, %v2664
  %v2721 = vpack.c.b16 %v2673, %v2669
  %v2722 = vpack.c.b16 %v2674, %v2670
  %v2723 = vpack.c.b16 %v2675, %v2671
  %v2724 = vpack.c.b16 %v2676, %v2672
  %v2725 = vpack.c.b16 %v2681, %v2677
  %v2726 = vpack.c.b16 %v2682, %v2678
  %v2727 = vpack.c.b16 %v2683, %v2679
  %v2728 = vpack.c.b16 %v2684, %v2680
  %v2729 = vpack.c.b16 %v2689, %v2685
  %v2730 = vpack.c.b16 %v2690, %v2686
  %v2731 = vpack.c.b16 %v2691, %v2687
  %v2732 = vpack.c.b16 %v2692, %v2688
  %v2733 = vpack.c.b16 %v2697, %v2693
  %v2734 = vpack.c.b16 %v2698, %v2694
  %v2735 = vpack.c.b16 %v2699, %v2695
  %v2736 = vpack.c.b16 %v2700, %v2696
  %v2737 = vpack.c.b16 %v2705, %v2701
  %v2738 = vpack.c.b16 %v2706, %v2702
  %v2739 = vpack.c.b16 %v2707, %v2703
  %v2740 = vpack.c.b16 %v2708, %v2704
  %2773 = vmatprep.subr.bf16.mxu0 %v2710
  %2774 = vmatpush1.bf16.msra.mxu0 %v2709
  %2775 = vmatprep.subr.bf16.mxu0 %v2714
  %2776 = vmatpush1.bf16.msra.mxu0 %v2713
  %2777 = vmatprep.subr.bf16.mxu0 %v2718
  %2778 = vmatpush1.bf16.msra.mxu0 %v2717
  %2779 = vmatprep.subr.bf16.mxu0 %v2722
  %2780 = vmatpush1.bf16.msra.mxu0 %v2721
  %2781 = vmatprep.subr.bf16.mxu0 %v2726
  %2782 = vmatpush1.bf16.msra.mxu0 %v2725
  %2783 = vmatprep.subr.bf16.mxu0 %v2730
  %2784 = vmatpush1.bf16.msra.mxu0 %v2729
  %2785 = vmatprep.subr.bf16.mxu0 %v2734
  %2786 = vmatpush1.bf16.msra.mxu0 %v2733
  %2787 = vmatprep.subr.bf16.mxu0 %v2738
  %2788 = vmatpush1.bf16.msra.mxu0 %v2737
  %2789 = vmatprep.subr.bf16.mxu0 0
  %2790 = vmatpush1.bf16.msra.mxu0 0
  %2791 = vmatprep.subr.bf16.mxu0 0
  %2792 = vmatpush1.bf16.msra.mxu0 0
  %2793 = vmatprep.subr.bf16.mxu0 0
  %2794 = vmatpush1.bf16.msra.mxu0 0
  %2795 = vmatprep.subr.bf16.mxu0 0
  %2796 = vmatpush1.bf16.msra.mxu0 0
  %2797 = vmatprep.subr.bf16.mxu0 0
  %2798 = vmatpush1.bf16.msra.mxu0 0
  %2799 = vmatprep.subr.bf16.mxu0 0
  %2800 = vmatpush1.bf16.msra.mxu0 0
  %2801 = vmatprep.subr.bf16.mxu0 0
  %2802 = vmatpush1.bf16.msra.mxu0 0
  %2803 = vmatprep.subr.bf16.mxu0 0
  %2804 = vmatpush1.bf16.msra.mxu0 0
  %2805 = vmatprep.mubr.bf16.mxu0 0
  %2806 = vmatmul.mubr.bf16.gmra.mrb[0].mxu0 %v2565
  %v2807 = vpop.f32.mrb[0].mxu0
  %v2808 = vadd.f32 0.0, %v2807
  %v2809 = vpop.f32.mrb[0].mxu0
  %v2810 = vadd.f32 0.0, %v2809
  %v2811 = vpop.f32.mrb[0].mxu0
  %v2812 = vadd.f32 0.0, %v2811
  %v2813 = vpop.f32.mrb[0].mxu0
  %v2814 = vadd.f32 0.0, %v2813
  %2815 = vdwg.mxu0
  %2816 = vmatprep.subr.bf16.mxu0 %v2712
  %2817 = vmatpush1.bf16.msra.mxu0 %v2711
  %2818 = vmatprep.subr.bf16.mxu0 %v2716
  %2819 = vmatpush1.bf16.msra.mxu0 %v2715
  %2820 = vmatprep.subr.bf16.mxu0 %v2720
  %2821 = vmatpush1.bf16.msra.mxu0 %v2719
  %2822 = vmatprep.subr.bf16.mxu0 %v2724
  %2823 = vmatpush1.bf16.msra.mxu0 %v2723
  %2824 = vmatprep.subr.bf16.mxu0 %v2728
  %2825 = vmatpush1.bf16.msra.mxu0 %v2727
  %2826 = vmatprep.subr.bf16.mxu0 %v2732
  %2827 = vmatpush1.bf16.msra.mxu0 %v2731
  %2828 = vmatprep.subr.bf16.mxu0 %v2736
  %2829 = vmatpush1.bf16.msra.mxu0 %v2735
  %2830 = vmatprep.subr.bf16.mxu0 %v2740
  %2831 = vmatpush1.bf16.msra.mxu0 %v2739
  %2832 = vmatprep.subr.bf16.mxu0 0
  %2833 = vmatpush1.bf16.msra.mxu0 0
  %2834 = vmatprep.subr.bf16.mxu0 0
  %2835 = vmatpush1.bf16.msra.mxu0 0
  %2836 = vmatprep.subr.bf16.mxu0 0
  %2837 = vmatpush1.bf16.msra.mxu0 0
  %2838 = vmatprep.subr.bf16.mxu0 0
  %2839 = vmatpush1.bf16.msra.mxu0 0
  %2840 = vmatprep.subr.bf16.mxu0 0
  %2841 = vmatpush1.bf16.msra.mxu0 0
  %2842 = vmatprep.subr.bf16.mxu0 0
  %2843 = vmatpush1.bf16.msra.mxu0 0
  %2844 = vmatprep.subr.bf16.mxu0 0
  %2845 = vmatpush1.bf16.msra.mxu0 0
  %2846 = vmatprep.subr.bf16.mxu0 0
  %2847 = vmatpush1.bf16.msra.mxu0 0
  %2848 = vmatprep.mubr.bf16.mxu0 0
  %2849 = vmatmul.mubr.bf16.gmra.mrb[0].mxu0 %v2565
  %v2850 = vpop.f32.mrb[0].mxu0
  %v2851 = vadd.f32 0.0, %v2850
  %v2852 = vpop.f32.mrb[0].mxu0
  %v2853 = vadd.f32 0.0, %v2852
  %v2854 = vpop.f32.mrb[0].mxu0
  %v2855 = vadd.f32 0.0, %v2854
  %v2856 = vpop.f32.mrb[0].mxu0
  %v2857 = vadd.f32 0.0, %v2856
  %2858 = vdwg.mxu0
  %v2859 = vadd.f32 %v2573, %v2808
  %v2860 = vadd.f32 %v2574, %v2810
  %v2861 = vadd.f32 %v2575, %v2851
  %v2862 = vadd.f32 %v2576, %v2853
  %v2863 = vadd.f32 %v2577, %v2812
  %v2864 = vadd.f32 %v2578, %v2814
  %v2865 = vadd.f32 %v2579, %v2855
  %v2866 = vadd.f32 %v2580, %v2857
  %v2867 = vxor.u32 %v2859, 2147483648
  %v2868 = vxor.u32 %v2863, 2147483648
  %v2869 = vmul.f32 %v2867, 1.442695
  %v2870 = vpow.pop %v2869
  %v2871 = vmul.f32 %v2868, 1.442695
  %v2872 = vpow.pop %v2871
  %v2873 = vadd.f32 %v2870, 1.0
  %v2874 = vadd.f32 %v2872, 1.0
  %v2875 = vrcp.pop %v2873
  %v2876 = vmul.f32 1.0, %v2875
  %v2877 = vrcp.pop %v2874
  %v2878 = vmul.f32 1.0, %v2877
  %v2879 = vxor.u32 %v2860, 2147483648
  %v2880 = vxor.u32 %v2864, 2147483648
  %v2881 = vmul.f32 %v2879, 1.442695
  %v2882 = vpow.pop %v2881
  %v2883 = vmul.f32 %v2880, 1.442695
  %v2884 = vpow.pop %v2883
  %v2885 = vadd.f32 %v2882, 1.0
  %v2886 = vadd.f32 %v2884, 1.0
  %v2887 = vrcp.pop %v2885
  %v2888 = vmul.f32 1.0, %v2887
  %v2889 = vrcp.pop %v2886
  %v2890 = vmul.f32 1.0, %v2889
  %v2891 = vtanh.pop %v2861
  %v2892 = vtanh.pop %v2865
  %v2893 = vxor.u32 %v2862, 2147483648
  %v2894 = vxor.u32 %v2866, 2147483648
  %v2895 = vmul.f32 %v2893, 1.442695
  %v2896 = vpow.pop %v2895
  %v2897 = vmul.f32 %v2894, 1.442695
  %v2898 = vpow.pop %v2897
  %v2899 = vadd.f32 %v2896, 1.0
  %v2900 = vadd.f32 %v2898, 1.0
  %v2901 = vrcp.pop %v2899
  %v2902 = vmul.f32 1.0, %v2901
  %v2903 = vrcp.pop %v2900
  %v2904 = vmul.f32 1.0, %v2903
  %v2905 = vmul.f32 %v2888, %v2566
  %v2906 = vmul.f32 %v2890, %v2567
  %v2907 = vmul.f32 %v2876, %v2891
  %v2908 = vmul.f32 %v2878, %v2892
  %v2909 = vadd.f32 %v2905, %v2907
  %v2910 = vadd.f32 %v2906, %v2908
  %v2911 = vtanh.pop %v2909
  %v2912 = vtanh.pop %v2910
  %v2913 = vmul.f32 %v2902, %v2911
  %v2914 = vmul.f32 %v2904, %v2912
  %v2915 = vpack.c.bf16 %v2914, %v2913
  %2916 = vst [vmem:[#allocation3] sm:$0xff] %v2909
  %2917 = vst [vmem:[#allocation3 + $0x8] sm:$0xff] %v2910
  %2918 = vst [vmem:[#allocation2] sm:$0xff] %v2915
  %v2920 = vunpack.c.l.b16 %v2915
  %v2921 = vunpack.c.h.b16 %v2915
  %v2922 = vpack.c.b16 %v2920, %v2920
  %v2923 = vpack.c.b16 %v2921, %v2921
  %s2926 = scalar_lea.vmem %s2, 56
  %2927 = vst [vmem:[%s2926] sm:$0xf] %v2922
  %2928 = vst [vmem:[%s2926 + $0x4] sm:$0xf] %v2923
  %v2929 = vld [vmem:[#allocation2] sm:$0xff]
  %v2930 = vld [vmem:[#allocation3] sm:$0xff]
  %v2931 = vld [vmem:[#allocation3 + $0x8] sm:$0xff]
  %s2932 = scalar_lea.vmem %s0, 256
  %v2933 = vld [vmem:[%s2932] sm:$0xff]
  %v2934 = vld [vmem:[%s2932 + $0x8] sm:$0xff]
  %v2935 = vld [vmem:[%s2932 + $0x10] sm:$0xff]
  %v2936 = vld [vmem:[%s2932 + $0x18] sm:$0xff]
  %v2937 = vunpack.c.l.bf16 %v2933
  %v2938 = vunpack.c.h.bf16 %v2933
  %v2939 = vunpack.c.l.bf16 %v2934
  %v2940 = vunpack.c.h.bf16 %v2934
  %v2941 = vunpack.c.l.bf16 %v2935
  %v2942 = vunpack.c.h.bf16 %v2935
  %v2943 = vunpack.c.l.bf16 %v2936
  %v2944 = vunpack.c.h.bf16 %v2936
  %v2945 = vld [vmem:[%s1] sm:$0xff]
  %v2946 = vld [vmem:[%s1 + $0x8] sm:$0xff]
  %v2947 = vld [vmem:[%s1 + $0x10] sm:$0xff]
  %v2948 = vld [vmem:[%s1 + $0x18] sm:$0xff]
  %v2949 = vld [vmem:[%s1 + $0x20] sm:$0xff]
  %v2950 = vld [vmem:[%s1 + $0x28] sm:$0xff]
  %v2951 = vld [vmem:[%s1 + $0x30] sm:$0xff]
  %v2952 = vld [vmem:[%s1 + $0x38] sm:$0xff]
  %v2953 = vld [vmem:[%s1 + $0x40] sm:$0xff]
  %v2954 = vld [vmem:[%s1 + $0x48] sm:$0xff]
  %v2955 = vld [vmem:[%s1 + $0x50] sm:$0xff]
  %v2956 = vld [vmem:[%s1 + $0x58] sm:$0xff]
  %v2957 = vld [vmem:[%s1 + $0x60] sm:$0xff]
  %v2958 = vld [vmem:[%s1 + $0x68] sm:$0xff]
  %v2959 = vld [vmem:[%s1 + $0x70] sm:$0xff]
  %v2960 = vld [vmem:[%s1 + $0x78] sm:$0xff]
  %v2961 = vld [vmem:[%s1 + $0x80] sm:$0xff]
  %v2962 = vld [vmem:[%s1 + $0x88] sm:$0xff]
  %v2963 = vld [vmem:[%s1 + $0x90] sm:$0xff]
  %v2964 = vld [vmem:[%s1 + $0x98] sm:$0xff]
  %v2965 = vld [vmem:[%s1 + $0xa0] sm:$0xff]
  %v2966 = vld [vmem:[%s1 + $0xa8] sm:$0xff]
  %v2967 = vld [vmem:[%s1 + $0xb0] sm:$0xff]
  %v2968 = vld [vmem:[%s1 + $0xb8] sm:$0xff]
  %v2969 = vld [vmem:[%s1 + $0xc0] sm:$0xff]
  %v2970 = vld [vmem:[%s1 + $0xc8] sm:$0xff]
  %v2971 = vld [vmem:[%s1 + $0xd0] sm:$0xff]
  %v2972 = vld [vmem:[%s1 + $0xd8] sm:$0xff]
  %v2973 = vld [vmem:[%s1 + $0xe0] sm:$0xff]
  %v2974 = vld [vmem:[%s1 + $0xe8] sm:$0xff]
  %v2975 = vld [vmem:[%s1 + $0xf0] sm:$0xff]
  %v2976 = vld [vmem:[%s1 + $0xf8] sm:$0xff]
  %v3009 = vunpack.c.l.b16 %v2945
  %v3010 = vunpack.c.h.b16 %v2945
  %v3011 = vunpack.c.l.b16 %v2946
  %v3012 = vunpack.c.h.b16 %v2946
  %v3013 = vunpack.c.l.b16 %v2947
  %v3014 = vunpack.c.h.b16 %v2947
  %v3015 = vunpack.c.l.b16 %v2948
  %v3016 = vunpack.c.h.b16 %v2948
  %v3017 = vunpack.c.l.b16 %v2949
  %v3018 = vunpack.c.h.b16 %v2949
  %v3019 = vunpack.c.l.b16 %v2950
  %v3020 = vunpack.c.h.b16 %v2950
  %v3021 = vunpack.c.l.b16 %v2951
  %v3022 = vunpack.c.h.b16 %v2951
  %v3023 = vunpack.c.l.b16 %v2952
  %v3024 = vunpack.c.h.b16 %v2952
  %v3025 = vunpack.c.l.b16 %v2953
  %v3026 = vunpack.c.h.b16 %v2953
  %v3027 = vunpack.c.l.b16 %v2954
  %v3028 = vunpack.c.h.b16 %v2954
  %v3029 = vunpack.c.l.b16 %v2955
  %v3030 = vunpack.c.h.b16 %v2955
  %v3031 = vunpack.c.l.b16 %v2956
  %v3032 = vunpack.c.h.b16 %v2956
  %v3033 = vunpack.c.l.b16 %v2957
  %v3034 = vunpack.c.h.b16 %v2957
  %v3035 = vunpack.c.l.b16 %v2958
  %v3036 = vunpack.c.h.b16 %v2958
  %v3037 = vunpack.c.l.b16 %v2959
  %v3038 = vunpack.c.h.b16 %v2959
  %v3039 = vunpack.c.l.b16 %v2960
  %v3040 = vunpack.c.h.b16 %v2960
  %v3041 = vunpack.c.l.b16 %v2961
  %v3042 = vunpack.c.h.b16 %v2961
  %v3043 = vunpack.c.l.b16 %v2962
  %v3044 = vunpack.c.h.b16 %v2962
  %v3045 = vunpack.c.l.b16 %v2963
  %v3046 = vunpack.c.h.b16 %v2963
  %v3047 = vunpack.c.l.b16 %v2964
  %v3048 = vunpack.c.h.b16 %v2964
  %v3049 = vunpack.c.l.b16 %v2965
  %v3050 = vunpack.c.h.b16 %v2965
  %v3051 = vunpack.c.l.b16 %v2966
  %v3052 = vunpack.c.h.b16 %v2966
  %v3053 = vunpack.c.l.b16 %v2967
  %v3054 = vunpack.c.h.b16 %v2967
  %v3055 = vunpack.c.l.b16 %v2968
  %v3056 = vunpack.c.h.b16 %v2968
  %v3057 = vunpack.c.l.b16 %v2969
  %v3058 = vunpack.c.h.b16 %v2969
  %v3059 = vunpack.c.l.b16 %v2970
  %v3060 = vunpack.c.h.b16 %v2970
  %v3061 = vunpack.c.l.b16 %v2971
  %v3062 = vunpack.c.h.b16 %v2971
  %v3063 = vunpack.c.l.b16 %v2972
  %v3064 = vunpack.c.h.b16 %v2972
  %v3065 = vunpack.c.l.b16 %v2973
  %v3066 = vunpack.c.h.b16 %v2973
  %v3067 = vunpack.c.l.b16 %v2974
  %v3068 = vunpack.c.h.b16 %v2974
  %v3069 = vunpack.c.l.b16 %v2975
  %v3070 = vunpack.c.h.b16 %v2975
  %v3071 = vunpack.c.l.b16 %v2976
  %v3072 = vunpack.c.h.b16 %v2976
  %v3073 = vpack.c.b16 %v3013, %v3009
  %v3074 = vpack.c.b16 %v3014, %v3010
  %v3075 = vpack.c.b16 %v3015, %v3011
  %v3076 = vpack.c.b16 %v3016, %v3012
  %v3077 = vpack.c.b16 %v3021, %v3017
  %v3078 = vpack.c.b16 %v3022, %v3018
  %v3079 = vpack.c.b16 %v3023, %v3019
  %v3080 = vpack.c.b16 %v3024, %v3020
  %v3081 = vpack.c.b16 %v3029, %v3025
  %v3082 = vpack.c.b16 %v3030, %v3026
  %v3083 = vpack.c.b16 %v3031, %v3027
  %v3084 = vpack.c.b16 %v3032, %v3028
  %v3085 = vpack.c.b16 %v3037, %v3033
  %v3086 = vpack.c.b16 %v3038, %v3034
  %v3087 = vpack.c.b16 %v3039, %v3035
  %v3088 = vpack.c.b16 %v3040, %v3036
  %v3089 = vpack.c.b16 %v3045, %v3041
  %v3090 = vpack.c.b16 %v3046, %v3042
  %v3091 = vpack.c.b16 %v3047, %v3043
  %v3092 = vpack.c.b16 %v3048, %v3044
  %v3093 = vpack.c.b16 %v3053, %v3049
  %v3094 = vpack.c.b16 %v3054, %v3050
  %v3095 = vpack.c.b16 %v3055, %v3051
  %v3096 = vpack.c.b16 %v3056, %v3052
  %v3097 = vpack.c.b16 %v3061, %v3057
  %v3098 = vpack.c.b16 %v3062, %v3058
  %v3099 = vpack.c.b16 %v3063, %v3059
  %v3100 = vpack.c.b16 %v3064, %v3060
  %v3101 = vpack.c.b16 %v3069, %v3065
  %v3102 = vpack.c.b16 %v3070, %v3066
  %v3103 = vpack.c.b16 %v3071, %v3067
  %v3104 = vpack.c.b16 %v3072, %v3068
  %3137 = vmatprep.subr.bf16.mxu0 %v3074
  %3138 = vmatpush1.bf16.msra.mxu0 %v3073
  %3139 = vmatprep.subr.bf16.mxu0 %v3078
  %3140 = vmatpush1.bf16.msra.mxu0 %v3077
  %3141 = vmatprep.subr.bf16.mxu0 %v3082
  %3142 = vmatpush1.bf16.msra.mxu0 %v3081
  %3143 = vmatprep.subr.bf16.mxu0 %v3086
  %3144 = vmatpush1.bf16.msra.mxu0 %v3085
  %3145 = vmatprep.subr.bf16.mxu0 %v3090
  %3146 = vmatpush1.bf16.msra.mxu0 %v3089
  %3147 = vmatprep.subr.bf16.mxu0 %v3094
  %3148 = vmatpush1.bf16.msra.mxu0 %v3093
  %3149 = vmatprep.subr.bf16.mxu0 %v3098
  %3150 = vmatpush1.bf16.msra.mxu0 %v3097
  %3151 = vmatprep.subr.bf16.mxu0 %v3102
  %3152 = vmatpush1.bf16.msra.mxu0 %v3101
  %3153 = vmatprep.subr.bf16.mxu0 0
  %3154 = vmatpush1.bf16.msra.mxu0 0
  %3155 = vmatprep.subr.bf16.mxu0 0
  %3156 = vmatpush1.bf16.msra.mxu0 0
  %3157 = vmatprep.subr.bf16.mxu0 0
  %3158 = vmatpush1.bf16.msra.mxu0 0
  %3159 = vmatprep.subr.bf16.mxu0 0
  %3160 = vmatpush1.bf16.msra.mxu0 0
  %3161 = vmatprep.subr.bf16.mxu0 0
  %3162 = vmatpush1.bf16.msra.mxu0 0
  %3163 = vmatprep.subr.bf16.mxu0 0
  %3164 = vmatpush1.bf16.msra.mxu0 0
  %3165 = vmatprep.subr.bf16.mxu0 0
  %3166 = vmatpush1.bf16.msra.mxu0 0
  %3167 = vmatprep.subr.bf16.mxu0 0
  %3168 = vmatpush1.bf16.msra.mxu0 0
  %3169 = vmatprep.mubr.bf16.mxu0 0
  %3170 = vmatmul.mubr.bf16.gmra.mrb[0].mxu0 %v2929
  %v3171 = vpop.f32.mrb[0].mxu0
  %v3172 = vadd.f32 0.0, %v3171
  %v3173 = vpop.f32.mrb[0].mxu0
  %v3174 = vadd.f32 0.0, %v3173
  %v3175 = vpop.f32.mrb[0].mxu0
  %v3176 = vadd.f32 0.0, %v3175
  %v3177 = vpop.f32.mrb[0].mxu0
  %v3178 = vadd.f32 0.0, %v3177
  %3179 = vdwg.mxu0
  %3180 = vmatprep.subr.bf16.mxu0 %v3076
  %3181 = vmatpush1.bf16.msra.mxu0 %v3075
  %3182 = vmatprep.subr.bf16.mxu0 %v3080
  %3183 = vmatpush1.bf16.msra.mxu0 %v3079
  %3184 = vmatprep.subr.bf16.mxu0 %v3084
  %3185 = vmatpush1.bf16.msra.mxu0 %v3083
  %3186 = vmatprep.subr.bf16.mxu0 %v3088
  %3187 = vmatpush1.bf16.msra.mxu0 %v3087
  %3188 = vmatprep.subr.bf16.mxu0 %v3092
  %3189 = vmatpush1.bf16.msra.mxu0 %v3091
  %3190 = vmatprep.subr.bf16.mxu0 %v3096
  %3191 = vmatpush1.bf16.msra.mxu0 %v3095
  %3192 = vmatprep.subr.bf16.mxu0 %v3100
  %3193 = vmatpush1.bf16.msra.mxu0 %v3099
  %3194 = vmatprep.subr.bf16.mxu0 %v3104
  %3195 = vmatpush1.bf16.msra.mxu0 %v3103
  %3196 = vmatprep.subr.bf16.mxu0 0
  %3197 = vmatpush1.bf16.msra.mxu0 0
  %3198 = vmatprep.subr.bf16.mxu0 0
  %3199 = vmatpush1.bf16.msra.mxu0 0
  %3200 = vmatprep.subr.bf16.mxu0 0
  %3201 = vmatpush1.bf16.msra.mxu0 0
  %3202 = vmatprep.subr.bf16.mxu0 0
  %3203 = vmatpush1.bf16.msra.mxu0 0
  %3204 = vmatprep.subr.bf16.mxu0 0
  %3205 = vmatpush1.bf16.msra.mxu0 0
  %3206 = vmatprep.subr.bf16.mxu0 0
  %3207 = vmatpush1.bf16.msra.mxu0 0
  %3208 = vmatprep.subr.bf16.mxu0 0
  %3209 = vmatpush1.bf16.msra.mxu0 0
  %3210 = vmatprep.subr.bf16.mxu0 0
  %3211 = vmatpush1.bf16.msra.mxu0 0
  %3212 = vmatprep.mubr.bf16.mxu0 0
  %3213 = vmatmul.mubr.bf16.gmra.mrb[0].mxu0 %v2929
  %v3214 = vpop.f32.mrb[0].mxu0
  %v3215 = vadd.f32 0.0, %v3214
  %v3216 = vpop.f32.mrb[0].mxu0
  %v3217 = vadd.f32 0.0, %v3216
  %v3218 = vpop.f32.mrb[0].mxu0
  %v3219 = vadd.f32 0.0, %v3218
  %v3220 = vpop.f32.mrb[0].mxu0
  %v3221 = vadd.f32 0.0, %v3220
  %3222 = vdwg.mxu0
  %v3223 = vadd.f32 %v2937, %v3172
  %v3224 = vadd.f32 %v2938, %v3174
  %v3225 = vadd.f32 %v2939, %v3215
  %v3226 = vadd.f32 %v2940, %v3217
  %v3227 = vadd.f32 %v2941, %v3176
  %v3228 = vadd.f32 %v2942, %v3178
  %v3229 = vadd.f32 %v2943, %v3219
  %v3230 = vadd.f32 %v2944, %v3221
  %v3231 = vxor.u32 %v3223, 2147483648
  %v3232 = vxor.u32 %v3227, 2147483648
  %v3233 = vmul.f32 %v3231, 1.442695
  %v3234 = vpow.pop %v3233
  %v3235 = vmul.f32 %v3232, 1.442695
  %v3236 = vpow.pop %v3235
  %v3237 = vadd.f32 %v3234, 1.0
  %v3238 = vadd.f32 %v3236, 1.0
  %v3239 = vrcp.pop %v3237
  %v3240 = vmul.f32 1.0, %v3239
  %v3241 = vrcp.pop %v3238
  %v3242 = vmul.f32 1.0, %v3241
  %v3243 = vxor.u32 %v3224, 2147483648
  %v3244 = vxor.u32 %v3228, 2147483648
  %v3245 = vmul.f32 %v3243, 1.442695
  %v3246 = vpow.pop %v3245
  %v3247 = vmul.f32 %v3244, 1.442695
  %v3248 = vpow.pop %v3247
  %v3249 = vadd.f32 %v3246, 1.0
  %v3250 = vadd.f32 %v3248, 1.0
  %v3251 = vrcp.pop %v3249
  %v3252 = vmul.f32 1.0, %v3251
  %v3253 = vrcp.pop %v3250
  %v3254 = vmul.f32 1.0, %v3253
  %v3255 = vtanh.pop %v3225
  %v3256 = vtanh.pop %v3229
  %v3257 = vxor.u32 %v3226, 2147483648
  %v3258 = vxor.u32 %v3230, 2147483648
  %v3259 = vmul.f32 %v3257, 1.442695
  %v3260 = vpow.pop %v3259
  %v3261 = vmul.f32 %v3258, 1.442695
  %v3262 = vpow.pop %v3261
  %v3263 = vadd.f32 %v3260, 1.0
  %v3264 = vadd.f32 %v3262, 1.0
  %v3265 = vrcp.pop %v3263
  %v3266 = vmul.f32 1.0, %v3265
  %v3267 = vrcp.pop %v3264
  %v3268 = vmul.f32 1.0, %v3267
  %v3269 = vmul.f32 %v3252, %v2930
  %v3270 = vmul.f32 %v3254, %v2931
  %v3271 = vmul.f32 %v3240, %v3255
  %v3272 = vmul.f32 %v3242, %v3256
  %v3273 = vadd.f32 %v3269, %v3271
  %v3274 = vadd.f32 %v3270, %v3272
  %v3275 = vtanh.pop %v3273
  %v3276 = vtanh.pop %v3274
  %v3277 = vmul.f32 %v3266, %v3275
  %v3278 = vmul.f32 %v3268, %v3276
  %v3279 = vpack.c.bf16 %v3278, %v3277
  %3280 = vst [vmem:[#allocation3] sm:$0xff] %v3273
  %3281 = vst [vmem:[#allocation3 + $0x8] sm:$0xff] %v3274
  %3282 = vst [vmem:[#allocation2] sm:$0xff] %v3279
  %v3284 = vunpack.c.l.b16 %v3279
  %v3285 = vunpack.c.h.b16 %v3279
  %v3286 = vpack.c.b16 %v3284, %v3284
  %v3287 = vpack.c.b16 %v3285, %v3285
  %s3290 = scalar_lea.vmem %s2, 64
  %3291 = vst [vmem:[%s3290] sm:$0xf] %v3286
  %3292 = vst [vmem:[%s3290 + $0x4] sm:$0xf] %v3287
  %v3293 = vld [vmem:[#allocation2] sm:$0xff]
  %v3294 = vld [vmem:[#allocation3] sm:$0xff]
  %v3295 = vld [vmem:[#allocation3 + $0x8] sm:$0xff]
  %s3296 = scalar_lea.vmem %s0, 288
  %v3297 = vld [vmem:[%s3296] sm:$0xff]
  %v3298 = vld [vmem:[%s3296 + $0x8] sm:$0xff]
  %v3299 = vld [vmem:[%s3296 + $0x10] sm:$0xff]
  %v3300 = vld [vmem:[%s3296 + $0x18] sm:$0xff]
  %v3301 = vunpack.c.l.bf16 %v3297
  %v3302 = vunpack.c.h.bf16 %v3297
  %v3303 = vunpack.c.l.bf16 %v3298
  %v3304 = vunpack.c.h.bf16 %v3298
  %v3305 = vunpack.c.l.bf16 %v3299
  %v3306 = vunpack.c.h.bf16 %v3299
  %v3307 = vunpack.c.l.bf16 %v3300
  %v3308 = vunpack.c.h.bf16 %v3300
  %v3309 = vld [vmem:[%s1] sm:$0xff]
  %v3310 = vld [vmem:[%s1 + $0x8] sm:$0xff]
  %v3311 = vld [vmem:[%s1 + $0x10] sm:$0xff]
  %v3312 = vld [vmem:[%s1 + $0x18] sm:$0xff]
  %v3313 = vld [vmem:[%s1 + $0x20] sm:$0xff]
  %v3314 = vld [vmem:[%s1 + $0x28] sm:$0xff]
  %v3315 = vld [vmem:[%s1 + $0x30] sm:$0xff]
  %v3316 = vld [vmem:[%s1 + $0x38] sm:$0xff]
  %v3317 = vld [vmem:[%s1 + $0x40] sm:$0xff]
  %v3318 = vld [vmem:[%s1 + $0x48] sm:$0xff]
  %v3319 = vld [vmem:[%s1 + $0x50] sm:$0xff]
  %v3320 = vld [vmem:[%s1 + $0x58] sm:$0xff]
  %v3321 = vld [vmem:[%s1 + $0x60] sm:$0xff]
  %v3322 = vld [vmem:[%s1 + $0x68] sm:$0xff]
  %v3323 = vld [vmem:[%s1 + $0x70] sm:$0xff]
  %v3324 = vld [vmem:[%s1 + $0x78] sm:$0xff]
  %v3325 = vld [vmem:[%s1 + $0x80] sm:$0xff]
  %v3326 = vld [vmem:[%s1 + $0x88] sm:$0xff]
  %v3327 = vld [vmem:[%s1 + $0x90] sm:$0xff]
  %v3328 = vld [vmem:[%s1 + $0x98] sm:$0xff]
  %v3329 = vld [vmem:[%s1 + $0xa0] sm:$0xff]
  %v3330 = vld [vmem:[%s1 + $0xa8] sm:$0xff]
  %v3331 = vld [vmem:[%s1 + $0xb0] sm:$0xff]
  %v3332 = vld [vmem:[%s1 + $0xb8] sm:$0xff]
  %v3333 = vld [vmem:[%s1 + $0xc0] sm:$0xff]
  %v3334 = vld [vmem:[%s1 + $0xc8] sm:$0xff]
  %v3335 = vld [vmem:[%s1 + $0xd0] sm:$0xff]
  %v3336 = vld [vmem:[%s1 + $0xd8] sm:$0xff]
  %v3337 = vld [vmem:[%s1 + $0xe0] sm:$0xff]
  %v3338 = vld [vmem:[%s1 + $0xe8] sm:$0xff]
  %v3339 = vld [vmem:[%s1 + $0xf0] sm:$0xff]
  %v3340 = vld [vmem:[%s1 + $0xf8] sm:$0xff]
  %v3373 = vunpack.c.l.b16 %v3309
  %v3374 = vunpack.c.h.b16 %v3309
  %v3375 = vunpack.c.l.b16 %v3310
  %v3376 = vunpack.c.h.b16 %v3310
  %v3377 = vunpack.c.l.b16 %v3311
  %v3378 = vunpack.c.h.b16 %v3311
  %v3379 = vunpack.c.l.b16 %v3312
  %v3380 = vunpack.c.h.b16 %v3312
  %v3381 = vunpack.c.l.b16 %v3313
  %v3382 = vunpack.c.h.b16 %v3313
  %v3383 = vunpack.c.l.b16 %v3314
  %v3384 = vunpack.c.h.b16 %v3314
  %v3385 = vunpack.c.l.b16 %v3315
  %v3386 = vunpack.c.h.b16 %v3315
  %v3387 = vunpack.c.l.b16 %v3316
  %v3388 = vunpack.c.h.b16 %v3316
  %v3389 = vunpack.c.l.b16 %v3317
  %v3390 = vunpack.c.h.b16 %v3317
  %v3391 = vunpack.c.l.b16 %v3318
  %v3392 = vunpack.c.h.b16 %v3318
  %v3393 = vunpack.c.l.b16 %v3319
  %v3394 = vunpack.c.h.b16 %v3319
  %v3395 = vunpack.c.l.b16 %v3320
  %v3396 = vunpack.c.h.b16 %v3320
  %v3397 = vunpack.c.l.b16 %v3321
  %v3398 = vunpack.c.h.b16 %v3321
  %v3399 = vunpack.c.l.b16 %v3322
  %v3400 = vunpack.c.h.b16 %v3322
  %v3401 = vunpack.c.l.b16 %v3323
  %v3402 = vunpack.c.h.b16 %v3323
  %v3403 = vunpack.c.l.b16 %v3324
  %v3404 = vunpack.c.h.b16 %v3324
  %v3405 = vunpack.c.l.b16 %v3325
  %v3406 = vunpack.c.h.b16 %v3325
  %v3407 = vunpack.c.l.b16 %v3326
  %v3408 = vunpack.c.h.b16 %v3326
  %v3409 = vunpack.c.l.b16 %v3327
  %v3410 = vunpack.c.h.b16 %v3327
  %v3411 = vunpack.c.l.b16 %v3328
  %v3412 = vunpack.c.h.b16 %v3328
  %v3413 = vunpack.c.l.b16 %v3329
  %v3414 = vunpack.c.h.b16 %v3329
  %v3415 = vunpack.c.l.b16 %v3330
  %v3416 = vunpack.c.h.b16 %v3330
  %v3417 = vunpack.c.l.b16 %v3331
  %v3418 = vunpack.c.h.b16 %v3331
  %v3419 = vunpack.c.l.b16 %v3332
  %v3420 = vunpack.c.h.b16 %v3332
  %v3421 = vunpack.c.l.b16 %v3333
  %v3422 = vunpack.c.h.b16 %v3333
  %v3423 = vunpack.c.l.b16 %v3334
  %v3424 = vunpack.c.h.b16 %v3334
  %v3425 = vunpack.c.l.b16 %v3335
  %v3426 = vunpack.c.h.b16 %v3335
  %v3427 = vunpack.c.l.b16 %v3336
  %v3428 = vunpack.c.h.b16 %v3336
  %v3429 = vunpack.c.l.b16 %v3337
  %v3430 = vunpack.c.h.b16 %v3337
  %v3431 = vunpack.c.l.b16 %v3338
  %v3432 = vunpack.c.h.b16 %v3338
  %v3433 = vunpack.c.l.b16 %v3339
  %v3434 = vunpack.c.h.b16 %v3339
  %v3435 = vunpack.c.l.b16 %v3340
  %v3436 = vunpack.c.h.b16 %v3340
  %v3437 = vpack.c.b16 %v3377, %v3373
  %v3438 = vpack.c.b16 %v3378, %v3374
  %v3439 = vpack.c.b16 %v3379, %v3375
  %v3440 = vpack.c.b16 %v3380, %v3376
  %v3441 = vpack.c.b16 %v3385, %v3381
  %v3442 = vpack.c.b16 %v3386, %v3382
  %v3443 = vpack.c.b16 %v3387, %v3383
  %v3444 = vpack.c.b16 %v3388, %v3384
  %v3445 = vpack.c.b16 %v3393, %v3389
  %v3446 = vpack.c.b16 %v3394, %v3390
  %v3447 = vpack.c.b16 %v3395, %v3391
  %v3448 = vpack.c.b16 %v3396, %v3392
  %v3449 = vpack.c.b16 %v3401, %v3397
  %v3450 = vpack.c.b16 %v3402, %v3398
  %v3451 = vpack.c.b16 %v3403, %v3399
  %v3452 = vpack.c.b16 %v3404, %v3400
  %v3453 = vpack.c.b16 %v3409, %v3405
  %v3454 = vpack.c.b16 %v3410, %v3406
  %v3455 = vpack.c.b16 %v3411, %v3407
  %v3456 = vpack.c.b16 %v3412, %v3408
  %v3457 = vpack.c.b16 %v3417, %v3413
  %v3458 = vpack.c.b16 %v3418, %v3414
  %v3459 = vpack.c.b16 %v3419, %v3415
  %v3460 = vpack.c.b16 %v3420, %v3416
  %v3461 = vpack.c.b16 %v3425, %v3421
  %v3462 = vpack.c.b16 %v3426, %v3422
  %v3463 = vpack.c.b16 %v3427, %v3423
  %v3464 = vpack.c.b16 %v3428, %v3424
  %v3465 = vpack.c.b16 %v3433, %v3429
  %v3466 = vpack.c.b16 %v3434, %v3430
  %v3467 = vpack.c.b16 %v3435, %v3431
  %v3468 = vpack.c.b16 %v3436, %v3432
  %3501 = vmatprep.subr.bf16.mxu0 %v3438
  %3502 = vmatpush1.bf16.msra.mxu0 %v3437
  %3503 = vmatprep.subr.bf16.mxu0 %v3442
  %3504 = vmatpush1.bf16.msra.mxu0 %v3441
  %3505 = vmatprep.subr.bf16.mxu0 %v3446
  %3506 = vmatpush1.bf16.msra.mxu0 %v3445
  %3507 = vmatprep.subr.bf16.mxu0 %v3450
  %3508 = vmatpush1.bf16.msra.mxu0 %v3449
  %3509 = vmatprep.subr.bf16.mxu0 %v3454
  %3510 = vmatpush1.bf16.msra.mxu0 %v3453
  %3511 = vmatprep.subr.bf16.mxu0 %v3458
  %3512 = vmatpush1.bf16.msra.mxu0 %v3457
  %3513 = vmatprep.subr.bf16.mxu0 %v3462
  %3514 = vmatpush1.bf16.msra.mxu0 %v3461
  %3515 = vmatprep.subr.bf16.mxu0 %v3466
  %3516 = vmatpush1.bf16.msra.mxu0 %v3465
  %3517 = vmatprep.subr.bf16.mxu0 0
  %3518 = vmatpush1.bf16.msra.mxu0 0
  %3519 = vmatprep.subr.bf16.mxu0 0
  %3520 = vmatpush1.bf16.msra.mxu0 0
  %3521 = vmatprep.subr.bf16.mxu0 0
  %3522 = vmatpush1.bf16.msra.mxu0 0
  %3523 = vmatprep.subr.bf16.mxu0 0
  %3524 = vmatpush1.bf16.msra.mxu0 0
  %3525 = vmatprep.subr.bf16.mxu0 0
  %3526 = vmatpush1.bf16.msra.mxu0 0
  %3527 = vmatprep.subr.bf16.mxu0 0
  %3528 = vmatpush1.bf16.msra.mxu0 0
  %3529 = vmatprep.subr.bf16.mxu0 0
  %3530 = vmatpush1.bf16.msra.mxu0 0
  %3531 = vmatprep.subr.bf16.mxu0 0
  %3532 = vmatpush1.bf16.msra.mxu0 0
  %3533 = vmatprep.mubr.bf16.mxu0 0
  %3534 = vmatmul.mubr.bf16.gmra.mrb[0].mxu0 %v3293
  %v3535 = vpop.f32.mrb[0].mxu0
  %v3536 = vadd.f32 0.0, %v3535
  %v3537 = vpop.f32.mrb[0].mxu0
  %v3538 = vadd.f32 0.0, %v3537
  %v3539 = vpop.f32.mrb[0].mxu0
  %v3540 = vadd.f32 0.0, %v3539
  %v3541 = vpop.f32.mrb[0].mxu0
  %v3542 = vadd.f32 0.0, %v3541
  %3543 = vdwg.mxu0
  %3544 = vmatprep.subr.bf16.mxu0 %v3440
  %3545 = vmatpush1.bf16.msra.mxu0 %v3439
  %3546 = vmatprep.subr.bf16.mxu0 %v3444
  %3547 = vmatpush1.bf16.msra.mxu0 %v3443
  %3548 = vmatprep.subr.bf16.mxu0 %v3448
  %3549 = vmatpush1.bf16.msra.mxu0 %v3447
  %3550 = vmatprep.subr.bf16.mxu0 %v3452
  %3551 = vmatpush1.bf16.msra.mxu0 %v3451
  %3552 = vmatprep.subr.bf16.mxu0 %v3456
  %3553 = vmatpush1.bf16.msra.mxu0 %v3455
  %3554 = vmatprep.subr.bf16.mxu0 %v3460
  %3555 = vmatpush1.bf16.msra.mxu0 %v3459
  %3556 = vmatprep.subr.bf16.mxu0 %v3464
  %3557 = vmatpush1.bf16.msra.mxu0 %v3463
  %3558 = vmatprep.subr.bf16.mxu0 %v3468
  %3559 = vmatpush1.bf16.msra.mxu0 %v3467
  %3560 = vmatprep.subr.bf16.mxu0 0
  %3561 = vmatpush1.bf16.msra.mxu0 0
  %3562 = vmatprep.subr.bf16.mxu0 0
  %3563 = vmatpush1.bf16.msra.mxu0 0
  %3564 = vmatprep.subr.bf16.mxu0 0
  %3565 = vmatpush1.bf16.msra.mxu0 0
  %3566 = vmatprep.subr.bf16.mxu0 0
  %3567 = vmatpush1.bf16.msra.mxu0 0
  %3568 = vmatprep.subr.bf16.mxu0 0
  %3569 = vmatpush1.bf16.msra.mxu0 0
  %3570 = vmatprep.subr.bf16.mxu0 0
  %3571 = vmatpush1.bf16.msra.mxu0 0
  %3572 = vmatprep.subr.bf16.mxu0 0
  %3573 = vmatpush1.bf16.msra.mxu0 0
  %3574 = vmatprep.subr.bf16.mxu0 0
  %3575 = vmatpush1.bf16.msra.mxu0 0
  %3576 = vmatprep.mubr.bf16.mxu0 0
  %3577 = vmatmul.mubr.bf16.gmra.mrb[0].mxu0 %v3293
  %v3578 = vpop.f32.mrb[0].mxu0
  %v3579 = vadd.f32 0.0, %v3578
  %v3580 = vpop.f32.mrb[0].mxu0
  %v3581 = vadd.f32 0.0, %v3580
  %v3582 = vpop.f32.mrb[0].mxu0
  %v3583 = vadd.f32 0.0, %v3582
  %v3584 = vpop.f32.mrb[0].mxu0
  %v3585 = vadd.f32 0.0, %v3584
  %3586 = vdwg.mxu0
  %v3587 = vadd.f32 %v3301, %v3536
  %v3588 = vadd.f32 %v3302, %v3538
  %v3589 = vadd.f32 %v3303, %v3579
  %v3590 = vadd.f32 %v3304, %v3581
  %v3591 = vadd.f32 %v3305, %v3540
  %v3592 = vadd.f32 %v3306, %v3542
  %v3593 = vadd.f32 %v3307, %v3583
  %v3594 = vadd.f32 %v3308, %v3585
  %v3595 = vxor.u32 %v3587, 2147483648
  %v3596 = vxor.u32 %v3591, 2147483648
  %v3597 = vmul.f32 %v3595, 1.442695
  %v3598 = vpow.pop %v3597
  %v3599 = vmul.f32 %v3596, 1.442695
  %v3600 = vpow.pop %v3599
  %v3601 = vadd.f32 %v3598, 1.0
  %v3602 = vadd.f32 %v3600, 1.0
  %v3603 = vrcp.pop %v3601
  %v3604 = vmul.f32 1.0, %v3603
  %v3605 = vrcp.pop %v3602
  %v3606 = vmul.f32 1.0, %v3605
  %v3607 = vxor.u32 %v3588, 2147483648
  %v3608 = vxor.u32 %v3592, 2147483648
  %v3609 = vmul.f32 %v3607, 1.442695
  %v3610 = vpow.pop %v3609
  %v3611 = vmul.f32 %v3608, 1.442695
  %v3612 = vpow.pop %v3611
  %v3613 = vadd.f32 %v3610, 1.0
  %v3614 = vadd.f32 %v3612, 1.0
  %v3615 = vrcp.pop %v3613
  %v3616 = vmul.f32 1.0, %v3615
  %v3617 = vrcp.pop %v3614
  %v3618 = vmul.f32 1.0, %v3617
  %v3619 = vtanh.pop %v3589
  %v3620 = vtanh.pop %v3593
  %v3621 = vxor.u32 %v3590, 2147483648
  %v3622 = vxor.u32 %v3594, 2147483648
  %v3623 = vmul.f32 %v3621, 1.442695
  %v3624 = vpow.pop %v3623
  %v3625 = vmul.f32 %v3622, 1.442695
  %v3626 = vpow.pop %v3625
  %v3627 = vadd.f32 %v3624, 1.0
  %v3628 = vadd.f32 %v3626, 1.0
  %v3629 = vrcp.pop %v3627
  %v3630 = vmul.f32 1.0, %v3629
  %v3631 = vrcp.pop %v3628
  %v3632 = vmul.f32 1.0, %v3631
  %v3633 = vmul.f32 %v3616, %v3294
  %v3634 = vmul.f32 %v3618, %v3295
  %v3635 = vmul.f32 %v3604, %v3619
  %v3636 = vmul.f32 %v3606, %v3620
  %v3637 = vadd.f32 %v3633, %v3635
  %v3638 = vadd.f32 %v3634, %v3636
  %v3639 = vtanh.pop %v3637
  %v3640 = vtanh.pop %v3638
  %v3641 = vmul.f32 %v3630, %v3639
  %v3642 = vmul.f32 %v3632, %v3640
  %v3643 = vpack.c.bf16 %v3642, %v3641
  %3644 = vst [vmem:[#allocation3] sm:$0xff] %v3637
  %3645 = vst [vmem:[#allocation3 + $0x8] sm:$0xff] %v3638
  %3646 = vst [vmem:[#allocation2] sm:$0xff] %v3643
  %v3648 = vunpack.c.l.b16 %v3643
  %v3649 = vunpack.c.h.b16 %v3643
  %v3650 = vpack.c.b16 %v3648, %v3648
  %v3651 = vpack.c.b16 %v3649, %v3649
  %s3654 = scalar_lea.vmem %s2, 72
  %3655 = vst [vmem:[%s3654] sm:$0xf] %v3650
  %3656 = vst [vmem:[%s3654 + $0x4] sm:$0xf] %v3651
  %v3657 = vld [vmem:[#allocation2] sm:$0xff]
  %v3658 = vld [vmem:[#allocation3] sm:$0xff]
  %v3659 = vld [vmem:[#allocation3 + $0x8] sm:$0xff]
  %s3660 = scalar_lea.vmem %s0, 320
  %v3661 = vld [vmem:[%s3660] sm:$0xff]
  %v3662 = vld [vmem:[%s3660 + $0x8] sm:$0xff]
  %v3663 = vld [vmem:[%s3660 + $0x10] sm:$0xff]
  %v3664 = vld [vmem:[%s3660 + $0x18] sm:$0xff]
  %v3665 = vunpack.c.l.bf16 %v3661
  %v3666 = vunpack.c.h.bf16 %v3661
  %v3667 = vunpack.c.l.bf16 %v3662
  %v3668 = vunpack.c.h.bf16 %v3662
  %v3669 = vunpack.c.l.bf16 %v3663
  %v3670 = vunpack.c.h.bf16 %v3663
  %v3671 = vunpack.c.l.bf16 %v3664
  %v3672 = vunpack.c.h.bf16 %v3664
  %v3673 = vld [vmem:[%s1] sm:$0xff]
  %v3674 = vld [vmem:[%s1 + $0x8] sm:$0xff]
  %v3675 = vld [vmem:[%s1 + $0x10] sm:$0xff]
  %v3676 = vld [vmem:[%s1 + $0x18] sm:$0xff]
  %v3677 = vld [vmem:[%s1 + $0x20] sm:$0xff]
  %v3678 = vld [vmem:[%s1 + $0x28] sm:$0xff]
  %v3679 = vld [vmem:[%s1 + $0x30] sm:$0xff]
  %v3680 = vld [vmem:[%s1 + $0x38] sm:$0xff]
  %v3681 = vld [vmem:[%s1 + $0x40] sm:$0xff]
  %v3682 = vld [vmem:[%s1 + $0x48] sm:$0xff]
  %v3683 = vld [vmem:[%s1 + $0x50] sm:$0xff]
  %v3684 = vld [vmem:[%s1 + $0x58] sm:$0xff]
  %v3685 = vld [vmem:[%s1 + $0x60] sm:$0xff]
  %v3686 = vld [vmem:[%s1 + $0x68] sm:$0xff]
  %v3687 = vld [vmem:[%s1 + $0x70] sm:$0xff]
  %v3688 = vld [vmem:[%s1 + $0x78] sm:$0xff]
  %v3689 = vld [vmem:[%s1 + $0x80] sm:$0xff]
  %v3690 = vld [vmem:[%s1 + $0x88] sm:$0xff]
  %v3691 = vld [vmem:[%s1 + $0x90] sm:$0xff]
  %v3692 = vld [vmem:[%s1 + $0x98] sm:$0xff]
  %v3693 = vld [vmem:[%s1 + $0xa0] sm:$0xff]
  %v3694 = vld [vmem:[%s1 + $0xa8] sm:$0xff]
  %v3695 = vld [vmem:[%s1 + $0xb0] sm:$0xff]
  %v3696 = vld [vmem:[%s1 + $0xb8] sm:$0xff]
  %v3697 = vld [vmem:[%s1 + $0xc0] sm:$0xff]
  %v3698 = vld [vmem:[%s1 + $0xc8] sm:$0xff]
  %v3699 = vld [vmem:[%s1 + $0xd0] sm:$0xff]
  %v3700 = vld [vmem:[%s1 + $0xd8] sm:$0xff]
  %v3701 = vld [vmem:[%s1 + $0xe0] sm:$0xff]
  %v3702 = vld [vmem:[%s1 + $0xe8] sm:$0xff]
  %v3703 = vld [vmem:[%s1 + $0xf0] sm:$0xff]
  %v3704 = vld [vmem:[%s1 + $0xf8] sm:$0xff]
  %v3737 = vunpack.c.l.b16 %v3673
  %v3738 = vunpack.c.h.b16 %v3673
  %v3739 = vunpack.c.l.b16 %v3674
  %v3740 = vunpack.c.h.b16 %v3674
  %v3741 = vunpack.c.l.b16 %v3675
  %v3742 = vunpack.c.h.b16 %v3675
  %v3743 = vunpack.c.l.b16 %v3676
  %v3744 = vunpack.c.h.b16 %v3676
  %v3745 = vunpack.c.l.b16 %v3677
  %v3746 = vunpack.c.h.b16 %v3677
  %v3747 = vunpack.c.l.b16 %v3678
  %v3748 = vunpack.c.h.b16 %v3678
  %v3749 = vunpack.c.l.b16 %v3679
  %v3750 = vunpack.c.h.b16 %v3679
  %v3751 = vunpack.c.l.b16 %v3680
  %v3752 = vunpack.c.h.b16 %v3680
  %v3753 = vunpack.c.l.b16 %v3681
  %v3754 = vunpack.c.h.b16 %v3681
  %v3755 = vunpack.c.l.b16 %v3682
  %v3756 = vunpack.c.h.b16 %v3682
  %v3757 = vunpack.c.l.b16 %v3683
  %v3758 = vunpack.c.h.b16 %v3683
  %v3759 = vunpack.c.l.b16 %v3684
  %v3760 = vunpack.c.h.b16 %v3684
  %v3761 = vunpack.c.l.b16 %v3685
  %v3762 = vunpack.c.h.b16 %v3685
  %v3763 = vunpack.c.l.b16 %v3686
  %v3764 = vunpack.c.h.b16 %v3686
  %v3765 = vunpack.c.l.b16 %v3687
  %v3766 = vunpack.c.h.b16 %v3687
  %v3767 = vunpack.c.l.b16 %v3688
  %v3768 = vunpack.c.h.b16 %v3688
  %v3769 = vunpack.c.l.b16 %v3689
  %v3770 = vunpack.c.h.b16 %v3689
  %v3771 = vunpack.c.l.b16 %v3690
  %v3772 = vunpack.c.h.b16 %v3690
  %v3773 = vunpack.c.l.b16 %v3691
  %v3774 = vunpack.c.h.b16 %v3691
  %v3775 = vunpack.c.l.b16 %v3692
  %v3776 = vunpack.c.h.b16 %v3692
  %v3777 = vunpack.c.l.b16 %v3693
  %v3778 = vunpack.c.h.b16 %v3693
  %v3779 = vunpack.c.l.b16 %v3694
  %v3780 = vunpack.c.h.b16 %v3694
  %v3781 = vunpack.c.l.b16 %v3695
  %v3782 = vunpack.c.h.b16 %v3695
  %v3783 = vunpack.c.l.b16 %v3696
  %v3784 = vunpack.c.h.b16 %v3696
  %v3785 = vunpack.c.l.b16 %v3697
  %v3786 = vunpack.c.h.b16 %v3697
  %v3787 = vunpack.c.l.b16 %v3698
  %v3788 = vunpack.c.h.b16 %v3698
  %v3789 = vunpack.c.l.b16 %v3699
  %v3790 = vunpack.c.h.b16 %v3699
  %v3791 = vunpack.c.l.b16 %v3700
  %v3792 = vunpack.c.h.b16 %v3700
  %v3793 = vunpack.c.l.b16 %v3701
  %v3794 = vunpack.c.h.b16 %v3701
  %v3795 = vunpack.c.l.b16 %v3702
  %v3796 = vunpack.c.h.b16 %v3702
  %v3797 = vunpack.c.l.b16 %v3703
  %v3798 = vunpack.c.h.b16 %v3703
  %v3799 = vunpack.c.l.b16 %v3704
  %v3800 = vunpack.c.h.b16 %v3704
  %v3801 = vpack.c.b16 %v3741, %v3737
  %v3802 = vpack.c.b16 %v3742, %v3738
  %v3803 = vpack.c.b16 %v3743, %v3739
  %v3804 = vpack.c.b16 %v3744, %v3740
  %v3805 = vpack.c.b16 %v3749, %v3745
  %v3806 = vpack.c.b16 %v3750, %v3746
  %v3807 = vpack.c.b16 %v3751, %v3747
  %v3808 = vpack.c.b16 %v3752, %v3748
  %v3809 = vpack.c.b16 %v3757, %v3753
  %v3810 = vpack.c.b16 %v3758, %v3754
  %v3811 = vpack.c.b16 %v3759, %v3755
  %v3812 = vpack.c.b16 %v3760, %v3756
  %v3813 = vpack.c.b16 %v3765, %v3761
  %v3814 = vpack.c.b16 %v3766, %v3762
  %v3815 = vpack.c.b16 %v3767, %v3763
  %v3816 = vpack.c.b16 %v3768, %v3764
  %v3817 = vpack.c.b16 %v3773, %v3769
  %v3818 = vpack.c.b16 %v3774, %v3770
  %v3819 = vpack.c.b16 %v3775, %v3771
  %v3820 = vpack.c.b16 %v3776, %v3772
  %v3821 = vpack.c.b16 %v3781, %v3777
  %v3822 = vpack.c.b16 %v3782, %v3778
  %v3823 = vpack.c.b16 %v3783, %v3779
  %v3824 = vpack.c.b16 %v3784, %v3780
  %v3825 = vpack.c.b16 %v3789, %v3785
  %v3826 = vpack.c.b16 %v3790, %v3786
  %v3827 = vpack.c.b16 %v3791, %v3787
  %v3828 = vpack.c.b16 %v3792, %v3788
  %v3829 = vpack.c.b16 %v3797, %v3793
  %v3830 = vpack.c.b16 %v3798, %v3794
  %v3831 = vpack.c.b16 %v3799, %v3795
  %v3832 = vpack.c.b16 %v3800, %v3796
  %3865 = vmatprep.subr.bf16.mxu0 %v3802
  %3866 = vmatpush1.bf16.msra.mxu0 %v3801
  %3867 = vmatprep.subr.bf16.mxu0 %v3806
  %3868 = vmatpush1.bf16.msra.mxu0 %v3805
  %3869 = vmatprep.subr.bf16.mxu0 %v3810
  %3870 = vmatpush1.bf16.msra.mxu0 %v3809
  %3871 = vmatprep.subr.bf16.mxu0 %v3814
  %3872 = vmatpush1.bf16.msra.mxu0 %v3813
  %3873 = vmatprep.subr.bf16.mxu0 %v3818
  %3874 = vmatpush1.bf16.msra.mxu0 %v3817
  %3875 = vmatprep.subr.bf16.mxu0 %v3822
  %3876 = vmatpush1.bf16.msra.mxu0 %v3821
  %3877 = vmatprep.subr.bf16.mxu0 %v3826
  %3878 = vmatpush1.bf16.msra.mxu0 %v3825
  %3879 = vmatprep.subr.bf16.mxu0 %v3830
  %3880 = vmatpush1.bf16.msra.mxu0 %v3829
  %3881 = vmatprep.subr.bf16.mxu0 0
  %3882 = vmatpush1.bf16.msra.mxu0 0
  %3883 = vmatprep.subr.bf16.mxu0 0
  %3884 = vmatpush1.bf16.msra.mxu0 0
  %3885 = vmatprep.subr.bf16.mxu0 0
  %3886 = vmatpush1.bf16.msra.mxu0 0
  %3887 = vmatprep.subr.bf16.mxu0 0
  %3888 = vmatpush1.bf16.msra.mxu0 0
  %3889 = vmatprep.subr.bf16.mxu0 0
  %3890 = vmatpush1.bf16.msra.mxu0 0
  %3891 = vmatprep.subr.bf16.mxu0 0
  %3892 = vmatpush1.bf16.msra.mxu0 0
  %3893 = vmatprep.subr.bf16.mxu0 0
  %3894 = vmatpush1.bf16.msra.mxu0 0
  %3895 = vmatprep.subr.bf16.mxu0 0
  %3896 = vmatpush1.bf16.msra.mxu0 0
  %3897 = vmatprep.mubr.bf16.mxu0 0
  %3898 = vmatmul.mubr.bf16.gmra.mrb[0].mxu0 %v3657
  %v3899 = vpop.f32.mrb[0].mxu0
  %v3900 = vadd.f32 0.0, %v3899
  %v3901 = vpop.f32.mrb[0].mxu0
  %v3902 = vadd.f32 0.0, %v3901
  %v3903 = vpop.f32.mrb[0].mxu0
  %v3904 = vadd.f32 0.0, %v3903
  %v3905 = vpop.f32.mrb[0].mxu0
  %v3906 = vadd.f32 0.0, %v3905
  %3907 = vdwg.mxu0
  %3908 = vmatprep.subr.bf16.mxu0 %v3804
  %3909 = vmatpush1.bf16.msra.mxu0 %v3803
  %3910 = vmatprep.subr.bf16.mxu0 %v3808
  %3911 = vmatpush1.bf16.msra.mxu0 %v3807
  %3912 = vmatprep.subr.bf16.mxu0 %v3812
  %3913 = vmatpush1.bf16.msra.mxu0 %v3811
  %3914 = vmatprep.subr.bf16.mxu0 %v3816
  %3915 = vmatpush1.bf16.msra.mxu0 %v3815
  %3916 = vmatprep.subr.bf16.mxu0 %v3820
  %3917 = vmatpush1.bf16.msra.mxu0 %v3819
  %3918 = vmatprep.subr.bf16.mxu0 %v3824
  %3919 = vmatpush1.bf16.msra.mxu0 %v3823
  %3920 = vmatprep.subr.bf16.mxu0 %v3828
  %3921 = vmatpush1.bf16.msra.mxu0 %v3827
  %3922 = vmatprep.subr.bf16.mxu0 %v3832
  %3923 = vmatpush1.bf16.msra.mxu0 %v3831
  %3924 = vmatprep.subr.bf16.mxu0 0
  %3925 = vmatpush1.bf16.msra.mxu0 0
  %3926 = vmatprep.subr.bf16.mxu0 0
  %3927 = vmatpush1.bf16.msra.mxu0 0
  %3928 = vmatprep.subr.bf16.mxu0 0
  %3929 = vmatpush1.bf16.msra.mxu0 0
  %3930 = vmatprep.subr.bf16.mxu0 0
  %3931 = vmatpush1.bf16.msra.mxu0 0
  %3932 = vmatprep.subr.bf16.mxu0 0
  %3933 = vmatpush1.bf16.msra.mxu0 0
  %3934 = vmatprep.subr.bf16.mxu0 0
  %3935 = vmatpush1.bf16.msra.mxu0 0
  %3936 = vmatprep.subr.bf16.mxu0 0
  %3937 = vmatpush1.bf16.msra.mxu0 0
  %3938 = vmatprep.subr.bf16.mxu0 0
  %3939 = vmatpush1.bf16.msra.mxu0 0
  %3940 = vmatprep.mubr.bf16.mxu0 0
  %3941 = vmatmul.mubr.bf16.gmra.mrb[0].mxu0 %v3657
  %v3942 = vpop.f32.mrb[0].mxu0
  %v3943 = vadd.f32 0.0, %v3942
  %v3944 = vpop.f32.mrb[0].mxu0
  %v3945 = vadd.f32 0.0, %v3944
  %v3946 = vpop.f32.mrb[0].mxu0
  %v3947 = vadd.f32 0.0, %v3946
  %v3948 = vpop.f32.mrb[0].mxu0
  %v3949 = vadd.f32 0.0, %v3948
  %3950 = vdwg.mxu0
  %v3951 = vadd.f32 %v3665, %v3900
  %v3952 = vadd.f32 %v3666, %v3902
  %v3953 = vadd.f32 %v3667, %v3943
  %v3954 = vadd.f32 %v3668, %v3945
  %v3955 = vadd.f32 %v3669, %v3904
  %v3956 = vadd.f32 %v3670, %v3906
  %v3957 = vadd.f32 %v3671, %v3947
  %v3958 = vadd.f32 %v3672, %v3949
  %v3959 = vxor.u32 %v3951, 2147483648
  %v3960 = vxor.u32 %v3955, 2147483648
  %v3961 = vmul.f32 %v3959, 1.442695
  %v3962 = vpow.pop %v3961
  %v3963 = vmul.f32 %v3960, 1.442695
  %v3964 = vpow.pop %v3963
  %v3965 = vadd.f32 %v3962, 1.0
  %v3966 = vadd.f32 %v3964, 1.0
  %v3967 = vrcp.pop %v3965
  %v3968 = vmul.f32 1.0, %v3967
  %v3969 = vrcp.pop %v3966
  %v3970 = vmul.f32 1.0, %v3969
  %v3971 = vxor.u32 %v3952, 2147483648
  %v3972 = vxor.u32 %v3956, 2147483648
  %v3973 = vmul.f32 %v3971, 1.442695
  %v3974 = vpow.pop %v3973
  %v3975 = vmul.f32 %v3972, 1.442695
  %v3976 = vpow.pop %v3975
  %v3977 = vadd.f32 %v3974, 1.0
  %v3978 = vadd.f32 %v3976, 1.0
  %v3979 = vrcp.pop %v3977
  %v3980 = vmul.f32 1.0, %v3979
  %v3981 = vrcp.pop %v3978
  %v3982 = vmul.f32 1.0, %v3981
  %v3983 = vtanh.pop %v3953
  %v3984 = vtanh.pop %v3957
  %v3985 = vxor.u32 %v3954, 2147483648
  %v3986 = vxor.u32 %v3958, 2147483648
  %v3987 = vmul.f32 %v3985, 1.442695
  %v3988 = vpow.pop %v3987
  %v3989 = vmul.f32 %v3986, 1.442695
  %v3990 = vpow.pop %v3989
  %v3991 = vadd.f32 %v3988, 1.0
  %v3992 = vadd.f32 %v3990, 1.0
  %v3993 = vrcp.pop %v3991
  %v3994 = vmul.f32 1.0, %v3993
  %v3995 = vrcp.pop %v3992
  %v3996 = vmul.f32 1.0, %v3995
  %v3997 = vmul.f32 %v3980, %v3658
  %v3998 = vmul.f32 %v3982, %v3659
  %v3999 = vmul.f32 %v3968, %v3983
  %v4000 = vmul.f32 %v3970, %v3984
  %v4001 = vadd.f32 %v3997, %v3999
  %v4002 = vadd.f32 %v3998, %v4000
  %v4003 = vtanh.pop %v4001
  %v4004 = vtanh.pop %v4002
  %v4005 = vmul.f32 %v3994, %v4003
  %v4006 = vmul.f32 %v3996, %v4004
  %v4007 = vpack.c.bf16 %v4006, %v4005
  %4008 = vst [vmem:[#allocation3] sm:$0xff] %v4001
  %4009 = vst [vmem:[#allocation3 + $0x8] sm:$0xff] %v4002
  %4010 = vst [vmem:[#allocation2] sm:$0xff] %v4007
  %v4012 = vunpack.c.l.b16 %v4007
  %v4013 = vunpack.c.h.b16 %v4007
  %v4014 = vpack.c.b16 %v4012, %v4012
  %v4015 = vpack.c.b16 %v4013, %v4013
  %s4018 = scalar_lea.vmem %s2, 80
  %4019 = vst [vmem:[%s4018] sm:$0xf] %v4014
  %4020 = vst [vmem:[%s4018 + $0x4] sm:$0xf] %v4015
  %v4021 = vld [vmem:[#allocation2] sm:$0xff]
  %v4022 = vld [vmem:[#allocation3] sm:$0xff]
  %v4023 = vld [vmem:[#allocation3 + $0x8] sm:$0xff]
  %s4024 = scalar_lea.vmem %s0, 352
  %v4025 = vld [vmem:[%s4024] sm:$0xff]
  %v4026 = vld [vmem:[%s4024 + $0x8] sm:$0xff]
  %v4027 = vld [vmem:[%s4024 + $0x10] sm:$0xff]
  %v4028 = vld [vmem:[%s4024 + $0x18] sm:$0xff]
  %v4029 = vunpack.c.l.bf16 %v4025
  %v4030 = vunpack.c.h.bf16 %v4025
  %v4031 = vunpack.c.l.bf16 %v4026
  %v4032 = vunpack.c.h.bf16 %v4026
  %v4033 = vunpack.c.l.bf16 %v4027
  %v4034 = vunpack.c.h.bf16 %v4027
  %v4035 = vunpack.c.l.bf16 %v4028
  %v4036 = vunpack.c.h.bf16 %v4028
  %v4037 = vld [vmem:[%s1] sm:$0xff]
  %v4038 = vld [vmem:[%s1 + $0x8] sm:$0xff]
  %v4039 = vld [vmem:[%s1 + $0x10] sm:$0xff]
  %v4040 = vld [vmem:[%s1 + $0x18] sm:$0xff]
  %v4041 = vld [vmem:[%s1 + $0x20] sm:$0xff]
  %v4042 = vld [vmem:[%s1 + $0x28] sm:$0xff]
  %v4043 = vld [vmem:[%s1 + $0x30] sm:$0xff]
  %v4044 = vld [vmem:[%s1 + $0x38] sm:$0xff]
  %v4045 = vld [vmem:[%s1 + $0x40] sm:$0xff]
  %v4046 = vld [vmem:[%s1 + $0x48] sm:$0xff]
  %v4047 = vld [vmem:[%s1 + $0x50] sm:$0xff]
  %v4048 = vld [vmem:[%s1 + $0x58] sm:$0xff]
  %v4049 = vld [vmem:[%s1 + $0x60] sm:$0xff]
  %v4050 = vld [vmem:[%s1 + $0x68] sm:$0xff]
  %v4051 = vld [vmem:[%s1 + $0x70] sm:$0xff]
  %v4052 = vld [vmem:[%s1 + $0x78] sm:$0xff]
  %v4053 = vld [vmem:[%s1 + $0x80] sm:$0xff]
  %v4054 = vld [vmem:[%s1 + $0x88] sm:$0xff]
  %v4055 = vld [vmem:[%s1 + $0x90] sm:$0xff]
  %v4056 = vld [vmem:[%s1 + $0x98] sm:$0xff]
  %v4057 = vld [vmem:[%s1 + $0xa0] sm:$0xff]
  %v4058 = vld [vmem:[%s1 + $0xa8] sm:$0xff]
  %v4059 = vld [vmem:[%s1 + $0xb0] sm:$0xff]
  %v4060 = vld [vmem:[%s1 + $0xb8] sm:$0xff]
  %v4061 = vld [vmem:[%s1 + $0xc0] sm:$0xff]
  %v4062 = vld [vmem:[%s1 + $0xc8] sm:$0xff]
  %v4063 = vld [vmem:[%s1 + $0xd0] sm:$0xff]
  %v4064 = vld [vmem:[%s1 + $0xd8] sm:$0xff]
  %v4065 = vld [vmem:[%s1 + $0xe0] sm:$0xff]
  %v4066 = vld [vmem:[%s1 + $0xe8] sm:$0xff]
  %v4067 = vld [vmem:[%s1 + $0xf0] sm:$0xff]
  %v4068 = vld [vmem:[%s1 + $0xf8] sm:$0xff]
  %v4101 = vunpack.c.l.b16 %v4037
  %v4102 = vunpack.c.h.b16 %v4037
  %v4103 = vunpack.c.l.b16 %v4038
  %v4104 = vunpack.c.h.b16 %v4038
  %v4105 = vunpack.c.l.b16 %v4039
  %v4106 = vunpack.c.h.b16 %v4039
  %v4107 = vunpack.c.l.b16 %v4040
  %v4108 = vunpack.c.h.b16 %v4040
  %v4109 = vunpack.c.l.b16 %v4041
  %v4110 = vunpack.c.h.b16 %v4041
  %v4111 = vunpack.c.l.b16 %v4042
  %v4112 = vunpack.c.h.b16 %v4042
  %v4113 = vunpack.c.l.b16 %v4043
  %v4114 = vunpack.c.h.b16 %v4043
  %v4115 = vunpack.c.l.b16 %v4044
  %v4116 = vunpack.c.h.b16 %v4044
  %v4117 = vunpack.c.l.b16 %v4045
  %v4118 = vunpack.c.h.b16 %v4045
  %v4119 = vunpack.c.l.b16 %v4046
  %v4120 = vunpack.c.h.b16 %v4046
  %v4121 = vunpack.c.l.b16 %v4047
  %v4122 = vunpack.c.h.b16 %v4047
  %v4123 = vunpack.c.l.b16 %v4048
  %v4124 = vunpack.c.h.b16 %v4048
  %v4125 = vunpack.c.l.b16 %v4049
  %v4126 = vunpack.c.h.b16 %v4049
  %v4127 = vunpack.c.l.b16 %v4050
  %v4128 = vunpack.c.h.b16 %v4050
  %v4129 = vunpack.c.l.b16 %v4051
  %v4130 = vunpack.c.h.b16 %v4051
  %v4131 = vunpack.c.l.b16 %v4052
  %v4132 = vunpack.c.h.b16 %v4052
  %v4133 = vunpack.c.l.b16 %v4053
  %v4134 = vunpack.c.h.b16 %v4053
  %v4135 = vunpack.c.l.b16 %v4054
  %v4136 = vunpack.c.h.b16 %v4054
  %v4137 = vunpack.c.l.b16 %v4055
  %v4138 = vunpack.c.h.b16 %v4055
  %v4139 = vunpack.c.l.b16 %v4056
  %v4140 = vunpack.c.h.b16 %v4056
  %v4141 = vunpack.c.l.b16 %v4057
  %v4142 = vunpack.c.h.b16 %v4057
  %v4143 = vunpack.c.l.b16 %v4058
  %v4144 = vunpack.c.h.b16 %v4058
  %v4145 = vunpack.c.l.b16 %v4059
  %v4146 = vunpack.c.h.b16 %v4059
  %v4147 = vunpack.c.l.b16 %v4060
  %v4148 = vunpack.c.h.b16 %v4060
  %v4149 = vunpack.c.l.b16 %v4061
  %v4150 = vunpack.c.h.b16 %v4061
  %v4151 = vunpack.c.l.b16 %v4062
  %v4152 = vunpack.c.h.b16 %v4062
  %v4153 = vunpack.c.l.b16 %v4063
  %v4154 = vunpack.c.h.b16 %v4063
  %v4155 = vunpack.c.l.b16 %v4064
  %v4156 = vunpack.c.h.b16 %v4064
  %v4157 = vunpack.c.l.b16 %v4065
  %v4158 = vunpack.c.h.b16 %v4065
  %v4159 = vunpack.c.l.b16 %v4066
  %v4160 = vunpack.c.h.b16 %v4066
  %v4161 = vunpack.c.l.b16 %v4067
  %v4162 = vunpack.c.h.b16 %v4067
  %v4163 = vunpack.c.l.b16 %v4068
  %v4164 = vunpack.c.h.b16 %v4068
  %v4165 = vpack.c.b16 %v4105, %v4101
  %v4166 = vpack.c.b16 %v4106, %v4102
  %v4167 = vpack.c.b16 %v4107, %v4103
  %v4168 = vpack.c.b16 %v4108, %v4104
  %v4169 = vpack.c.b16 %v4113, %v4109
  %v4170 = vpack.c.b16 %v4114, %v4110
  %v4171 = vpack.c.b16 %v4115, %v4111
  %v4172 = vpack.c.b16 %v4116, %v4112
  %v4173 = vpack.c.b16 %v4121, %v4117
  %v4174 = vpack.c.b16 %v4122, %v4118
  %v4175 = vpack.c.b16 %v4123, %v4119
  %v4176 = vpack.c.b16 %v4124, %v4120
  %v4177 = vpack.c.b16 %v4129, %v4125
  %v4178 = vpack.c.b16 %v4130, %v4126
  %v4179 = vpack.c.b16 %v4131, %v4127
  %v4180 = vpack.c.b16 %v4132, %v4128
  %v4181 = vpack.c.b16 %v4137, %v4133
  %v4182 = vpack.c.b16 %v4138, %v4134
  %v4183 = vpack.c.b16 %v4139, %v4135
  %v4184 = vpack.c.b16 %v4140, %v4136
  %v4185 = vpack.c.b16 %v4145, %v4141
  %v4186 = vpack.c.b16 %v4146, %v4142
  %v4187 = vpack.c.b16 %v4147, %v4143
  %v4188 = vpack.c.b16 %v4148, %v4144
  %v4189 = vpack.c.b16 %v4153, %v4149
  %v4190 = vpack.c.b16 %v4154, %v4150
  %v4191 = vpack.c.b16 %v4155, %v4151
  %v4192 = vpack.c.b16 %v4156, %v4152
  %v4193 = vpack.c.b16 %v4161, %v4157
  %v4194 = vpack.c.b16 %v4162, %v4158
  %v4195 = vpack.c.b16 %v4163, %v4159
  %v4196 = vpack.c.b16 %v4164, %v4160
  %4229 = vmatprep.subr.bf16.mxu0 %v4166
  %4230 = vmatpush1.bf16.msra.mxu0 %v4165
  %4231 = vmatprep.subr.bf16.mxu0 %v4170
  %4232 = vmatpush1.bf16.msra.mxu0 %v4169
  %4233 = vmatprep.subr.bf16.mxu0 %v4174
  %4234 = vmatpush1.bf16.msra.mxu0 %v4173
  %4235 = vmatprep.subr.bf16.mxu0 %v4178
  %4236 = vmatpush1.bf16.msra.mxu0 %v4177
  %4237 = vmatprep.subr.bf16.mxu0 %v4182
  %4238 = vmatpush1.bf16.msra.mxu0 %v4181
  %4239 = vmatprep.subr.bf16.mxu0 %v4186
  %4240 = vmatpush1.bf16.msra.mxu0 %v4185
  %4241 = vmatprep.subr.bf16.mxu0 %v4190
  %4242 = vmatpush1.bf16.msra.mxu0 %v4189
  %4243 = vmatprep.subr.bf16.mxu0 %v4194
  %4244 = vmatpush1.bf16.msra.mxu0 %v4193
  %4245 = vmatprep.subr.bf16.mxu0 0
  %4246 = vmatpush1.bf16.msra.mxu0 0
  %4247 = vmatprep.subr.bf16.mxu0 0
  %4248 = vmatpush1.bf16.msra.mxu0 0
  %4249 = vmatprep.subr.bf16.mxu0 0
  %4250 = vmatpush1.bf16.msra.mxu0 0
  %4251 = vmatprep.subr.bf16.mxu0 0
  %4252 = vmatpush1.bf16.msra.mxu0 0
  %4253 = vmatprep.subr.bf16.mxu0 0
  %4254 = vmatpush1.bf16.msra.mxu0 0
  %4255 = vmatprep.subr.bf16.mxu0 0
  %4256 = vmatpush1.bf16.msra.mxu0 0
  %4257 = vmatprep.subr.bf16.mxu0 0
  %4258 = vmatpush1.bf16.msra.mxu0 0
  %4259 = vmatprep.subr.bf16.mxu0 0
  %4260 = vmatpush1.bf16.msra.mxu0 0
  %4261 = vmatprep.mubr.bf16.mxu0 0
  %4262 = vmatmul.mubr.bf16.gmra.mrb[0].mxu0 %v4021
  %v4263 = vpop.f32.mrb[0].mxu0
  %v4264 = vadd.f32 0.0, %v4263
  %v4265 = vpop.f32.mrb[0].mxu0
  %v4266 = vadd.f32 0.0, %v4265
  %v4267 = vpop.f32.mrb[0].mxu0
  %v4268 = vadd.f32 0.0, %v4267
  %v4269 = vpop.f32.mrb[0].mxu0
  %v4270 = vadd.f32 0.0, %v4269
  %4271 = vdwg.mxu0
  %4272 = vmatprep.subr.bf16.mxu0 %v4168
  %4273 = vmatpush1.bf16.msra.mxu0 %v4167
  %4274 = vmatprep.subr.bf16.mxu0 %v4172
  %4275 = vmatpush1.bf16.msra.mxu0 %v4171
  %4276 = vmatprep.subr.bf16.mxu0 %v4176
  %4277 = vmatpush1.bf16.msra.mxu0 %v4175
  %4278 = vmatprep.subr.bf16.mxu0 %v4180
  %4279 = vmatpush1.bf16.msra.mxu0 %v4179
  %4280 = vmatprep.subr.bf16.mxu0 %v4184
  %4281 = vmatpush1.bf16.msra.mxu0 %v4183
  %4282 = vmatprep.subr.bf16.mxu0 %v4188
  %4283 = vmatpush1.bf16.msra.mxu0 %v4187
  %4284 = vmatprep.subr.bf16.mxu0 %v4192
  %4285 = vmatpush1.bf16.msra.mxu0 %v4191
  %4286 = vmatprep.subr.bf16.mxu0 %v4196
  %4287 = vmatpush1.bf16.msra.mxu0 %v4195
  %4288 = vmatprep.subr.bf16.mxu0 0
  %4289 = vmatpush1.bf16.msra.mxu0 0
  %4290 = vmatprep.subr.bf16.mxu0 0
  %4291 = vmatpush1.bf16.msra.mxu0 0
  %4292 = vmatprep.subr.bf16.mxu0 0
  %4293 = vmatpush1.bf16.msra.mxu0 0
  %4294 = vmatprep.subr.bf16.mxu0 0
  %4295 = vmatpush1.bf16.msra.mxu0 0
  %4296 = vmatprep.subr.bf16.mxu0 0
  %4297 = vmatpush1.bf16.msra.mxu0 0
  %4298 = vmatprep.subr.bf16.mxu0 0
  %4299 = vmatpush1.bf16.msra.mxu0 0
  %4300 = vmatprep.subr.bf16.mxu0 0
  %4301 = vmatpush1.bf16.msra.mxu0 0
  %4302 = vmatprep.subr.bf16.mxu0 0
  %4303 = vmatpush1.bf16.msra.mxu0 0
  %4304 = vmatprep.mubr.bf16.mxu0 0
  %4305 = vmatmul.mubr.bf16.gmra.mrb[0].mxu0 %v4021
  %v4306 = vpop.f32.mrb[0].mxu0
  %v4307 = vadd.f32 0.0, %v4306
  %v4308 = vpop.f32.mrb[0].mxu0
  %v4309 = vadd.f32 0.0, %v4308
  %v4310 = vpop.f32.mrb[0].mxu0
  %v4311 = vadd.f32 0.0, %v4310
  %v4312 = vpop.f32.mrb[0].mxu0
  %v4313 = vadd.f32 0.0, %v4312
  %4314 = vdwg.mxu0
  %v4315 = vadd.f32 %v4029, %v4264
  %v4316 = vadd.f32 %v4030, %v4266
  %v4317 = vadd.f32 %v4031, %v4307
  %v4318 = vadd.f32 %v4032, %v4309
  %v4319 = vadd.f32 %v4033, %v4268
  %v4320 = vadd.f32 %v4034, %v4270
  %v4321 = vadd.f32 %v4035, %v4311
  %v4322 = vadd.f32 %v4036, %v4313
  %v4323 = vxor.u32 %v4315, 2147483648
  %v4324 = vxor.u32 %v4319, 2147483648
  %v4325 = vmul.f32 %v4323, 1.442695
  %v4326 = vpow.pop %v4325
  %v4327 = vmul.f32 %v4324, 1.442695
  %v4328 = vpow.pop %v4327
  %v4329 = vadd.f32 %v4326, 1.0
  %v4330 = vadd.f32 %v4328, 1.0
  %v4331 = vrcp.pop %v4329
  %v4332 = vmul.f32 1.0, %v4331
  %v4333 = vrcp.pop %v4330
  %v4334 = vmul.f32 1.0, %v4333
  %v4335 = vxor.u32 %v4316, 2147483648
  %v4336 = vxor.u32 %v4320, 2147483648
  %v4337 = vmul.f32 %v4335, 1.442695
  %v4338 = vpow.pop %v4337
  %v4339 = vmul.f32 %v4336, 1.442695
  %v4340 = vpow.pop %v4339
  %v4341 = vadd.f32 %v4338, 1.0
  %v4342 = vadd.f32 %v4340, 1.0
  %v4343 = vrcp.pop %v4341
  %v4344 = vmul.f32 1.0, %v4343
  %v4345 = vrcp.pop %v4342
  %v4346 = vmul.f32 1.0, %v4345
  %v4347 = vtanh.pop %v4317
  %v4348 = vtanh.pop %v4321
  %v4349 = vxor.u32 %v4318, 2147483648
  %v4350 = vxor.u32 %v4322, 2147483648
  %v4351 = vmul.f32 %v4349, 1.442695
  %v4352 = vpow.pop %v4351
  %v4353 = vmul.f32 %v4350, 1.442695
  %v4354 = vpow.pop %v4353
  %v4355 = vadd.f32 %v4352, 1.0
  %v4356 = vadd.f32 %v4354, 1.0
  %v4357 = vrcp.pop %v4355
  %v4358 = vmul.f32 1.0, %v4357
  %v4359 = vrcp.pop %v4356
  %v4360 = vmul.f32 1.0, %v4359
  %v4361 = vmul.f32 %v4344, %v4022
  %v4362 = vmul.f32 %v4346, %v4023
  %v4363 = vmul.f32 %v4332, %v4347
  %v4364 = vmul.f32 %v4334, %v4348
  %v4365 = vadd.f32 %v4361, %v4363
  %v4366 = vadd.f32 %v4362, %v4364
  %v4367 = vtanh.pop %v4365
  %v4368 = vtanh.pop %v4366
  %v4369 = vmul.f32 %v4358, %v4367
  %v4370 = vmul.f32 %v4360, %v4368
  %v4371 = vpack.c.bf16 %v4370, %v4369
  %4372 = vst [vmem:[#allocation3] sm:$0xff] %v4365
  %4373 = vst [vmem:[#allocation3 + $0x8] sm:$0xff] %v4366
  %4374 = vst [vmem:[#allocation2] sm:$0xff] %v4371
  %v4376 = vunpack.c.l.b16 %v4371
  %v4377 = vunpack.c.h.b16 %v4371
  %v4378 = vpack.c.b16 %v4376, %v4376
  %v4379 = vpack.c.b16 %v4377, %v4377
  %s4382 = scalar_lea.vmem %s2, 88
  %4383 = vst [vmem:[%s4382] sm:$0xf] %v4378
  %4384 = vst [vmem:[%s4382 + $0x4] sm:$0xf] %v4379
  %v4385 = vld [vmem:[#allocation2] sm:$0xff]
  %v4386 = vld [vmem:[#allocation3] sm:$0xff]
  %v4387 = vld [vmem:[#allocation3 + $0x8] sm:$0xff]
  %s4388 = scalar_lea.vmem %s0, 384
  %v4389 = vld [vmem:[%s4388] sm:$0xff]
  %v4390 = vld [vmem:[%s4388 + $0x8] sm:$0xff]
  %v4391 = vld [vmem:[%s4388 + $0x10] sm:$0xff]
  %v4392 = vld [vmem:[%s4388 + $0x18] sm:$0xff]
  %v4393 = vunpack.c.l.bf16 %v4389
  %v4394 = vunpack.c.h.bf16 %v4389
  %v4395 = vunpack.c.l.bf16 %v4390
  %v4396 = vunpack.c.h.bf16 %v4390
  %v4397 = vunpack.c.l.bf16 %v4391
  %v4398 = vunpack.c.h.bf16 %v4391
  %v4399 = vunpack.c.l.bf16 %v4392
  %v4400 = vunpack.c.h.bf16 %v4392
  %v4401 = vld [vmem:[%s1] sm:$0xff]
  %v4402 = vld [vmem:[%s1 + $0x8] sm:$0xff]
  %v4403 = vld [vmem:[%s1 + $0x10] sm:$0xff]
  %v4404 = vld [vmem:[%s1 + $0x18] sm:$0xff]
  %v4405 = vld [vmem:[%s1 + $0x20] sm:$0xff]
  %v4406 = vld [vmem:[%s1 + $0x28] sm:$0xff]
  %v4407 = vld [vmem:[%s1 + $0x30] sm:$0xff]
  %v4408 = vld [vmem:[%s1 + $0x38] sm:$0xff]
  %v4409 = vld [vmem:[%s1 + $0x40] sm:$0xff]
  %v4410 = vld [vmem:[%s1 + $0x48] sm:$0xff]
  %v4411 = vld [vmem:[%s1 + $0x50] sm:$0xff]
  %v4412 = vld [vmem:[%s1 + $0x58] sm:$0xff]
  %v4413 = vld [vmem:[%s1 + $0x60] sm:$0xff]
  %v4414 = vld [vmem:[%s1 + $0x68] sm:$0xff]
  %v4415 = vld [vmem:[%s1 + $0x70] sm:$0xff]
  %v4416 = vld [vmem:[%s1 + $0x78] sm:$0xff]
  %v4417 = vld [vmem:[%s1 + $0x80] sm:$0xff]
  %v4418 = vld [vmem:[%s1 + $0x88] sm:$0xff]
  %v4419 = vld [vmem:[%s1 + $0x90] sm:$0xff]
  %v4420 = vld [vmem:[%s1 + $0x98] sm:$0xff]
  %v4421 = vld [vmem:[%s1 + $0xa0] sm:$0xff]
  %v4422 = vld [vmem:[%s1 + $0xa8] sm:$0xff]
  %v4423 = vld [vmem:[%s1 + $0xb0] sm:$0xff]
  %v4424 = vld [vmem:[%s1 + $0xb8] sm:$0xff]
  %v4425 = vld [vmem:[%s1 + $0xc0] sm:$0xff]
  %v4426 = vld [vmem:[%s1 + $0xc8] sm:$0xff]
  %v4427 = vld [vmem:[%s1 + $0xd0] sm:$0xff]
  %v4428 = vld [vmem:[%s1 + $0xd8] sm:$0xff]
  %v4429 = vld [vmem:[%s1 + $0xe0] sm:$0xff]
  %v4430 = vld [vmem:[%s1 + $0xe8] sm:$0xff]
  %v4431 = vld [vmem:[%s1 + $0xf0] sm:$0xff]
  %v4432 = vld [vmem:[%s1 + $0xf8] sm:$0xff]
  %v4465 = vunpack.c.l.b16 %v4401
  %v4466 = vunpack.c.h.b16 %v4401
  %v4467 = vunpack.c.l.b16 %v4402
  %v4468 = vunpack.c.h.b16 %v4402
  %v4469 = vunpack.c.l.b16 %v4403
  %v4470 = vunpack.c.h.b16 %v4403
  %v4471 = vunpack.c.l.b16 %v4404
  %v4472 = vunpack.c.h.b16 %v4404
  %v4473 = vunpack.c.l.b16 %v4405
  %v4474 = vunpack.c.h.b16 %v4405
  %v4475 = vunpack.c.l.b16 %v4406
  %v4476 = vunpack.c.h.b16 %v4406
  %v4477 = vunpack.c.l.b16 %v4407
  %v4478 = vunpack.c.h.b16 %v4407
  %v4479 = vunpack.c.l.b16 %v4408
  %v4480 = vunpack.c.h.b16 %v4408
  %v4481 = vunpack.c.l.b16 %v4409
  %v4482 = vunpack.c.h.b16 %v4409
  %v4483 = vunpack.c.l.b16 %v4410
  %v4484 = vunpack.c.h.b16 %v4410
  %v4485 = vunpack.c.l.b16 %v4411
  %v4486 = vunpack.c.h.b16 %v4411
  %v4487 = vunpack.c.l.b16 %v4412
  %v4488 = vunpack.c.h.b16 %v4412
  %v4489 = vunpack.c.l.b16 %v4413
  %v4490 = vunpack.c.h.b16 %v4413
  %v4491 = vunpack.c.l.b16 %v4414
  %v4492 = vunpack.c.h.b16 %v4414
  %v4493 = vunpack.c.l.b16 %v4415
  %v4494 = vunpack.c.h.b16 %v4415
  %v4495 = vunpack.c.l.b16 %v4416
  %v4496 = vunpack.c.h.b16 %v4416
  %v4497 = vunpack.c.l.b16 %v4417
  %v4498 = vunpack.c.h.b16 %v4417
  %v4499 = vunpack.c.l.b16 %v4418
  %v4500 = vunpack.c.h.b16 %v4418
  %v4501 = vunpack.c.l.b16 %v4419
  %v4502 = vunpack.c.h.b16 %v4419
  %v4503 = vunpack.c.l.b16 %v4420
  %v4504 = vunpack.c.h.b16 %v4420
  %v4505 = vunpack.c.l.b16 %v4421
  %v4506 = vunpack.c.h.b16 %v4421
  %v4507 = vunpack.c.l.b16 %v4422
  %v4508 = vunpack.c.h.b16 %v4422
  %v4509 = vunpack.c.l.b16 %v4423
  %v4510 = vunpack.c.h.b16 %v4423
  %v4511 = vunpack.c.l.b16 %v4424
  %v4512 = vunpack.c.h.b16 %v4424
  %v4513 = vunpack.c.l.b16 %v4425
  %v4514 = vunpack.c.h.b16 %v4425
  %v4515 = vunpack.c.l.b16 %v4426
  %v4516 = vunpack.c.h.b16 %v4426
  %v4517 = vunpack.c.l.b16 %v4427
  %v4518 = vunpack.c.h.b16 %v4427
  %v4519 = vunpack.c.l.b16 %v4428
  %v4520 = vunpack.c.h.b16 %v4428
  %v4521 = vunpack.c.l.b16 %v4429
  %v4522 = vunpack.c.h.b16 %v4429
  %v4523 = vunpack.c.l.b16 %v4430
  %v4524 = vunpack.c.h.b16 %v4430
  %v4525 = vunpack.c.l.b16 %v4431
  %v4526 = vunpack.c.h.b16 %v4431
  %v4527 = vunpack.c.l.b16 %v4432
  %v4528 = vunpack.c.h.b16 %v4432
  %v4529 = vpack.c.b16 %v4469, %v4465
  %v4530 = vpack.c.b16 %v4470, %v4466
  %v4531 = vpack.c.b16 %v4471, %v4467
  %v4532 = vpack.c.b16 %v4472, %v4468
  %v4533 = vpack.c.b16 %v4477, %v4473
  %v4534 = vpack.c.b16 %v4478, %v4474
  %v4535 = vpack.c.b16 %v4479, %v4475
  %v4536 = vpack.c.b16 %v4480, %v4476
  %v4537 = vpack.c.b16 %v4485, %v4481
  %v4538 = vpack.c.b16 %v4486, %v4482
  %v4539 = vpack.c.b16 %v4487, %v4483
  %v4540 = vpack.c.b16 %v4488, %v4484
  %v4541 = vpack.c.b16 %v4493, %v4489
  %v4542 = vpack.c.b16 %v4494, %v4490
  %v4543 = vpack.c.b16 %v4495, %v4491
  %v4544 = vpack.c.b16 %v4496, %v4492
  %v4545 = vpack.c.b16 %v4501, %v4497
  %v4546 = vpack.c.b16 %v4502, %v4498
  %v4547 = vpack.c.b16 %v4503, %v4499
  %v4548 = vpack.c.b16 %v4504, %v4500
  %v4549 = vpack.c.b16 %v4509, %v4505
  %v4550 = vpack.c.b16 %v4510, %v4506
  %v4551 = vpack.c.b16 %v4511, %v4507
  %v4552 = vpack.c.b16 %v4512, %v4508
  %v4553 = vpack.c.b16 %v4517, %v4513
  %v4554 = vpack.c.b16 %v4518, %v4514
  %v4555 = vpack.c.b16 %v4519, %v4515
  %v4556 = vpack.c.b16 %v4520, %v4516
  %v4557 = vpack.c.b16 %v4525, %v4521
  %v4558 = vpack.c.b16 %v4526, %v4522
  %v4559 = vpack.c.b16 %v4527, %v4523
  %v4560 = vpack.c.b16 %v4528, %v4524
  %4593 = vmatprep.subr.bf16.mxu0 %v4530
  %4594 = vmatpush1.bf16.msra.mxu0 %v4529
  %4595 = vmatprep.subr.bf16.mxu0 %v4534
  %4596 = vmatpush1.bf16.msra.mxu0 %v4533
  %4597 = vmatprep.subr.bf16.mxu0 %v4538
  %4598 = vmatpush1.bf16.msra.mxu0 %v4537
  %4599 = vmatprep.subr.bf16.mxu0 %v4542
  %4600 = vmatpush1.bf16.msra.mxu0 %v4541
  %4601 = vmatprep.subr.bf16.mxu0 %v4546
  %4602 = vmatpush1.bf16.msra.mxu0 %v4545
  %4603 = vmatprep.subr.bf16.mxu0 %v4550
  %4604 = vmatpush1.bf16.msra.mxu0 %v4549
  %4605 = vmatprep.subr.bf16.mxu0 %v4554
  %4606 = vmatpush1.bf16.msra.mxu0 %v4553
  %4607 = vmatprep.subr.bf16.mxu0 %v4558
  %4608 = vmatpush1.bf16.msra.mxu0 %v4557
  %4609 = vmatprep.subr.bf16.mxu0 0
  %4610 = vmatpush1.bf16.msra.mxu0 0
  %4611 = vmatprep.subr.bf16.mxu0 0
  %4612 = vmatpush1.bf16.msra.mxu0 0
  %4613 = vmatprep.subr.bf16.mxu0 0
  %4614 = vmatpush1.bf16.msra.mxu0 0
  %4615 = vmatprep.subr.bf16.mxu0 0
  %4616 = vmatpush1.bf16.msra.mxu0 0
  %4617 = vmatprep.subr.bf16.mxu0 0
  %4618 = vmatpush1.bf16.msra.mxu0 0
  %4619 = vmatprep.subr.bf16.mxu0 0
  %4620 = vmatpush1.bf16.msra.mxu0 0
  %4621 = vmatprep.subr.bf16.mxu0 0
  %4622 = vmatpush1.bf16.msra.mxu0 0
  %4623 = vmatprep.subr.bf16.mxu0 0
  %4624 = vmatpush1.bf16.msra.mxu0 0
  %4625 = vmatprep.mubr.bf16.mxu0 0
  %4626 = vmatmul.mubr.bf16.gmra.mrb[0].mxu0 %v4385
  %v4627 = vpop.f32.mrb[0].mxu0
  %v4628 = vadd.f32 0.0, %v4627
  %v4629 = vpop.f32.mrb[0].mxu0
  %v4630 = vadd.f32 0.0, %v4629
  %v4631 = vpop.f32.mrb[0].mxu0
  %v4632 = vadd.f32 0.0, %v4631
  %v4633 = vpop.f32.mrb[0].mxu0
  %v4634 = vadd.f32 0.0, %v4633
  %4635 = vdwg.mxu0
  %4636 = vmatprep.subr.bf16.mxu0 %v4532
  %4637 = vmatpush1.bf16.msra.mxu0 %v4531
  %4638 = vmatprep.subr.bf16.mxu0 %v4536
  %4639 = vmatpush1.bf16.msra.mxu0 %v4535
  %4640 = vmatprep.subr.bf16.mxu0 %v4540
  %4641 = vmatpush1.bf16.msra.mxu0 %v4539
  %4642 = vmatprep.subr.bf16.mxu0 %v4544
  %4643 = vmatpush1.bf16.msra.mxu0 %v4543
  %4644 = vmatprep.subr.bf16.mxu0 %v4548
  %4645 = vmatpush1.bf16.msra.mxu0 %v4547
  %4646 = vmatprep.subr.bf16.mxu0 %v4552
  %4647 = vmatpush1.bf16.msra.mxu0 %v4551
  %4648 = vmatprep.subr.bf16.mxu0 %v4556
  %4649 = vmatpush1.bf16.msra.mxu0 %v4555
  %4650 = vmatprep.subr.bf16.mxu0 %v4560
  %4651 = vmatpush1.bf16.msra.mxu0 %v4559
  %4652 = vmatprep.subr.bf16.mxu0 0
  %4653 = vmatpush1.bf16.msra.mxu0 0
  %4654 = vmatprep.subr.bf16.mxu0 0
  %4655 = vmatpush1.bf16.msra.mxu0 0
  %4656 = vmatprep.subr.bf16.mxu0 0
  %4657 = vmatpush1.bf16.msra.mxu0 0
  %4658 = vmatprep.subr.bf16.mxu0 0
  %4659 = vmatpush1.bf16.msra.mxu0 0
  %4660 = vmatprep.subr.bf16.mxu0 0
  %4661 = vmatpush1.bf16.msra.mxu0 0
  %4662 = vmatprep.subr.bf16.mxu0 0
  %4663 = vmatpush1.bf16.msra.mxu0 0
  %4664 = vmatprep.subr.bf16.mxu0 0
  %4665 = vmatpush1.bf16.msra.mxu0 0
  %4666 = vmatprep.subr.bf16.mxu0 0
  %4667 = vmatpush1.bf16.msra.mxu0 0
  %4668 = vmatprep.mubr.bf16.mxu0 0
  %4669 = vmatmul.mubr.bf16.gmra.mrb[0].mxu0 %v4385
  %v4670 = vpop.f32.mrb[0].mxu0
  %v4671 = vadd.f32 0.0, %v4670
  %v4672 = vpop.f32.mrb[0].mxu0
  %v4673 = vadd.f32 0.0, %v4672
  %v4674 = vpop.f32.mrb[0].mxu0
  %v4675 = vadd.f32 0.0, %v4674
  %v4676 = vpop.f32.mrb[0].mxu0
  %v4677 = vadd.f32 0.0, %v4676
  %4678 = vdwg.mxu0
  %v4679 = vadd.f32 %v4393, %v4628
  %v4680 = vadd.f32 %v4394, %v4630
  %v4681 = vadd.f32 %v4395, %v4671
  %v4682 = vadd.f32 %v4396, %v4673
  %v4683 = vadd.f32 %v4397, %v4632
  %v4684 = vadd.f32 %v4398, %v4634
  %v4685 = vadd.f32 %v4399, %v4675
  %v4686 = vadd.f32 %v4400, %v4677
  %v4687 = vxor.u32 %v4679, 2147483648
  %v4688 = vxor.u32 %v4683, 2147483648
  %v4689 = vmul.f32 %v4687, 1.442695
  %v4690 = vpow.pop %v4689
  %v4691 = vmul.f32 %v4688, 1.442695
  %v4692 = vpow.pop %v4691
  %v4693 = vadd.f32 %v4690, 1.0
  %v4694 = vadd.f32 %v4692, 1.0
  %v4695 = vrcp.pop %v4693
  %v4696 = vmul.f32 1.0, %v4695
  %v4697 = vrcp.pop %v4694
  %v4698 = vmul.f32 1.0, %v4697
  %v4699 = vxor.u32 %v4680, 2147483648
  %v4700 = vxor.u32 %v4684, 2147483648
  %v4701 = vmul.f32 %v4699, 1.442695
  %v4702 = vpow.pop %v4701
  %v4703 = vmul.f32 %v4700, 1.442695
  %v4704 = vpow.pop %v4703
  %v4705 = vadd.f32 %v4702, 1.0
  %v4706 = vadd.f32 %v4704, 1.0
  %v4707 = vrcp.pop %v4705
  %v4708 = vmul.f32 1.0, %v4707
  %v4709 = vrcp.pop %v4706
  %v4710 = vmul.f32 1.0, %v4709
  %v4711 = vtanh.pop %v4681
  %v4712 = vtanh.pop %v4685
  %v4713 = vxor.u32 %v4682, 2147483648
  %v4714 = vxor.u32 %v4686, 2147483648
  %v4715 = vmul.f32 %v4713, 1.442695
  %v4716 = vpow.pop %v4715
  %v4717 = vmul.f32 %v4714, 1.442695
  %v4718 = vpow.pop %v4717
  %v4719 = vadd.f32 %v4716, 1.0
  %v4720 = vadd.f32 %v4718, 1.0
  %v4721 = vrcp.pop %v4719
  %v4722 = vmul.f32 1.0, %v4721
  %v4723 = vrcp.pop %v4720
  %v4724 = vmul.f32 1.0, %v4723
  %v4725 = vmul.f32 %v4708, %v4386
  %v4726 = vmul.f32 %v4710, %v4387
  %v4727 = vmul.f32 %v4696, %v4711
  %v4728 = vmul.f32 %v4698, %v4712
  %v4729 = vadd.f32 %v4725, %v4727
  %v4730 = vadd.f32 %v4726, %v4728
  %v4731 = vtanh.pop %v4729
  %v4732 = vtanh.pop %v4730
  %v4733 = vmul.f32 %v4722, %v4731
  %v4734 = vmul.f32 %v4724, %v4732
  %v4735 = vpack.c.bf16 %v4734, %v4733
  %4736 = vst [vmem:[#allocation3] sm:$0xff] %v4729
  %4737 = vst [vmem:[#allocation3 + $0x8] sm:$0xff] %v4730
  %4738 = vst [vmem:[#allocation2] sm:$0xff] %v4735
  %v4740 = vunpack.c.l.b16 %v4735
  %v4741 = vunpack.c.h.b16 %v4735
  %v4742 = vpack.c.b16 %v4740, %v4740
  %v4743 = vpack.c.b16 %v4741, %v4741
  %s4746 = scalar_lea.vmem %s2, 96
  %4747 = vst [vmem:[%s4746] sm:$0xf] %v4742
  %4748 = vst [vmem:[%s4746 + $0x4] sm:$0xf] %v4743
  %v4749 = vld [vmem:[#allocation2] sm:$0xff]
  %v4750 = vld [vmem:[#allocation3] sm:$0xff]
  %v4751 = vld [vmem:[#allocation3 + $0x8] sm:$0xff]
  %s4752 = scalar_lea.vmem %s0, 416
  %v4753 = vld [vmem:[%s4752] sm:$0xff]
  %v4754 = vld [vmem:[%s4752 + $0x8] sm:$0xff]
  %v4755 = vld [vmem:[%s4752 + $0x10] sm:$0xff]
  %v4756 = vld [vmem:[%s4752 + $0x18] sm:$0xff]
  %v4757 = vunpack.c.l.bf16 %v4753
  %v4758 = vunpack.c.h.bf16 %v4753
  %v4759 = vunpack.c.l.bf16 %v4754
  %v4760 = vunpack.c.h.bf16 %v4754
  %v4761 = vunpack.c.l.bf16 %v4755
  %v4762 = vunpack.c.h.bf16 %v4755
  %v4763 = vunpack.c.l.bf16 %v4756
  %v4764 = vunpack.c.h.bf16 %v4756
  %v4765 = vld [vmem:[%s1] sm:$0xff]
  %v4766 = vld [vmem:[%s1 + $0x8] sm:$0xff]
  %v4767 = vld [vmem:[%s1 + $0x10] sm:$0xff]
  %v4768 = vld [vmem:[%s1 + $0x18] sm:$0xff]
  %v4769 = vld [vmem:[%s1 + $0x20] sm:$0xff]
  %v4770 = vld [vmem:[%s1 + $0x28] sm:$0xff]
  %v4771 = vld [vmem:[%s1 + $0x30] sm:$0xff]
  %v4772 = vld [vmem:[%s1 + $0x38] sm:$0xff]
  %v4773 = vld [vmem:[%s1 + $0x40] sm:$0xff]
  %v4774 = vld [vmem:[%s1 + $0x48] sm:$0xff]
  %v4775 = vld [vmem:[%s1 + $0x50] sm:$0xff]
  %v4776 = vld [vmem:[%s1 + $0x58] sm:$0xff]
  %v4777 = vld [vmem:[%s1 + $0x60] sm:$0xff]
  %v4778 = vld [vmem:[%s1 + $0x68] sm:$0xff]
  %v4779 = vld [vmem:[%s1 + $0x70] sm:$0xff]
  %v4780 = vld [vmem:[%s1 + $0x78] sm:$0xff]
  %v4781 = vld [vmem:[%s1 + $0x80] sm:$0xff]
  %v4782 = vld [vmem:[%s1 + $0x88] sm:$0xff]
  %v4783 = vld [vmem:[%s1 + $0x90] sm:$0xff]
  %v4784 = vld [vmem:[%s1 + $0x98] sm:$0xff]
  %v4785 = vld [vmem:[%s1 + $0xa0] sm:$0xff]
  %v4786 = vld [vmem:[%s1 + $0xa8] sm:$0xff]
  %v4787 = vld [vmem:[%s1 + $0xb0] sm:$0xff]
  %v4788 = vld [vmem:[%s1 + $0xb8] sm:$0xff]
  %v4789 = vld [vmem:[%s1 + $0xc0] sm:$0xff]
  %v4790 = vld [vmem:[%s1 + $0xc8] sm:$0xff]
  %v4791 = vld [vmem:[%s1 + $0xd0] sm:$0xff]
  %v4792 = vld [vmem:[%s1 + $0xd8] sm:$0xff]
  %v4793 = vld [vmem:[%s1 + $0xe0] sm:$0xff]
  %v4794 = vld [vmem:[%s1 + $0xe8] sm:$0xff]
  %v4795 = vld [vmem:[%s1 + $0xf0] sm:$0xff]
  %v4796 = vld [vmem:[%s1 + $0xf8] sm:$0xff]
  %v4829 = vunpack.c.l.b16 %v4765
  %v4830 = vunpack.c.h.b16 %v4765
  %v4831 = vunpack.c.l.b16 %v4766
  %v4832 = vunpack.c.h.b16 %v4766
  %v4833 = vunpack.c.l.b16 %v4767
  %v4834 = vunpack.c.h.b16 %v4767
  %v4835 = vunpack.c.l.b16 %v4768
  %v4836 = vunpack.c.h.b16 %v4768
  %v4837 = vunpack.c.l.b16 %v4769
  %v4838 = vunpack.c.h.b16 %v4769
  %v4839 = vunpack.c.l.b16 %v4770
  %v4840 = vunpack.c.h.b16 %v4770
  %v4841 = vunpack.c.l.b16 %v4771
  %v4842 = vunpack.c.h.b16 %v4771
  %v4843 = vunpack.c.l.b16 %v4772
  %v4844 = vunpack.c.h.b16 %v4772
  %v4845 = vunpack.c.l.b16 %v4773
  %v4846 = vunpack.c.h.b16 %v4773
  %v4847 = vunpack.c.l.b16 %v4774
  %v4848 = vunpack.c.h.b16 %v4774
  %v4849 = vunpack.c.l.b16 %v4775
  %v4850 = vunpack.c.h.b16 %v4775
  %v4851 = vunpack.c.l.b16 %v4776
  %v4852 = vunpack.c.h.b16 %v4776
  %v4853 = vunpack.c.l.b16 %v4777
  %v4854 = vunpack.c.h.b16 %v4777
  %v4855 = vunpack.c.l.b16 %v4778
  %v4856 = vunpack.c.h.b16 %v4778
  %v4857 = vunpack.c.l.b16 %v4779
  %v4858 = vunpack.c.h.b16 %v4779
  %v4859 = vunpack.c.l.b16 %v4780
  %v4860 = vunpack.c.h.b16 %v4780
  %v4861 = vunpack.c.l.b16 %v4781
  %v4862 = vunpack.c.h.b16 %v4781
  %v4863 = vunpack.c.l.b16 %v4782
  %v4864 = vunpack.c.h.b16 %v4782
  %v4865 = vunpack.c.l.b16 %v4783
  %v4866 = vunpack.c.h.b16 %v4783
  %v4867 = vunpack.c.l.b16 %v4784
  %v4868 = vunpack.c.h.b16 %v4784
  %v4869 = vunpack.c.l.b16 %v4785
  %v4870 = vunpack.c.h.b16 %v4785
  %v4871 = vunpack.c.l.b16 %v4786
  %v4872 = vunpack.c.h.b16 %v4786
  %v4873 = vunpack.c.l.b16 %v4787
  %v4874 = vunpack.c.h.b16 %v4787
  %v4875 = vunpack.c.l.b16 %v4788
  %v4876 = vunpack.c.h.b16 %v4788
  %v4877 = vunpack.c.l.b16 %v4789
  %v4878 = vunpack.c.h.b16 %v4789
  %v4879 = vunpack.c.l.b16 %v4790
  %v4880 = vunpack.c.h.b16 %v4790
  %v4881 = vunpack.c.l.b16 %v4791
  %v4882 = vunpack.c.h.b16 %v4791
  %v4883 = vunpack.c.l.b16 %v4792
  %v4884 = vunpack.c.h.b16 %v4792
  %v4885 = vunpack.c.l.b16 %v4793
  %v4886 = vunpack.c.h.b16 %v4793
  %v4887 = vunpack.c.l.b16 %v4794
  %v4888 = vunpack.c.h.b16 %v4794
  %v4889 = vunpack.c.l.b16 %v4795
  %v4890 = vunpack.c.h.b16 %v4795
  %v4891 = vunpack.c.l.b16 %v4796
  %v4892 = vunpack.c.h.b16 %v4796
  %v4893 = vpack.c.b16 %v4833, %v4829
  %v4894 = vpack.c.b16 %v4834, %v4830
  %v4895 = vpack.c.b16 %v4835, %v4831
  %v4896 = vpack.c.b16 %v4836, %v4832
  %v4897 = vpack.c.b16 %v4841, %v4837
  %v4898 = vpack.c.b16 %v4842, %v4838
  %v4899 = vpack.c.b16 %v4843, %v4839
  %v4900 = vpack.c.b16 %v4844, %v4840
  %v4901 = vpack.c.b16 %v4849, %v4845
  %v4902 = vpack.c.b16 %v4850, %v4846
  %v4903 = vpack.c.b16 %v4851, %v4847
  %v4904 = vpack.c.b16 %v4852, %v4848
  %v4905 = vpack.c.b16 %v4857, %v4853
  %v4906 = vpack.c.b16 %v4858, %v4854
  %v4907 = vpack.c.b16 %v4859, %v4855
  %v4908 = vpack.c.b16 %v4860, %v4856
  %v4909 = vpack.c.b16 %v4865, %v4861
  %v4910 = vpack.c.b16 %v4866, %v4862
  %v4911 = vpack.c.b16 %v4867, %v4863
  %v4912 = vpack.c.b16 %v4868, %v4864
  %v4913 = vpack.c.b16 %v4873, %v4869
  %v4914 = vpack.c.b16 %v4874, %v4870
  %v4915 = vpack.c.b16 %v4875, %v4871
  %v4916 = vpack.c.b16 %v4876, %v4872
  %v4917 = vpack.c.b16 %v4881, %v4877
  %v4918 = vpack.c.b16 %v4882, %v4878
  %v4919 = vpack.c.b16 %v4883, %v4879
  %v4920 = vpack.c.b16 %v4884, %v4880
  %v4921 = vpack.c.b16 %v4889, %v4885
  %v4922 = vpack.c.b16 %v4890, %v4886
  %v4923 = vpack.c.b16 %v4891, %v4887
  %v4924 = vpack.c.b16 %v4892, %v4888
  %4957 = vmatprep.subr.bf16.mxu0 %v4894
  %4958 = vmatpush1.bf16.msra.mxu0 %v4893
  %4959 = vmatprep.subr.bf16.mxu0 %v4898
  %4960 = vmatpush1.bf16.msra.mxu0 %v4897
  %4961 = vmatprep.subr.bf16.mxu0 %v4902
  %4962 = vmatpush1.bf16.msra.mxu0 %v4901
  %4963 = vmatprep.subr.bf16.mxu0 %v4906
  %4964 = vmatpush1.bf16.msra.mxu0 %v4905
  %4965 = vmatprep.subr.bf16.mxu0 %v4910
  %4966 = vmatpush1.bf16.msra.mxu0 %v4909
  %4967 = vmatprep.subr.bf16.mxu0 %v4914
  %4968 = vmatpush1.bf16.msra.mxu0 %v4913
  %4969 = vmatprep.subr.bf16.mxu0 %v4918
  %4970 = vmatpush1.bf16.msra.mxu0 %v4917
  %4971 = vmatprep.subr.bf16.mxu0 %v4922
  %4972 = vmatpush1.bf16.msra.mxu0 %v4921
  %4973 = vmatprep.subr.bf16.mxu0 0
  %4974 = vmatpush1.bf16.msra.mxu0 0
  %4975 = vmatprep.subr.bf16.mxu0 0
  %4976 = vmatpush1.bf16.msra.mxu0 0
  %4977 = vmatprep.subr.bf16.mxu0 0
  %4978 = vmatpush1.bf16.msra.mxu0 0
  %4979 = vmatprep.subr.bf16.mxu0 0
  %4980 = vmatpush1.bf16.msra.mxu0 0
  %4981 = vmatprep.subr.bf16.mxu0 0
  %4982 = vmatpush1.bf16.msra.mxu0 0
  %4983 = vmatprep.subr.bf16.mxu0 0
  %4984 = vmatpush1.bf16.msra.mxu0 0
  %4985 = vmatprep.subr.bf16.mxu0 0
  %4986 = vmatpush1.bf16.msra.mxu0 0
  %4987 = vmatprep.subr.bf16.mxu0 0
  %4988 = vmatpush1.bf16.msra.mxu0 0
  %4989 = vmatprep.mubr.bf16.mxu0 0
  %4990 = vmatmul.mubr.bf16.gmra.mrb[0].mxu0 %v4749
  %v4991 = vpop.f32.mrb[0].mxu0
  %v4992 = vadd.f32 0.0, %v4991
  %v4993 = vpop.f32.mrb[0].mxu0
  %v4994 = vadd.f32 0.0, %v4993
  %v4995 = vpop.f32.mrb[0].mxu0
  %v4996 = vadd.f32 0.0, %v4995
  %v4997 = vpop.f32.mrb[0].mxu0
  %v4998 = vadd.f32 0.0, %v4997
  %4999 = vdwg.mxu0
  %5000 = vmatprep.subr.bf16.mxu0 %v4896
  %5001 = vmatpush1.bf16.msra.mxu0 %v4895
  %5002 = vmatprep.subr.bf16.mxu0 %v4900
  %5003 = vmatpush1.bf16.msra.mxu0 %v4899
  %5004 = vmatprep.subr.bf16.mxu0 %v4904
  %5005 = vmatpush1.bf16.msra.mxu0 %v4903
  %5006 = vmatprep.subr.bf16.mxu0 %v4908
  %5007 = vmatpush1.bf16.msra.mxu0 %v4907
  %5008 = vmatprep.subr.bf16.mxu0 %v4912
  %5009 = vmatpush1.bf16.msra.mxu0 %v4911
  %5010 = vmatprep.subr.bf16.mxu0 %v4916
  %5011 = vmatpush1.bf16.msra.mxu0 %v4915
  %5012 = vmatprep.subr.bf16.mxu0 %v4920
  %5013 = vmatpush1.bf16.msra.mxu0 %v4919
  %5014 = vmatprep.subr.bf16.mxu0 %v4924
  %5015 = vmatpush1.bf16.msra.mxu0 %v4923
  %5016 = vmatprep.subr.bf16.mxu0 0
  %5017 = vmatpush1.bf16.msra.mxu0 0
  %5018 = vmatprep.subr.bf16.mxu0 0
  %5019 = vmatpush1.bf16.msra.mxu0 0
  %5020 = vmatprep.subr.bf16.mxu0 0
  %5021 = vmatpush1.bf16.msra.mxu0 0
  %5022 = vmatprep.subr.bf16.mxu0 0
  %5023 = vmatpush1.bf16.msra.mxu0 0
  %5024 = vmatprep.subr.bf16.mxu0 0
  %5025 = vmatpush1.bf16.msra.mxu0 0
  %5026 = vmatprep.subr.bf16.mxu0 0
  %5027 = vmatpush1.bf16.msra.mxu0 0
  %5028 = vmatprep.subr.bf16.mxu0 0
  %5029 = vmatpush1.bf16.msra.mxu0 0
  %5030 = vmatprep.subr.bf16.mxu0 0
  %5031 = vmatpush1.bf16.msra.mxu0 0
  %5032 = vmatprep.mubr.bf16.mxu0 0
  %5033 = vmatmul.mubr.bf16.gmra.mrb[0].mxu0 %v4749
  %v5034 = vpop.f32.mrb[0].mxu0
  %v5035 = vadd.f32 0.0, %v5034
  %v5036 = vpop.f32.mrb[0].mxu0
  %v5037 = vadd.f32 0.0, %v5036
  %v5038 = vpop.f32.mrb[0].mxu0
  %v5039 = vadd.f32 0.0, %v5038
  %v5040 = vpop.f32.mrb[0].mxu0
  %v5041 = vadd.f32 0.0, %v5040
  %5042 = vdwg.mxu0
  %v5043 = vadd.f32 %v4757, %v4992
  %v5044 = vadd.f32 %v4758, %v4994
  %v5045 = vadd.f32 %v4759, %v5035
  %v5046 = vadd.f32 %v4760, %v5037
  %v5047 = vadd.f32 %v4761, %v4996
  %v5048 = vadd.f32 %v4762, %v4998
  %v5049 = vadd.f32 %v4763, %v5039
  %v5050 = vadd.f32 %v4764, %v5041
  %v5051 = vxor.u32 %v5043, 2147483648
  %v5052 = vxor.u32 %v5047, 2147483648
  %v5053 = vmul.f32 %v5051, 1.442695
  %v5054 = vpow.pop %v5053
  %v5055 = vmul.f32 %v5052, 1.442695
  %v5056 = vpow.pop %v5055
  %v5057 = vadd.f32 %v5054, 1.0
  %v5058 = vadd.f32 %v5056, 1.0
  %v5059 = vrcp.pop %v5057
  %v5060 = vmul.f32 1.0, %v5059
  %v5061 = vrcp.pop %v5058
  %v5062 = vmul.f32 1.0, %v5061
  %v5063 = vxor.u32 %v5044, 2147483648
  %v5064 = vxor.u32 %v5048, 2147483648
  %v5065 = vmul.f32 %v5063, 1.442695
  %v5066 = vpow.pop %v5065
  %v5067 = vmul.f32 %v5064, 1.442695
  %v5068 = vpow.pop %v5067
  %v5069 = vadd.f32 %v5066, 1.0
  %v5070 = vadd.f32 %v5068, 1.0
  %v5071 = vrcp.pop %v5069
  %v5072 = vmul.f32 1.0, %v5071
  %v5073 = vrcp.pop %v5070
  %v5074 = vmul.f32 1.0, %v5073
  %v5075 = vtanh.pop %v5045
  %v5076 = vtanh.pop %v5049
  %v5077 = vxor.u32 %v5046, 2147483648
  %v5078 = vxor.u32 %v5050, 2147483648
  %v5079 = vmul.f32 %v5077, 1.442695
  %v5080 = vpow.pop %v5079
  %v5081 = vmul.f32 %v5078, 1.442695
  %v5082 = vpow.pop %v5081
  %v5083 = vadd.f32 %v5080, 1.0
  %v5084 = vadd.f32 %v5082, 1.0
  %v5085 = vrcp.pop %v5083
  %v5086 = vmul.f32 1.0, %v5085
  %v5087 = vrcp.pop %v5084
  %v5088 = vmul.f32 1.0, %v5087
  %v5089 = vmul.f32 %v5072, %v4750
  %v5090 = vmul.f32 %v5074, %v4751
  %v5091 = vmul.f32 %v5060, %v5075
  %v5092 = vmul.f32 %v5062, %v5076
  %v5093 = vadd.f32 %v5089, %v5091
  %v5094 = vadd.f32 %v5090, %v5092
  %v5095 = vtanh.pop %v5093
  %v5096 = vtanh.pop %v5094
  %v5097 = vmul.f32 %v5086, %v5095
  %v5098 = vmul.f32 %v5088, %v5096
  %v5099 = vpack.c.bf16 %v5098, %v5097
  %5100 = vst [vmem:[#allocation3] sm:$0xff] %v5093
  %5101 = vst [vmem:[#allocation3 + $0x8] sm:$0xff] %v5094
  %5102 = vst [vmem:[#allocation2] sm:$0xff] %v5099
  %v5104 = vunpack.c.l.b16 %v5099
  %v5105 = vunpack.c.h.b16 %v5099
  %v5106 = vpack.c.b16 %v5104, %v5104
  %v5107 = vpack.c.b16 %v5105, %v5105
  %s5110 = scalar_lea.vmem %s2, 104
  %5111 = vst [vmem:[%s5110] sm:$0xf] %v5106
  %5112 = vst [vmem:[%s5110 + $0x4] sm:$0xf] %v5107
  %v5113 = vld [vmem:[#allocation2] sm:$0xff]
  %v5114 = vld [vmem:[#allocation3] sm:$0xff]
  %v5115 = vld [vmem:[#allocation3 + $0x8] sm:$0xff]
  %s5116 = scalar_lea.vmem %s0, 448
  %v5117 = vld [vmem:[%s5116] sm:$0xff]
  %v5118 = vld [vmem:[%s5116 + $0x8] sm:$0xff]
  %v5119 = vld [vmem:[%s5116 + $0x10] sm:$0xff]
  %v5120 = vld [vmem:[%s5116 + $0x18] sm:$0xff]
  %v5121 = vunpack.c.l.bf16 %v5117
  %v5122 = vunpack.c.h.bf16 %v5117
  %v5123 = vunpack.c.l.bf16 %v5118
  %v5124 = vunpack.c.h.bf16 %v5118
  %v5125 = vunpack.c.l.bf16 %v5119
  %v5126 = vunpack.c.h.bf16 %v5119
  %v5127 = vunpack.c.l.bf16 %v5120
  %v5128 = vunpack.c.h.bf16 %v5120
  %v5129 = vld [vmem:[%s1] sm:$0xff]
  %v5130 = vld [vmem:[%s1 + $0x8] sm:$0xff]
  %v5131 = vld [vmem:[%s1 + $0x10] sm:$0xff]
  %v5132 = vld [vmem:[%s1 + $0x18] sm:$0xff]
  %v5133 = vld [vmem:[%s1 + $0x20] sm:$0xff]
  %v5134 = vld [vmem:[%s1 + $0x28] sm:$0xff]
  %v5135 = vld [vmem:[%s1 + $0x30] sm:$0xff]
  %v5136 = vld [vmem:[%s1 + $0x38] sm:$0xff]
  %v5137 = vld [vmem:[%s1 + $0x40] sm:$0xff]
  %v5138 = vld [vmem:[%s1 + $0x48] sm:$0xff]
  %v5139 = vld [vmem:[%s1 + $0x50] sm:$0xff]
  %v5140 = vld [vmem:[%s1 + $0x58] sm:$0xff]
  %v5141 = vld [vmem:[%s1 + $0x60] sm:$0xff]
  %v5142 = vld [vmem:[%s1 + $0x68] sm:$0xff]
  %v5143 = vld [vmem:[%s1 + $0x70] sm:$0xff]
  %v5144 = vld [vmem:[%s1 + $0x78] sm:$0xff]
  %v5145 = vld [vmem:[%s1 + $0x80] sm:$0xff]
  %v5146 = vld [vmem:[%s1 + $0x88] sm:$0xff]
  %v5147 = vld [vmem:[%s1 + $0x90] sm:$0xff]
  %v5148 = vld [vmem:[%s1 + $0x98] sm:$0xff]
  %v5149 = vld [vmem:[%s1 + $0xa0] sm:$0xff]
  %v5150 = vld [vmem:[%s1 + $0xa8] sm:$0xff]
  %v5151 = vld [vmem:[%s1 + $0xb0] sm:$0xff]
  %v5152 = vld [vmem:[%s1 + $0xb8] sm:$0xff]
  %v5153 = vld [vmem:[%s1 + $0xc0] sm:$0xff]
  %v5154 = vld [vmem:[%s1 + $0xc8] sm:$0xff]
  %v5155 = vld [vmem:[%s1 + $0xd0] sm:$0xff]
  %v5156 = vld [vmem:[%s1 + $0xd8] sm:$0xff]
  %v5157 = vld [vmem:[%s1 + $0xe0] sm:$0xff]
  %v5158 = vld [vmem:[%s1 + $0xe8] sm:$0xff]
  %v5159 = vld [vmem:[%s1 + $0xf0] sm:$0xff]
  %v5160 = vld [vmem:[%s1 + $0xf8] sm:$0xff]
  %v5193 = vunpack.c.l.b16 %v5129
  %v5194 = vunpack.c.h.b16 %v5129
  %v5195 = vunpack.c.l.b16 %v5130
  %v5196 = vunpack.c.h.b16 %v5130
  %v5197 = vunpack.c.l.b16 %v5131
  %v5198 = vunpack.c.h.b16 %v5131
  %v5199 = vunpack.c.l.b16 %v5132
  %v5200 = vunpack.c.h.b16 %v5132
  %v5201 = vunpack.c.l.b16 %v5133
  %v5202 = vunpack.c.h.b16 %v5133
  %v5203 = vunpack.c.l.b16 %v5134
  %v5204 = vunpack.c.h.b16 %v5134
  %v5205 = vunpack.c.l.b16 %v5135
  %v5206 = vunpack.c.h.b16 %v5135
  %v5207 = vunpack.c.l.b16 %v5136
  %v5208 = vunpack.c.h.b16 %v5136
  %v5209 = vunpack.c.l.b16 %v5137
  %v5210 = vunpack.c.h.b16 %v5137
  %v5211 = vunpack.c.l.b16 %v5138
  %v5212 = vunpack.c.h.b16 %v5138
  %v5213 = vunpack.c.l.b16 %v5139
  %v5214 = vunpack.c.h.b16 %v5139
  %v5215 = vunpack.c.l.b16 %v5140
  %v5216 = vunpack.c.h.b16 %v5140
  %v5217 = vunpack.c.l.b16 %v5141
  %v5218 = vunpack.c.h.b16 %v5141
  %v5219 = vunpack.c.l.b16 %v5142
  %v5220 = vunpack.c.h.b16 %v5142
  %v5221 = vunpack.c.l.b16 %v5143
  %v5222 = vunpack.c.h.b16 %v5143
  %v5223 = vunpack.c.l.b16 %v5144
  %v5224 = vunpack.c.h.b16 %v5144
  %v5225 = vunpack.c.l.b16 %v5145
  %v5226 = vunpack.c.h.b16 %v5145
  %v5227 = vunpack.c.l.b16 %v5146
  %v5228 = vunpack.c.h.b16 %v5146
  %v5229 = vunpack.c.l.b16 %v5147
  %v5230 = vunpack.c.h.b16 %v5147
  %v5231 = vunpack.c.l.b16 %v5148
  %v5232 = vunpack.c.h.b16 %v5148
  %v5233 = vunpack.c.l.b16 %v5149
  %v5234 = vunpack.c.h.b16 %v5149
  %v5235 = vunpack.c.l.b16 %v5150
  %v5236 = vunpack.c.h.b16 %v5150
  %v5237 = vunpack.c.l.b16 %v5151
  %v5238 = vunpack.c.h.b16 %v5151
  %v5239 = vunpack.c.l.b16 %v5152
  %v5240 = vunpack.c.h.b16 %v5152
  %v5241 = vunpack.c.l.b16 %v5153
  %v5242 = vunpack.c.h.b16 %v5153
  %v5243 = vunpack.c.l.b16 %v5154
  %v5244 = vunpack.c.h.b16 %v5154
  %v5245 = vunpack.c.l.b16 %v5155
  %v5246 = vunpack.c.h.b16 %v5155
  %v5247 = vunpack.c.l.b16 %v5156
  %v5248 = vunpack.c.h.b16 %v5156
  %v5249 = vunpack.c.l.b16 %v5157
  %v5250 = vunpack.c.h.b16 %v5157
  %v5251 = vunpack.c.l.b16 %v5158
  %v5252 = vunpack.c.h.b16 %v5158
  %v5253 = vunpack.c.l.b16 %v5159
  %v5254 = vunpack.c.h.b16 %v5159
  %v5255 = vunpack.c.l.b16 %v5160
  %v5256 = vunpack.c.h.b16 %v5160
  %v5257 = vpack.c.b16 %v5197, %v5193
  %v5258 = vpack.c.b16 %v5198, %v5194
  %v5259 = vpack.c.b16 %v5199, %v5195
  %v5260 = vpack.c.b16 %v5200, %v5196
  %v5261 = vpack.c.b16 %v5205, %v5201
  %v5262 = vpack.c.b16 %v5206, %v5202
  %v5263 = vpack.c.b16 %v5207, %v5203
  %v5264 = vpack.c.b16 %v5208, %v5204
  %v5265 = vpack.c.b16 %v5213, %v5209
  %v5266 = vpack.c.b16 %v5214, %v5210
  %v5267 = vpack.c.b16 %v5215, %v5211
  %v5268 = vpack.c.b16 %v5216, %v5212
  %v5269 = vpack.c.b16 %v5221, %v5217
  %v5270 = vpack.c.b16 %v5222, %v5218
  %v5271 = vpack.c.b16 %v5223, %v5219
  %v5272 = vpack.c.b16 %v5224, %v5220
  %v5273 = vpack.c.b16 %v5229, %v5225
  %v5274 = vpack.c.b16 %v5230, %v5226
  %v5275 = vpack.c.b16 %v5231, %v5227
  %v5276 = vpack.c.b16 %v5232, %v5228
  %v5277 = vpack.c.b16 %v5237, %v5233
  %v5278 = vpack.c.b16 %v5238, %v5234
  %v5279 = vpack.c.b16 %v5239, %v5235
  %v5280 = vpack.c.b16 %v5240, %v5236
  %v5281 = vpack.c.b16 %v5245, %v5241
  %v5282 = vpack.c.b16 %v5246, %v5242
  %v5283 = vpack.c.b16 %v5247, %v5243
  %v5284 = vpack.c.b16 %v5248, %v5244
  %v5285 = vpack.c.b16 %v5253, %v5249
  %v5286 = vpack.c.b16 %v5254, %v5250
  %v5287 = vpack.c.b16 %v5255, %v5251
  %v5288 = vpack.c.b16 %v5256, %v5252
  %5321 = vmatprep.subr.bf16.mxu0 %v5258
  %5322 = vmatpush1.bf16.msra.mxu0 %v5257
  %5323 = vmatprep.subr.bf16.mxu0 %v5262
  %5324 = vmatpush1.bf16.msra.mxu0 %v5261
  %5325 = vmatprep.subr.bf16.mxu0 %v5266
  %5326 = vmatpush1.bf16.msra.mxu0 %v5265
  %5327 = vmatprep.subr.bf16.mxu0 %v5270
  %5328 = vmatpush1.bf16.msra.mxu0 %v5269
  %5329 = vmatprep.subr.bf16.mxu0 %v5274
  %5330 = vmatpush1.bf16.msra.mxu0 %v5273
  %5331 = vmatprep.subr.bf16.mxu0 %v5278
  %5332 = vmatpush1.bf16.msra.mxu0 %v5277
  %5333 = vmatprep.subr.bf16.mxu0 %v5282
  %5334 = vmatpush1.bf16.msra.mxu0 %v5281
  %5335 = vmatprep.subr.bf16.mxu0 %v5286
  %5336 = vmatpush1.bf16.msra.mxu0 %v5285
  %5337 = vmatprep.subr.bf16.mxu0 0
  %5338 = vmatpush1.bf16.msra.mxu0 0
  %5339 = vmatprep.subr.bf16.mxu0 0
  %5340 = vmatpush1.bf16.msra.mxu0 0
  %5341 = vmatprep.subr.bf16.mxu0 0
  %5342 = vmatpush1.bf16.msra.mxu0 0
  %5343 = vmatprep.subr.bf16.mxu0 0
  %5344 = vmatpush1.bf16.msra.mxu0 0
  %5345 = vmatprep.subr.bf16.mxu0 0
  %5346 = vmatpush1.bf16.msra.mxu0 0
  %5347 = vmatprep.subr.bf16.mxu0 0
  %5348 = vmatpush1.bf16.msra.mxu0 0
  %5349 = vmatprep.subr.bf16.mxu0 0
  %5350 = vmatpush1.bf16.msra.mxu0 0
  %5351 = vmatprep.subr.bf16.mxu0 0
  %5352 = vmatpush1.bf16.msra.mxu0 0
  %5353 = vmatprep.mubr.bf16.mxu0 0
  %5354 = vmatmul.mubr.bf16.gmra.mrb[0].mxu0 %v5113
  %v5355 = vpop.f32.mrb[0].mxu0
  %v5356 = vadd.f32 0.0, %v5355
  %v5357 = vpop.f32.mrb[0].mxu0
  %v5358 = vadd.f32 0.0, %v5357
  %v5359 = vpop.f32.mrb[0].mxu0
  %v5360 = vadd.f32 0.0, %v5359
  %v5361 = vpop.f32.mrb[0].mxu0
  %v5362 = vadd.f32 0.0, %v5361
  %5363 = vdwg.mxu0
  %5364 = vmatprep.subr.bf16.mxu0 %v5260
  %5365 = vmatpush1.bf16.msra.mxu0 %v5259
  %5366 = vmatprep.subr.bf16.mxu0 %v5264
  %5367 = vmatpush1.bf16.msra.mxu0 %v5263
  %5368 = vmatprep.subr.bf16.mxu0 %v5268
  %5369 = vmatpush1.bf16.msra.mxu0 %v5267
  %5370 = vmatprep.subr.bf16.mxu0 %v5272
  %5371 = vmatpush1.bf16.msra.mxu0 %v5271
  %5372 = vmatprep.subr.bf16.mxu0 %v5276
  %5373 = vmatpush1.bf16.msra.mxu0 %v5275
  %5374 = vmatprep.subr.bf16.mxu0 %v5280
  %5375 = vmatpush1.bf16.msra.mxu0 %v5279
  %5376 = vmatprep.subr.bf16.mxu0 %v5284
  %5377 = vmatpush1.bf16.msra.mxu0 %v5283
  %5378 = vmatprep.subr.bf16.mxu0 %v5288
  %5379 = vmatpush1.bf16.msra.mxu0 %v5287
  %5380 = vmatprep.subr.bf16.mxu0 0
  %5381 = vmatpush1.bf16.msra.mxu0 0
  %5382 = vmatprep.subr.bf16.mxu0 0
  %5383 = vmatpush1.bf16.msra.mxu0 0
  %5384 = vmatprep.subr.bf16.mxu0 0
  %5385 = vmatpush1.bf16.msra.mxu0 0
  %5386 = vmatprep.subr.bf16.mxu0 0
  %5387 = vmatpush1.bf16.msra.mxu0 0
  %5388 = vmatprep.subr.bf16.mxu0 0
  %5389 = vmatpush1.bf16.msra.mxu0 0
  %5390 = vmatprep.subr.bf16.mxu0 0
  %5391 = vmatpush1.bf16.msra.mxu0 0
  %5392 = vmatprep.subr.bf16.mxu0 0
  %5393 = vmatpush1.bf16.msra.mxu0 0
  %5394 = vmatprep.subr.bf16.mxu0 0
  %5395 = vmatpush1.bf16.msra.mxu0 0
  %5396 = vmatprep.mubr.bf16.mxu0 0
  %5397 = vmatmul.mubr.bf16.gmra.mrb[0].mxu0 %v5113
  %v5398 = vpop.f32.mrb[0].mxu0
  %v5399 = vadd.f32 0.0, %v5398
  %v5400 = vpop.f32.mrb[0].mxu0
  %v5401 = vadd.f32 0.0, %v5400
  %v5402 = vpop.f32.mrb[0].mxu0
  %v5403 = vadd.f32 0.0, %v5402
  %v5404 = vpop.f32.mrb[0].mxu0
  %v5405 = vadd.f32 0.0, %v5404
  %5406 = vdwg.mxu0
  %v5407 = vadd.f32 %v5121, %v5356
  %v5408 = vadd.f32 %v5122, %v5358
  %v5409 = vadd.f32 %v5123, %v5399
  %v5410 = vadd.f32 %v5124, %v5401
  %v5411 = vadd.f32 %v5125, %v5360
  %v5412 = vadd.f32 %v5126, %v5362
  %v5413 = vadd.f32 %v5127, %v5403
  %v5414 = vadd.f32 %v5128, %v5405
  %v5415 = vxor.u32 %v5407, 2147483648
  %v5416 = vxor.u32 %v5411, 2147483648
  %v5417 = vmul.f32 %v5415, 1.442695
  %v5418 = vpow.pop %v5417
  %v5419 = vmul.f32 %v5416, 1.442695
  %v5420 = vpow.pop %v5419
  %v5421 = vadd.f32 %v5418, 1.0
  %v5422 = vadd.f32 %v5420, 1.0
  %v5423 = vrcp.pop %v5421
  %v5424 = vmul.f32 1.0, %v5423
  %v5425 = vrcp.pop %v5422
  %v5426 = vmul.f32 1.0, %v5425
  %v5427 = vxor.u32 %v5408, 2147483648
  %v5428 = vxor.u32 %v5412, 2147483648
  %v5429 = vmul.f32 %v5427, 1.442695
  %v5430 = vpow.pop %v5429
  %v5431 = vmul.f32 %v5428, 1.442695
  %v5432 = vpow.pop %v5431
  %v5433 = vadd.f32 %v5430, 1.0
  %v5434 = vadd.f32 %v5432, 1.0
  %v5435 = vrcp.pop %v5433
  %v5436 = vmul.f32 1.0, %v5435
  %v5437 = vrcp.pop %v5434
  %v5438 = vmul.f32 1.0, %v5437
  %v5439 = vtanh.pop %v5409
  %v5440 = vtanh.pop %v5413
  %v5441 = vxor.u32 %v5410, 2147483648
  %v5442 = vxor.u32 %v5414, 2147483648
  %v5443 = vmul.f32 %v5441, 1.442695
  %v5444 = vpow.pop %v5443
  %v5445 = vmul.f32 %v5442, 1.442695
  %v5446 = vpow.pop %v5445
  %v5447 = vadd.f32 %v5444, 1.0
  %v5448 = vadd.f32 %v5446, 1.0
  %v5449 = vrcp.pop %v5447
  %v5450 = vmul.f32 1.0, %v5449
  %v5451 = vrcp.pop %v5448
  %v5452 = vmul.f32 1.0, %v5451
  %v5453 = vmul.f32 %v5436, %v5114
  %v5454 = vmul.f32 %v5438, %v5115
  %v5455 = vmul.f32 %v5424, %v5439
  %v5456 = vmul.f32 %v5426, %v5440
  %v5457 = vadd.f32 %v5453, %v5455
  %v5458 = vadd.f32 %v5454, %v5456
  %v5459 = vtanh.pop %v5457
  %v5460 = vtanh.pop %v5458
  %v5461 = vmul.f32 %v5450, %v5459
  %v5462 = vmul.f32 %v5452, %v5460
  %v5463 = vpack.c.bf16 %v5462, %v5461
  %5464 = vst [vmem:[#allocation3] sm:$0xff] %v5457
  %5465 = vst [vmem:[#allocation3 + $0x8] sm:$0xff] %v5458
  %5466 = vst [vmem:[#allocation2] sm:$0xff] %v5463
  %v5468 = vunpack.c.l.b16 %v5463
  %v5469 = vunpack.c.h.b16 %v5463
  %v5470 = vpack.c.b16 %v5468, %v5468
  %v5471 = vpack.c.b16 %v5469, %v5469
  %s5474 = scalar_lea.vmem %s2, 112
  %5475 = vst [vmem:[%s5474] sm:$0xf] %v5470
  %5476 = vst [vmem:[%s5474 + $0x4] sm:$0xf] %v5471
  %v5477 = vld [vmem:[#allocation2] sm:$0xff]
  %v5478 = vld [vmem:[#allocation3] sm:$0xff]
  %v5479 = vld [vmem:[#allocation3 + $0x8] sm:$0xff]
  %s5480 = scalar_lea.vmem %s0, 480
  %v5481 = vld [vmem:[%s5480] sm:$0xff]
  %v5482 = vld [vmem:[%s5480 + $0x8] sm:$0xff]
  %v5483 = vld [vmem:[%s5480 + $0x10] sm:$0xff]
  %v5484 = vld [vmem:[%s5480 + $0x18] sm:$0xff]
  %v5485 = vunpack.c.l.bf16 %v5481
  %v5486 = vunpack.c.h.bf16 %v5481
  %v5487 = vunpack.c.l.bf16 %v5482
  %v5488 = vunpack.c.h.bf16 %v5482
  %v5489 = vunpack.c.l.bf16 %v5483
  %v5490 = vunpack.c.h.bf16 %v5483
  %v5491 = vunpack.c.l.bf16 %v5484
  %v5492 = vunpack.c.h.bf16 %v5484
  %v5493 = vld [vmem:[%s1] sm:$0xff]
  %v5494 = vld [vmem:[%s1 + $0x8] sm:$0xff]
  %v5495 = vld [vmem:[%s1 + $0x10] sm:$0xff]
  %v5496 = vld [vmem:[%s1 + $0x18] sm:$0xff]
  %v5497 = vld [vmem:[%s1 + $0x20] sm:$0xff]
  %v5498 = vld [vmem:[%s1 + $0x28] sm:$0xff]
  %v5499 = vld [vmem:[%s1 + $0x30] sm:$0xff]
  %v5500 = vld [vmem:[%s1 + $0x38] sm:$0xff]
  %v5501 = vld [vmem:[%s1 + $0x40] sm:$0xff]
  %v5502 = vld [vmem:[%s1 + $0x48] sm:$0xff]
  %v5503 = vld [vmem:[%s1 + $0x50] sm:$0xff]
  %v5504 = vld [vmem:[%s1 + $0x58] sm:$0xff]
  %v5505 = vld [vmem:[%s1 + $0x60] sm:$0xff]
  %v5506 = vld [vmem:[%s1 + $0x68] sm:$0xff]
  %v5507 = vld [vmem:[%s1 + $0x70] sm:$0xff]
  %v5508 = vld [vmem:[%s1 + $0x78] sm:$0xff]
  %v5509 = vld [vmem:[%s1 + $0x80] sm:$0xff]
  %v5510 = vld [vmem:[%s1 + $0x88] sm:$0xff]
  %v5511 = vld [vmem:[%s1 + $0x90] sm:$0xff]
  %v5512 = vld [vmem:[%s1 + $0x98] sm:$0xff]
  %v5513 = vld [vmem:[%s1 + $0xa0] sm:$0xff]
  %v5514 = vld [vmem:[%s1 + $0xa8] sm:$0xff]
  %v5515 = vld [vmem:[%s1 + $0xb0] sm:$0xff]
  %v5516 = vld [vmem:[%s1 + $0xb8] sm:$0xff]
  %v5517 = vld [vmem:[%s1 + $0xc0] sm:$0xff]
  %v5518 = vld [vmem:[%s1 + $0xc8] sm:$0xff]
  %v5519 = vld [vmem:[%s1 + $0xd0] sm:$0xff]
  %v5520 = vld [vmem:[%s1 + $0xd8] sm:$0xff]
  %v5521 = vld [vmem:[%s1 + $0xe0] sm:$0xff]
  %v5522 = vld [vmem:[%s1 + $0xe8] sm:$0xff]
  %v5523 = vld [vmem:[%s1 + $0xf0] sm:$0xff]
  %v5524 = vld [vmem:[%s1 + $0xf8] sm:$0xff]
  %v5557 = vunpack.c.l.b16 %v5493
  %v5558 = vunpack.c.h.b16 %v5493
  %v5559 = vunpack.c.l.b16 %v5494
  %v5560 = vunpack.c.h.b16 %v5494
  %v5561 = vunpack.c.l.b16 %v5495
  %v5562 = vunpack.c.h.b16 %v5495
  %v5563 = vunpack.c.l.b16 %v5496
  %v5564 = vunpack.c.h.b16 %v5496
  %v5565 = vunpack.c.l.b16 %v5497
  %v5566 = vunpack.c.h.b16 %v5497
  %v5567 = vunpack.c.l.b16 %v5498
  %v5568 = vunpack.c.h.b16 %v5498
  %v5569 = vunpack.c.l.b16 %v5499
  %v5570 = vunpack.c.h.b16 %v5499
  %v5571 = vunpack.c.l.b16 %v5500
  %v5572 = vunpack.c.h.b16 %v5500
  %v5573 = vunpack.c.l.b16 %v5501
  %v5574 = vunpack.c.h.b16 %v5501
  %v5575 = vunpack.c.l.b16 %v5502
  %v5576 = vunpack.c.h.b16 %v5502
  %v5577 = vunpack.c.l.b16 %v5503
  %v5578 = vunpack.c.h.b16 %v5503
  %v5579 = vunpack.c.l.b16 %v5504
  %v5580 = vunpack.c.h.b16 %v5504
  %v5581 = vunpack.c.l.b16 %v5505
  %v5582 = vunpack.c.h.b16 %v5505
  %v5583 = vunpack.c.l.b16 %v5506
  %v5584 = vunpack.c.h.b16 %v5506
  %v5585 = vunpack.c.l.b16 %v5507
  %v5586 = vunpack.c.h.b16 %v5507
  %v5587 = vunpack.c.l.b16 %v5508
  %v5588 = vunpack.c.h.b16 %v5508
  %v5589 = vunpack.c.l.b16 %v5509
  %v5590 = vunpack.c.h.b16 %v5509
  %v5591 = vunpack.c.l.b16 %v5510
  %v5592 = vunpack.c.h.b16 %v5510
  %v5593 = vunpack.c.l.b16 %v5511
  %v5594 = vunpack.c.h.b16 %v5511
  %v5595 = vunpack.c.l.b16 %v5512
  %v5596 = vunpack.c.h.b16 %v5512
  %v5597 = vunpack.c.l.b16 %v5513
  %v5598 = vunpack.c.h.b16 %v5513
  %v5599 = vunpack.c.l.b16 %v5514
  %v5600 = vunpack.c.h.b16 %v5514
  %v5601 = vunpack.c.l.b16 %v5515
  %v5602 = vunpack.c.h.b16 %v5515
  %v5603 = vunpack.c.l.b16 %v5516
  %v5604 = vunpack.c.h.b16 %v5516
  %v5605 = vunpack.c.l.b16 %v5517
  %v5606 = vunpack.c.h.b16 %v5517
  %v5607 = vunpack.c.l.b16 %v5518
  %v5608 = vunpack.c.h.b16 %v5518
  %v5609 = vunpack.c.l.b16 %v5519
  %v5610 = vunpack.c.h.b16 %v5519
  %v5611 = vunpack.c.l.b16 %v5520
  %v5612 = vunpack.c.h.b16 %v5520
  %v5613 = vunpack.c.l.b16 %v5521
  %v5614 = vunpack.c.h.b16 %v5521
  %v5615 = vunpack.c.l.b16 %v5522
  %v5616 = vunpack.c.h.b16 %v5522
  %v5617 = vunpack.c.l.b16 %v5523
  %v5618 = vunpack.c.h.b16 %v5523
  %v5619 = vunpack.c.l.b16 %v5524
  %v5620 = vunpack.c.h.b16 %v5524
  %v5621 = vpack.c.b16 %v5561, %v5557
  %v5622 = vpack.c.b16 %v5562, %v5558
  %v5623 = vpack.c.b16 %v5563, %v5559
  %v5624 = vpack.c.b16 %v5564, %v5560
  %v5625 = vpack.c.b16 %v5569, %v5565
  %v5626 = vpack.c.b16 %v5570, %v5566
  %v5627 = vpack.c.b16 %v5571, %v5567
  %v5628 = vpack.c.b16 %v5572, %v5568
  %v5629 = vpack.c.b16 %v5577, %v5573
  %v5630 = vpack.c.b16 %v5578, %v5574
  %v5631 = vpack.c.b16 %v5579, %v5575
  %v5632 = vpack.c.b16 %v5580, %v5576
  %v5633 = vpack.c.b16 %v5585, %v5581
  %v5634 = vpack.c.b16 %v5586, %v5582
  %v5635 = vpack.c.b16 %v5587, %v5583
  %v5636 = vpack.c.b16 %v5588, %v5584
  %v5637 = vpack.c.b16 %v5593, %v5589
  %v5638 = vpack.c.b16 %v5594, %v5590
  %v5639 = vpack.c.b16 %v5595, %v5591
  %v5640 = vpack.c.b16 %v5596, %v5592
  %v5641 = vpack.c.b16 %v5601, %v5597
  %v5642 = vpack.c.b16 %v5602, %v5598
  %v5643 = vpack.c.b16 %v5603, %v5599
  %v5644 = vpack.c.b16 %v5604, %v5600
  %v5645 = vpack.c.b16 %v5609, %v5605
  %v5646 = vpack.c.b16 %v5610, %v5606
  %v5647 = vpack.c.b16 %v5611, %v5607
  %v5648 = vpack.c.b16 %v5612, %v5608
  %v5649 = vpack.c.b16 %v5617, %v5613
  %v5650 = vpack.c.b16 %v5618, %v5614
  %v5651 = vpack.c.b16 %v5619, %v5615
  %v5652 = vpack.c.b16 %v5620, %v5616
  %5685 = vmatprep.subr.bf16.mxu0 %v5622
  %5686 = vmatpush1.bf16.msra.mxu0 %v5621
  %5687 = vmatprep.subr.bf16.mxu0 %v5626
  %5688 = vmatpush1.bf16.msra.mxu0 %v5625
  %5689 = vmatprep.subr.bf16.mxu0 %v5630
  %5690 = vmatpush1.bf16.msra.mxu0 %v5629
  %5691 = vmatprep.subr.bf16.mxu0 %v5634
  %5692 = vmatpush1.bf16.msra.mxu0 %v5633
  %5693 = vmatprep.subr.bf16.mxu0 %v5638
  %5694 = vmatpush1.bf16.msra.mxu0 %v5637
  %5695 = vmatprep.subr.bf16.mxu0 %v5642
  %5696 = vmatpush1.bf16.msra.mxu0 %v5641
  %5697 = vmatprep.subr.bf16.mxu0 %v5646
  %5698 = vmatpush1.bf16.msra.mxu0 %v5645
  %5699 = vmatprep.subr.bf16.mxu0 %v5650
  %5700 = vmatpush1.bf16.msra.mxu0 %v5649
  %5701 = vmatprep.subr.bf16.mxu0 0
  %5702 = vmatpush1.bf16.msra.mxu0 0
  %5703 = vmatprep.subr.bf16.mxu0 0
  %5704 = vmatpush1.bf16.msra.mxu0 0
  %5705 = vmatprep.subr.bf16.mxu0 0
  %5706 = vmatpush1.bf16.msra.mxu0 0
  %5707 = vmatprep.subr.bf16.mxu0 0
  %5708 = vmatpush1.bf16.msra.mxu0 0
  %5709 = vmatprep.subr.bf16.mxu0 0
  %5710 = vmatpush1.bf16.msra.mxu0 0
  %5711 = vmatprep.subr.bf16.mxu0 0
  %5712 = vmatpush1.bf16.msra.mxu0 0
  %5713 = vmatprep.subr.bf16.mxu0 0
  %5714 = vmatpush1.bf16.msra.mxu0 0
  %5715 = vmatprep.subr.bf16.mxu0 0
  %5716 = vmatpush1.bf16.msra.mxu0 0
  %5717 = vmatprep.mubr.bf16.mxu0 0
  %5718 = vmatmul.mubr.bf16.gmra.mrb[0].mxu0 %v5477
  %v5719 = vpop.f32.mrb[0].mxu0
  %v5720 = vadd.f32 0.0, %v5719
  %v5721 = vpop.f32.mrb[0].mxu0
  %v5722 = vadd.f32 0.0, %v5721
  %v5723 = vpop.f32.mrb[0].mxu0
  %v5724 = vadd.f32 0.0, %v5723
  %v5725 = vpop.f32.mrb[0].mxu0
  %v5726 = vadd.f32 0.0, %v5725
  %5727 = vdwg.mxu0
  %5728 = vmatprep.subr.bf16.mxu0 %v5624
  %5729 = vmatpush1.bf16.msra.mxu0 %v5623
  %5730 = vmatprep.subr.bf16.mxu0 %v5628
  %5731 = vmatpush1.bf16.msra.mxu0 %v5627
  %5732 = vmatprep.subr.bf16.mxu0 %v5632
  %5733 = vmatpush1.bf16.msra.mxu0 %v5631
  %5734 = vmatprep.subr.bf16.mxu0 %v5636
  %5735 = vmatpush1.bf16.msra.mxu0 %v5635
  %5736 = vmatprep.subr.bf16.mxu0 %v5640
  %5737 = vmatpush1.bf16.msra.mxu0 %v5639
  %5738 = vmatprep.subr.bf16.mxu0 %v5644
  %5739 = vmatpush1.bf16.msra.mxu0 %v5643
  %5740 = vmatprep.subr.bf16.mxu0 %v5648
  %5741 = vmatpush1.bf16.msra.mxu0 %v5647
  %5742 = vmatprep.subr.bf16.mxu0 %v5652
  %5743 = vmatpush1.bf16.msra.mxu0 %v5651
  %5744 = vmatprep.subr.bf16.mxu0 0
  %5745 = vmatpush1.bf16.msra.mxu0 0
  %5746 = vmatprep.subr.bf16.mxu0 0
  %5747 = vmatpush1.bf16.msra.mxu0 0
  %5748 = vmatprep.subr.bf16.mxu0 0
  %5749 = vmatpush1.bf16.msra.mxu0 0
  %5750 = vmatprep.subr.bf16.mxu0 0
  %5751 = vmatpush1.bf16.msra.mxu0 0
  %5752 = vmatprep.subr.bf16.mxu0 0
  %5753 = vmatpush1.bf16.msra.mxu0 0
  %5754 = vmatprep.subr.bf16.mxu0 0
  %5755 = vmatpush1.bf16.msra.mxu0 0
  %5756 = vmatprep.subr.bf16.mxu0 0
  %5757 = vmatpush1.bf16.msra.mxu0 0
  %5758 = vmatprep.subr.bf16.mxu0 0
  %5759 = vmatpush1.bf16.msra.mxu0 0
  %5760 = vmatprep.mubr.bf16.mxu0 0
  %5761 = vmatmul.mubr.bf16.gmra.mrb[0].mxu0 %v5477
  %v5762 = vpop.f32.mrb[0].mxu0
  %v5763 = vadd.f32 0.0, %v5762
  %v5764 = vpop.f32.mrb[0].mxu0
  %v5765 = vadd.f32 0.0, %v5764
  %v5766 = vpop.f32.mrb[0].mxu0
  %v5767 = vadd.f32 0.0, %v5766
  %v5768 = vpop.f32.mrb[0].mxu0
  %v5769 = vadd.f32 0.0, %v5768
  %5770 = vdwg.mxu0
  %v5771 = vadd.f32 %v5485, %v5720
  %v5772 = vadd.f32 %v5486, %v5722
  %v5773 = vadd.f32 %v5487, %v5763
  %v5774 = vadd.f32 %v5488, %v5765
  %v5775 = vadd.f32 %v5489, %v5724
  %v5776 = vadd.f32 %v5490, %v5726
  %v5777 = vadd.f32 %v5491, %v5767
  %v5778 = vadd.f32 %v5492, %v5769
  %v5779 = vxor.u32 %v5771, 2147483648
  %v5780 = vxor.u32 %v5775, 2147483648
  %v5781 = vmul.f32 %v5779, 1.442695
  %v5782 = vpow.pop %v5781
  %v5783 = vmul.f32 %v5780, 1.442695
  %v5784 = vpow.pop %v5783
  %v5785 = vadd.f32 %v5782, 1.0
  %v5786 = vadd.f32 %v5784, 1.0
  %v5787 = vrcp.pop %v5785
  %v5788 = vmul.f32 1.0, %v5787
  %v5789 = vrcp.pop %v5786
  %v5790 = vmul.f32 1.0, %v5789
  %v5791 = vxor.u32 %v5772, 2147483648
  %v5792 = vxor.u32 %v5776, 2147483648
  %v5793 = vmul.f32 %v5791, 1.442695
  %v5794 = vpow.pop %v5793
  %v5795 = vmul.f32 %v5792, 1.442695
  %v5796 = vpow.pop %v5795
  %v5797 = vadd.f32 %v5794, 1.0
  %v5798 = vadd.f32 %v5796, 1.0
  %v5799 = vrcp.pop %v5797
  %v5800 = vmul.f32 1.0, %v5799
  %v5801 = vrcp.pop %v5798
  %v5802 = vmul.f32 1.0, %v5801
  %v5803 = vtanh.pop %v5773
  %v5804 = vtanh.pop %v5777
  %v5805 = vxor.u32 %v5774, 2147483648
  %v5806 = vxor.u32 %v5778, 2147483648
  %v5807 = vmul.f32 %v5805, 1.442695
  %v5808 = vpow.pop %v5807
  %v5809 = vmul.f32 %v5806, 1.442695
  %v5810 = vpow.pop %v5809
  %v5811 = vadd.f32 %v5808, 1.0
  %v5812 = vadd.f32 %v5810, 1.0
  %v5813 = vrcp.pop %v5811
  %v5814 = vmul.f32 1.0, %v5813
  %v5815 = vrcp.pop %v5812
  %v5816 = vmul.f32 1.0, %v5815
  %v5817 = vmul.f32 %v5800, %v5478
  %v5818 = vmul.f32 %v5802, %v5479
  %v5819 = vmul.f32 %v5788, %v5803
  %v5820 = vmul.f32 %v5790, %v5804
  %v5821 = vadd.f32 %v5817, %v5819
  %v5822 = vadd.f32 %v5818, %v5820
  %v5823 = vtanh.pop %v5821
  %v5824 = vtanh.pop %v5822
  %v5825 = vmul.f32 %v5814, %v5823
  %v5826 = vmul.f32 %v5816, %v5824
  %v5827 = vpack.c.bf16 %v5826, %v5825
  %5828 = vst [vmem:[#allocation3] sm:$0xff] %v5821
  %5829 = vst [vmem:[#allocation3 + $0x8] sm:$0xff] %v5822
  %5830 = vst [vmem:[#allocation2] sm:$0xff] %v5827
  %v5832 = vunpack.c.l.b16 %v5827
  %v5833 = vunpack.c.h.b16 %v5827
  %v5834 = vpack.c.b16 %v5832, %v5832
  %v5835 = vpack.c.b16 %v5833, %v5833
  %s5838 = scalar_lea.vmem %s2, 120
  %5839 = vst [vmem:[%s5838] sm:$0xf] %v5834
  %5840 = vst [vmem:[%s5838 + $0x4] sm:$0xf] %v5835
  // Predicated region
  $region14: #{lm_lstm_forward.4} parent=0 // pred_check
    _
  $region15: #{lm_lstm_forward.4} parent=0 // pred_check_branch
    %5842 = sbr.rel (0) target = $region17
  $region16: #{lm_lstm_forward.4} parent=0 // pred_region
    _
  $region17: #{lm_lstm_forward.4} parent=0 // pred_fallthru
    _
  // Predicated region
  $region18: #{lm_lstm_forward.4} parent=0 // pred_check
    _
  $region19: #{lm_lstm_forward.4} parent=0 // pred_check_branch
    %5844 = sbr.rel (0) target = $region21
  $region20: #{lm_lstm_forward.4} parent=0 // pred_region
    _
  $region21: #{lm_lstm_forward.4} parent=0 // pred_fallthru
    _

</llo_original>
